<compile_context>
chip_gen: v6e
topology: v6e:2x2x1
jax: 0.10.0
libtpu: 0.0.40
codegen_flags: <defaults>
</compile_context>

<pallas_src>
import math

import jax
import jax.numpy as jnp
from jax import lax
from jax.experimental import pallas as pl
from jax.experimental.pallas import tpu as pltpu

# Fixed architecture constants from ShallowEMGNet.__init__
C1 = 10                       # hidden conv channels
K1_W = 15                     # Conv2d(1, 10, kernel_size=(1, 15))
K2_H = 8                      # Conv2d(10, 10, kernel_size=(8, 8))
K2_W = 8
K_EFF = K1_W + K2_W - 1       # 22: width of the fused conv1*conv2 kernel
POOL_K = 75                   # AvgPool2d(kernel_size=(1, 75), stride=(1, 15))
POOL_S = 15
K3_W = 7                      # Conv2d(10, OUTPUT, kernel_size=(1, 7))
BN_EPS = 1e-5


def shallow_emg_kernel(x_ref, t_ref, beff_ref, pool_ref, w3t_ref, b3_ref,
                       out_ref):
    """One grid step: TB samples through the whole network (eval mode)."""
    # ---- conv1 + conv2 + BatchNorm: one 2D bf16 MXU matmul ------------------
    xb = x_ref[...].astype(jnp.bfloat16)                       # (TB, H*W)
    h2 = jnp.dot(xb, t_ref[...],
                 preferred_element_type=jnp.float32)           # (TB, C1*W2)
    h2 = h2 + beff_ref[...]                                    # (1, C1*W2) bcast

    # ---- square non-linearity ------------------------------------------------
    sq = h2 * h2

    # ---- AvgPool2d((1,75), stride 15): one 2D matmul vs 0/1 matrix -----------
    pooled = jnp.dot(sq.astype(jnp.bfloat16), pool_ref[...],
                     preferred_element_type=jnp.float32)       # (TB, C1*Wp)
    pooled = pooled * (1.0 / POOL_K)                           # exact f32 scale

    # ---- log(clamp(., 1e-6)); dropout = identity in eval mode ----------------
    logp = jnp.log(jnp.maximum(pooled, 1e-6))

    # ---- classifier conv (1,7): single small f32 contraction -----------------
    logits = jnp.dot(logp, w3t_ref[...],
                     preferred_element_type=jnp.float32)       # (TB, n_cls)
    logits = logits + b3_ref[...]

    # ---- LogSoftmax over classes ----------------------------------------------
    m = jnp.max(logits, axis=1, keepdims=True)
    lse = m + jnp.log(jnp.sum(jnp.exp(logits - m), axis=1, keepdims=True))

    # Lane-dense output: (n_cls, TB)
    out_ref[...] = jnp.transpose(logits - lse, (1, 0))


def _fold_params(params, W):
    """Host-side (eval-mode) folding: conv1*conv2*BN -> Toeplitz, pool, clf."""
    w1 = params["w1"].astype(jnp.float32)        # (C1, 1, 1, K1_W)
    b1 = params["b1"].astype(jnp.float32)        # (C1,)
    w2 = params["w2"].astype(jnp.float32)        # (C1, C1, K2_H, K2_W)
    b2 = params["b2"].astype(jnp.float32)        # (C1,)
    gamma = params["bn_gamma"].astype(jnp.float32)
    beta = params["bn_beta"].astype(jnp.float32)
    rm = params["bn_mean"].astype(jnp.float32)
    rv = params["bn_var"].astype(jnp.float32)
    w3 = params["w3"].astype(jnp.float32)        # (OUT, C1, 1, K3_W)
    b3 = params["b3"].astype(jnp.float32)        # (OUT,)

    W2 = W - K_EFF + 1
    Wp = (W2 - POOL_K) // POOL_S + 1

    # Effective conv: weff[o, kh, u] = sum_{i, kw+t=u} w2[o,i,kh,kw]*w1[i,t]
    w1s = w1[:, 0, 0, :]                                          # (C1, K1_W)
    uu = jnp.arange(K_EFF)[:, None]
    kk = jnp.arange(K2_W)[None, :]
    idx = uu - kk                                                 # (K_EFF, K2_W)
    valid = (idx >= 0) & (idx < K1_W)
    t1 = jnp.where(valid[None, :, :],
                   w1s[:, jnp.clip(idx, 0, K1_W - 1)], 0.0)       # (C1,K_EFF,K2_W)
    weff = jnp.einsum('oihk,iuk->ohu', w2, t1)                    # (C1, K2_H, K_EFF)
    beff = b2 + jnp.einsum('oihk,i->o', w2, b1)                   # (C1,)

    # Fold eval-mode BatchNorm: y = (h - mean) * gamma/sqrt(var+eps) + beta
    s = gamma / jnp.sqrt(rv + BN_EPS)
    weff = weff * s[:, None, None]
    beff = (beff - rm) * s + beta

    # Block-Toeplitz matrix: T[kh*W + wi, c*W2 + w] = weff[c, kh, wi - w]
    wi = jnp.arange(W)[:, None]
    wo = jnp.arange(W2)[None, :]
    tap = wi - wo                                                 # (W, W2)
    tvalid = (tap >= 0) & (tap < K_EFF)
    gathered = weff[:, :, jnp.clip(tap, 0, K_EFF - 1)]            # (C1,K2_H,W,W2)
    t4 = jnp.where(tvalid[None, None], gathered, 0.0)
    toep = jnp.transpose(t4, (1, 2, 0, 3)).reshape(K2_H * W, C1 * W2)
    toep = toep.astype(jnp.bfloat16)
    beff_row = jnp.repeat(beff, W2).reshape(1, C1 * W2)           # f32

    # Block-diagonal 0/1 pooling matrix (bf16-exact); 1/75 applied in-kernel.
    wv = jnp.arange(W2)[:, None]
    pv = jnp.arange(Wp)[None, :]
    win = ((wv >= POOL_S * pv) & (wv < POOL_S * pv + POOL_K)).astype(jnp.float32)
    eye = jnp.eye(C1, dtype=jnp.float32)
    pool_m = (eye[:, None, :, None] * win[None, :, None, :]).reshape(
        C1 * W2, C1 * Wp).astype(jnp.bfloat16)

    # Classifier (Wp == K3_W): logits = logp_flat @ w3t + b3
    w3t = w3[:, :, 0, :].reshape(-1, C1 * K3_W).T                 # (C1*Wp, OUT)
    b3_row = b3.reshape(1, -1)                                    # (1, OUT)
    return toep, beff_row, pool_m, w3t, b3_row


def shallow_emg_net_forward(x, params, *, tb=128):
    """x: (N, n_electrodes, T) float32 — same input as the torch module."""
    x = x.astype(jnp.float32)
    N, H, W = x.shape
    assert H == K2_H, "kernel specialized to n_electrodes == 8 (conv2 height)"
    W2 = W - K_EFF + 1
    assert W2 >= POOL_K, "time axis too short for the avg-pool window"
    Wp = (W2 - POOL_K) // POOL_S + 1
    assert Wp == K3_W, "kernel specialized to a single classifier column"

    toep, beff_row, pool_m, w3t, b3_row = _fold_params(params, W)
    n_cls = w3t.shape[1]
    hw, cw2, cwp = H * W, C1 * W2, C1 * Wp

    # Batch tile: big enough to amortize per-step cost, clamped for small N.
    n8 = ((N + 7) // 8) * 8
    tb = max(8, min(tb, n8))
    if n8 > tb:                      # multi-step grid -> lane-dense out needs 128x
        tb = max(128, (tb // 128) * 128)
    npad = (-N) % tb
    n_total = N + npad

    x2 = x.reshape(N, hw)            # (N, H*W): row-major, matches Toeplitz rows
    if npad:
        x2 = jnp.pad(x2, ((0, npad), (0, 0)))

    flops = 2 * n_total * (hw * cw2 + cw2 * cwp + cwp * n_cls)
    transcendentals = n_total * (cwp + 2 * n_cls)
    bytes_accessed = (n_total * hw * 4 + hw * cw2 * 2 + cw2 * cwp * 2
                      + cwp * n_cls * 4 + n_total * n_cls * 4)

    out_t = pl.pallas_call(
        shallow_emg_kernel,
        out_shape=jax.ShapeDtypeStruct((n_cls, n_total), jnp.float32),
        grid=(n_total // tb,),
        in_specs=[
            pl.BlockSpec((tb, hw), lambda n: (n, 0)),         # x (flattened)
            pl.BlockSpec((hw, cw2), lambda n: (0, 0)),        # Toeplitz conv W
            pl.BlockSpec((1, cw2), lambda n: (0, 0)),         # fused bias row
            pl.BlockSpec((cw2, cwp), lambda n: (0, 0)),       # pooling matrix
            pl.BlockSpec((cwp, n_cls), lambda n: (0, 0)),     # classifier W^T
            pl.BlockSpec((1, n_cls), lambda n: (0, 0)),       # classifier bias
        ],
        out_specs=pl.BlockSpec((n_cls, tb), lambda n: (0, n)),
        compiler_params=pltpu.CompilerParams(
            dimension_semantics=("parallel",)),
        cost_estimate=pl.CostEstimate(flops=flops,
                                      transcendentals=transcendentals,
                                      bytes_accessed=bytes_accessed),
    )(x2, toep, beff_row, pool_m, w3t, b3_row)

    # torch.squeeze on (N, OUTPUT, 1, 1) -> (N, OUTPUT) (assumes N>1, OUTPUT>1)
    return jnp.transpose(out_t[:, :N], (1, 0))


def reference_forward(x, params):
    """Pure-JAX reference matching the PyTorch forward (eval mode)."""
    dn = ("NCHW", "OIHW", "NCHW")
    hp = lax.Precision.HIGHEST
    h = x[:, None, :, :].astype(jnp.float32)
    h = lax.conv_general_dilated(h, params["w1"], (1, 1), "VALID",
                                 dimension_numbers=dn, precision=hp)
    h = h + params["b1"][None, :, None, None]
    h = lax.conv_general_dilated(h, params["w2"], (1, 1), "VALID",
                                 dimension_numbers=dn, precision=hp)
    h = h + params["b2"][None, :, None, None]
    inv = 1.0 / jnp.sqrt(params["bn_var"] + BN_EPS)
    h = (h - params["bn_mean"][None, :, None, None]) * inv[None, :, None, None]
    h = h * params["bn_gamma"][None, :, None, None] + params["bn_beta"][None, :, None, None]
    h = h * h
    wp = (h.shape[-1] - POOL_K) // POOL_S + 1
    h = jnp.stack([jnp.mean(h[..., POOL_S * j: POOL_S * j + POOL_K], axis=-1)
                   for j in range(wp)], axis=-1)
    h = jnp.log(jnp.clip(h, 1e-6))
    h = lax.conv_general_dilated(h, params["w3"], (1, 1), "VALID",
                                 dimension_numbers=dn, precision=hp)
    h = h + params["b3"][None, :, None, None]
    h = jax.nn.log_softmax(h, axis=1)
    return jnp.squeeze(h)


if __name__ == "__main__":
    OUTPUT = 4                       # number of classes
    N, H, W = 12, 8, 186             # batch, n_electrodes, time (min valid length)

    key = jax.random.PRNGKey(0)
    ks = jax.random.split(key, 12)

    def uni(k, shape, fan_in):
        b = 1.0 / math.sqrt(fan_in)
        return jax.random.uniform(k, shape, jnp.float32, -b, b)

    params = {
        "w1": uni(ks[0], (C1, 1, 1, K1_W), 1 * K1_W),
        "b1": uni(ks[1], (C1,), 1 * K1_W),
        "w2": uni(ks[2], (C1, C1, K2_H, K2_W), C1 * K2_H * K2_W),
        "b2": uni(ks[3], (C1,), C1 * K2_H * K2_W),
        "bn_gamma": 1.0 + 0.1 * jax.random.normal(ks[4], (C1,), jnp.float32),
        "bn_beta": 0.05 * jax.random.normal(ks[5], (C1,), jnp.float32),
        "bn_mean": 0.05 * jax.random.normal(ks[6], (C1,), jnp.float32),
        "bn_var": 1.0 + 0.1 * jax.random.uniform(ks[7], (C1,), jnp.float32),
        "w3": uni(ks[8], (OUTPUT, C1, 1, K3_W), C1 * K3_W),
        "b3": uni(ks[9], (OUTPUT,), C1 * K3_W),
    }
    x = jax.random.normal(ks[10], (N, H, W), jnp.float32)

    out = shallow_emg_net_forward(x, params)     # tb clamps to padded batch here
    out = jax.block_until_ready(out)

    ref = reference_forward(x, params)
    assert out.shape == (N, OUTPUT), out.shape
    assert bool(jnp.all(jnp.isfinite(out)))
    assert jnp.allclose(out, ref, atol=2e-2, rtol=2e-2), float(jnp.max(jnp.abs(out - ref)))
    print("KERNEL_OK")
</pallas_src>

<mosaic_0001>
module attributes {stable_mosaic.version = 11 : i64} {
  func.func @shallow_emg_kernel(%arg0: i32, %arg1: memref<16x1488xf32, #tpu.memory_space<vmem>>, %arg2: memref<1488x1650xbf16, #tpu.memory_space<vmem>>, %arg3: memref<1x1650xf32, #tpu.memory_space<vmem>>, %arg4: memref<1650x70xbf16, #tpu.memory_space<vmem>>, %arg5: memref<70x4xf32, #tpu.memory_space<vmem>>, %arg6: memref<1x4xf32, #tpu.memory_space<vmem>>, %arg7: memref<4x16xf32, #tpu.memory_space<vmem>>) attributes {dimension_semantics = [#tpu.dimension_semantics<parallel>], iteration_bounds = array<i64: 1>, scalar_prefetch = 0 : i64, scratch_operands = 0 : i64, tpu.core_type = #tpu.core_type<tc>, window_params = [{transform_indices = @transform_0, window_bounds = array<i64: 16, 1488>}, {pipeline_mode = #tpu.pipeline_mode<synchronous>, transform_indices = @transform_1, window_bounds = array<i64: 1488, 1650>}, {pipeline_mode = #tpu.pipeline_mode<synchronous>, transform_indices = @transform_2, window_bounds = array<i64: 1, 1650>}, {pipeline_mode = #tpu.pipeline_mode<synchronous>, transform_indices = @transform_3, window_bounds = array<i64: 1650, 70>}, {pipeline_mode = #tpu.pipeline_mode<synchronous>, transform_indices = @transform_4, window_bounds = array<i64: 70, 4>}, {pipeline_mode = #tpu.pipeline_mode<synchronous>, transform_indices = @transform_5, window_bounds = array<i64: 1, 4>}, {transform_indices = @transform_6, window_bounds = array<i64: 4, 16>}]} {
    %c0 = arith.constant 0 : index
    %c0_0 = arith.constant 0 : index
    %0 = vector.load %arg1[%c0, %c0_0] : memref<16x1488xf32, #tpu.memory_space<vmem>>, vector<16x1488xf32>
    %1 = arith.truncf %0 : vector<16x1488xf32> to vector<16x1488xbf16>
    %c0_1 = arith.constant 0 : index
    %c0_2 = arith.constant 0 : index
    %2 = vector.load %arg2[%c0_1, %c0_2] : memref<1488x1650xbf16, #tpu.memory_space<vmem>>, vector<1488x1650xbf16>
    %cst = arith.constant dense<0.000000e+00> : vector<16x1650xf32>
    %3 = tpu.matmul %1, %2, %cst {dimension_numbers = #tpu.dot_dimension_numbers<[1], [0], [0], [1], [0, 0, 1, 1], [], []>} : vector<16x1488xbf16>, vector<1488x1650xbf16>, vector<16x1650xf32> -> vector<16x1650xf32>
    %c0_3 = arith.constant 0 : index
    %c0_4 = arith.constant 0 : index
    %4 = vector.load %arg3[%c0_3, %c0_4] : memref<1x1650xf32, #tpu.memory_space<vmem>>, vector<1x1650xf32>
    %5 = vector.broadcast %4 : vector<1x1650xf32> to vector<16x1650xf32>
    %6 = arith.addf %3, %5 : vector<16x1650xf32>
    %7 = arith.mulf %6, %6 : vector<16x1650xf32>
    %8 = arith.truncf %7 : vector<16x1650xf32> to vector<16x1650xbf16>
    %c0_5 = arith.constant 0 : index
    %c0_6 = arith.constant 0 : index
    %9 = vector.load %arg4[%c0_5, %c0_6] : memref<1650x70xbf16, #tpu.memory_space<vmem>>, vector<1650x70xbf16>
    %cst_7 = arith.constant dense<0.000000e+00> : vector<16x70xf32>
    %10 = tpu.matmul %8, %9, %cst_7 {dimension_numbers = #tpu.dot_dimension_numbers<[1], [0], [0], [1], [0, 0, 1, 1], [], []>} : vector<16x1650xbf16>, vector<1650x70xbf16>, vector<16x70xf32> -> vector<16x70xf32>
    %cst_8 = arith.constant 0.0133333337 : f32
    %11 = vector.broadcast %cst_8 : f32 to vector<16x70xf32>
    %12 = arith.mulf %10, %11 : vector<16x70xf32>
    %cst_9 = arith.constant 9.99999997E-7 : f32
    %13 = vector.broadcast %cst_9 : f32 to vector<16x70xf32>
    %14 = arith.maximumf %12, %13 : vector<16x70xf32>
    %15 = math.log %14 : vector<16x70xf32>
    %c0_10 = arith.constant 0 : index
    %c0_11 = arith.constant 0 : index
    %16 = vector.load %arg5[%c0_10, %c0_11] : memref<70x4xf32, #tpu.memory_space<vmem>>, vector<70x4xf32>
    %cst_12 = arith.constant dense<0.000000e+00> : vector<16x4xf32>
    %17 = tpu.matmul %15, %16, %cst_12 {dimension_numbers = #tpu.dot_dimension_numbers<[1], [0], [0], [1], [0, 0, 1, 1], [], []>} : vector<16x70xf32>, vector<70x4xf32>, vector<16x4xf32> -> vector<16x4xf32>
    %c0_13 = arith.constant 0 : index
    %c0_14 = arith.constant 0 : index
    %18 = vector.load %arg6[%c0_13, %c0_14] : memref<1x4xf32, #tpu.memory_space<vmem>>, vector<1x4xf32>
    %19 = vector.broadcast %18 : vector<1x4xf32> to vector<16x4xf32>
    %20 = arith.addf %17, %19 : vector<16x4xf32>
    %cst_15 = arith.constant dense<0xFF800000> : vector<16xf32>
    %21 = vector.multi_reduction <maximumf>, %20, %cst_15 [1] : vector<16x4xf32> to vector<16xf32>
    %22 = vector.shape_cast %21 : vector<16xf32> to vector<16x1xf32>
    %23 = vector.broadcast %22 : vector<16x1xf32> to vector<16x4xf32>
    %24 = arith.subf %20, %23 : vector<16x4xf32>
    %25 = math.exp %24 : vector<16x4xf32>
    %cst_16 = arith.constant dense<0.000000e+00> : vector<16xf32>
    %26 = vector.multi_reduction <add>, %25, %cst_16 [1] : vector<16x4xf32> to vector<16xf32>
    %27 = vector.shape_cast %26 : vector<16xf32> to vector<16x1xf32>
    %28 = math.log %27 : vector<16x1xf32>
    %29 = arith.addf %22, %28 : vector<16x1xf32>
    %30 = vector.broadcast %29 : vector<16x1xf32> to vector<16x4xf32>
    %31 = arith.subf %20, %30 : vector<16x4xf32>
    %32 = tpu.transpose %31, [1, 0] : vector<16x4xf32> -> vector<4x16xf32>
    %c0_17 = arith.constant 0 : index
    %c0_18 = arith.constant 0 : index
    %33 = vector.load %arg7[%c0_17, %c0_18] : memref<4x16xf32, #tpu.memory_space<vmem>>, vector<4x16xf32>
    tpu.vector_store %arg7[%c0_17, %c0_18], %32 {strides = array<i32>} : memref<4x16xf32, #tpu.memory_space<vmem>>, vector<4x16xf32>,
    return
  }
  func.func @transform_0(%arg0: i32) -> (i32, i32) {
    %c0_i32 = arith.constant 0 : i32
    %c0_i32_0 = arith.constant 0 : i32
    return %arg0, %c0_i32 : i32, i32
  }
  func.func @transform_1(%arg0: i32) -> (i32, i32) {
    %c0_i32 = arith.constant 0 : i32
    %c0_i32_0 = arith.constant 0 : i32
    %c0_i32_1 = arith.constant 0 : i32
    return %c0_i32, %c0_i32_0 : i32, i32
  }
  func.func @transform_2(%arg0: i32) -> (i32, i32) {
    %c0_i32 = arith.constant 0 : i32
    %c0_i32_0 = arith.constant 0 : i32
    %c0_i32_1 = arith.constant 0 : i32
    return %c0_i32, %c0_i32_0 : i32, i32
  }
  func.func @transform_3(%arg0: i32) -> (i32, i32) {
    %c0_i32 = arith.constant 0 : i32
    %c0_i32_0 = arith.constant 0 : i32
    %c0_i32_1 = arith.constant 0 : i32
    return %c0_i32, %c0_i32_0 : i32, i32
  }
  func.func @transform_4(%arg0: i32) -> (i32, i32) {
    %c0_i32 = arith.constant 0 : i32
    %c0_i32_0 = arith.constant 0 : i32
    %c0_i32_1 = arith.constant 0 : i32
    return %c0_i32, %c0_i32_0 : i32, i32
  }
  func.func @transform_5(%arg0: i32) -> (i32, i32) {
    %c0_i32 = arith.constant 0 : i32
    %c0_i32_0 = arith.constant 0 : i32
    %c0_i32_1 = arith.constant 0 : i32
    return %c0_i32, %c0_i32_0 : i32, i32
  }
  func.func @transform_6(%arg0: i32) -> (i32, i32) {
    %c0_i32 = arith.constant 0 : i32
    %c0_i32_0 = arith.constant 0 : i32
    return %c0_i32, %arg0 : i32, i32
  }
}

</mosaic_0001>

<llo_original>
// kernel: tpu_custom_call.1
$region0: #{tpu_custom_call.1}
  #allocation0 [shape = 'u32[]', space=smem, size = 0x4, offset = 0x4, fixed_abs, tag = 'smem constant byte address 0x4 - core index']
  #allocation1 [shape = 'u32[144,128]{1,0:T(1,128)}', space=vmem, size = 0x12000, scoped, tag = 'internal scratch']
  %s0 = inlined_call_operand.hbm [shape: f32[16,1488], index: 0, kind: input, shape index: {}]
  %s1 = inlined_call_operand.hbm [shape: bf16[1488,1650], index: 1, kind: input, shape index: {}]
  %s2 = inlined_call_operand.hbm [shape: f32[1,1650], index: 2, kind: input, shape index: {}]
  %s3 = inlined_call_operand.vmem [shape: bf16[1650,70], index: 3, kind: input, shape index: {}]
  %s4 = inlined_call_operand.vmem [shape: f32[70,4], index: 4, kind: input, shape index: {}]
  %s5 = inlined_call_operand.hbm [shape: f32[1,4], index: 5, kind: input, shape index: {}]
  %s6 = inlined_call_operand.hbm [shape: f32[4,16], index: 6, kind: output, shape index: {}]
  %s7 = sld [smem:[#allocation0]]
  $region50: #{tpu_custom_call.1} parent=0
    _
  %s9 = ssub.s32 1, %s7
  %s10 = scalar_select 0, %s9, %s7
  $region1: #{tpu_custom_call.1} parent=0
    #allocation2 [shape = 'u8[98304]{0}', space=vmem, size = 0x18000, scoped, tag = 'input window, operand 0, single buffered']
    #allocation3 [shape = 's32[1]{0}', space=sflag, size = 0x4, scoped, tag = 'scoped memory for tpu_custom_call.1']
    #allocation4 [shape = 's32[1]{0}', space=sflag, size = 0x4, scoped, tag = 'scoped memory for tpu_custom_call.1']
    #allocation5 [shape = 'u8[4952064]{0}', space=vmem, size = 0x4b9000, scoped, tag = 'input window, operand 1, single buffered']
    #allocation6 [shape = 's32[1]{0}', space=sflag, size = 0x4, scoped, tag = 'scoped memory for tpu_custom_call.1']
    #allocation7 [shape = 'u8[6656]{0}', space=vmem, size = 0x1c00, scoped, tag = 'input window, operand 2, single buffered']
    #allocation8 [shape = 'u8[512]{0}', space=vmem, size = 0x400, scoped, tag = 'input window, operand 5, single buffered']
    #allocation9 [shape = 's32[1]{0}', space=sflag, size = 0x4, scoped, tag = 'scoped memory for tpu_custom_call.1']
    #allocation10 [shape = 'u8[2048]{0}', space=vmem, size = 0x800, scoped, tag = 'output window, operand 0, single buffered']
    %11 = vsyncpa [#allocation3], 0
    %12 = vsyncpa [#allocation6], 0
    %13 = vsyncpa [#allocation9], 0
    %14 = vsyncpa [#allocation4], 0
    // Predicated region
    $region2: #{tpu_custom_call.1} parent=1 // pred_check
      _
    $region3: #{tpu_custom_call.1} parent=1 // pred_check_branch
      %16 = sbr.rel (0) target = $region5
    $region4: #{tpu_custom_call.1} parent=1 // pred_region
      %s18 = ssub.s32 3072, 3072
      %19 = vsyncadd [#allocation3], %s18
      %s20 = sshll.u32 [#allocation2], 4
      %s21 = int_to_ptr.vmem [resolvable:$true] %s20
      %26 = dma.hbm_to_vmem [thread:$0]  %s0, 3072, %s21, [#allocation3], 1536, 1536, 96
    $region5: #{tpu_custom_call.1} parent=1 // pred_fallthru
      _
    // Predicated region
    $region6: #{tpu_custom_call.1} parent=1 // pred_check
      _
    $region7: #{tpu_custom_call.1} parent=1 // pred_check_branch
      %28 = sbr.rel (0) target = $region9
    $region8: #{tpu_custom_call.1} parent=1 // pred_region
      %s30 = ssub.s32 154752, 154752
      %31 = vsyncadd [#allocation6], %s30
      %s32 = sshll.u32 [#allocation5], 4
      %s33 = int_to_ptr.vmem [resolvable:$true] %s32
      %38 = dma.hbm_to_vmem [thread:$0]  %s1, 154752, %s33, [#allocation6], 832, 832, 52
    $region9: #{tpu_custom_call.1} parent=1 // pred_fallthru
      _
    // Predicated region
    $region10: #{tpu_custom_call.1} parent=1 // pred_check
      _
    $region11: #{tpu_custom_call.1} parent=1 // pred_check_branch
      %40 = sbr.rel (0) target = $region13
    $region12: #{tpu_custom_call.1} parent=1 // pred_region
      %s42 = ssub.s32 208, 208
      %43 = vsyncadd [#allocation6], %s42
      %s45 = sshll.u32 [#allocation7], 4
      %s46 = int_to_ptr.vmem [resolvable:$true] %s45
      %48 = dma.hbm_to_vmem [thread:$0]  %s2, 208, %s46, [#allocation6]
    $region13: #{tpu_custom_call.1} parent=1 // pred_fallthru
      _
    // Predicated region
    $region14: #{tpu_custom_call.1} parent=1 // pred_check
      _
    $region15: #{tpu_custom_call.1} parent=1 // pred_check_branch
      %50 = sbr.rel (0) target = $region17
    $region16: #{tpu_custom_call.1} parent=1 // pred_region
      _
    $region17: #{tpu_custom_call.1} parent=1 // pred_fallthru
      _
    // Predicated region
    $region18: #{tpu_custom_call.1} parent=1 // pred_check
      _
    $region19: #{tpu_custom_call.1} parent=1 // pred_check_branch
      %52 = sbr.rel (0) target = $region21
    $region20: #{tpu_custom_call.1} parent=1 // pred_region
      _
    $region21: #{tpu_custom_call.1} parent=1 // pred_fallthru
      _
    // Predicated region
    $region22: #{tpu_custom_call.1} parent=1 // pred_check
      _
    $region23: #{tpu_custom_call.1} parent=1 // pred_check_branch
      %54 = sbr.rel (0) target = $region25
    $region24: #{tpu_custom_call.1} parent=1 // pred_region
      %s56 = ssub.s32 16, 16
      %57 = vsyncadd [#allocation9], %s56
      %s59 = sshll.u32 [#allocation8], 4
      %s60 = int_to_ptr.vmem [resolvable:$true] %s59
      %62 = dma.hbm_to_vmem [thread:$0]  %s5, 16, %s60, [#allocation9]
    $region25: #{tpu_custom_call.1} parent=1 // pred_fallthru
      _
    // Predicated region
    $region26: #{tpu_custom_call.1} parent=1 // pred_check
      _
    $region27: #{tpu_custom_call.1} parent=1 // pred_check_branch
      %64 = sbr.rel (0) target = $region29
    $region28: #{tpu_custom_call.1} parent=1 // pred_region
      %65 = dma.done [#allocation3], 3072
    $region29: #{tpu_custom_call.1} parent=1 // pred_fallthru
      _
    // Predicated region
    $region30: #{tpu_custom_call.1} parent=1 // pred_check
      _
    $region31: #{tpu_custom_call.1} parent=1 // pred_check_branch
      %67 = sbr.rel (0) target = $region33
    $region32: #{tpu_custom_call.1} parent=1 // pred_region
      %68 = dma.done [#allocation6], 154752
    $region33: #{tpu_custom_call.1} parent=1 // pred_fallthru
      _
    // Predicated region
    $region34: #{tpu_custom_call.1} parent=1 // pred_check
      _
    $region35: #{tpu_custom_call.1} parent=1 // pred_check_branch
      %70 = sbr.rel (0) target = $region37
    $region36: #{tpu_custom_call.1} parent=1 // pred_region
      %71 = dma.done [#allocation6], 208
    $region37: #{tpu_custom_call.1} parent=1 // pred_fallthru
      _
    // Predicated region
    $region38: #{tpu_custom_call.1} parent=1 // pred_check
      _
    $region39: #{tpu_custom_call.1} parent=1 // pred_check_branch
      %73 = sbr.rel (0) target = $region41
    $region40: #{tpu_custom_call.1} parent=1 // pred_region
      %74 = dma.done [#allocation9], 16
    $region41: #{tpu_custom_call.1} parent=1 // pred_fallthru
      _
    %v76 = vld [vmem:[#allocation2] sm:$0xff]
    %v77 = vld [vmem:[#allocation2 + $0x8] sm:$0xff]
    %v78 = vld [vmem:[#allocation2 + $0x10] sm:$0xff]
    %v79 = vld [vmem:[#allocation2 + $0x18] sm:$0xff]
    %v80 = vld [vmem:[#allocation2 + $0x20] sm:$0xff]
    %v81 = vld [vmem:[#allocation2 + $0x28] sm:$0xff]
    %v82 = vld [vmem:[#allocation2 + $0x30] sm:$0xff]
    %v83 = vld [vmem:[#allocation2 + $0x38] sm:$0xff]
    %v84 = vld [vmem:[#allocation2 + $0x40] sm:$0xff]
    %v85 = vld [vmem:[#allocation2 + $0x48] sm:$0xff]
    %v86 = vld [vmem:[#allocation2 + $0x50] sm:$0xff]
    %v87 = vld [vmem:[#allocation2 + $0x58] sm:$0xff]
    %v88 = vld [vmem:[#allocation2 + $0x60] sm:$0xff]
    %v89 = vld [vmem:[#allocation2 + $0x68] sm:$0xff]
    %v90 = vld [vmem:[#allocation2 + $0x70] sm:$0xff]
    %v91 = vld [vmem:[#allocation2 + $0x78] sm:$0xff]
    %v92 = vld [vmem:[#allocation2 + $0x80] sm:$0xff]
    %v93 = vld [vmem:[#allocation2 + $0x88] sm:$0xff]
    %v94 = vld [vmem:[#allocation2 + $0x90] sm:$0xff]
    %v95 = vld [vmem:[#allocation2 + $0x98] sm:$0xff]
    %v96 = vld [vmem:[#allocation2 + $0xa0] sm:$0xff]
    %v97 = vld [vmem:[#allocation2 + $0xa8] sm:$0xff]
    %v98 = vld [vmem:[#allocation2 + $0xb0] sm:$0xff]
    %v99 = vld [vmem:[#allocation2 + $0xb8] sm:$0xff]
    %v100 = vpack.c.bf16 %v88, %v76
    %v101 = vpack.c.bf16 %v89, %v77
    %v102 = vpack.c.bf16 %v90, %v78
    %v103 = vpack.c.bf16 %v91, %v79
    %v104 = vpack.c.bf16 %v92, %v80
    %v105 = vpack.c.bf16 %v93, %v81
    %v106 = vpack.c.bf16 %v94, %v82
    %v107 = vpack.c.bf16 %v95, %v83
    %v108 = vpack.c.bf16 %v96, %v84
    %v109 = vpack.c.bf16 %v97, %v85
    %v110 = vpack.c.bf16 %v98, %v86
    %v111 = vpack.c.bf16 %v99, %v87
    %v112 = vld [vmem:[#allocation5] sm:$0xff]
    %v113 = vld [vmem:[#allocation5 + $0x8] sm:$0xff]
    %v114 = vld [vmem:[#allocation5 + $0x10] sm:$0xff]
    %v115 = vld [vmem:[#allocation5 + $0x18] sm:$0xff]
    %v116 = vld [vmem:[#allocation5 + $0x20] sm:$0xff]
    %v117 = vld [vmem:[#allocation5 + $0x28] sm:$0xff]
    %v118 = vld [vmem:[#allocation5 + $0x30] sm:$0xf]
    %v119 = vld [vmem:[#allocation5 + $0x34] sm:$0xff]
    %v120 = vld [vmem:[#allocation5 + $0x3c] sm:$0xff]
    %v121 = vld [vmem:[#allocation5 + $0x44] sm:$0xff]
    %v122 = vld [vmem:[#allocation5 + $0x4c] sm:$0xff]
    %v123 = vld [vmem:[#allocation5 + $0x54] sm:$0xff]
    %v124 = vld [vmem:[#allocation5 + $0x5c] sm:$0xff]
    %v125 = vld [vmem:[#allocation5 + $0x64] sm:$0xf]
    %v126 = vld [vmem:[#allocation5 + $0x68] sm:$0xff]
    %v127 = vld [vmem:[#allocation5 + $0x70] sm:$0xff]
    %v128 = vld [vmem:[#allocation5 + $0x78] sm:$0xff]
    %v129 = vld [vmem:[#allocation5 + $0x80] sm:$0xff]
    %v130 = vld [vmem:[#allocation5 + $0x88] sm:$0xff]
    %v131 = vld [vmem:[#allocation5 + $0x90] sm:$0xff]
    %v132 = vld [vmem:[#allocation5 + $0x98] sm:$0xf]
    %v133 = vld [vmem:[#allocation5 + $0x9c] sm:$0xff]
    %v134 = vld [vmem:[#allocation5 + $0xa4] sm:$0xff]
    %v135 = vld [vmem:[#allocation5 + $0xac] sm:$0xff]
    %v136 = vld [vmem:[#allocation5 + $0xb4] sm:$0xff]
    %v137 = vld [vmem:[#allocation5 + $0xbc] sm:$0xff]
    %v138 = vld [vmem:[#allocation5 + $0xc4] sm:$0xff]
    %v139 = vld [vmem:[#allocation5 + $0xcc] sm:$0xf]
    %v140 = vld [vmem:[#allocation5 + $0xd0] sm:$0xff]
    %v141 = vld [vmem:[#allocation5 + $0xd8] sm:$0xff]
    %v142 = vld [vmem:[#allocation5 + $0xe0] sm:$0xff]
    %v143 = vld [vmem:[#allocation5 + $0xe8] sm:$0xff]
    %v144 = vld [vmem:[#allocation5 + $0xf0] sm:$0xff]
    %v145 = vld [vmem:[#allocation5 + $0xf8] sm:$0xff]
    %v146 = vld [vmem:[#allocation5 + $0x100] sm:$0xf]
    %v147 = vld [vmem:[#allocation5 + $0x104] sm:$0xff]
    %v148 = vld [vmem:[#allocation5 + $0x10c] sm:$0xff]
    %v149 = vld [vmem:[#allocation5 + $0x114] sm:$0xff]
    %v150 = vld [vmem:[#allocation5 + $0x11c] sm:$0xff]
    %v151 = vld [vmem:[#allocation5 + $0x124] sm:$0xff]
    %v152 = vld [vmem:[#allocation5 + $0x12c] sm:$0xff]
    %v153 = vld [vmem:[#allocation5 + $0x134] sm:$0xf]
    %v154 = vld [vmem:[#allocation5 + $0x138] sm:$0xff]
    %v155 = vld [vmem:[#allocation5 + $0x140] sm:$0xff]
    %v156 = vld [vmem:[#allocation5 + $0x148] sm:$0xff]
    %v157 = vld [vmem:[#allocation5 + $0x150] sm:$0xff]
    %v158 = vld [vmem:[#allocation5 + $0x158] sm:$0xff]
    %v159 = vld [vmem:[#allocation5 + $0x160] sm:$0xff]
    %v160 = vld [vmem:[#allocation5 + $0x168] sm:$0xf]
    %v161 = vld [vmem:[#allocation5 + $0x16c] sm:$0xff]
    %v162 = vld [vmem:[#allocation5 + $0x174] sm:$0xff]
    %v163 = vld [vmem:[#allocation5 + $0x17c] sm:$0xff]
    %v164 = vld [vmem:[#allocation5 + $0x184] sm:$0xff]
    %v165 = vld [vmem:[#allocation5 + $0x18c] sm:$0xff]
    %v166 = vld [vmem:[#allocation5 + $0x194] sm:$0xff]
    %v167 = vld [vmem:[#allocation5 + $0x19c] sm:$0xf]
    %v168 = vld [vmem:[#allocation5 + $0x1a0] sm:$0xff]
    %v169 = vld [vmem:[#allocation5 + $0x1a8] sm:$0xff]
    %v170 = vld [vmem:[#allocation5 + $0x1b0] sm:$0xff]
    %v171 = vld [vmem:[#allocation5 + $0x1b8] sm:$0xff]
    %v172 = vld [vmem:[#allocation5 + $0x1c0] sm:$0xff]
    %v173 = vld [vmem:[#allocation5 + $0x1c8] sm:$0xff]
    %v174 = vld [vmem:[#allocation5 + $0x1d0] sm:$0xf]
    %v175 = vld [vmem:[#allocation5 + $0x1d4] sm:$0xff]
    %v176 = vld [vmem:[#allocation5 + $0x1dc] sm:$0xff]
    %v177 = vld [vmem:[#allocation5 + $0x1e4] sm:$0xff]
    %v178 = vld [vmem:[#allocation5 + $0x1ec] sm:$0xff]
    %v179 = vld [vmem:[#allocation5 + $0x1f4] sm:$0xff]
    %v180 = vld [vmem:[#allocation5 + $0x1fc] sm:$0xff]
    %v181 = vld [vmem:[#allocation5 + $0x204] sm:$0xf]
    %v182 = vld [vmem:[#allocation5 + $0x208] sm:$0xff]
    %v183 = vld [vmem:[#allocation5 + $0x210] sm:$0xff]
    %v184 = vld [vmem:[#allocation5 + $0x218] sm:$0xff]
    %v185 = vld [vmem:[#allocation5 + $0x220] sm:$0xff]
    %v186 = vld [vmem:[#allocation5 + $0x228] sm:$0xff]
    %v187 = vld [vmem:[#allocation5 + $0x230] sm:$0xff]
    %v188 = vld [vmem:[#allocation5 + $0x238] sm:$0xf]
    %v189 = vld [vmem:[#allocation5 + $0x23c] sm:$0xff]
    %v190 = vld [vmem:[#allocation5 + $0x244] sm:$0xff]
    %v191 = vld [vmem:[#allocation5 + $0x24c] sm:$0xff]
    %v192 = vld [vmem:[#allocation5 + $0x254] sm:$0xff]
    %v193 = vld [vmem:[#allocation5 + $0x25c] sm:$0xff]
    %v194 = vld [vmem:[#allocation5 + $0x264] sm:$0xff]
    %v195 = vld [vmem:[#allocation5 + $0x26c] sm:$0xf]
    %v196 = vld [vmem:[#allocation5 + $0x270] sm:$0xff]
    %v197 = vld [vmem:[#allocation5 + $0x278] sm:$0xff]
    %v198 = vld [vmem:[#allocation5 + $0x280] sm:$0xff]
    %v199 = vld [vmem:[#allocation5 + $0x288] sm:$0xff]
    %v200 = vld [vmem:[#allocation5 + $0x290] sm:$0xff]
    %v201 = vld [vmem:[#allocation5 + $0x298] sm:$0xff]
    %v202 = vld [vmem:[#allocation5 + $0x2a0] sm:$0xf]
    %v203 = vld [vmem:[#allocation5 + $0x2a4] sm:$0xff]
    %v204 = vld [vmem:[#allocation5 + $0x2ac] sm:$0xff]
    %v205 = vld [vmem:[#allocation5 + $0x2b4] sm:$0xff]
    %v206 = vld [vmem:[#allocation5 + $0x2bc] sm:$0xff]
    %v207 = vld [vmem:[#allocation5 + $0x2c4] sm:$0xff]
    %v208 = vld [vmem:[#allocation5 + $0x2cc] sm:$0xff]
    %v209 = vld [vmem:[#allocation5 + $0x2d4] sm:$0xf]
    %v210 = vld [vmem:[#allocation5 + $0x2d8] sm:$0xff]
    %v211 = vld [vmem:[#allocation5 + $0x2e0] sm:$0xff]
    %v212 = vld [vmem:[#allocation5 + $0x2e8] sm:$0xff]
    %v213 = vld [vmem:[#allocation5 + $0x2f0] sm:$0xff]
    %v214 = vld [vmem:[#allocation5 + $0x2f8] sm:$0xff]
    %v215 = vld [vmem:[#allocation5 + $0x300] sm:$0xff]
    %v216 = vld [vmem:[#allocation5 + $0x308] sm:$0xf]
    %v217 = vld [vmem:[#allocation5 + $0x30c] sm:$0xff]
    %v218 = vld [vmem:[#allocation5 + $0x314] sm:$0xff]
    %v219 = vld [vmem:[#allocation5 + $0x31c] sm:$0xff]
    %v220 = vld [vmem:[#allocation5 + $0x324] sm:$0xff]
    %v221 = vld [vmem:[#allocation5 + $0x32c] sm:$0xff]
    %v222 = vld [vmem:[#allocation5 + $0x334] sm:$0xff]
    %v223 = vld [vmem:[#allocation5 + $0x33c] sm:$0xf]
    %v224 = vld [vmem:[#allocation5 + $0x340] sm:$0xff]
    %v225 = vld [vmem:[#allocation5 + $0x348] sm:$0xff]
    %v226 = vld [vmem:[#allocation5 + $0x350] sm:$0xff]
    %v227 = vld [vmem:[#allocation5 + $0x358] sm:$0xff]
    %v228 = vld [vmem:[#allocation5 + $0x360] sm:$0xff]
    %v229 = vld [vmem:[#allocation5 + $0x368] sm:$0xff]
    %v230 = vld [vmem:[#allocation5 + $0x370] sm:$0xf]
    %v231 = vld [vmem:[#allocation5 + $0x374] sm:$0xff]
    %v232 = vld [vmem:[#allocation5 + $0x37c] sm:$0xff]
    %v233 = vld [vmem:[#allocation5 + $0x384] sm:$0xff]
    %v234 = vld [vmem:[#allocation5 + $0x38c] sm:$0xff]
    %v235 = vld [vmem:[#allocation5 + $0x394] sm:$0xff]
    %v236 = vld [vmem:[#allocation5 + $0x39c] sm:$0xff]
    %v237 = vld [vmem:[#allocation5 + $0x3a4] sm:$0xf]
    %v238 = vld [vmem:[#allocation5 + $0x3a8] sm:$0xff]
    %v239 = vld [vmem:[#allocation5 + $0x3b0] sm:$0xff]
    %v240 = vld [vmem:[#allocation5 + $0x3b8] sm:$0xff]
    %v241 = vld [vmem:[#allocation5 + $0x3c0] sm:$0xff]
    %v242 = vld [vmem:[#allocation5 + $0x3c8] sm:$0xff]
    %v243 = vld [vmem:[#allocation5 + $0x3d0] sm:$0xff]
    %v244 = vld [vmem:[#allocation5 + $0x3d8] sm:$0xf]
    %v245 = vld [vmem:[#allocation5 + $0x3dc] sm:$0xff]
    %v246 = vld [vmem:[#allocation5 + $0x3e4] sm:$0xff]
    %v247 = vld [vmem:[#allocation5 + $0x3ec] sm:$0xff]
    %v248 = vld [vmem:[#allocation5 + $0x3f4] sm:$0xff]
    %v249 = vld [vmem:[#allocation5 + $0x3fc] sm:$0xff]
    %v250 = vld [vmem:[#allocation5 + $0x404] sm:$0xff]
    %v251 = vld [vmem:[#allocation5 + $0x40c] sm:$0xf]
    %v252 = vld [vmem:[#allocation5 + $0x410] sm:$0xff]
    %v253 = vld [vmem:[#allocation5 + $0x418] sm:$0xff]
    %v254 = vld [vmem:[#allocation5 + $0x420] sm:$0xff]
    %v255 = vld [vmem:[#allocation5 + $0x428] sm:$0xff]
    %v256 = vld [vmem:[#allocation5 + $0x430] sm:$0xff]
    %v257 = vld [vmem:[#allocation5 + $0x438] sm:$0xff]
    %v258 = vld [vmem:[#allocation5 + $0x440] sm:$0xf]
    %v259 = vld [vmem:[#allocation5 + $0x444] sm:$0xff]
    %v260 = vld [vmem:[#allocation5 + $0x44c] sm:$0xff]
    %v261 = vld [vmem:[#allocation5 + $0x454] sm:$0xff]
    %v262 = vld [vmem:[#allocation5 + $0x45c] sm:$0xff]
    %v263 = vld [vmem:[#allocation5 + $0x464] sm:$0xff]
    %v264 = vld [vmem:[#allocation5 + $0x46c] sm:$0xff]
    %v265 = vld [vmem:[#allocation5 + $0x474] sm:$0xf]
    %v266 = vld [vmem:[#allocation5 + $0x478] sm:$0xff]
    %v267 = vld [vmem:[#allocation5 + $0x480] sm:$0xff]
    %v268 = vld [vmem:[#allocation5 + $0x488] sm:$0xff]
    %v269 = vld [vmem:[#allocation5 + $0x490] sm:$0xff]
    %v270 = vld [vmem:[#allocation5 + $0x498] sm:$0xff]
    %v271 = vld [vmem:[#allocation5 + $0x4a0] sm:$0xff]
    %v272 = vld [vmem:[#allocation5 + $0x4a8] sm:$0xf]
    %v273 = vld [vmem:[#allocation5 + $0x4ac] sm:$0xff]
    %v274 = vld [vmem:[#allocation5 + $0x4b4] sm:$0xff]
    %v275 = vld [vmem:[#allocation5 + $0x4bc] sm:$0xff]
    %v276 = vld [vmem:[#allocation5 + $0x4c4] sm:$0xff]
    %v277 = vld [vmem:[#allocation5 + $0x4cc] sm:$0xff]
    %v278 = vld [vmem:[#allocation5 + $0x4d4] sm:$0xff]
    %v279 = vld [vmem:[#allocation5 + $0x4dc] sm:$0xf]
    %v280 = vld [vmem:[#allocation5 + $0x4e0] sm:$0xff]
    %v281 = vld [vmem:[#allocation5 + $0x4e8] sm:$0xff]
    %v282 = vld [vmem:[#allocation5 + $0x4f0] sm:$0xff]
    %v283 = vld [vmem:[#allocation5 + $0x4f8] sm:$0xff]
    %v284 = vld [vmem:[#allocation5 + $0x500] sm:$0xff]
    %v285 = vld [vmem:[#allocation5 + $0x508] sm:$0xff]
    %v286 = vld [vmem:[#allocation5 + $0x510] sm:$0xf]
    %v287 = vld [vmem:[#allocation5 + $0x514] sm:$0xff]
    %v288 = vld [vmem:[#allocation5 + $0x51c] sm:$0xff]
    %v289 = vld [vmem:[#allocation5 + $0x524] sm:$0xff]
    %v290 = vld [vmem:[#allocation5 + $0x52c] sm:$0xff]
    %v291 = vld [vmem:[#allocation5 + $0x534] sm:$0xff]
    %v292 = vld [vmem:[#allocation5 + $0x53c] sm:$0xff]
    %v293 = vld [vmem:[#allocation5 + $0x544] sm:$0xf]
    %v294 = vld [vmem:[#allocation5 + $0x548] sm:$0xff]
    %v295 = vld [vmem:[#allocation5 + $0x550] sm:$0xff]
    %v296 = vld [vmem:[#allocation5 + $0x558] sm:$0xff]
    %v297 = vld [vmem:[#allocation5 + $0x560] sm:$0xff]
    %v298 = vld [vmem:[#allocation5 + $0x568] sm:$0xff]
    %v299 = vld [vmem:[#allocation5 + $0x570] sm:$0xff]
    %v300 = vld [vmem:[#allocation5 + $0x578] sm:$0xf]
    %v301 = vld [vmem:[#allocation5 + $0x57c] sm:$0xff]
    %v302 = vld [vmem:[#allocation5 + $0x584] sm:$0xff]
    %v303 = vld [vmem:[#allocation5 + $0x58c] sm:$0xff]
    %v304 = vld [vmem:[#allocation5 + $0x594] sm:$0xff]
    %v305 = vld [vmem:[#allocation5 + $0x59c] sm:$0xff]
    %v306 = vld [vmem:[#allocation5 + $0x5a4] sm:$0xff]
    %v307 = vld [vmem:[#allocation5 + $0x5ac] sm:$0xf]
    %v308 = vld [vmem:[#allocation5 + $0x5b0] sm:$0xff]
    %v309 = vld [vmem:[#allocation5 + $0x5b8] sm:$0xff]
    %v310 = vld [vmem:[#allocation5 + $0x5c0] sm:$0xff]
    %v311 = vld [vmem:[#allocation5 + $0x5c8] sm:$0xff]
    %v312 = vld [vmem:[#allocation5 + $0x5d0] sm:$0xff]
    %v313 = vld [vmem:[#allocation5 + $0x5d8] sm:$0xff]
    %v314 = vld [vmem:[#allocation5 + $0x5e0] sm:$0xf]
    %v315 = vld [vmem:[#allocation5 + $0x5e4] sm:$0xff]
    %v316 = vld [vmem:[#allocation5 + $0x5ec] sm:$0xff]
    %v317 = vld [vmem:[#allocation5 + $0x5f4] sm:$0xff]
    %v318 = vld [vmem:[#allocation5 + $0x5fc] sm:$0xff]
    %v319 = vld [vmem:[#allocation5 + $0x604] sm:$0xff]
    %v320 = vld [vmem:[#allocation5 + $0x60c] sm:$0xff]
    %v321 = vld [vmem:[#allocation5 + $0x614] sm:$0xf]
    %v322 = vld [vmem:[#allocation5 + $0x618] sm:$0xff]
    %v323 = vld [vmem:[#allocation5 + $0x620] sm:$0xff]
    %v324 = vld [vmem:[#allocation5 + $0x628] sm:$0xff]
    %v325 = vld [vmem:[#allocation5 + $0x630] sm:$0xff]
    %v326 = vld [vmem:[#allocation5 + $0x638] sm:$0xff]
    %v327 = vld [vmem:[#allocation5 + $0x640] sm:$0xff]
    %v328 = vld [vmem:[#allocation5 + $0x648] sm:$0xf]
    %v329 = vld [vmem:[#allocation5 + $0x64c] sm:$0xff]
    %v330 = vld [vmem:[#allocation5 + $0x654] sm:$0xff]
    %v331 = vld [vmem:[#allocation5 + $0x65c] sm:$0xff]
    %v332 = vld [vmem:[#allocation5 + $0x664] sm:$0xff]
    %v333 = vld [vmem:[#allocation5 + $0x66c] sm:$0xff]
    %v334 = vld [vmem:[#allocation5 + $0x674] sm:$0xff]
    %v335 = vld [vmem:[#allocation5 + $0x67c] sm:$0xf]
    %v336 = vld [vmem:[#allocation5 + $0x680] sm:$0xff]
    %v337 = vld [vmem:[#allocation5 + $0x688] sm:$0xff]
    %v338 = vld [vmem:[#allocation5 + $0x690] sm:$0xff]
    %v339 = vld [vmem:[#allocation5 + $0x698] sm:$0xff]
    %v340 = vld [vmem:[#allocation5 + $0x6a0] sm:$0xff]
    %v341 = vld [vmem:[#allocation5 + $0x6a8] sm:$0xff]
    %v342 = vld [vmem:[#allocation5 + $0x6b0] sm:$0xf]
    %v343 = vld [vmem:[#allocation5 + $0x6b4] sm:$0xff]
    %v344 = vld [vmem:[#allocation5 + $0x6bc] sm:$0xff]
    %v345 = vld [vmem:[#allocation5 + $0x6c4] sm:$0xff]
    %v346 = vld [vmem:[#allocation5 + $0x6cc] sm:$0xff]
    %v347 = vld [vmem:[#allocation5 + $0x6d4] sm:$0xff]
    %v348 = vld [vmem:[#allocation5 + $0x6dc] sm:$0xff]
    %v349 = vld [vmem:[#allocation5 + $0x6e4] sm:$0xf]
    %v350 = vld [vmem:[#allocation5 + $0x6e8] sm:$0xff]
    %v351 = vld [vmem:[#allocation5 + $0x6f0] sm:$0xff]
    %v352 = vld [vmem:[#allocation5 + $0x6f8] sm:$0xff]
    %v353 = vld [vmem:[#allocation5 + $0x700] sm:$0xff]
    %v354 = vld [vmem:[#allocation5 + $0x708] sm:$0xff]
    %v355 = vld [vmem:[#allocation5 + $0x710] sm:$0xff]
    %v356 = vld [vmem:[#allocation5 + $0x718] sm:$0xf]
    %v357 = vld [vmem:[#allocation5 + $0x71c] sm:$0xff]
    %v358 = vld [vmem:[#allocation5 + $0x724] sm:$0xff]
    %v359 = vld [vmem:[#allocation5 + $0x72c] sm:$0xff]
    %v360 = vld [vmem:[#allocation5 + $0x734] sm:$0xff]
    %v361 = vld [vmem:[#allocation5 + $0x73c] sm:$0xff]
    %v362 = vld [vmem:[#allocation5 + $0x744] sm:$0xff]
    %v363 = vld [vmem:[#allocation5 + $0x74c] sm:$0xf]
    %v364 = vld [vmem:[#allocation5 + $0x750] sm:$0xff]
    %v365 = vld [vmem:[#allocation5 + $0x758] sm:$0xff]
    %v366 = vld [vmem:[#allocation5 + $0x760] sm:$0xff]
    %v367 = vld [vmem:[#allocation5 + $0x768] sm:$0xff]
    %v368 = vld [vmem:[#allocation5 + $0x770] sm:$0xff]
    %v369 = vld [vmem:[#allocation5 + $0x778] sm:$0xff]
    %v370 = vld [vmem:[#allocation5 + $0x780] sm:$0xf]
    %v371 = vld [vmem:[#allocation5 + $0x784] sm:$0xff]
    %v372 = vld [vmem:[#allocation5 + $0x78c] sm:$0xff]
    %v373 = vld [vmem:[#allocation5 + $0x794] sm:$0xff]
    %v374 = vld [vmem:[#allocation5 + $0x79c] sm:$0xff]
    %v375 = vld [vmem:[#allocation5 + $0x7a4] sm:$0xff]
    %v376 = vld [vmem:[#allocation5 + $0x7ac] sm:$0xff]
    %v377 = vld [vmem:[#allocation5 + $0x7b4] sm:$0xf]
    %v378 = vld [vmem:[#allocation5 + $0x7b8] sm:$0xff]
    %v379 = vld [vmem:[#allocation5 + $0x7c0] sm:$0xff]
    %v380 = vld [vmem:[#allocation5 + $0x7c8] sm:$0xff]
    %v381 = vld [vmem:[#allocation5 + $0x7d0] sm:$0xff]
    %v382 = vld [vmem:[#allocation5 + $0x7d8] sm:$0xff]
    %v383 = vld [vmem:[#allocation5 + $0x7e0] sm:$0xff]
    %v384 = vld [vmem:[#allocation5 + $0x7e8] sm:$0xf]
    %v385 = vld [vmem:[#allocation5 + $0x7ec] sm:$0xff]
    %v386 = vld [vmem:[#allocation5 + $0x7f4] sm:$0xff]
    %v387 = vld [vmem:[#allocation5 + $0x7fc] sm:$0xff]
    %v388 = vld [vmem:[#allocation5 + $0x804] sm:$0xff]
    %v389 = vld [vmem:[#allocation5 + $0x80c] sm:$0xff]
    %v390 = vld [vmem:[#allocation5 + $0x814] sm:$0xff]
    %v391 = vld [vmem:[#allocation5 + $0x81c] sm:$0xf]
    %v392 = vld [vmem:[#allocation5 + $0x820] sm:$0xff]
    %v393 = vld [vmem:[#allocation5 + $0x828] sm:$0xff]
    %v394 = vld [vmem:[#allocation5 + $0x830] sm:$0xff]
    %v395 = vld [vmem:[#allocation5 + $0x838] sm:$0xff]
    %v396 = vld [vmem:[#allocation5 + $0x840] sm:$0xff]
    %v397 = vld [vmem:[#allocation5 + $0x848] sm:$0xff]
    %v398 = vld [vmem:[#allocation5 + $0x850] sm:$0xf]
    %v399 = vld [vmem:[#allocation5 + $0x854] sm:$0xff]
    %v400 = vld [vmem:[#allocation5 + $0x85c] sm:$0xff]
    %v401 = vld [vmem:[#allocation5 + $0x864] sm:$0xff]
    %v402 = vld [vmem:[#allocation5 + $0x86c] sm:$0xff]
    %v403 = vld [vmem:[#allocation5 + $0x874] sm:$0xff]
    %v404 = vld [vmem:[#allocation5 + $0x87c] sm:$0xff]
    %v405 = vld [vmem:[#allocation5 + $0x884] sm:$0xf]
    %v406 = vld [vmem:[#allocation5 + $0x888] sm:$0xff]
    %v407 = vld [vmem:[#allocation5 + $0x890] sm:$0xff]
    %v408 = vld [vmem:[#allocation5 + $0x898] sm:$0xff]
    %v409 = vld [vmem:[#allocation5 + $0x8a0] sm:$0xff]
    %v410 = vld [vmem:[#allocation5 + $0x8a8] sm:$0xff]
    %v411 = vld [vmem:[#allocation5 + $0x8b0] sm:$0xff]
    %v412 = vld [vmem:[#allocation5 + $0x8b8] sm:$0xf]
    %v413 = vld [vmem:[#allocation5 + $0x8bc] sm:$0xff]
    %v414 = vld [vmem:[#allocation5 + $0x8c4] sm:$0xff]
    %v415 = vld [vmem:[#allocation5 + $0x8cc] sm:$0xff]
    %v416 = vld [vmem:[#allocation5 + $0x8d4] sm:$0xff]
    %v417 = vld [vmem:[#allocation5 + $0x8dc] sm:$0xff]
    %v418 = vld [vmem:[#allocation5 + $0x8e4] sm:$0xff]
    %v419 = vld [vmem:[#allocation5 + $0x8ec] sm:$0xf]
    %v420 = vld [vmem:[#allocation5 + $0x8f0] sm:$0xff]
    %v421 = vld [vmem:[#allocation5 + $0x8f8] sm:$0xff]
    %v422 = vld [vmem:[#allocation5 + $0x900] sm:$0xff]
    %v423 = vld [vmem:[#allocation5 + $0x908] sm:$0xff]
    %v424 = vld [vmem:[#allocation5 + $0x910] sm:$0xff]
    %v425 = vld [vmem:[#allocation5 + $0x918] sm:$0xff]
    %v426 = vld [vmem:[#allocation5 + $0x920] sm:$0xf]
    %v427 = vld [vmem:[#allocation5 + $0x924] sm:$0xff]
    %v428 = vld [vmem:[#allocation5 + $0x92c] sm:$0xff]
    %v429 = vld [vmem:[#allocation5 + $0x934] sm:$0xff]
    %v430 = vld [vmem:[#allocation5 + $0x93c] sm:$0xff]
    %v431 = vld [vmem:[#allocation5 + $0x944] sm:$0xff]
    %v432 = vld [vmem:[#allocation5 + $0x94c] sm:$0xff]
    %v433 = vld [vmem:[#allocation5 + $0x954] sm:$0xf]
    %v434 = vld [vmem:[#allocation5 + $0x958] sm:$0xff]
    %v435 = vld [vmem:[#allocation5 + $0x960] sm:$0xff]
    %v436 = vld [vmem:[#allocation5 + $0x968] sm:$0xff]
    %v437 = vld [vmem:[#allocation5 + $0x970] sm:$0xff]
    %v438 = vld [vmem:[#allocation5 + $0x978] sm:$0xff]
    %v439 = vld [vmem:[#allocation5 + $0x980] sm:$0xff]
    %v440 = vld [vmem:[#allocation5 + $0x988] sm:$0xf]
    %v441 = vld [vmem:[#allocation5 + $0x98c] sm:$0xff]
    %v442 = vld [vmem:[#allocation5 + $0x994] sm:$0xff]
    %v443 = vld [vmem:[#allocation5 + $0x99c] sm:$0xff]
    %v444 = vld [vmem:[#allocation5 + $0x9a4] sm:$0xff]
    %v445 = vld [vmem:[#allocation5 + $0x9ac] sm:$0xff]
    %v446 = vld [vmem:[#allocation5 + $0x9b4] sm:$0xff]
    %v447 = vld [vmem:[#allocation5 + $0x9bc] sm:$0xf]
    %v448 = vld [vmem:[#allocation5 + $0x9c0] sm:$0xff]
    %v449 = vld [vmem:[#allocation5 + $0x9c8] sm:$0xff]
    %v450 = vld [vmem:[#allocation5 + $0x9d0] sm:$0xff]
    %v451 = vld [vmem:[#allocation5 + $0x9d8] sm:$0xff]
    %v452 = vld [vmem:[#allocation5 + $0x9e0] sm:$0xff]
    %v453 = vld [vmem:[#allocation5 + $0x9e8] sm:$0xff]
    %v454 = vld [vmem:[#allocation5 + $0x9f0] sm:$0xf]
    %v455 = vld [vmem:[#allocation5 + $0x9f4] sm:$0xff]
    %v456 = vld [vmem:[#allocation5 + $0x9fc] sm:$0xff]
    %v457 = vld [vmem:[#allocation5 + $0xa04] sm:$0xff]
    %v458 = vld [vmem:[#allocation5 + $0xa0c] sm:$0xff]
    %v459 = vld [vmem:[#allocation5 + $0xa14] sm:$0xff]
    %v460 = vld [vmem:[#allocation5 + $0xa1c] sm:$0xff]
    %v461 = vld [vmem:[#allocation5 + $0xa24] sm:$0xf]
    %v462 = vld [vmem:[#allocation5 + $0xa28] sm:$0xff]
    %v463 = vld [vmem:[#allocation5 + $0xa30] sm:$0xff]
    %v464 = vld [vmem:[#allocation5 + $0xa38] sm:$0xff]
    %v465 = vld [vmem:[#allocation5 + $0xa40] sm:$0xff]
    %v466 = vld [vmem:[#allocation5 + $0xa48] sm:$0xff]
    %v467 = vld [vmem:[#allocation5 + $0xa50] sm:$0xff]
    %v468 = vld [vmem:[#allocation5 + $0xa58] sm:$0xf]
    %v469 = vld [vmem:[#allocation5 + $0xa5c] sm:$0xff]
    %v470 = vld [vmem:[#allocation5 + $0xa64] sm:$0xff]
    %v471 = vld [vmem:[#allocation5 + $0xa6c] sm:$0xff]
    %v472 = vld [vmem:[#allocation5 + $0xa74] sm:$0xff]
    %v473 = vld [vmem:[#allocation5 + $0xa7c] sm:$0xff]
    %v474 = vld [vmem:[#allocation5 + $0xa84] sm:$0xff]
    %v475 = vld [vmem:[#allocation5 + $0xa8c] sm:$0xf]
    %v476 = vld [vmem:[#allocation5 + $0xa90] sm:$0xff]
    %v477 = vld [vmem:[#allocation5 + $0xa98] sm:$0xff]
    %v478 = vld [vmem:[#allocation5 + $0xaa0] sm:$0xff]
    %v479 = vld [vmem:[#allocation5 + $0xaa8] sm:$0xff]
    %v480 = vld [vmem:[#allocation5 + $0xab0] sm:$0xff]
    %v481 = vld [vmem:[#allocation5 + $0xab8] sm:$0xff]
    %v482 = vld [vmem:[#allocation5 + $0xac0] sm:$0xf]
    %v483 = vld [vmem:[#allocation5 + $0xac4] sm:$0xff]
    %v484 = vld [vmem:[#allocation5 + $0xacc] sm:$0xff]
    %v485 = vld [vmem:[#allocation5 + $0xad4] sm:$0xff]
    %v486 = vld [vmem:[#allocation5 + $0xadc] sm:$0xff]
    %v487 = vld [vmem:[#allocation5 + $0xae4] sm:$0xff]
    %v488 = vld [vmem:[#allocation5 + $0xaec] sm:$0xff]
    %v489 = vld [vmem:[#allocation5 + $0xaf4] sm:$0xf]
    %v490 = vld [vmem:[#allocation5 + $0xaf8] sm:$0xff]
    %v491 = vld [vmem:[#allocation5 + $0xb00] sm:$0xff]
    %v492 = vld [vmem:[#allocation5 + $0xb08] sm:$0xff]
    %v493 = vld [vmem:[#allocation5 + $0xb10] sm:$0xff]
    %v494 = vld [vmem:[#allocation5 + $0xb18] sm:$0xff]
    %v495 = vld [vmem:[#allocation5 + $0xb20] sm:$0xff]
    %v496 = vld [vmem:[#allocation5 + $0xb28] sm:$0xf]
    %v497 = vld [vmem:[#allocation5 + $0xb2c] sm:$0xff]
    %v498 = vld [vmem:[#allocation5 + $0xb34] sm:$0xff]
    %v499 = vld [vmem:[#allocation5 + $0xb3c] sm:$0xff]
    %v500 = vld [vmem:[#allocation5 + $0xb44] sm:$0xff]
    %v501 = vld [vmem:[#allocation5 + $0xb4c] sm:$0xff]
    %v502 = vld [vmem:[#allocation5 + $0xb54] sm:$0xff]
    %v503 = vld [vmem:[#allocation5 + $0xb5c] sm:$0xf]
    %v504 = vld [vmem:[#allocation5 + $0xb60] sm:$0xff]
    %v505 = vld [vmem:[#allocation5 + $0xb68] sm:$0xff]
    %v506 = vld [vmem:[#allocation5 + $0xb70] sm:$0xff]
    %v507 = vld [vmem:[#allocation5 + $0xb78] sm:$0xff]
    %v508 = vld [vmem:[#allocation5 + $0xb80] sm:$0xff]
    %v509 = vld [vmem:[#allocation5 + $0xb88] sm:$0xff]
    %v510 = vld [vmem:[#allocation5 + $0xb90] sm:$0xf]
    %v511 = vld [vmem:[#allocation5 + $0xb94] sm:$0xff]
    %v512 = vld [vmem:[#allocation5 + $0xb9c] sm:$0xff]
    %v513 = vld [vmem:[#allocation5 + $0xba4] sm:$0xff]
    %v514 = vld [vmem:[#allocation5 + $0xbac] sm:$0xff]
    %v515 = vld [vmem:[#allocation5 + $0xbb4] sm:$0xff]
    %v516 = vld [vmem:[#allocation5 + $0xbbc] sm:$0xff]
    %v517 = vld [vmem:[#allocation5 + $0xbc4] sm:$0xf]
    %v518 = vld [vmem:[#allocation5 + $0xbc8] sm:$0xff]
    %v519 = vld [vmem:[#allocation5 + $0xbd0] sm:$0xff]
    %v520 = vld [vmem:[#allocation5 + $0xbd8] sm:$0xff]
    %v521 = vld [vmem:[#allocation5 + $0xbe0] sm:$0xff]
    %v522 = vld [vmem:[#allocation5 + $0xbe8] sm:$0xff]
    %v523 = vld [vmem:[#allocation5 + $0xbf0] sm:$0xff]
    %v524 = vld [vmem:[#allocation5 + $0xbf8] sm:$0xf]
    %v525 = vld [vmem:[#allocation5 + $0xbfc] sm:$0xff]
    %v526 = vld [vmem:[#allocation5 + $0xc04] sm:$0xff]
    %v527 = vld [vmem:[#allocation5 + $0xc0c] sm:$0xff]
    %v528 = vld [vmem:[#allocation5 + $0xc14] sm:$0xff]
    %v529 = vld [vmem:[#allocation5 + $0xc1c] sm:$0xff]
    %v530 = vld [vmem:[#allocation5 + $0xc24] sm:$0xff]
    %v531 = vld [vmem:[#allocation5 + $0xc2c] sm:$0xf]
    %v532 = vld [vmem:[#allocation5 + $0xc30] sm:$0xff]
    %v533 = vld [vmem:[#allocation5 + $0xc38] sm:$0xff]
    %v534 = vld [vmem:[#allocation5 + $0xc40] sm:$0xff]
    %v535 = vld [vmem:[#allocation5 + $0xc48] sm:$0xff]
    %v536 = vld [vmem:[#allocation5 + $0xc50] sm:$0xff]
    %v537 = vld [vmem:[#allocation5 + $0xc58] sm:$0xff]
    %v538 = vld [vmem:[#allocation5 + $0xc60] sm:$0xf]
    %v539 = vld [vmem:[#allocation5 + $0xc64] sm:$0xff]
    %v540 = vld [vmem:[#allocation5 + $0xc6c] sm:$0xff]
    %v541 = vld [vmem:[#allocation5 + $0xc74] sm:$0xff]
    %v542 = vld [vmem:[#allocation5 + $0xc7c] sm:$0xff]
    %v543 = vld [vmem:[#allocation5 + $0xc84] sm:$0xff]
    %v544 = vld [vmem:[#allocation5 + $0xc8c] sm:$0xff]
    %v545 = vld [vmem:[#allocation5 + $0xc94] sm:$0xf]
    %v546 = vld [vmem:[#allocation5 + $0xc98] sm:$0xff]
    %v547 = vld [vmem:[#allocation5 + $0xca0] sm:$0xff]
    %v548 = vld [vmem:[#allocation5 + $0xca8] sm:$0xff]
    %v549 = vld [vmem:[#allocation5 + $0xcb0] sm:$0xff]
    %v550 = vld [vmem:[#allocation5 + $0xcb8] sm:$0xff]
    %v551 = vld [vmem:[#allocation5 + $0xcc0] sm:$0xff]
    %v552 = vld [vmem:[#allocation5 + $0xcc8] sm:$0xf]
    %v553 = vld [vmem:[#allocation5 + $0xccc] sm:$0xff]
    %v554 = vld [vmem:[#allocation5 + $0xcd4] sm:$0xff]
    %v555 = vld [vmem:[#allocation5 + $0xcdc] sm:$0xff]
    %v556 = vld [vmem:[#allocation5 + $0xce4] sm:$0xff]
    %v557 = vld [vmem:[#allocation5 + $0xcec] sm:$0xff]
    %v558 = vld [vmem:[#allocation5 + $0xcf4] sm:$0xff]
    %v559 = vld [vmem:[#allocation5 + $0xcfc] sm:$0xf]
    %v560 = vld [vmem:[#allocation5 + $0xd00] sm:$0xff]
    %v561 = vld [vmem:[#allocation5 + $0xd08] sm:$0xff]
    %v562 = vld [vmem:[#allocation5 + $0xd10] sm:$0xff]
    %v563 = vld [vmem:[#allocation5 + $0xd18] sm:$0xff]
    %v564 = vld [vmem:[#allocation5 + $0xd20] sm:$0xff]
    %v565 = vld [vmem:[#allocation5 + $0xd28] sm:$0xff]
    %v566 = vld [vmem:[#allocation5 + $0xd30] sm:$0xf]
    %v567 = vld [vmem:[#allocation5 + $0xd34] sm:$0xff]
    %v568 = vld [vmem:[#allocation5 + $0xd3c] sm:$0xff]
    %v569 = vld [vmem:[#allocation5 + $0xd44] sm:$0xff]
    %v570 = vld [vmem:[#allocation5 + $0xd4c] sm:$0xff]
    %v571 = vld [vmem:[#allocation5 + $0xd54] sm:$0xff]
    %v572 = vld [vmem:[#allocation5 + $0xd5c] sm:$0xff]
    %v573 = vld [vmem:[#allocation5 + $0xd64] sm:$0xf]
    %v574 = vld [vmem:[#allocation5 + $0xd68] sm:$0xff]
    %v575 = vld [vmem:[#allocation5 + $0xd70] sm:$0xff]
    %v576 = vld [vmem:[#allocation5 + $0xd78] sm:$0xff]
    %v577 = vld [vmem:[#allocation5 + $0xd80] sm:$0xff]
    %v578 = vld [vmem:[#allocation5 + $0xd88] sm:$0xff]
    %v579 = vld [vmem:[#allocation5 + $0xd90] sm:$0xff]
    %v580 = vld [vmem:[#allocation5 + $0xd98] sm:$0xf]
    %v581 = vld [vmem:[#allocation5 + $0xd9c] sm:$0xff]
    %v582 = vld [vmem:[#allocation5 + $0xda4] sm:$0xff]
    %v583 = vld [vmem:[#allocation5 + $0xdac] sm:$0xff]
    %v584 = vld [vmem:[#allocation5 + $0xdb4] sm:$0xff]
    %v585 = vld [vmem:[#allocation5 + $0xdbc] sm:$0xff]
    %v586 = vld [vmem:[#allocation5 + $0xdc4] sm:$0xff]
    %v587 = vld [vmem:[#allocation5 + $0xdcc] sm:$0xf]
    %v588 = vld [vmem:[#allocation5 + $0xdd0] sm:$0xff]
    %v589 = vld [vmem:[#allocation5 + $0xdd8] sm:$0xff]
    %v590 = vld [vmem:[#allocation5 + $0xde0] sm:$0xff]
    %v591 = vld [vmem:[#allocation5 + $0xde8] sm:$0xff]
    %v592 = vld [vmem:[#allocation5 + $0xdf0] sm:$0xff]
    %v593 = vld [vmem:[#allocation5 + $0xdf8] sm:$0xff]
    %v594 = vld [vmem:[#allocation5 + $0xe00] sm:$0xf]
    %v595 = vld [vmem:[#allocation5 + $0xe04] sm:$0xff]
    %v596 = vld [vmem:[#allocation5 + $0xe0c] sm:$0xff]
    %v597 = vld [vmem:[#allocation5 + $0xe14] sm:$0xff]
    %v598 = vld [vmem:[#allocation5 + $0xe1c] sm:$0xff]
    %v599 = vld [vmem:[#allocation5 + $0xe24] sm:$0xff]
    %v600 = vld [vmem:[#allocation5 + $0xe2c] sm:$0xff]
    %v601 = vld [vmem:[#allocation5 + $0xe34] sm:$0xf]
    %v602 = vld [vmem:[#allocation5 + $0xe38] sm:$0xff]
    %v603 = vld [vmem:[#allocation5 + $0xe40] sm:$0xff]
    %v604 = vld [vmem:[#allocation5 + $0xe48] sm:$0xff]
    %v605 = vld [vmem:[#allocation5 + $0xe50] sm:$0xff]
    %v606 = vld [vmem:[#allocation5 + $0xe58] sm:$0xff]
    %v607 = vld [vmem:[#allocation5 + $0xe60] sm:$0xff]
    %v608 = vld [vmem:[#allocation5 + $0xe68] sm:$0xf]
    %v609 = vld [vmem:[#allocation5 + $0xe6c] sm:$0xff]
    %v610 = vld [vmem:[#allocation5 + $0xe74] sm:$0xff]
    %v611 = vld [vmem:[#allocation5 + $0xe7c] sm:$0xff]
    %v612 = vld [vmem:[#allocation5 + $0xe84] sm:$0xff]
    %v613 = vld [vmem:[#allocation5 + $0xe8c] sm:$0xff]
    %v614 = vld [vmem:[#allocation5 + $0xe94] sm:$0xff]
    %v615 = vld [vmem:[#allocation5 + $0xe9c] sm:$0xf]
    %v616 = vld [vmem:[#allocation5 + $0xea0] sm:$0xff]
    %v617 = vld [vmem:[#allocation5 + $0xea8] sm:$0xff]
    %v618 = vld [vmem:[#allocation5 + $0xeb0] sm:$0xff]
    %v619 = vld [vmem:[#allocation5 + $0xeb8] sm:$0xff]
    %v620 = vld [vmem:[#allocation5 + $0xec0] sm:$0xff]
    %v621 = vld [vmem:[#allocation5 + $0xec8] sm:$0xff]
    %v622 = vld [vmem:[#allocation5 + $0xed0] sm:$0xf]
    %v623 = vld [vmem:[#allocation5 + $0xed4] sm:$0xff]
    %v624 = vld [vmem:[#allocation5 + $0xedc] sm:$0xff]
    %v625 = vld [vmem:[#allocation5 + $0xee4] sm:$0xff]
    %v626 = vld [vmem:[#allocation5 + $0xeec] sm:$0xff]
    %v627 = vld [vmem:[#allocation5 + $0xef4] sm:$0xff]
    %v628 = vld [vmem:[#allocation5 + $0xefc] sm:$0xff]
    %v629 = vld [vmem:[#allocation5 + $0xf04] sm:$0xf]
    %v630 = vld [vmem:[#allocation5 + $0xf08] sm:$0xff]
    %v631 = vld [vmem:[#allocation5 + $0xf10] sm:$0xff]
    %v632 = vld [vmem:[#allocation5 + $0xf18] sm:$0xff]
    %v633 = vld [vmem:[#allocation5 + $0xf20] sm:$0xff]
    %v634 = vld [vmem:[#allocation5 + $0xf28] sm:$0xff]
    %v635 = vld [vmem:[#allocation5 + $0xf30] sm:$0xff]
    %v636 = vld [vmem:[#allocation5 + $0xf38] sm:$0xf]
    %v637 = vld [vmem:[#allocation5 + $0xf3c] sm:$0xff]
    %v638 = vld [vmem:[#allocation5 + $0xf44] sm:$0xff]
    %v639 = vld [vmem:[#allocation5 + $0xf4c] sm:$0xff]
    %v640 = vld [vmem:[#allocation5 + $0xf54] sm:$0xff]
    %v641 = vld [vmem:[#allocation5 + $0xf5c] sm:$0xff]
    %v642 = vld [vmem:[#allocation5 + $0xf64] sm:$0xff]
    %v643 = vld [vmem:[#allocation5 + $0xf6c] sm:$0xf]
    %v644 = vld [vmem:[#allocation5 + $0xf70] sm:$0xff]
    %v645 = vld [vmem:[#allocation5 + $0xf78] sm:$0xff]
    %v646 = vld [vmem:[#allocation5 + $0xf80] sm:$0xff]
    %v647 = vld [vmem:[#allocation5 + $0xf88] sm:$0xff]
    %v648 = vld [vmem:[#allocation5 + $0xf90] sm:$0xff]
    %v649 = vld [vmem:[#allocation5 + $0xf98] sm:$0xff]
    %v650 = vld [vmem:[#allocation5 + $0xfa0] sm:$0xf]
    %v651 = vld [vmem:[#allocation5 + $0xfa4] sm:$0xff]
    %v652 = vld [vmem:[#allocation5 + $0xfac] sm:$0xff]
    %v653 = vld [vmem:[#allocation5 + $0xfb4] sm:$0xff]
    %v654 = vld [vmem:[#allocation5 + $0xfbc] sm:$0xff]
    %v655 = vld [vmem:[#allocation5 + $0xfc4] sm:$0xff]
    %v656 = vld [vmem:[#allocation5 + $0xfcc] sm:$0xff]
    %v657 = vld [vmem:[#allocation5 + $0xfd4] sm:$0xf]
    %v658 = vld [vmem:[#allocation5 + $0xfd8] sm:$0xff]
    %v659 = vld [vmem:[#allocation5 + $0xfe0] sm:$0xff]
    %v660 = vld [vmem:[#allocation5 + $0xfe8] sm:$0xff]
    %v661 = vld [vmem:[#allocation5 + $0xff0] sm:$0xff]
    %v662 = vld [vmem:[#allocation5 + $0xff8] sm:$0xff]
    %v663 = vld [vmem:[#allocation5 + $0x1000] sm:$0xff]
    %v664 = vld [vmem:[#allocation5 + $0x1008] sm:$0xf]
    %v665 = vld [vmem:[#allocation5 + $0x100c] sm:$0xff]
    %v666 = vld [vmem:[#allocation5 + $0x1014] sm:$0xff]
    %v667 = vld [vmem:[#allocation5 + $0x101c] sm:$0xff]
    %v668 = vld [vmem:[#allocation5 + $0x1024] sm:$0xff]
    %v669 = vld [vmem:[#allocation5 + $0x102c] sm:$0xff]
    %v670 = vld [vmem:[#allocation5 + $0x1034] sm:$0xff]
    %v671 = vld [vmem:[#allocation5 + $0x103c] sm:$0xf]
    %v672 = vld [vmem:[#allocation5 + $0x1040] sm:$0xff]
    %v673 = vld [vmem:[#allocation5 + $0x1048] sm:$0xff]
    %v674 = vld [vmem:[#allocation5 + $0x1050] sm:$0xff]
    %v675 = vld [vmem:[#allocation5 + $0x1058] sm:$0xff]
    %v676 = vld [vmem:[#allocation5 + $0x1060] sm:$0xff]
    %v677 = vld [vmem:[#allocation5 + $0x1068] sm:$0xff]
    %v678 = vld [vmem:[#allocation5 + $0x1070] sm:$0xf]
    %v679 = vld [vmem:[#allocation5 + $0x1074] sm:$0xff]
    %v680 = vld [vmem:[#allocation5 + $0x107c] sm:$0xff]
    %v681 = vld [vmem:[#allocation5 + $0x1084] sm:$0xff]
    %v682 = vld [vmem:[#allocation5 + $0x108c] sm:$0xff]
    %v683 = vld [vmem:[#allocation5 + $0x1094] sm:$0xff]
    %v684 = vld [vmem:[#allocation5 + $0x109c] sm:$0xff]
    %v685 = vld [vmem:[#allocation5 + $0x10a4] sm:$0xf]
    %v686 = vld [vmem:[#allocation5 + $0x10a8] sm:$0xff]
    %v687 = vld [vmem:[#allocation5 + $0x10b0] sm:$0xff]
    %v688 = vld [vmem:[#allocation5 + $0x10b8] sm:$0xff]
    %v689 = vld [vmem:[#allocation5 + $0x10c0] sm:$0xff]
    %v690 = vld [vmem:[#allocation5 + $0x10c8] sm:$0xff]
    %v691 = vld [vmem:[#allocation5 + $0x10d0] sm:$0xff]
    %v692 = vld [vmem:[#allocation5 + $0x10d8] sm:$0xf]
    %v693 = vld [vmem:[#allocation5 + $0x10dc] sm:$0xff]
    %v694 = vld [vmem:[#allocation5 + $0x10e4] sm:$0xff]
    %v695 = vld [vmem:[#allocation5 + $0x10ec] sm:$0xff]
    %v696 = vld [vmem:[#allocation5 + $0x10f4] sm:$0xff]
    %v697 = vld [vmem:[#allocation5 + $0x10fc] sm:$0xff]
    %v698 = vld [vmem:[#allocation5 + $0x1104] sm:$0xff]
    %v699 = vld [vmem:[#allocation5 + $0x110c] sm:$0xf]
    %v700 = vld [vmem:[#allocation5 + $0x1110] sm:$0xff]
    %v701 = vld [vmem:[#allocation5 + $0x1118] sm:$0xff]
    %v702 = vld [vmem:[#allocation5 + $0x1120] sm:$0xff]
    %v703 = vld [vmem:[#allocation5 + $0x1128] sm:$0xff]
    %v704 = vld [vmem:[#allocation5 + $0x1130] sm:$0xff]
    %v705 = vld [vmem:[#allocation5 + $0x1138] sm:$0xff]
    %v706 = vld [vmem:[#allocation5 + $0x1140] sm:$0xf]
    %v707 = vld [vmem:[#allocation5 + $0x1144] sm:$0xff]
    %v708 = vld [vmem:[#allocation5 + $0x114c] sm:$0xff]
    %v709 = vld [vmem:[#allocation5 + $0x1154] sm:$0xff]
    %v710 = vld [vmem:[#allocation5 + $0x115c] sm:$0xff]
    %v711 = vld [vmem:[#allocation5 + $0x1164] sm:$0xff]
    %v712 = vld [vmem:[#allocation5 + $0x116c] sm:$0xff]
    %v713 = vld [vmem:[#allocation5 + $0x1174] sm:$0xf]
    %v714 = vld [vmem:[#allocation5 + $0x1178] sm:$0xff]
    %v715 = vld [vmem:[#allocation5 + $0x1180] sm:$0xff]
    %v716 = vld [vmem:[#allocation5 + $0x1188] sm:$0xff]
    %v717 = vld [vmem:[#allocation5 + $0x1190] sm:$0xff]
    %v718 = vld [vmem:[#allocation5 + $0x1198] sm:$0xff]
    %v719 = vld [vmem:[#allocation5 + $0x11a0] sm:$0xff]
    %v720 = vld [vmem:[#allocation5 + $0x11a8] sm:$0xf]
    %v721 = vld [vmem:[#allocation5 + $0x11ac] sm:$0xff]
    %v722 = vld [vmem:[#allocation5 + $0x11b4] sm:$0xff]
    %v723 = vld [vmem:[#allocation5 + $0x11bc] sm:$0xff]
    %v724 = vld [vmem:[#allocation5 + $0x11c4] sm:$0xff]
    %v725 = vld [vmem:[#allocation5 + $0x11cc] sm:$0xff]
    %v726 = vld [vmem:[#allocation5 + $0x11d4] sm:$0xff]
    %v727 = vld [vmem:[#allocation5 + $0x11dc] sm:$0xf]
    %v728 = vld [vmem:[#allocation5 + $0x11e0] sm:$0xff]
    %v729 = vld [vmem:[#allocation5 + $0x11e8] sm:$0xff]
    %v730 = vld [vmem:[#allocation5 + $0x11f0] sm:$0xff]
    %v731 = vld [vmem:[#allocation5 + $0x11f8] sm:$0xff]
    %v732 = vld [vmem:[#allocation5 + $0x1200] sm:$0xff]
    %v733 = vld [vmem:[#allocation5 + $0x1208] sm:$0xff]
    %v734 = vld [vmem:[#allocation5 + $0x1210] sm:$0xf]
    %v735 = vld [vmem:[#allocation5 + $0x1214] sm:$0xff]
    %v736 = vld [vmem:[#allocation5 + $0x121c] sm:$0xff]
    %v737 = vld [vmem:[#allocation5 + $0x1224] sm:$0xff]
    %v738 = vld [vmem:[#allocation5 + $0x122c] sm:$0xff]
    %v739 = vld [vmem:[#allocation5 + $0x1234] sm:$0xff]
    %v740 = vld [vmem:[#allocation5 + $0x123c] sm:$0xff]
    %v741 = vld [vmem:[#allocation5 + $0x1244] sm:$0xf]
    %v742 = vld [vmem:[#allocation5 + $0x1248] sm:$0xff]
    %v743 = vld [vmem:[#allocation5 + $0x1250] sm:$0xff]
    %v744 = vld [vmem:[#allocation5 + $0x1258] sm:$0xff]
    %v745 = vld [vmem:[#allocation5 + $0x1260] sm:$0xff]
    %v746 = vld [vmem:[#allocation5 + $0x1268] sm:$0xff]
    %v747 = vld [vmem:[#allocation5 + $0x1270] sm:$0xff]
    %v748 = vld [vmem:[#allocation5 + $0x1278] sm:$0xf]
    %v749 = vld [vmem:[#allocation5 + $0x127c] sm:$0xff]
    %v750 = vld [vmem:[#allocation5 + $0x1284] sm:$0xff]
    %v751 = vld [vmem:[#allocation5 + $0x128c] sm:$0xff]
    %v752 = vld [vmem:[#allocation5 + $0x1294] sm:$0xff]
    %v753 = vld [vmem:[#allocation5 + $0x129c] sm:$0xff]
    %v754 = vld [vmem:[#allocation5 + $0x12a4] sm:$0xff]
    %v755 = vld [vmem:[#allocation5 + $0x12ac] sm:$0xf]
    %v756 = vld [vmem:[#allocation5 + $0x12b0] sm:$0xff]
    %v757 = vld [vmem:[#allocation5 + $0x12b8] sm:$0xff]
    %v758 = vld [vmem:[#allocation5 + $0x12c0] sm:$0xff]
    %v759 = vld [vmem:[#allocation5 + $0x12c8] sm:$0xff]
    %v760 = vld [vmem:[#allocation5 + $0x12d0] sm:$0xff]
    %v761 = vld [vmem:[#allocation5 + $0x12d8] sm:$0xff]
    %v762 = vld [vmem:[#allocation5 + $0x12e0] sm:$0xf]
    %v763 = vld [vmem:[#allocation5 + $0x12e4] sm:$0xff]
    %v764 = vld [vmem:[#allocation5 + $0x12ec] sm:$0xff]
    %v765 = vld [vmem:[#allocation5 + $0x12f4] sm:$0xff]
    %v766 = vld [vmem:[#allocation5 + $0x12fc] sm:$0xff]
    %v767 = vld [vmem:[#allocation5 + $0x1304] sm:$0xff]
    %v768 = vld [vmem:[#allocation5 + $0x130c] sm:$0xff]
    %v769 = vld [vmem:[#allocation5 + $0x1314] sm:$0xf]
    %v770 = vld [vmem:[#allocation5 + $0x1318] sm:$0xff]
    %v771 = vld [vmem:[#allocation5 + $0x1320] sm:$0xff]
    %v772 = vld [vmem:[#allocation5 + $0x1328] sm:$0xff]
    %v773 = vld [vmem:[#allocation5 + $0x1330] sm:$0xff]
    %v774 = vld [vmem:[#allocation5 + $0x1338] sm:$0xff]
    %v775 = vld [vmem:[#allocation5 + $0x1340] sm:$0xff]
    %v776 = vld [vmem:[#allocation5 + $0x1348] sm:$0xf]
    %v777 = vld [vmem:[#allocation5 + $0x134c] sm:$0xff]
    %v778 = vld [vmem:[#allocation5 + $0x1354] sm:$0xff]
    %v779 = vld [vmem:[#allocation5 + $0x135c] sm:$0xff]
    %v780 = vld [vmem:[#allocation5 + $0x1364] sm:$0xff]
    %v781 = vld [vmem:[#allocation5 + $0x136c] sm:$0xff]
    %v782 = vld [vmem:[#allocation5 + $0x1374] sm:$0xff]
    %v783 = vld [vmem:[#allocation5 + $0x137c] sm:$0xf]
    %v784 = vld [vmem:[#allocation5 + $0x1380] sm:$0xff]
    %v785 = vld [vmem:[#allocation5 + $0x1388] sm:$0xff]
    %v786 = vld [vmem:[#allocation5 + $0x1390] sm:$0xff]
    %v787 = vld [vmem:[#allocation5 + $0x1398] sm:$0xff]
    %v788 = vld [vmem:[#allocation5 + $0x13a0] sm:$0xff]
    %v789 = vld [vmem:[#allocation5 + $0x13a8] sm:$0xff]
    %v790 = vld [vmem:[#allocation5 + $0x13b0] sm:$0xf]
    %v791 = vld [vmem:[#allocation5 + $0x13b4] sm:$0xff]
    %v792 = vld [vmem:[#allocation5 + $0x13bc] sm:$0xff]
    %v793 = vld [vmem:[#allocation5 + $0x13c4] sm:$0xff]
    %v794 = vld [vmem:[#allocation5 + $0x13cc] sm:$0xff]
    %v795 = vld [vmem:[#allocation5 + $0x13d4] sm:$0xff]
    %v796 = vld [vmem:[#allocation5 + $0x13dc] sm:$0xff]
    %v797 = vld [vmem:[#allocation5 + $0x13e4] sm:$0xf]
    %v798 = vld [vmem:[#allocation5 + $0x13e8] sm:$0xff]
    %v799 = vld [vmem:[#allocation5 + $0x13f0] sm:$0xff]
    %v800 = vld [vmem:[#allocation5 + $0x13f8] sm:$0xff]
    %v801 = vld [vmem:[#allocation5 + $0x1400] sm:$0xff]
    %v802 = vld [vmem:[#allocation5 + $0x1408] sm:$0xff]
    %v803 = vld [vmem:[#allocation5 + $0x1410] sm:$0xff]
    %v804 = vld [vmem:[#allocation5 + $0x1418] sm:$0xf]
    %v805 = vld [vmem:[#allocation5 + $0x141c] sm:$0xff]
    %v806 = vld [vmem:[#allocation5 + $0x1424] sm:$0xff]
    %v807 = vld [vmem:[#allocation5 + $0x142c] sm:$0xff]
    %v808 = vld [vmem:[#allocation5 + $0x1434] sm:$0xff]
    %v809 = vld [vmem:[#allocation5 + $0x143c] sm:$0xff]
    %v810 = vld [vmem:[#allocation5 + $0x1444] sm:$0xff]
    %v811 = vld [vmem:[#allocation5 + $0x144c] sm:$0xf]
    %v812 = vld [vmem:[#allocation5 + $0x1450] sm:$0xff]
    %v813 = vld [vmem:[#allocation5 + $0x1458] sm:$0xff]
    %v814 = vld [vmem:[#allocation5 + $0x1460] sm:$0xff]
    %v815 = vld [vmem:[#allocation5 + $0x1468] sm:$0xff]
    %v816 = vld [vmem:[#allocation5 + $0x1470] sm:$0xff]
    %v817 = vld [vmem:[#allocation5 + $0x1478] sm:$0xff]
    %v818 = vld [vmem:[#allocation5 + $0x1480] sm:$0xf]
    %v819 = vld [vmem:[#allocation5 + $0x1484] sm:$0xff]
    %v820 = vld [vmem:[#allocation5 + $0x148c] sm:$0xff]
    %v821 = vld [vmem:[#allocation5 + $0x1494] sm:$0xff]
    %v822 = vld [vmem:[#allocation5 + $0x149c] sm:$0xff]
    %v823 = vld [vmem:[#allocation5 + $0x14a4] sm:$0xff]
    %v824 = vld [vmem:[#allocation5 + $0x14ac] sm:$0xff]
    %v825 = vld [vmem:[#allocation5 + $0x14b4] sm:$0xf]
    %v826 = vld [vmem:[#allocation5 + $0x14b8] sm:$0xff]
    %v827 = vld [vmem:[#allocation5 + $0x14c0] sm:$0xff]
    %v828 = vld [vmem:[#allocation5 + $0x14c8] sm:$0xff]
    %v829 = vld [vmem:[#allocation5 + $0x14d0] sm:$0xff]
    %v830 = vld [vmem:[#allocation5 + $0x14d8] sm:$0xff]
    %v831 = vld [vmem:[#allocation5 + $0x14e0] sm:$0xff]
    %v832 = vld [vmem:[#allocation5 + $0x14e8] sm:$0xf]
    %v833 = vld [vmem:[#allocation5 + $0x14ec] sm:$0xff]
    %v834 = vld [vmem:[#allocation5 + $0x14f4] sm:$0xff]
    %v835 = vld [vmem:[#allocation5 + $0x14fc] sm:$0xff]
    %v836 = vld [vmem:[#allocation5 + $0x1504] sm:$0xff]
    %v837 = vld [vmem:[#allocation5 + $0x150c] sm:$0xff]
    %v838 = vld [vmem:[#allocation5 + $0x1514] sm:$0xff]
    %v839 = vld [vmem:[#allocation5 + $0x151c] sm:$0xf]
    %v840 = vld [vmem:[#allocation5 + $0x1520] sm:$0xff]
    %v841 = vld [vmem:[#allocation5 + $0x1528] sm:$0xff]
    %v842 = vld [vmem:[#allocation5 + $0x1530] sm:$0xff]
    %v843 = vld [vmem:[#allocation5 + $0x1538] sm:$0xff]
    %v844 = vld [vmem:[#allocation5 + $0x1540] sm:$0xff]
    %v845 = vld [vmem:[#allocation5 + $0x1548] sm:$0xff]
    %v846 = vld [vmem:[#allocation5 + $0x1550] sm:$0xf]
    %v847 = vld [vmem:[#allocation5 + $0x1554] sm:$0xff]
    %v848 = vld [vmem:[#allocation5 + $0x155c] sm:$0xff]
    %v849 = vld [vmem:[#allocation5 + $0x1564] sm:$0xff]
    %v850 = vld [vmem:[#allocation5 + $0x156c] sm:$0xff]
    %v851 = vld [vmem:[#allocation5 + $0x1574] sm:$0xff]
    %v852 = vld [vmem:[#allocation5 + $0x157c] sm:$0xff]
    %v853 = vld [vmem:[#allocation5 + $0x1584] sm:$0xf]
    %v854 = vld [vmem:[#allocation5 + $0x1588] sm:$0xff]
    %v855 = vld [vmem:[#allocation5 + $0x1590] sm:$0xff]
    %v856 = vld [vmem:[#allocation5 + $0x1598] sm:$0xff]
    %v857 = vld [vmem:[#allocation5 + $0x15a0] sm:$0xff]
    %v858 = vld [vmem:[#allocation5 + $0x15a8] sm:$0xff]
    %v859 = vld [vmem:[#allocation5 + $0x15b0] sm:$0xff]
    %v860 = vld [vmem:[#allocation5 + $0x15b8] sm:$0xf]
    %v861 = vld [vmem:[#allocation5 + $0x15bc] sm:$0xff]
    %v862 = vld [vmem:[#allocation5 + $0x15c4] sm:$0xff]
    %v863 = vld [vmem:[#allocation5 + $0x15cc] sm:$0xff]
    %v864 = vld [vmem:[#allocation5 + $0x15d4] sm:$0xff]
    %v865 = vld [vmem:[#allocation5 + $0x15dc] sm:$0xff]
    %v866 = vld [vmem:[#allocation5 + $0x15e4] sm:$0xff]
    %v867 = vld [vmem:[#allocation5 + $0x15ec] sm:$0xf]
    %v868 = vld [vmem:[#allocation5 + $0x15f0] sm:$0xff]
    %v869 = vld [vmem:[#allocation5 + $0x15f8] sm:$0xff]
    %v870 = vld [vmem:[#allocation5 + $0x1600] sm:$0xff]
    %v871 = vld [vmem:[#allocation5 + $0x1608] sm:$0xff]
    %v872 = vld [vmem:[#allocation5 + $0x1610] sm:$0xff]
    %v873 = vld [vmem:[#allocation5 + $0x1618] sm:$0xff]
    %v874 = vld [vmem:[#allocation5 + $0x1620] sm:$0xf]
    %v875 = vld [vmem:[#allocation5 + $0x1624] sm:$0xff]
    %v876 = vld [vmem:[#allocation5 + $0x162c] sm:$0xff]
    %v877 = vld [vmem:[#allocation5 + $0x1634] sm:$0xff]
    %v878 = vld [vmem:[#allocation5 + $0x163c] sm:$0xff]
    %v879 = vld [vmem:[#allocation5 + $0x1644] sm:$0xff]
    %v880 = vld [vmem:[#allocation5 + $0x164c] sm:$0xff]
    %v881 = vld [vmem:[#allocation5 + $0x1654] sm:$0xf]
    %v882 = vld [vmem:[#allocation5 + $0x1658] sm:$0xff]
    %v883 = vld [vmem:[#allocation5 + $0x1660] sm:$0xff]
    %v884 = vld [vmem:[#allocation5 + $0x1668] sm:$0xff]
    %v885 = vld [vmem:[#allocation5 + $0x1670] sm:$0xff]
    %v886 = vld [vmem:[#allocation5 + $0x1678] sm:$0xff]
    %v887 = vld [vmem:[#allocation5 + $0x1680] sm:$0xff]
    %v888 = vld [vmem:[#allocation5 + $0x1688] sm:$0xf]
    %v889 = vld [vmem:[#allocation5 + $0x168c] sm:$0xff]
    %v890 = vld [vmem:[#allocation5 + $0x1694] sm:$0xff]
    %v891 = vld [vmem:[#allocation5 + $0x169c] sm:$0xff]
    %v892 = vld [vmem:[#allocation5 + $0x16a4] sm:$0xff]
    %v893 = vld [vmem:[#allocation5 + $0x16ac] sm:$0xff]
    %v894 = vld [vmem:[#allocation5 + $0x16b4] sm:$0xff]
    %v895 = vld [vmem:[#allocation5 + $0x16bc] sm:$0xf]
    %v896 = vld [vmem:[#allocation5 + $0x16c0] sm:$0xff]
    %v897 = vld [vmem:[#allocation5 + $0x16c8] sm:$0xff]
    %v898 = vld [vmem:[#allocation5 + $0x16d0] sm:$0xff]
    %v899 = vld [vmem:[#allocation5 + $0x16d8] sm:$0xff]
    %v900 = vld [vmem:[#allocation5 + $0x16e0] sm:$0xff]
    %v901 = vld [vmem:[#allocation5 + $0x16e8] sm:$0xff]
    %v902 = vld [vmem:[#allocation5 + $0x16f0] sm:$0xf]
    %v903 = vld [vmem:[#allocation5 + $0x16f4] sm:$0xff]
    %v904 = vld [vmem:[#allocation5 + $0x16fc] sm:$0xff]
    %v905 = vld [vmem:[#allocation5 + $0x1704] sm:$0xff]
    %v906 = vld [vmem:[#allocation5 + $0x170c] sm:$0xff]
    %v907 = vld [vmem:[#allocation5 + $0x1714] sm:$0xff]
    %v908 = vld [vmem:[#allocation5 + $0x171c] sm:$0xff]
    %v909 = vld [vmem:[#allocation5 + $0x1724] sm:$0xf]
    %v910 = vld [vmem:[#allocation5 + $0x1728] sm:$0xff]
    %v911 = vld [vmem:[#allocation5 + $0x1730] sm:$0xff]
    %v912 = vld [vmem:[#allocation5 + $0x1738] sm:$0xff]
    %v913 = vld [vmem:[#allocation5 + $0x1740] sm:$0xff]
    %v914 = vld [vmem:[#allocation5 + $0x1748] sm:$0xff]
    %v915 = vld [vmem:[#allocation5 + $0x1750] sm:$0xff]
    %v916 = vld [vmem:[#allocation5 + $0x1758] sm:$0xf]
    %v917 = vld [vmem:[#allocation5 + $0x175c] sm:$0xff]
    %v918 = vld [vmem:[#allocation5 + $0x1764] sm:$0xff]
    %v919 = vld [vmem:[#allocation5 + $0x176c] sm:$0xff]
    %v920 = vld [vmem:[#allocation5 + $0x1774] sm:$0xff]
    %v921 = vld [vmem:[#allocation5 + $0x177c] sm:$0xff]
    %v922 = vld [vmem:[#allocation5 + $0x1784] sm:$0xff]
    %v923 = vld [vmem:[#allocation5 + $0x178c] sm:$0xf]
    %v924 = vld [vmem:[#allocation5 + $0x1790] sm:$0xff]
    %v925 = vld [vmem:[#allocation5 + $0x1798] sm:$0xff]
    %v926 = vld [vmem:[#allocation5 + $0x17a0] sm:$0xff]
    %v927 = vld [vmem:[#allocation5 + $0x17a8] sm:$0xff]
    %v928 = vld [vmem:[#allocation5 + $0x17b0] sm:$0xff]
    %v929 = vld [vmem:[#allocation5 + $0x17b8] sm:$0xff]
    %v930 = vld [vmem:[#allocation5 + $0x17c0] sm:$0xf]
    %v931 = vld [vmem:[#allocation5 + $0x17c4] sm:$0xff]
    %v932 = vld [vmem:[#allocation5 + $0x17cc] sm:$0xff]
    %v933 = vld [vmem:[#allocation5 + $0x17d4] sm:$0xff]
    %v934 = vld [vmem:[#allocation5 + $0x17dc] sm:$0xff]
    %v935 = vld [vmem:[#allocation5 + $0x17e4] sm:$0xff]
    %v936 = vld [vmem:[#allocation5 + $0x17ec] sm:$0xff]
    %v937 = vld [vmem:[#allocation5 + $0x17f4] sm:$0xf]
    %v938 = vld [vmem:[#allocation5 + $0x17f8] sm:$0xff]
    %v939 = vld [vmem:[#allocation5 + $0x1800] sm:$0xff]
    %v940 = vld [vmem:[#allocation5 + $0x1808] sm:$0xff]
    %v941 = vld [vmem:[#allocation5 + $0x1810] sm:$0xff]
    %v942 = vld [vmem:[#allocation5 + $0x1818] sm:$0xff]
    %v943 = vld [vmem:[#allocation5 + $0x1820] sm:$0xff]
    %v944 = vld [vmem:[#allocation5 + $0x1828] sm:$0xf]
    %v945 = vld [vmem:[#allocation5 + $0x182c] sm:$0xff]
    %v946 = vld [vmem:[#allocation5 + $0x1834] sm:$0xff]
    %v947 = vld [vmem:[#allocation5 + $0x183c] sm:$0xff]
    %v948 = vld [vmem:[#allocation5 + $0x1844] sm:$0xff]
    %v949 = vld [vmem:[#allocation5 + $0x184c] sm:$0xff]
    %v950 = vld [vmem:[#allocation5 + $0x1854] sm:$0xff]
    %v951 = vld [vmem:[#allocation5 + $0x185c] sm:$0xf]
    %v952 = vld [vmem:[#allocation5 + $0x1860] sm:$0xff]
    %v953 = vld [vmem:[#allocation5 + $0x1868] sm:$0xff]
    %v954 = vld [vmem:[#allocation5 + $0x1870] sm:$0xff]
    %v955 = vld [vmem:[#allocation5 + $0x1878] sm:$0xff]
    %v956 = vld [vmem:[#allocation5 + $0x1880] sm:$0xff]
    %v957 = vld [vmem:[#allocation5 + $0x1888] sm:$0xff]
    %v958 = vld [vmem:[#allocation5 + $0x1890] sm:$0xf]
    %v959 = vld [vmem:[#allocation5 + $0x1894] sm:$0xff]
    %v960 = vld [vmem:[#allocation5 + $0x189c] sm:$0xff]
    %v961 = vld [vmem:[#allocation5 + $0x18a4] sm:$0xff]
    %v962 = vld [vmem:[#allocation5 + $0x18ac] sm:$0xff]
    %v963 = vld [vmem:[#allocation5 + $0x18b4] sm:$0xff]
    %v964 = vld [vmem:[#allocation5 + $0x18bc] sm:$0xff]
    %v965 = vld [vmem:[#allocation5 + $0x18c4] sm:$0xf]
    %v966 = vld [vmem:[#allocation5 + $0x18c8] sm:$0xff]
    %v967 = vld [vmem:[#allocation5 + $0x18d0] sm:$0xff]
    %v968 = vld [vmem:[#allocation5 + $0x18d8] sm:$0xff]
    %v969 = vld [vmem:[#allocation5 + $0x18e0] sm:$0xff]
    %v970 = vld [vmem:[#allocation5 + $0x18e8] sm:$0xff]
    %v971 = vld [vmem:[#allocation5 + $0x18f0] sm:$0xff]
    %v972 = vld [vmem:[#allocation5 + $0x18f8] sm:$0xf]
    %v973 = vld [vmem:[#allocation5 + $0x18fc] sm:$0xff]
    %v974 = vld [vmem:[#allocation5 + $0x1904] sm:$0xff]
    %v975 = vld [vmem:[#allocation5 + $0x190c] sm:$0xff]
    %v976 = vld [vmem:[#allocation5 + $0x1914] sm:$0xff]
    %v977 = vld [vmem:[#allocation5 + $0x191c] sm:$0xff]
    %v978 = vld [vmem:[#allocation5 + $0x1924] sm:$0xff]
    %v979 = vld [vmem:[#allocation5 + $0x192c] sm:$0xf]
    %v980 = vld [vmem:[#allocation5 + $0x1930] sm:$0xff]
    %v981 = vld [vmem:[#allocation5 + $0x1938] sm:$0xff]
    %v982 = vld [vmem:[#allocation5 + $0x1940] sm:$0xff]
    %v983 = vld [vmem:[#allocation5 + $0x1948] sm:$0xff]
    %v984 = vld [vmem:[#allocation5 + $0x1950] sm:$0xff]
    %v985 = vld [vmem:[#allocation5 + $0x1958] sm:$0xff]
    %v986 = vld [vmem:[#allocation5 + $0x1960] sm:$0xf]
    %v987 = vld [vmem:[#allocation5 + $0x1964] sm:$0xff]
    %v988 = vld [vmem:[#allocation5 + $0x196c] sm:$0xff]
    %v989 = vld [vmem:[#allocation5 + $0x1974] sm:$0xff]
    %v990 = vld [vmem:[#allocation5 + $0x197c] sm:$0xff]
    %v991 = vld [vmem:[#allocation5 + $0x1984] sm:$0xff]
    %v992 = vld [vmem:[#allocation5 + $0x198c] sm:$0xff]
    %v993 = vld [vmem:[#allocation5 + $0x1994] sm:$0xf]
    %v994 = vld [vmem:[#allocation5 + $0x1998] sm:$0xff]
    %v995 = vld [vmem:[#allocation5 + $0x19a0] sm:$0xff]
    %v996 = vld [vmem:[#allocation5 + $0x19a8] sm:$0xff]
    %v997 = vld [vmem:[#allocation5 + $0x19b0] sm:$0xff]
    %v998 = vld [vmem:[#allocation5 + $0x19b8] sm:$0xff]
    %v999 = vld [vmem:[#allocation5 + $0x19c0] sm:$0xff]
    %v1000 = vld [vmem:[#allocation5 + $0x19c8] sm:$0xf]
    %v1001 = vld [vmem:[#allocation5 + $0x19cc] sm:$0xff]
    %v1002 = vld [vmem:[#allocation5 + $0x19d4] sm:$0xff]
    %v1003 = vld [vmem:[#allocation5 + $0x19dc] sm:$0xff]
    %v1004 = vld [vmem:[#allocation5 + $0x19e4] sm:$0xff]
    %v1005 = vld [vmem:[#allocation5 + $0x19ec] sm:$0xff]
    %v1006 = vld [vmem:[#allocation5 + $0x19f4] sm:$0xff]
    %v1007 = vld [vmem:[#allocation5 + $0x19fc] sm:$0xf]
    %v1008 = vld [vmem:[#allocation5 + $0x1a00] sm:$0xff]
    %v1009 = vld [vmem:[#allocation5 + $0x1a08] sm:$0xff]
    %v1010 = vld [vmem:[#allocation5 + $0x1a10] sm:$0xff]
    %v1011 = vld [vmem:[#allocation5 + $0x1a18] sm:$0xff]
    %v1012 = vld [vmem:[#allocation5 + $0x1a20] sm:$0xff]
    %v1013 = vld [vmem:[#allocation5 + $0x1a28] sm:$0xff]
    %v1014 = vld [vmem:[#allocation5 + $0x1a30] sm:$0xf]
    %v1015 = vld [vmem:[#allocation5 + $0x1a34] sm:$0xff]
    %v1016 = vld [vmem:[#allocation5 + $0x1a3c] sm:$0xff]
    %v1017 = vld [vmem:[#allocation5 + $0x1a44] sm:$0xff]
    %v1018 = vld [vmem:[#allocation5 + $0x1a4c] sm:$0xff]
    %v1019 = vld [vmem:[#allocation5 + $0x1a54] sm:$0xff]
    %v1020 = vld [vmem:[#allocation5 + $0x1a5c] sm:$0xff]
    %v1021 = vld [vmem:[#allocation5 + $0x1a64] sm:$0xf]
    %v1022 = vld [vmem:[#allocation5 + $0x1a68] sm:$0xff]
    %v1023 = vld [vmem:[#allocation5 + $0x1a70] sm:$0xff]
    %v1024 = vld [vmem:[#allocation5 + $0x1a78] sm:$0xff]
    %v1025 = vld [vmem:[#allocation5 + $0x1a80] sm:$0xff]
    %v1026 = vld [vmem:[#allocation5 + $0x1a88] sm:$0xff]
    %v1027 = vld [vmem:[#allocation5 + $0x1a90] sm:$0xff]
    %v1028 = vld [vmem:[#allocation5 + $0x1a98] sm:$0xf]
    %v1029 = vld [vmem:[#allocation5 + $0x1a9c] sm:$0xff]
    %v1030 = vld [vmem:[#allocation5 + $0x1aa4] sm:$0xff]
    %v1031 = vld [vmem:[#allocation5 + $0x1aac] sm:$0xff]
    %v1032 = vld [vmem:[#allocation5 + $0x1ab4] sm:$0xff]
    %v1033 = vld [vmem:[#allocation5 + $0x1abc] sm:$0xff]
    %v1034 = vld [vmem:[#allocation5 + $0x1ac4] sm:$0xff]
    %v1035 = vld [vmem:[#allocation5 + $0x1acc] sm:$0xf]
    %v1036 = vld [vmem:[#allocation5 + $0x1ad0] sm:$0xff]
    %v1037 = vld [vmem:[#allocation5 + $0x1ad8] sm:$0xff]
    %v1038 = vld [vmem:[#allocation5 + $0x1ae0] sm:$0xff]
    %v1039 = vld [vmem:[#allocation5 + $0x1ae8] sm:$0xff]
    %v1040 = vld [vmem:[#allocation5 + $0x1af0] sm:$0xff]
    %v1041 = vld [vmem:[#allocation5 + $0x1af8] sm:$0xff]
    %v1042 = vld [vmem:[#allocation5 + $0x1b00] sm:$0xf]
    %v1043 = vld [vmem:[#allocation5 + $0x1b04] sm:$0xff]
    %v1044 = vld [vmem:[#allocation5 + $0x1b0c] sm:$0xff]
    %v1045 = vld [vmem:[#allocation5 + $0x1b14] sm:$0xff]
    %v1046 = vld [vmem:[#allocation5 + $0x1b1c] sm:$0xff]
    %v1047 = vld [vmem:[#allocation5 + $0x1b24] sm:$0xff]
    %v1048 = vld [vmem:[#allocation5 + $0x1b2c] sm:$0xff]
    %v1049 = vld [vmem:[#allocation5 + $0x1b34] sm:$0xf]
    %v1050 = vld [vmem:[#allocation5 + $0x1b38] sm:$0xff]
    %v1051 = vld [vmem:[#allocation5 + $0x1b40] sm:$0xff]
    %v1052 = vld [vmem:[#allocation5 + $0x1b48] sm:$0xff]
    %v1053 = vld [vmem:[#allocation5 + $0x1b50] sm:$0xff]
    %v1054 = vld [vmem:[#allocation5 + $0x1b58] sm:$0xff]
    %v1055 = vld [vmem:[#allocation5 + $0x1b60] sm:$0xff]
    %v1056 = vld [vmem:[#allocation5 + $0x1b68] sm:$0xf]
    %v1057 = vld [vmem:[#allocation5 + $0x1b6c] sm:$0xff]
    %v1058 = vld [vmem:[#allocation5 + $0x1b74] sm:$0xff]
    %v1059 = vld [vmem:[#allocation5 + $0x1b7c] sm:$0xff]
    %v1060 = vld [vmem:[#allocation5 + $0x1b84] sm:$0xff]
    %v1061 = vld [vmem:[#allocation5 + $0x1b8c] sm:$0xff]
    %v1062 = vld [vmem:[#allocation5 + $0x1b94] sm:$0xff]
    %v1063 = vld [vmem:[#allocation5 + $0x1b9c] sm:$0xf]
    %v1064 = vld [vmem:[#allocation5 + $0x1ba0] sm:$0xff]
    %v1065 = vld [vmem:[#allocation5 + $0x1ba8] sm:$0xff]
    %v1066 = vld [vmem:[#allocation5 + $0x1bb0] sm:$0xff]
    %v1067 = vld [vmem:[#allocation5 + $0x1bb8] sm:$0xff]
    %v1068 = vld [vmem:[#allocation5 + $0x1bc0] sm:$0xff]
    %v1069 = vld [vmem:[#allocation5 + $0x1bc8] sm:$0xff]
    %v1070 = vld [vmem:[#allocation5 + $0x1bd0] sm:$0xf]
    %v1071 = vld [vmem:[#allocation5 + $0x1bd4] sm:$0xff]
    %v1072 = vld [vmem:[#allocation5 + $0x1bdc] sm:$0xff]
    %v1073 = vld [vmem:[#allocation5 + $0x1be4] sm:$0xff]
    %v1074 = vld [vmem:[#allocation5 + $0x1bec] sm:$0xff]
    %v1075 = vld [vmem:[#allocation5 + $0x1bf4] sm:$0xff]
    %v1076 = vld [vmem:[#allocation5 + $0x1bfc] sm:$0xff]
    %v1077 = vld [vmem:[#allocation5 + $0x1c04] sm:$0xf]
    %v1078 = vld [vmem:[#allocation5 + $0x1c08] sm:$0xff]
    %v1079 = vld [vmem:[#allocation5 + $0x1c10] sm:$0xff]
    %v1080 = vld [vmem:[#allocation5 + $0x1c18] sm:$0xff]
    %v1081 = vld [vmem:[#allocation5 + $0x1c20] sm:$0xff]
    %v1082 = vld [vmem:[#allocation5 + $0x1c28] sm:$0xff]
    %v1083 = vld [vmem:[#allocation5 + $0x1c30] sm:$0xff]
    %v1084 = vld [vmem:[#allocation5 + $0x1c38] sm:$0xf]
    %v1085 = vld [vmem:[#allocation5 + $0x1c3c] sm:$0xff]
    %v1086 = vld [vmem:[#allocation5 + $0x1c44] sm:$0xff]
    %v1087 = vld [vmem:[#allocation5 + $0x1c4c] sm:$0xff]
    %v1088 = vld [vmem:[#allocation5 + $0x1c54] sm:$0xff]
    %v1089 = vld [vmem:[#allocation5 + $0x1c5c] sm:$0xff]
    %v1090 = vld [vmem:[#allocation5 + $0x1c64] sm:$0xff]
    %v1091 = vld [vmem:[#allocation5 + $0x1c6c] sm:$0xf]
    %v1092 = vld [vmem:[#allocation5 + $0x1c70] sm:$0xff]
    %v1093 = vld [vmem:[#allocation5 + $0x1c78] sm:$0xff]
    %v1094 = vld [vmem:[#allocation5 + $0x1c80] sm:$0xff]
    %v1095 = vld [vmem:[#allocation5 + $0x1c88] sm:$0xff]
    %v1096 = vld [vmem:[#allocation5 + $0x1c90] sm:$0xff]
    %v1097 = vld [vmem:[#allocation5 + $0x1c98] sm:$0xff]
    %v1098 = vld [vmem:[#allocation5 + $0x1ca0] sm:$0xf]
    %v1099 = vld [vmem:[#allocation5 + $0x1ca4] sm:$0xff]
    %v1100 = vld [vmem:[#allocation5 + $0x1cac] sm:$0xff]
    %v1101 = vld [vmem:[#allocation5 + $0x1cb4] sm:$0xff]
    %v1102 = vld [vmem:[#allocation5 + $0x1cbc] sm:$0xff]
    %v1103 = vld [vmem:[#allocation5 + $0x1cc4] sm:$0xff]
    %v1104 = vld [vmem:[#allocation5 + $0x1ccc] sm:$0xff]
    %v1105 = vld [vmem:[#allocation5 + $0x1cd4] sm:$0xf]
    %v1106 = vld [vmem:[#allocation5 + $0x1cd8] sm:$0xff]
    %v1107 = vld [vmem:[#allocation5 + $0x1ce0] sm:$0xff]
    %v1108 = vld [vmem:[#allocation5 + $0x1ce8] sm:$0xff]
    %v1109 = vld [vmem:[#allocation5 + $0x1cf0] sm:$0xff]
    %v1110 = vld [vmem:[#allocation5 + $0x1cf8] sm:$0xff]
    %v1111 = vld [vmem:[#allocation5 + $0x1d00] sm:$0xff]
    %v1112 = vld [vmem:[#allocation5 + $0x1d08] sm:$0xf]
    %v1113 = vld [vmem:[#allocation5 + $0x1d0c] sm:$0xff]
    %v1114 = vld [vmem:[#allocation5 + $0x1d14] sm:$0xff]
    %v1115 = vld [vmem:[#allocation5 + $0x1d1c] sm:$0xff]
    %v1116 = vld [vmem:[#allocation5 + $0x1d24] sm:$0xff]
    %v1117 = vld [vmem:[#allocation5 + $0x1d2c] sm:$0xff]
    %v1118 = vld [vmem:[#allocation5 + $0x1d34] sm:$0xff]
    %v1119 = vld [vmem:[#allocation5 + $0x1d3c] sm:$0xf]
    %v1120 = vld [vmem:[#allocation5 + $0x1d40] sm:$0xff]
    %v1121 = vld [vmem:[#allocation5 + $0x1d48] sm:$0xff]
    %v1122 = vld [vmem:[#allocation5 + $0x1d50] sm:$0xff]
    %v1123 = vld [vmem:[#allocation5 + $0x1d58] sm:$0xff]
    %v1124 = vld [vmem:[#allocation5 + $0x1d60] sm:$0xff]
    %v1125 = vld [vmem:[#allocation5 + $0x1d68] sm:$0xff]
    %v1126 = vld [vmem:[#allocation5 + $0x1d70] sm:$0xf]
    %v1127 = vld [vmem:[#allocation5 + $0x1d74] sm:$0xff]
    %v1128 = vld [vmem:[#allocation5 + $0x1d7c] sm:$0xff]
    %v1129 = vld [vmem:[#allocation5 + $0x1d84] sm:$0xff]
    %v1130 = vld [vmem:[#allocation5 + $0x1d8c] sm:$0xff]
    %v1131 = vld [vmem:[#allocation5 + $0x1d94] sm:$0xff]
    %v1132 = vld [vmem:[#allocation5 + $0x1d9c] sm:$0xff]
    %v1133 = vld [vmem:[#allocation5 + $0x1da4] sm:$0xf]
    %v1134 = vld [vmem:[#allocation5 + $0x1da8] sm:$0xff]
    %v1135 = vld [vmem:[#allocation5 + $0x1db0] sm:$0xff]
    %v1136 = vld [vmem:[#allocation5 + $0x1db8] sm:$0xff]
    %v1137 = vld [vmem:[#allocation5 + $0x1dc0] sm:$0xff]
    %v1138 = vld [vmem:[#allocation5 + $0x1dc8] sm:$0xff]
    %v1139 = vld [vmem:[#allocation5 + $0x1dd0] sm:$0xff]
    %v1140 = vld [vmem:[#allocation5 + $0x1dd8] sm:$0xf]
    %v1141 = vld [vmem:[#allocation5 + $0x1ddc] sm:$0xff]
    %v1142 = vld [vmem:[#allocation5 + $0x1de4] sm:$0xff]
    %v1143 = vld [vmem:[#allocation5 + $0x1dec] sm:$0xff]
    %v1144 = vld [vmem:[#allocation5 + $0x1df4] sm:$0xff]
    %v1145 = vld [vmem:[#allocation5 + $0x1dfc] sm:$0xff]
    %v1146 = vld [vmem:[#allocation5 + $0x1e04] sm:$0xff]
    %v1147 = vld [vmem:[#allocation5 + $0x1e0c] sm:$0xf]
    %v1148 = vld [vmem:[#allocation5 + $0x1e10] sm:$0xff]
    %v1149 = vld [vmem:[#allocation5 + $0x1e18] sm:$0xff]
    %v1150 = vld [vmem:[#allocation5 + $0x1e20] sm:$0xff]
    %v1151 = vld [vmem:[#allocation5 + $0x1e28] sm:$0xff]
    %v1152 = vld [vmem:[#allocation5 + $0x1e30] sm:$0xff]
    %v1153 = vld [vmem:[#allocation5 + $0x1e38] sm:$0xff]
    %v1154 = vld [vmem:[#allocation5 + $0x1e40] sm:$0xf]
    %v1155 = vld [vmem:[#allocation5 + $0x1e44] sm:$0xff]
    %v1156 = vld [vmem:[#allocation5 + $0x1e4c] sm:$0xff]
    %v1157 = vld [vmem:[#allocation5 + $0x1e54] sm:$0xff]
    %v1158 = vld [vmem:[#allocation5 + $0x1e5c] sm:$0xff]
    %v1159 = vld [vmem:[#allocation5 + $0x1e64] sm:$0xff]
    %v1160 = vld [vmem:[#allocation5 + $0x1e6c] sm:$0xff]
    %v1161 = vld [vmem:[#allocation5 + $0x1e74] sm:$0xf]
    %v1162 = vld [vmem:[#allocation5 + $0x1e78] sm:$0xff]
    %v1163 = vld [vmem:[#allocation5 + $0x1e80] sm:$0xff]
    %v1164 = vld [vmem:[#allocation5 + $0x1e88] sm:$0xff]
    %v1165 = vld [vmem:[#allocation5 + $0x1e90] sm:$0xff]
    %v1166 = vld [vmem:[#allocation5 + $0x1e98] sm:$0xff]
    %v1167 = vld [vmem:[#allocation5 + $0x1ea0] sm:$0xff]
    %v1168 = vld [vmem:[#allocation5 + $0x1ea8] sm:$0xf]
    %v1169 = vld [vmem:[#allocation5 + $0x1eac] sm:$0xff]
    %v1170 = vld [vmem:[#allocation5 + $0x1eb4] sm:$0xff]
    %v1171 = vld [vmem:[#allocation5 + $0x1ebc] sm:$0xff]
    %v1172 = vld [vmem:[#allocation5 + $0x1ec4] sm:$0xff]
    %v1173 = vld [vmem:[#allocation5 + $0x1ecc] sm:$0xff]
    %v1174 = vld [vmem:[#allocation5 + $0x1ed4] sm:$0xff]
    %v1175 = vld [vmem:[#allocation5 + $0x1edc] sm:$0xf]
    %v1176 = vld [vmem:[#allocation5 + $0x1ee0] sm:$0xff]
    %v1177 = vld [vmem:[#allocation5 + $0x1ee8] sm:$0xff]
    %v1178 = vld [vmem:[#allocation5 + $0x1ef0] sm:$0xff]
    %v1179 = vld [vmem:[#allocation5 + $0x1ef8] sm:$0xff]
    %v1180 = vld [vmem:[#allocation5 + $0x1f00] sm:$0xff]
    %v1181 = vld [vmem:[#allocation5 + $0x1f08] sm:$0xff]
    %v1182 = vld [vmem:[#allocation5 + $0x1f10] sm:$0xf]
    %v1183 = vld [vmem:[#allocation5 + $0x1f14] sm:$0xff]
    %v1184 = vld [vmem:[#allocation5 + $0x1f1c] sm:$0xff]
    %v1185 = vld [vmem:[#allocation5 + $0x1f24] sm:$0xff]
    %v1186 = vld [vmem:[#allocation5 + $0x1f2c] sm:$0xff]
    %v1187 = vld [vmem:[#allocation5 + $0x1f34] sm:$0xff]
    %v1188 = vld [vmem:[#allocation5 + $0x1f3c] sm:$0xff]
    %v1189 = vld [vmem:[#allocation5 + $0x1f44] sm:$0xf]
    %v1190 = vld [vmem:[#allocation5 + $0x1f48] sm:$0xff]
    %v1191 = vld [vmem:[#allocation5 + $0x1f50] sm:$0xff]
    %v1192 = vld [vmem:[#allocation5 + $0x1f58] sm:$0xff]
    %v1193 = vld [vmem:[#allocation5 + $0x1f60] sm:$0xff]
    %v1194 = vld [vmem:[#allocation5 + $0x1f68] sm:$0xff]
    %v1195 = vld [vmem:[#allocation5 + $0x1f70] sm:$0xff]
    %v1196 = vld [vmem:[#allocation5 + $0x1f78] sm:$0xf]
    %v1197 = vld [vmem:[#allocation5 + $0x1f7c] sm:$0xff]
    %v1198 = vld [vmem:[#allocation5 + $0x1f84] sm:$0xff]
    %v1199 = vld [vmem:[#allocation5 + $0x1f8c] sm:$0xff]
    %v1200 = vld [vmem:[#allocation5 + $0x1f94] sm:$0xff]
    %v1201 = vld [vmem:[#allocation5 + $0x1f9c] sm:$0xff]
    %v1202 = vld [vmem:[#allocation5 + $0x1fa4] sm:$0xff]
    %v1203 = vld [vmem:[#allocation5 + $0x1fac] sm:$0xf]
    %v1204 = vld [vmem:[#allocation5 + $0x1fb0] sm:$0xff]
    %v1205 = vld [vmem:[#allocation5 + $0x1fb8] sm:$0xff]
    %v1206 = vld [vmem:[#allocation5 + $0x1fc0] sm:$0xff]
    %v1207 = vld [vmem:[#allocation5 + $0x1fc8] sm:$0xff]
    %v1208 = vld [vmem:[#allocation5 + $0x1fd0] sm:$0xff]
    %v1209 = vld [vmem:[#allocation5 + $0x1fd8] sm:$0xff]
    %v1210 = vld [vmem:[#allocation5 + $0x1fe0] sm:$0xf]
    %v1211 = vld [vmem:[#allocation5 + $0x1fe4] sm:$0xff]
    %v1212 = vld [vmem:[#allocation5 + $0x1fec] sm:$0xff]
    %v1213 = vld [vmem:[#allocation5 + $0x1ff4] sm:$0xff]
    %v1214 = vld [vmem:[#allocation5 + $0x1ffc] sm:$0xff]
    %v1215 = vld [vmem:[#allocation5 + $0x2004] sm:$0xff]
    %v1216 = vld [vmem:[#allocation5 + $0x200c] sm:$0xff]
    %v1217 = vld [vmem:[#allocation5 + $0x2014] sm:$0xf]
    %v1218 = vld [vmem:[#allocation5 + $0x2018] sm:$0xff]
    %v1219 = vld [vmem:[#allocation5 + $0x2020] sm:$0xff]
    %v1220 = vld [vmem:[#allocation5 + $0x2028] sm:$0xff]
    %v1221 = vld [vmem:[#allocation5 + $0x2030] sm:$0xff]
    %v1222 = vld [vmem:[#allocation5 + $0x2038] sm:$0xff]
    %v1223 = vld [vmem:[#allocation5 + $0x2040] sm:$0xff]
    %v1224 = vld [vmem:[#allocation5 + $0x2048] sm:$0xf]
    %v1225 = vld [vmem:[#allocation5 + $0x204c] sm:$0xff]
    %v1226 = vld [vmem:[#allocation5 + $0x2054] sm:$0xff]
    %v1227 = vld [vmem:[#allocation5 + $0x205c] sm:$0xff]
    %v1228 = vld [vmem:[#allocation5 + $0x2064] sm:$0xff]
    %v1229 = vld [vmem:[#allocation5 + $0x206c] sm:$0xff]
    %v1230 = vld [vmem:[#allocation5 + $0x2074] sm:$0xff]
    %v1231 = vld [vmem:[#allocation5 + $0x207c] sm:$0xf]
    %v1232 = vld [vmem:[#allocation5 + $0x2080] sm:$0xff]
    %v1233 = vld [vmem:[#allocation5 + $0x2088] sm:$0xff]
    %v1234 = vld [vmem:[#allocation5 + $0x2090] sm:$0xff]
    %v1235 = vld [vmem:[#allocation5 + $0x2098] sm:$0xff]
    %v1236 = vld [vmem:[#allocation5 + $0x20a0] sm:$0xff]
    %v1237 = vld [vmem:[#allocation5 + $0x20a8] sm:$0xff]
    %v1238 = vld [vmem:[#allocation5 + $0x20b0] sm:$0xf]
    %v1239 = vld [vmem:[#allocation5 + $0x20b4] sm:$0xff]
    %v1240 = vld [vmem:[#allocation5 + $0x20bc] sm:$0xff]
    %v1241 = vld [vmem:[#allocation5 + $0x20c4] sm:$0xff]
    %v1242 = vld [vmem:[#allocation5 + $0x20cc] sm:$0xff]
    %v1243 = vld [vmem:[#allocation5 + $0x20d4] sm:$0xff]
    %v1244 = vld [vmem:[#allocation5 + $0x20dc] sm:$0xff]
    %v1245 = vld [vmem:[#allocation5 + $0x20e4] sm:$0xf]
    %v1246 = vld [vmem:[#allocation5 + $0x20e8] sm:$0xff]
    %v1247 = vld [vmem:[#allocation5 + $0x20f0] sm:$0xff]
    %v1248 = vld [vmem:[#allocation5 + $0x20f8] sm:$0xff]
    %v1249 = vld [vmem:[#allocation5 + $0x2100] sm:$0xff]
    %v1250 = vld [vmem:[#allocation5 + $0x2108] sm:$0xff]
    %v1251 = vld [vmem:[#allocation5 + $0x2110] sm:$0xff]
    %v1252 = vld [vmem:[#allocation5 + $0x2118] sm:$0xf]
    %v1253 = vld [vmem:[#allocation5 + $0x211c] sm:$0xff]
    %v1254 = vld [vmem:[#allocation5 + $0x2124] sm:$0xff]
    %v1255 = vld [vmem:[#allocation5 + $0x212c] sm:$0xff]
    %v1256 = vld [vmem:[#allocation5 + $0x2134] sm:$0xff]
    %v1257 = vld [vmem:[#allocation5 + $0x213c] sm:$0xff]
    %v1258 = vld [vmem:[#allocation5 + $0x2144] sm:$0xff]
    %v1259 = vld [vmem:[#allocation5 + $0x214c] sm:$0xf]
    %v1260 = vld [vmem:[#allocation5 + $0x2150] sm:$0xff]
    %v1261 = vld [vmem:[#allocation5 + $0x2158] sm:$0xff]
    %v1262 = vld [vmem:[#allocation5 + $0x2160] sm:$0xff]
    %v1263 = vld [vmem:[#allocation5 + $0x2168] sm:$0xff]
    %v1264 = vld [vmem:[#allocation5 + $0x2170] sm:$0xff]
    %v1265 = vld [vmem:[#allocation5 + $0x2178] sm:$0xff]
    %v1266 = vld [vmem:[#allocation5 + $0x2180] sm:$0xf]
    %v1267 = vld [vmem:[#allocation5 + $0x2184] sm:$0xff]
    %v1268 = vld [vmem:[#allocation5 + $0x218c] sm:$0xff]
    %v1269 = vld [vmem:[#allocation5 + $0x2194] sm:$0xff]
    %v1270 = vld [vmem:[#allocation5 + $0x219c] sm:$0xff]
    %v1271 = vld [vmem:[#allocation5 + $0x21a4] sm:$0xff]
    %v1272 = vld [vmem:[#allocation5 + $0x21ac] sm:$0xff]
    %v1273 = vld [vmem:[#allocation5 + $0x21b4] sm:$0xf]
    %v1274 = vld [vmem:[#allocation5 + $0x21b8] sm:$0xff]
    %v1275 = vld [vmem:[#allocation5 + $0x21c0] sm:$0xff]
    %v1276 = vld [vmem:[#allocation5 + $0x21c8] sm:$0xff]
    %v1277 = vld [vmem:[#allocation5 + $0x21d0] sm:$0xff]
    %v1278 = vld [vmem:[#allocation5 + $0x21d8] sm:$0xff]
    %v1279 = vld [vmem:[#allocation5 + $0x21e0] sm:$0xff]
    %v1280 = vld [vmem:[#allocation5 + $0x21e8] sm:$0xf]
    %v1281 = vld [vmem:[#allocation5 + $0x21ec] sm:$0xff]
    %v1282 = vld [vmem:[#allocation5 + $0x21f4] sm:$0xff]
    %v1283 = vld [vmem:[#allocation5 + $0x21fc] sm:$0xff]
    %v1284 = vld [vmem:[#allocation5 + $0x2204] sm:$0xff]
    %v1285 = vld [vmem:[#allocation5 + $0x220c] sm:$0xff]
    %v1286 = vld [vmem:[#allocation5 + $0x2214] sm:$0xff]
    %v1287 = vld [vmem:[#allocation5 + $0x221c] sm:$0xf]
    %v1288 = vld [vmem:[#allocation5 + $0x2220] sm:$0xff]
    %v1289 = vld [vmem:[#allocation5 + $0x2228] sm:$0xff]
    %v1290 = vld [vmem:[#allocation5 + $0x2230] sm:$0xff]
    %v1291 = vld [vmem:[#allocation5 + $0x2238] sm:$0xff]
    %v1292 = vld [vmem:[#allocation5 + $0x2240] sm:$0xff]
    %v1293 = vld [vmem:[#allocation5 + $0x2248] sm:$0xff]
    %v1294 = vld [vmem:[#allocation5 + $0x2250] sm:$0xf]
    %v1295 = vld [vmem:[#allocation5 + $0x2254] sm:$0xff]
    %v1296 = vld [vmem:[#allocation5 + $0x225c] sm:$0xff]
    %v1297 = vld [vmem:[#allocation5 + $0x2264] sm:$0xff]
    %v1298 = vld [vmem:[#allocation5 + $0x226c] sm:$0xff]
    %v1299 = vld [vmem:[#allocation5 + $0x2274] sm:$0xff]
    %v1300 = vld [vmem:[#allocation5 + $0x227c] sm:$0xff]
    %v1301 = vld [vmem:[#allocation5 + $0x2284] sm:$0xf]
    %v1302 = vld [vmem:[#allocation5 + $0x2288] sm:$0xff]
    %v1303 = vld [vmem:[#allocation5 + $0x2290] sm:$0xff]
    %v1304 = vld [vmem:[#allocation5 + $0x2298] sm:$0xff]
    %v1305 = vld [vmem:[#allocation5 + $0x22a0] sm:$0xff]
    %v1306 = vld [vmem:[#allocation5 + $0x22a8] sm:$0xff]
    %v1307 = vld [vmem:[#allocation5 + $0x22b0] sm:$0xff]
    %v1308 = vld [vmem:[#allocation5 + $0x22b8] sm:$0xf]
    %v1309 = vld [vmem:[#allocation5 + $0x22bc] sm:$0xff]
    %v1310 = vld [vmem:[#allocation5 + $0x22c4] sm:$0xff]
    %v1311 = vld [vmem:[#allocation5 + $0x22cc] sm:$0xff]
    %v1312 = vld [vmem:[#allocation5 + $0x22d4] sm:$0xff]
    %v1313 = vld [vmem:[#allocation5 + $0x22dc] sm:$0xff]
    %v1314 = vld [vmem:[#allocation5 + $0x22e4] sm:$0xff]
    %v1315 = vld [vmem:[#allocation5 + $0x22ec] sm:$0xf]
    %v1316 = vld [vmem:[#allocation5 + $0x22f0] sm:$0xff]
    %v1317 = vld [vmem:[#allocation5 + $0x22f8] sm:$0xff]
    %v1318 = vld [vmem:[#allocation5 + $0x2300] sm:$0xff]
    %v1319 = vld [vmem:[#allocation5 + $0x2308] sm:$0xff]
    %v1320 = vld [vmem:[#allocation5 + $0x2310] sm:$0xff]
    %v1321 = vld [vmem:[#allocation5 + $0x2318] sm:$0xff]
    %v1322 = vld [vmem:[#allocation5 + $0x2320] sm:$0xf]
    %v1323 = vld [vmem:[#allocation5 + $0x2324] sm:$0xff]
    %v1324 = vld [vmem:[#allocation5 + $0x232c] sm:$0xff]
    %v1325 = vld [vmem:[#allocation5 + $0x2334] sm:$0xff]
    %v1326 = vld [vmem:[#allocation5 + $0x233c] sm:$0xff]
    %v1327 = vld [vmem:[#allocation5 + $0x2344] sm:$0xff]
    %v1328 = vld [vmem:[#allocation5 + $0x234c] sm:$0xff]
    %v1329 = vld [vmem:[#allocation5 + $0x2354] sm:$0xf]
    %v1330 = vld [vmem:[#allocation5 + $0x2358] sm:$0xff]
    %v1331 = vld [vmem:[#allocation5 + $0x2360] sm:$0xff]
    %v1332 = vld [vmem:[#allocation5 + $0x2368] sm:$0xff]
    %v1333 = vld [vmem:[#allocation5 + $0x2370] sm:$0xff]
    %v1334 = vld [vmem:[#allocation5 + $0x2378] sm:$0xff]
    %v1335 = vld [vmem:[#allocation5 + $0x2380] sm:$0xff]
    %v1336 = vld [vmem:[#allocation5 + $0x2388] sm:$0xf]
    %v1337 = vld [vmem:[#allocation5 + $0x238c] sm:$0xff]
    %v1338 = vld [vmem:[#allocation5 + $0x2394] sm:$0xff]
    %v1339 = vld [vmem:[#allocation5 + $0x239c] sm:$0xff]
    %v1340 = vld [vmem:[#allocation5 + $0x23a4] sm:$0xff]
    %v1341 = vld [vmem:[#allocation5 + $0x23ac] sm:$0xff]
    %v1342 = vld [vmem:[#allocation5 + $0x23b4] sm:$0xff]
    %v1343 = vld [vmem:[#allocation5 + $0x23bc] sm:$0xf]
    %v1344 = vld [vmem:[#allocation5 + $0x23c0] sm:$0xff]
    %v1345 = vld [vmem:[#allocation5 + $0x23c8] sm:$0xff]
    %v1346 = vld [vmem:[#allocation5 + $0x23d0] sm:$0xff]
    %v1347 = vld [vmem:[#allocation5 + $0x23d8] sm:$0xff]
    %v1348 = vld [vmem:[#allocation5 + $0x23e0] sm:$0xff]
    %v1349 = vld [vmem:[#allocation5 + $0x23e8] sm:$0xff]
    %v1350 = vld [vmem:[#allocation5 + $0x23f0] sm:$0xf]
    %v1351 = vld [vmem:[#allocation5 + $0x23f4] sm:$0xff]
    %v1352 = vld [vmem:[#allocation5 + $0x23fc] sm:$0xff]
    %v1353 = vld [vmem:[#allocation5 + $0x2404] sm:$0xff]
    %v1354 = vld [vmem:[#allocation5 + $0x240c] sm:$0xff]
    %v1355 = vld [vmem:[#allocation5 + $0x2414] sm:$0xff]
    %v1356 = vld [vmem:[#allocation5 + $0x241c] sm:$0xff]
    %v1357 = vld [vmem:[#allocation5 + $0x2424] sm:$0xf]
    %v1358 = vld [vmem:[#allocation5 + $0x2428] sm:$0xff]
    %v1359 = vld [vmem:[#allocation5 + $0x2430] sm:$0xff]
    %v1360 = vld [vmem:[#allocation5 + $0x2438] sm:$0xff]
    %v1361 = vld [vmem:[#allocation5 + $0x2440] sm:$0xff]
    %v1362 = vld [vmem:[#allocation5 + $0x2448] sm:$0xff]
    %v1363 = vld [vmem:[#allocation5 + $0x2450] sm:$0xff]
    %v1364 = vld [vmem:[#allocation5 + $0x2458] sm:$0xf]
    %v1365 = vld [vmem:[#allocation5 + $0x245c] sm:$0xff]
    %v1366 = vld [vmem:[#allocation5 + $0x2464] sm:$0xff]
    %v1367 = vld [vmem:[#allocation5 + $0x246c] sm:$0xff]
    %v1368 = vld [vmem:[#allocation5 + $0x2474] sm:$0xff]
    %v1369 = vld [vmem:[#allocation5 + $0x247c] sm:$0xff]
    %v1370 = vld [vmem:[#allocation5 + $0x2484] sm:$0xff]
    %v1371 = vld [vmem:[#allocation5 + $0x248c] sm:$0xf]
    %v1372 = vld [vmem:[#allocation5 + $0x2490] sm:$0xff]
    %v1373 = vld [vmem:[#allocation5 + $0x2498] sm:$0xff]
    %v1374 = vld [vmem:[#allocation5 + $0x24a0] sm:$0xff]
    %v1375 = vld [vmem:[#allocation5 + $0x24a8] sm:$0xff]
    %v1376 = vld [vmem:[#allocation5 + $0x24b0] sm:$0xff]
    %v1377 = vld [vmem:[#allocation5 + $0x24b8] sm:$0xff]
    %v1378 = vld [vmem:[#allocation5 + $0x24c0] sm:$0xf]
    %v1379 = vld [vmem:[#allocation5 + $0x24c4] sm:$0xff]
    %v1380 = vld [vmem:[#allocation5 + $0x24cc] sm:$0xff]
    %v1381 = vld [vmem:[#allocation5 + $0x24d4] sm:$0xff]
    %v1382 = vld [vmem:[#allocation5 + $0x24dc] sm:$0xff]
    %v1383 = vld [vmem:[#allocation5 + $0x24e4] sm:$0xff]
    %v1384 = vld [vmem:[#allocation5 + $0x24ec] sm:$0xff]
    %v1385 = vld [vmem:[#allocation5 + $0x24f4] sm:$0xf]
    %v1386 = vld [vmem:[#allocation5 + $0x24f8] sm:$0xff]
    %v1387 = vld [vmem:[#allocation5 + $0x2500] sm:$0xff]
    %v1388 = vld [vmem:[#allocation5 + $0x2508] sm:$0xff]
    %v1389 = vld [vmem:[#allocation5 + $0x2510] sm:$0xff]
    %v1390 = vld [vmem:[#allocation5 + $0x2518] sm:$0xff]
    %v1391 = vld [vmem:[#allocation5 + $0x2520] sm:$0xff]
    %v1392 = vld [vmem:[#allocation5 + $0x2528] sm:$0xf]
    %v1393 = vld [vmem:[#allocation5 + $0x252c] sm:$0xff]
    %v1394 = vld [vmem:[#allocation5 + $0x2534] sm:$0xff]
    %v1395 = vld [vmem:[#allocation5 + $0x253c] sm:$0xff]
    %v1396 = vld [vmem:[#allocation5 + $0x2544] sm:$0xff]
    %v1397 = vld [vmem:[#allocation5 + $0x254c] sm:$0xff]
    %v1398 = vld [vmem:[#allocation5 + $0x2554] sm:$0xff]
    %v1399 = vld [vmem:[#allocation5 + $0x255c] sm:$0xf]
    %v1400 = vld [vmem:[#allocation5 + $0x2560] sm:$0xff]
    %v1401 = vld [vmem:[#allocation5 + $0x2568] sm:$0xff]
    %v1402 = vld [vmem:[#allocation5 + $0x2570] sm:$0xff]
    %v1403 = vld [vmem:[#allocation5 + $0x2578] sm:$0xff]
    %v1404 = vld [vmem:[#allocation5 + $0x2580] sm:$0xff]
    %v1405 = vld [vmem:[#allocation5 + $0x2588] sm:$0xff]
    %v1406 = vld [vmem:[#allocation5 + $0x2590] sm:$0xf]
    %v1407 = vld [vmem:[#allocation5 + $0x2594] sm:$0xff]
    %v1408 = vld [vmem:[#allocation5 + $0x259c] sm:$0xff]
    %v1409 = vld [vmem:[#allocation5 + $0x25a4] sm:$0xff]
    %v1410 = vld [vmem:[#allocation5 + $0x25ac] sm:$0xff]
    %v1411 = vld [vmem:[#allocation5 + $0x25b4] sm:$0xff]
    %v1412 = vld [vmem:[#allocation5 + $0x25bc] sm:$0xff]
    %v1413 = vld [vmem:[#allocation5 + $0x25c4] sm:$0xf]
    %v1414 = vld [vmem:[#allocation7] sm:$0xff]
    %v1415 = vld [vmem:[#allocation7 + $0x8] sm:$0x1f]
    %v1418 = vlaneseq
    %v1419 = vshrl.u32 %v1418, 7
    %v1420 = vsub.s32 0, %v1419
    %v1421 = vrot.slane %v1414, %v1420
    %v1422 = vlaneseq
    %v1423 = vshrl.u32 %v1422, 7
    %v1424 = vsub.s32 1, %v1423
    %v1425 = vrot.slane %v1414, %v1424
    %v1426 = vlaneseq
    %v1427 = vshrl.u32 %v1426, 7
    %v1428 = vsub.s32 2, %v1427
    %v1429 = vrot.slane %v1414, %v1428
    %v1430 = vlaneseq
    %v1431 = vshrl.u32 %v1430, 7
    %v1432 = vsub.s32 3, %v1431
    %v1433 = vrot.slane %v1414, %v1432
    %v1434 = vlaneseq
    %v1435 = vshrl.u32 %v1434, 7
    %v1436 = vsub.s32 4, %v1435
    %v1437 = vrot.slane %v1414, %v1436
    %v1438 = vlaneseq
    %v1439 = vshrl.u32 %v1438, 7
    %v1440 = vsub.s32 5, %v1439
    %v1441 = vrot.slane %v1414, %v1440
    %v1442 = vlaneseq
    %v1443 = vshrl.u32 %v1442, 7
    %v1444 = vsub.s32 6, %v1443
    %v1445 = vrot.slane %v1414, %v1444
    %v1446 = vlaneseq
    %v1447 = vshrl.u32 %v1446, 7
    %v1448 = vsub.s32 7, %v1447
    %v1449 = vrot.slane %v1414, %v1448
    %v1450 = vlaneseq
    %v1451 = vshrl.u32 %v1450, 7
    %v1452 = vsub.s32 0, %v1451
    %v1453 = vrot.slane %v1415, %v1452
    %v1454 = vlaneseq
    %v1455 = vshrl.u32 %v1454, 7
    %v1456 = vsub.s32 1, %v1455
    %v1457 = vrot.slane %v1415, %v1456
    %v1458 = vlaneseq
    %v1459 = vshrl.u32 %v1458, 7
    %v1460 = vsub.s32 2, %v1459
    %v1461 = vrot.slane %v1415, %v1460
    %v1462 = vlaneseq
    %v1463 = vshrl.u32 %v1462, 7
    %v1464 = vsub.s32 3, %v1463
    %v1465 = vrot.slane %v1415, %v1464
    %v1466 = vlaneseq
    %v1467 = vshrl.u32 %v1466, 7
    %v1468 = vsub.s32 4, %v1467
    %v1469 = vrot.slane %v1415, %v1468
    %v2785 = vunpack.c.l.b16 %v112
    %v2786 = vunpack.c.h.b16 %v112
    %v2787 = vunpack.c.l.b16 %v113
    %v2788 = vunpack.c.h.b16 %v113
    %v2789 = vunpack.c.l.b16 %v114
    %v2790 = vunpack.c.h.b16 %v114
    %v2791 = vunpack.c.l.b16 %v115
    %v2792 = vunpack.c.h.b16 %v115
    %v2793 = vunpack.c.l.b16 %v116
    %v2794 = vunpack.c.h.b16 %v116
    %v2795 = vunpack.c.l.b16 %v117
    %v2796 = vunpack.c.h.b16 %v117
    %v2797 = vunpack.c.l.b16 %v118
    %v2798 = vunpack.c.l.b16 %v119
    %v2799 = vunpack.c.h.b16 %v119
    %v2800 = vunpack.c.l.b16 %v120
    %v2801 = vunpack.c.h.b16 %v120
    %v2802 = vunpack.c.l.b16 %v121
    %v2803 = vunpack.c.h.b16 %v121
    %v2804 = vunpack.c.l.b16 %v122
    %v2805 = vunpack.c.h.b16 %v122
    %v2806 = vunpack.c.l.b16 %v123
    %v2807 = vunpack.c.h.b16 %v123
    %v2808 = vunpack.c.l.b16 %v124
    %v2809 = vunpack.c.h.b16 %v124
    %v2810 = vunpack.c.l.b16 %v125
    %v2811 = vunpack.c.l.b16 %v126
    %v2812 = vunpack.c.h.b16 %v126
    %v2813 = vunpack.c.l.b16 %v127
    %v2814 = vunpack.c.h.b16 %v127
    %v2815 = vunpack.c.l.b16 %v128
    %v2816 = vunpack.c.h.b16 %v128
    %v2817 = vunpack.c.l.b16 %v129
    %v2818 = vunpack.c.h.b16 %v129
    %v2819 = vunpack.c.l.b16 %v130
    %v2820 = vunpack.c.h.b16 %v130
    %v2821 = vunpack.c.l.b16 %v131
    %v2822 = vunpack.c.h.b16 %v131
    %v2823 = vunpack.c.l.b16 %v132
    %v2824 = vunpack.c.l.b16 %v133
    %v2825 = vunpack.c.h.b16 %v133
    %v2826 = vunpack.c.l.b16 %v134
    %v2827 = vunpack.c.h.b16 %v134
    %v2828 = vunpack.c.l.b16 %v135
    %v2829 = vunpack.c.h.b16 %v135
    %v2830 = vunpack.c.l.b16 %v136
    %v2831 = vunpack.c.h.b16 %v136
    %v2832 = vunpack.c.l.b16 %v137
    %v2833 = vunpack.c.h.b16 %v137
    %v2834 = vunpack.c.l.b16 %v138
    %v2835 = vunpack.c.h.b16 %v138
    %v2836 = vunpack.c.l.b16 %v139
    %v2837 = vunpack.c.l.b16 %v140
    %v2838 = vunpack.c.h.b16 %v140
    %v2839 = vunpack.c.l.b16 %v141
    %v2840 = vunpack.c.h.b16 %v141
    %v2841 = vunpack.c.l.b16 %v142
    %v2842 = vunpack.c.h.b16 %v142
    %v2843 = vunpack.c.l.b16 %v143
    %v2844 = vunpack.c.h.b16 %v143
    %v2845 = vunpack.c.l.b16 %v144
    %v2846 = vunpack.c.h.b16 %v144
    %v2847 = vunpack.c.l.b16 %v145
    %v2848 = vunpack.c.h.b16 %v145
    %v2849 = vunpack.c.l.b16 %v146
    %v2850 = vunpack.c.l.b16 %v147
    %v2851 = vunpack.c.h.b16 %v147
    %v2852 = vunpack.c.l.b16 %v148
    %v2853 = vunpack.c.h.b16 %v148
    %v2854 = vunpack.c.l.b16 %v149
    %v2855 = vunpack.c.h.b16 %v149
    %v2856 = vunpack.c.l.b16 %v150
    %v2857 = vunpack.c.h.b16 %v150
    %v2858 = vunpack.c.l.b16 %v151
    %v2859 = vunpack.c.h.b16 %v151
    %v2860 = vunpack.c.l.b16 %v152
    %v2861 = vunpack.c.h.b16 %v152
    %v2862 = vunpack.c.l.b16 %v153
    %v2863 = vunpack.c.l.b16 %v154
    %v2864 = vunpack.c.h.b16 %v154
    %v2865 = vunpack.c.l.b16 %v155
    %v2866 = vunpack.c.h.b16 %v155
    %v2867 = vunpack.c.l.b16 %v156
    %v2868 = vunpack.c.h.b16 %v156
    %v2869 = vunpack.c.l.b16 %v157
    %v2870 = vunpack.c.h.b16 %v157
    %v2871 = vunpack.c.l.b16 %v158
    %v2872 = vunpack.c.h.b16 %v158
    %v2873 = vunpack.c.l.b16 %v159
    %v2874 = vunpack.c.h.b16 %v159
    %v2875 = vunpack.c.l.b16 %v160
    %v2876 = vunpack.c.l.b16 %v161
    %v2877 = vunpack.c.h.b16 %v161
    %v2878 = vunpack.c.l.b16 %v162
    %v2879 = vunpack.c.h.b16 %v162
    %v2880 = vunpack.c.l.b16 %v163
    %v2881 = vunpack.c.h.b16 %v163
    %v2882 = vunpack.c.l.b16 %v164
    %v2883 = vunpack.c.h.b16 %v164
    %v2884 = vunpack.c.l.b16 %v165
    %v2885 = vunpack.c.h.b16 %v165
    %v2886 = vunpack.c.l.b16 %v166
    %v2887 = vunpack.c.h.b16 %v166
    %v2888 = vunpack.c.l.b16 %v167
    %v2889 = vunpack.c.l.b16 %v168
    %v2890 = vunpack.c.h.b16 %v168
    %v2891 = vunpack.c.l.b16 %v169
    %v2892 = vunpack.c.h.b16 %v169
    %v2893 = vunpack.c.l.b16 %v170
    %v2894 = vunpack.c.h.b16 %v170
    %v2895 = vunpack.c.l.b16 %v171
    %v2896 = vunpack.c.h.b16 %v171
    %v2897 = vunpack.c.l.b16 %v172
    %v2898 = vunpack.c.h.b16 %v172
    %v2899 = vunpack.c.l.b16 %v173
    %v2900 = vunpack.c.h.b16 %v173
    %v2901 = vunpack.c.l.b16 %v174
    %v2902 = vunpack.c.l.b16 %v175
    %v2903 = vunpack.c.h.b16 %v175
    %v2904 = vunpack.c.l.b16 %v176
    %v2905 = vunpack.c.h.b16 %v176
    %v2906 = vunpack.c.l.b16 %v177
    %v2907 = vunpack.c.h.b16 %v177
    %v2908 = vunpack.c.l.b16 %v178
    %v2909 = vunpack.c.h.b16 %v178
    %v2910 = vunpack.c.l.b16 %v179
    %v2911 = vunpack.c.h.b16 %v179
    %v2912 = vunpack.c.l.b16 %v180
    %v2913 = vunpack.c.h.b16 %v180
    %v2914 = vunpack.c.l.b16 %v181
    %v2915 = vunpack.c.l.b16 %v182
    %v2916 = vunpack.c.h.b16 %v182
    %v2917 = vunpack.c.l.b16 %v183
    %v2918 = vunpack.c.h.b16 %v183
    %v2919 = vunpack.c.l.b16 %v184
    %v2920 = vunpack.c.h.b16 %v184
    %v2921 = vunpack.c.l.b16 %v185
    %v2922 = vunpack.c.h.b16 %v185
    %v2923 = vunpack.c.l.b16 %v186
    %v2924 = vunpack.c.h.b16 %v186
    %v2925 = vunpack.c.l.b16 %v187
    %v2926 = vunpack.c.h.b16 %v187
    %v2927 = vunpack.c.l.b16 %v188
    %v2928 = vunpack.c.l.b16 %v189
    %v2929 = vunpack.c.h.b16 %v189
    %v2930 = vunpack.c.l.b16 %v190
    %v2931 = vunpack.c.h.b16 %v190
    %v2932 = vunpack.c.l.b16 %v191
    %v2933 = vunpack.c.h.b16 %v191
    %v2934 = vunpack.c.l.b16 %v192
    %v2935 = vunpack.c.h.b16 %v192
    %v2936 = vunpack.c.l.b16 %v193
    %v2937 = vunpack.c.h.b16 %v193
    %v2938 = vunpack.c.l.b16 %v194
    %v2939 = vunpack.c.h.b16 %v194
    %v2940 = vunpack.c.l.b16 %v195
    %v2941 = vunpack.c.l.b16 %v196
    %v2942 = vunpack.c.h.b16 %v196
    %v2943 = vunpack.c.l.b16 %v197
    %v2944 = vunpack.c.h.b16 %v197
    %v2945 = vunpack.c.l.b16 %v198
    %v2946 = vunpack.c.h.b16 %v198
    %v2947 = vunpack.c.l.b16 %v199
    %v2948 = vunpack.c.h.b16 %v199
    %v2949 = vunpack.c.l.b16 %v200
    %v2950 = vunpack.c.h.b16 %v200
    %v2951 = vunpack.c.l.b16 %v201
    %v2952 = vunpack.c.h.b16 %v201
    %v2953 = vunpack.c.l.b16 %v202
    %v2954 = vunpack.c.l.b16 %v203
    %v2955 = vunpack.c.h.b16 %v203
    %v2956 = vunpack.c.l.b16 %v204
    %v2957 = vunpack.c.h.b16 %v204
    %v2958 = vunpack.c.l.b16 %v205
    %v2959 = vunpack.c.h.b16 %v205
    %v2960 = vunpack.c.l.b16 %v206
    %v2961 = vunpack.c.h.b16 %v206
    %v2962 = vunpack.c.l.b16 %v207
    %v2963 = vunpack.c.h.b16 %v207
    %v2964 = vunpack.c.l.b16 %v208
    %v2965 = vunpack.c.h.b16 %v208
    %v2966 = vunpack.c.l.b16 %v209
    %v2967 = vunpack.c.l.b16 %v210
    %v2968 = vunpack.c.h.b16 %v210
    %v2969 = vunpack.c.l.b16 %v211
    %v2970 = vunpack.c.h.b16 %v211
    %v2971 = vunpack.c.l.b16 %v212
    %v2972 = vunpack.c.h.b16 %v212
    %v2973 = vunpack.c.l.b16 %v213
    %v2974 = vunpack.c.h.b16 %v213
    %v2975 = vunpack.c.l.b16 %v214
    %v2976 = vunpack.c.h.b16 %v214
    %v2977 = vunpack.c.l.b16 %v215
    %v2978 = vunpack.c.h.b16 %v215
    %v2979 = vunpack.c.l.b16 %v216
    %v2980 = vunpack.c.l.b16 %v217
    %v2981 = vunpack.c.h.b16 %v217
    %v2982 = vunpack.c.l.b16 %v218
    %v2983 = vunpack.c.h.b16 %v218
    %v2984 = vunpack.c.l.b16 %v219
    %v2985 = vunpack.c.h.b16 %v219
    %v2986 = vunpack.c.l.b16 %v220
    %v2987 = vunpack.c.h.b16 %v220
    %v2988 = vunpack.c.l.b16 %v221
    %v2989 = vunpack.c.h.b16 %v221
    %v2990 = vunpack.c.l.b16 %v222
    %v2991 = vunpack.c.h.b16 %v222
    %v2992 = vunpack.c.l.b16 %v223
    %v2993 = vunpack.c.l.b16 %v224
    %v2994 = vunpack.c.h.b16 %v224
    %v2995 = vunpack.c.l.b16 %v225
    %v2996 = vunpack.c.h.b16 %v225
    %v2997 = vunpack.c.l.b16 %v226
    %v2998 = vunpack.c.h.b16 %v226
    %v2999 = vunpack.c.l.b16 %v227
    %v3000 = vunpack.c.h.b16 %v227
    %v3001 = vunpack.c.l.b16 %v228
    %v3002 = vunpack.c.h.b16 %v228
    %v3003 = vunpack.c.l.b16 %v229
    %v3004 = vunpack.c.h.b16 %v229
    %v3005 = vunpack.c.l.b16 %v230
    %v3006 = vunpack.c.l.b16 %v231
    %v3007 = vunpack.c.h.b16 %v231
    %v3008 = vunpack.c.l.b16 %v232
    %v3009 = vunpack.c.h.b16 %v232
    %v3010 = vunpack.c.l.b16 %v233
    %v3011 = vunpack.c.h.b16 %v233
    %v3012 = vunpack.c.l.b16 %v234
    %v3013 = vunpack.c.h.b16 %v234
    %v3014 = vunpack.c.l.b16 %v235
    %v3015 = vunpack.c.h.b16 %v235
    %v3016 = vunpack.c.l.b16 %v236
    %v3017 = vunpack.c.h.b16 %v236
    %v3018 = vunpack.c.l.b16 %v237
    %v3019 = vunpack.c.l.b16 %v238
    %v3020 = vunpack.c.h.b16 %v238
    %v3021 = vunpack.c.l.b16 %v239
    %v3022 = vunpack.c.h.b16 %v239
    %v3023 = vunpack.c.l.b16 %v240
    %v3024 = vunpack.c.h.b16 %v240
    %v3025 = vunpack.c.l.b16 %v241
    %v3026 = vunpack.c.h.b16 %v241
    %v3027 = vunpack.c.l.b16 %v242
    %v3028 = vunpack.c.h.b16 %v242
    %v3029 = vunpack.c.l.b16 %v243
    %v3030 = vunpack.c.h.b16 %v243
    %v3031 = vunpack.c.l.b16 %v244
    %v3032 = vunpack.c.l.b16 %v245
    %v3033 = vunpack.c.h.b16 %v245
    %v3034 = vunpack.c.l.b16 %v246
    %v3035 = vunpack.c.h.b16 %v246
    %v3036 = vunpack.c.l.b16 %v247
    %v3037 = vunpack.c.h.b16 %v247
    %v3038 = vunpack.c.l.b16 %v248
    %v3039 = vunpack.c.h.b16 %v248
    %v3040 = vunpack.c.l.b16 %v249
    %v3041 = vunpack.c.h.b16 %v249
    %v3042 = vunpack.c.l.b16 %v250
    %v3043 = vunpack.c.h.b16 %v250
    %v3044 = vunpack.c.l.b16 %v251
    %v3045 = vunpack.c.l.b16 %v252
    %v3046 = vunpack.c.h.b16 %v252
    %v3047 = vunpack.c.l.b16 %v253
    %v3048 = vunpack.c.h.b16 %v253
    %v3049 = vunpack.c.l.b16 %v254
    %v3050 = vunpack.c.h.b16 %v254
    %v3051 = vunpack.c.l.b16 %v255
    %v3052 = vunpack.c.h.b16 %v255
    %v3053 = vunpack.c.l.b16 %v256
    %v3054 = vunpack.c.h.b16 %v256
    %v3055 = vunpack.c.l.b16 %v257
    %v3056 = vunpack.c.h.b16 %v257
    %v3057 = vunpack.c.l.b16 %v258
    %v3058 = vunpack.c.l.b16 %v259
    %v3059 = vunpack.c.h.b16 %v259
    %v3060 = vunpack.c.l.b16 %v260
    %v3061 = vunpack.c.h.b16 %v260
    %v3062 = vunpack.c.l.b16 %v261
    %v3063 = vunpack.c.h.b16 %v261
    %v3064 = vunpack.c.l.b16 %v262
    %v3065 = vunpack.c.h.b16 %v262
    %v3066 = vunpack.c.l.b16 %v263
    %v3067 = vunpack.c.h.b16 %v263
    %v3068 = vunpack.c.l.b16 %v264
    %v3069 = vunpack.c.h.b16 %v264
    %v3070 = vunpack.c.l.b16 %v265
    %v3071 = vunpack.c.l.b16 %v266
    %v3072 = vunpack.c.h.b16 %v266
    %v3073 = vunpack.c.l.b16 %v267
    %v3074 = vunpack.c.h.b16 %v267
    %v3075 = vunpack.c.l.b16 %v268
    %v3076 = vunpack.c.h.b16 %v268
    %v3077 = vunpack.c.l.b16 %v269
    %v3078 = vunpack.c.h.b16 %v269
    %v3079 = vunpack.c.l.b16 %v270
    %v3080 = vunpack.c.h.b16 %v270
    %v3081 = vunpack.c.l.b16 %v271
    %v3082 = vunpack.c.h.b16 %v271
    %v3083 = vunpack.c.l.b16 %v272
    %v3084 = vunpack.c.l.b16 %v273
    %v3085 = vunpack.c.h.b16 %v273
    %v3086 = vunpack.c.l.b16 %v274
    %v3087 = vunpack.c.h.b16 %v274
    %v3088 = vunpack.c.l.b16 %v275
    %v3089 = vunpack.c.h.b16 %v275
    %v3090 = vunpack.c.l.b16 %v276
    %v3091 = vunpack.c.h.b16 %v276
    %v3092 = vunpack.c.l.b16 %v277
    %v3093 = vunpack.c.h.b16 %v277
    %v3094 = vunpack.c.l.b16 %v278
    %v3095 = vunpack.c.h.b16 %v278
    %v3096 = vunpack.c.l.b16 %v279
    %v3097 = vunpack.c.l.b16 %v280
    %v3098 = vunpack.c.h.b16 %v280
    %v3099 = vunpack.c.l.b16 %v281
    %v3100 = vunpack.c.h.b16 %v281
    %v3101 = vunpack.c.l.b16 %v282
    %v3102 = vunpack.c.h.b16 %v282
    %v3103 = vunpack.c.l.b16 %v283
    %v3104 = vunpack.c.h.b16 %v283
    %v3105 = vunpack.c.l.b16 %v284
    %v3106 = vunpack.c.h.b16 %v284
    %v3107 = vunpack.c.l.b16 %v285
    %v3108 = vunpack.c.h.b16 %v285
    %v3109 = vunpack.c.l.b16 %v286
    %v3110 = vunpack.c.l.b16 %v287
    %v3111 = vunpack.c.h.b16 %v287
    %v3112 = vunpack.c.l.b16 %v288
    %v3113 = vunpack.c.h.b16 %v288
    %v3114 = vunpack.c.l.b16 %v289
    %v3115 = vunpack.c.h.b16 %v289
    %v3116 = vunpack.c.l.b16 %v290
    %v3117 = vunpack.c.h.b16 %v290
    %v3118 = vunpack.c.l.b16 %v291
    %v3119 = vunpack.c.h.b16 %v291
    %v3120 = vunpack.c.l.b16 %v292
    %v3121 = vunpack.c.h.b16 %v292
    %v3122 = vunpack.c.l.b16 %v293
    %v3123 = vunpack.c.l.b16 %v294
    %v3124 = vunpack.c.h.b16 %v294
    %v3125 = vunpack.c.l.b16 %v295
    %v3126 = vunpack.c.h.b16 %v295
    %v3127 = vunpack.c.l.b16 %v296
    %v3128 = vunpack.c.h.b16 %v296
    %v3129 = vunpack.c.l.b16 %v297
    %v3130 = vunpack.c.h.b16 %v297
    %v3131 = vunpack.c.l.b16 %v298
    %v3132 = vunpack.c.h.b16 %v298
    %v3133 = vunpack.c.l.b16 %v299
    %v3134 = vunpack.c.h.b16 %v299
    %v3135 = vunpack.c.l.b16 %v300
    %v3136 = vunpack.c.l.b16 %v301
    %v3137 = vunpack.c.h.b16 %v301
    %v3138 = vunpack.c.l.b16 %v302
    %v3139 = vunpack.c.h.b16 %v302
    %v3140 = vunpack.c.l.b16 %v303
    %v3141 = vunpack.c.h.b16 %v303
    %v3142 = vunpack.c.l.b16 %v304
    %v3143 = vunpack.c.h.b16 %v304
    %v3144 = vunpack.c.l.b16 %v305
    %v3145 = vunpack.c.h.b16 %v305
    %v3146 = vunpack.c.l.b16 %v306
    %v3147 = vunpack.c.h.b16 %v306
    %v3148 = vunpack.c.l.b16 %v307
    %v3149 = vunpack.c.l.b16 %v308
    %v3150 = vunpack.c.h.b16 %v308
    %v3151 = vunpack.c.l.b16 %v309
    %v3152 = vunpack.c.h.b16 %v309
    %v3153 = vunpack.c.l.b16 %v310
    %v3154 = vunpack.c.h.b16 %v310
    %v3155 = vunpack.c.l.b16 %v311
    %v3156 = vunpack.c.h.b16 %v311
    %v3157 = vunpack.c.l.b16 %v312
    %v3158 = vunpack.c.h.b16 %v312
    %v3159 = vunpack.c.l.b16 %v313
    %v3160 = vunpack.c.h.b16 %v313
    %v3161 = vunpack.c.l.b16 %v314
    %v3162 = vunpack.c.l.b16 %v315
    %v3163 = vunpack.c.h.b16 %v315
    %v3164 = vunpack.c.l.b16 %v316
    %v3165 = vunpack.c.h.b16 %v316
    %v3166 = vunpack.c.l.b16 %v317
    %v3167 = vunpack.c.h.b16 %v317
    %v3168 = vunpack.c.l.b16 %v318
    %v3169 = vunpack.c.h.b16 %v318
    %v3170 = vunpack.c.l.b16 %v319
    %v3171 = vunpack.c.h.b16 %v319
    %v3172 = vunpack.c.l.b16 %v320
    %v3173 = vunpack.c.h.b16 %v320
    %v3174 = vunpack.c.l.b16 %v321
    %v3175 = vunpack.c.l.b16 %v322
    %v3176 = vunpack.c.h.b16 %v322
    %v3177 = vunpack.c.l.b16 %v323
    %v3178 = vunpack.c.h.b16 %v323
    %v3179 = vunpack.c.l.b16 %v324
    %v3180 = vunpack.c.h.b16 %v324
    %v3181 = vunpack.c.l.b16 %v325
    %v3182 = vunpack.c.h.b16 %v325
    %v3183 = vunpack.c.l.b16 %v326
    %v3184 = vunpack.c.h.b16 %v326
    %v3185 = vunpack.c.l.b16 %v327
    %v3186 = vunpack.c.h.b16 %v327
    %v3187 = vunpack.c.l.b16 %v328
    %v3188 = vunpack.c.l.b16 %v329
    %v3189 = vunpack.c.h.b16 %v329
    %v3190 = vunpack.c.l.b16 %v330
    %v3191 = vunpack.c.h.b16 %v330
    %v3192 = vunpack.c.l.b16 %v331
    %v3193 = vunpack.c.h.b16 %v331
    %v3194 = vunpack.c.l.b16 %v332
    %v3195 = vunpack.c.h.b16 %v332
    %v3196 = vunpack.c.l.b16 %v333
    %v3197 = vunpack.c.h.b16 %v333
    %v3198 = vunpack.c.l.b16 %v334
    %v3199 = vunpack.c.h.b16 %v334
    %v3200 = vunpack.c.l.b16 %v335
    %v3201 = vunpack.c.l.b16 %v336
    %v3202 = vunpack.c.h.b16 %v336
    %v3203 = vunpack.c.l.b16 %v337
    %v3204 = vunpack.c.h.b16 %v337
    %v3205 = vunpack.c.l.b16 %v338
    %v3206 = vunpack.c.h.b16 %v338
    %v3207 = vunpack.c.l.b16 %v339
    %v3208 = vunpack.c.h.b16 %v339
    %v3209 = vunpack.c.l.b16 %v340
    %v3210 = vunpack.c.h.b16 %v340
    %v3211 = vunpack.c.l.b16 %v341
    %v3212 = vunpack.c.h.b16 %v341
    %v3213 = vunpack.c.l.b16 %v342
    %v3214 = vunpack.c.l.b16 %v343
    %v3215 = vunpack.c.h.b16 %v343
    %v3216 = vunpack.c.l.b16 %v344
    %v3217 = vunpack.c.h.b16 %v344
    %v3218 = vunpack.c.l.b16 %v345
    %v3219 = vunpack.c.h.b16 %v345
    %v3220 = vunpack.c.l.b16 %v346
    %v3221 = vunpack.c.h.b16 %v346
    %v3222 = vunpack.c.l.b16 %v347
    %v3223 = vunpack.c.h.b16 %v347
    %v3224 = vunpack.c.l.b16 %v348
    %v3225 = vunpack.c.h.b16 %v348
    %v3226 = vunpack.c.l.b16 %v349
    %v3227 = vunpack.c.l.b16 %v350
    %v3228 = vunpack.c.h.b16 %v350
    %v3229 = vunpack.c.l.b16 %v351
    %v3230 = vunpack.c.h.b16 %v351
    %v3231 = vunpack.c.l.b16 %v352
    %v3232 = vunpack.c.h.b16 %v352
    %v3233 = vunpack.c.l.b16 %v353
    %v3234 = vunpack.c.h.b16 %v353
    %v3235 = vunpack.c.l.b16 %v354
    %v3236 = vunpack.c.h.b16 %v354
    %v3237 = vunpack.c.l.b16 %v355
    %v3238 = vunpack.c.h.b16 %v355
    %v3239 = vunpack.c.l.b16 %v356
    %v3240 = vunpack.c.l.b16 %v357
    %v3241 = vunpack.c.h.b16 %v357
    %v3242 = vunpack.c.l.b16 %v358
    %v3243 = vunpack.c.h.b16 %v358
    %v3244 = vunpack.c.l.b16 %v359
    %v3245 = vunpack.c.h.b16 %v359
    %v3246 = vunpack.c.l.b16 %v360
    %v3247 = vunpack.c.h.b16 %v360
    %v3248 = vunpack.c.l.b16 %v361
    %v3249 = vunpack.c.h.b16 %v361
    %v3250 = vunpack.c.l.b16 %v362
    %v3251 = vunpack.c.h.b16 %v362
    %v3252 = vunpack.c.l.b16 %v363
    %v3253 = vunpack.c.l.b16 %v364
    %v3254 = vunpack.c.h.b16 %v364
    %v3255 = vunpack.c.l.b16 %v365
    %v3256 = vunpack.c.h.b16 %v365
    %v3257 = vunpack.c.l.b16 %v366
    %v3258 = vunpack.c.h.b16 %v366
    %v3259 = vunpack.c.l.b16 %v367
    %v3260 = vunpack.c.h.b16 %v367
    %v3261 = vunpack.c.l.b16 %v368
    %v3262 = vunpack.c.h.b16 %v368
    %v3263 = vunpack.c.l.b16 %v369
    %v3264 = vunpack.c.h.b16 %v369
    %v3265 = vunpack.c.l.b16 %v370
    %v3266 = vunpack.c.l.b16 %v371
    %v3267 = vunpack.c.h.b16 %v371
    %v3268 = vunpack.c.l.b16 %v372
    %v3269 = vunpack.c.h.b16 %v372
    %v3270 = vunpack.c.l.b16 %v373
    %v3271 = vunpack.c.h.b16 %v373
    %v3272 = vunpack.c.l.b16 %v374
    %v3273 = vunpack.c.h.b16 %v374
    %v3274 = vunpack.c.l.b16 %v375
    %v3275 = vunpack.c.h.b16 %v375
    %v3276 = vunpack.c.l.b16 %v376
    %v3277 = vunpack.c.h.b16 %v376
    %v3278 = vunpack.c.l.b16 %v377
    %v3279 = vunpack.c.l.b16 %v378
    %v3280 = vunpack.c.h.b16 %v378
    %v3281 = vunpack.c.l.b16 %v379
    %v3282 = vunpack.c.h.b16 %v379
    %v3283 = vunpack.c.l.b16 %v380
    %v3284 = vunpack.c.h.b16 %v380
    %v3285 = vunpack.c.l.b16 %v381
    %v3286 = vunpack.c.h.b16 %v381
    %v3287 = vunpack.c.l.b16 %v382
    %v3288 = vunpack.c.h.b16 %v382
    %v3289 = vunpack.c.l.b16 %v383
    %v3290 = vunpack.c.h.b16 %v383
    %v3291 = vunpack.c.l.b16 %v384
    %v3292 = vunpack.c.l.b16 %v385
    %v3293 = vunpack.c.h.b16 %v385
    %v3294 = vunpack.c.l.b16 %v386
    %v3295 = vunpack.c.h.b16 %v386
    %v3296 = vunpack.c.l.b16 %v387
    %v3297 = vunpack.c.h.b16 %v387
    %v3298 = vunpack.c.l.b16 %v388
    %v3299 = vunpack.c.h.b16 %v388
    %v3300 = vunpack.c.l.b16 %v389
    %v3301 = vunpack.c.h.b16 %v389
    %v3302 = vunpack.c.l.b16 %v390
    %v3303 = vunpack.c.h.b16 %v390
    %v3304 = vunpack.c.l.b16 %v391
    %v3305 = vunpack.c.l.b16 %v392
    %v3306 = vunpack.c.h.b16 %v392
    %v3307 = vunpack.c.l.b16 %v393
    %v3308 = vunpack.c.h.b16 %v393
    %v3309 = vunpack.c.l.b16 %v394
    %v3310 = vunpack.c.h.b16 %v394
    %v3311 = vunpack.c.l.b16 %v395
    %v3312 = vunpack.c.h.b16 %v395
    %v3313 = vunpack.c.l.b16 %v396
    %v3314 = vunpack.c.h.b16 %v396
    %v3315 = vunpack.c.l.b16 %v397
    %v3316 = vunpack.c.h.b16 %v397
    %v3317 = vunpack.c.l.b16 %v398
    %v3318 = vunpack.c.l.b16 %v399
    %v3319 = vunpack.c.h.b16 %v399
    %v3320 = vunpack.c.l.b16 %v400
    %v3321 = vunpack.c.h.b16 %v400
    %v3322 = vunpack.c.l.b16 %v401
    %v3323 = vunpack.c.h.b16 %v401
    %v3324 = vunpack.c.l.b16 %v402
    %v3325 = vunpack.c.h.b16 %v402
    %v3326 = vunpack.c.l.b16 %v403
    %v3327 = vunpack.c.h.b16 %v403
    %v3328 = vunpack.c.l.b16 %v404
    %v3329 = vunpack.c.h.b16 %v404
    %v3330 = vunpack.c.l.b16 %v405
    %v3331 = vunpack.c.l.b16 %v406
    %v3332 = vunpack.c.h.b16 %v406
    %v3333 = vunpack.c.l.b16 %v407
    %v3334 = vunpack.c.h.b16 %v407
    %v3335 = vunpack.c.l.b16 %v408
    %v3336 = vunpack.c.h.b16 %v408
    %v3337 = vunpack.c.l.b16 %v409
    %v3338 = vunpack.c.h.b16 %v409
    %v3339 = vunpack.c.l.b16 %v410
    %v3340 = vunpack.c.h.b16 %v410
    %v3341 = vunpack.c.l.b16 %v411
    %v3342 = vunpack.c.h.b16 %v411
    %v3343 = vunpack.c.l.b16 %v412
    %v3344 = vunpack.c.l.b16 %v413
    %v3345 = vunpack.c.h.b16 %v413
    %v3346 = vunpack.c.l.b16 %v414
    %v3347 = vunpack.c.h.b16 %v414
    %v3348 = vunpack.c.l.b16 %v415
    %v3349 = vunpack.c.h.b16 %v415
    %v3350 = vunpack.c.l.b16 %v416
    %v3351 = vunpack.c.h.b16 %v416
    %v3352 = vunpack.c.l.b16 %v417
    %v3353 = vunpack.c.h.b16 %v417
    %v3354 = vunpack.c.l.b16 %v418
    %v3355 = vunpack.c.h.b16 %v418
    %v3356 = vunpack.c.l.b16 %v419
    %v3357 = vunpack.c.l.b16 %v420
    %v3358 = vunpack.c.h.b16 %v420
    %v3359 = vunpack.c.l.b16 %v421
    %v3360 = vunpack.c.h.b16 %v421
    %v3361 = vunpack.c.l.b16 %v422
    %v3362 = vunpack.c.h.b16 %v422
    %v3363 = vunpack.c.l.b16 %v423
    %v3364 = vunpack.c.h.b16 %v423
    %v3365 = vunpack.c.l.b16 %v424
    %v3366 = vunpack.c.h.b16 %v424
    %v3367 = vunpack.c.l.b16 %v425
    %v3368 = vunpack.c.h.b16 %v425
    %v3369 = vunpack.c.l.b16 %v426
    %v3370 = vunpack.c.l.b16 %v427
    %v3371 = vunpack.c.h.b16 %v427
    %v3372 = vunpack.c.l.b16 %v428
    %v3373 = vunpack.c.h.b16 %v428
    %v3374 = vunpack.c.l.b16 %v429
    %v3375 = vunpack.c.h.b16 %v429
    %v3376 = vunpack.c.l.b16 %v430
    %v3377 = vunpack.c.h.b16 %v430
    %v3378 = vunpack.c.l.b16 %v431
    %v3379 = vunpack.c.h.b16 %v431
    %v3380 = vunpack.c.l.b16 %v432
    %v3381 = vunpack.c.h.b16 %v432
    %v3382 = vunpack.c.l.b16 %v433
    %v3383 = vunpack.c.l.b16 %v434
    %v3384 = vunpack.c.h.b16 %v434
    %v3385 = vunpack.c.l.b16 %v435
    %v3386 = vunpack.c.h.b16 %v435
    %v3387 = vunpack.c.l.b16 %v436
    %v3388 = vunpack.c.h.b16 %v436
    %v3389 = vunpack.c.l.b16 %v437
    %v3390 = vunpack.c.h.b16 %v437
    %v3391 = vunpack.c.l.b16 %v438
    %v3392 = vunpack.c.h.b16 %v438
    %v3393 = vunpack.c.l.b16 %v439
    %v3394 = vunpack.c.h.b16 %v439
    %v3395 = vunpack.c.l.b16 %v440
    %v3396 = vunpack.c.l.b16 %v441
    %v3397 = vunpack.c.h.b16 %v441
    %v3398 = vunpack.c.l.b16 %v442
    %v3399 = vunpack.c.h.b16 %v442
    %v3400 = vunpack.c.l.b16 %v443
    %v3401 = vunpack.c.h.b16 %v443
    %v3402 = vunpack.c.l.b16 %v444
    %v3403 = vunpack.c.h.b16 %v444
    %v3404 = vunpack.c.l.b16 %v445
    %v3405 = vunpack.c.h.b16 %v445
    %v3406 = vunpack.c.l.b16 %v446
    %v3407 = vunpack.c.h.b16 %v446
    %v3408 = vunpack.c.l.b16 %v447
    %v3409 = vunpack.c.l.b16 %v448
    %v3410 = vunpack.c.h.b16 %v448
    %v3411 = vunpack.c.l.b16 %v449
    %v3412 = vunpack.c.h.b16 %v449
    %v3413 = vunpack.c.l.b16 %v450
    %v3414 = vunpack.c.h.b16 %v450
    %v3415 = vunpack.c.l.b16 %v451
    %v3416 = vunpack.c.h.b16 %v451
    %v3417 = vunpack.c.l.b16 %v452
    %v3418 = vunpack.c.h.b16 %v452
    %v3419 = vunpack.c.l.b16 %v453
    %v3420 = vunpack.c.h.b16 %v453
    %v3421 = vunpack.c.l.b16 %v454
    %v3422 = vunpack.c.l.b16 %v455
    %v3423 = vunpack.c.h.b16 %v455
    %v3424 = vunpack.c.l.b16 %v456
    %v3425 = vunpack.c.h.b16 %v456
    %v3426 = vunpack.c.l.b16 %v457
    %v3427 = vunpack.c.h.b16 %v457
    %v3428 = vunpack.c.l.b16 %v458
    %v3429 = vunpack.c.h.b16 %v458
    %v3430 = vunpack.c.l.b16 %v459
    %v3431 = vunpack.c.h.b16 %v459
    %v3432 = vunpack.c.l.b16 %v460
    %v3433 = vunpack.c.h.b16 %v460
    %v3434 = vunpack.c.l.b16 %v461
    %v3435 = vunpack.c.l.b16 %v462
    %v3436 = vunpack.c.h.b16 %v462
    %v3437 = vunpack.c.l.b16 %v463
    %v3438 = vunpack.c.h.b16 %v463
    %v3439 = vunpack.c.l.b16 %v464
    %v3440 = vunpack.c.h.b16 %v464
    %v3441 = vunpack.c.l.b16 %v465
    %v3442 = vunpack.c.h.b16 %v465
    %v3443 = vunpack.c.l.b16 %v466
    %v3444 = vunpack.c.h.b16 %v466
    %v3445 = vunpack.c.l.b16 %v467
    %v3446 = vunpack.c.h.b16 %v467
    %v3447 = vunpack.c.l.b16 %v468
    %v3448 = vunpack.c.l.b16 %v469
    %v3449 = vunpack.c.h.b16 %v469
    %v3450 = vunpack.c.l.b16 %v470
    %v3451 = vunpack.c.h.b16 %v470
    %v3452 = vunpack.c.l.b16 %v471
    %v3453 = vunpack.c.h.b16 %v471
    %v3454 = vunpack.c.l.b16 %v472
    %v3455 = vunpack.c.h.b16 %v472
    %v3456 = vunpack.c.l.b16 %v473
    %v3457 = vunpack.c.h.b16 %v473
    %v3458 = vunpack.c.l.b16 %v474
    %v3459 = vunpack.c.h.b16 %v474
    %v3460 = vunpack.c.l.b16 %v475
    %v3461 = vunpack.c.l.b16 %v476
    %v3462 = vunpack.c.h.b16 %v476
    %v3463 = vunpack.c.l.b16 %v477
    %v3464 = vunpack.c.h.b16 %v477
    %v3465 = vunpack.c.l.b16 %v478
    %v3466 = vunpack.c.h.b16 %v478
    %v3467 = vunpack.c.l.b16 %v479
    %v3468 = vunpack.c.h.b16 %v479
    %v3469 = vunpack.c.l.b16 %v480
    %v3470 = vunpack.c.h.b16 %v480
    %v3471 = vunpack.c.l.b16 %v481
    %v3472 = vunpack.c.h.b16 %v481
    %v3473 = vunpack.c.l.b16 %v482
    %v3474 = vunpack.c.l.b16 %v483
    %v3475 = vunpack.c.h.b16 %v483
    %v3476 = vunpack.c.l.b16 %v484
    %v3477 = vunpack.c.h.b16 %v484
    %v3478 = vunpack.c.l.b16 %v485
    %v3479 = vunpack.c.h.b16 %v485
    %v3480 = vunpack.c.l.b16 %v486
    %v3481 = vunpack.c.h.b16 %v486
    %v3482 = vunpack.c.l.b16 %v487
    %v3483 = vunpack.c.h.b16 %v487
    %v3484 = vunpack.c.l.b16 %v488
    %v3485 = vunpack.c.h.b16 %v488
    %v3486 = vunpack.c.l.b16 %v489
    %v3487 = vunpack.c.l.b16 %v490
    %v3488 = vunpack.c.h.b16 %v490
    %v3489 = vunpack.c.l.b16 %v491
    %v3490 = vunpack.c.h.b16 %v491
    %v3491 = vunpack.c.l.b16 %v492
    %v3492 = vunpack.c.h.b16 %v492
    %v3493 = vunpack.c.l.b16 %v493
    %v3494 = vunpack.c.h.b16 %v493
    %v3495 = vunpack.c.l.b16 %v494
    %v3496 = vunpack.c.h.b16 %v494
    %v3497 = vunpack.c.l.b16 %v495
    %v3498 = vunpack.c.h.b16 %v495
    %v3499 = vunpack.c.l.b16 %v496
    %v3500 = vunpack.c.l.b16 %v497
    %v3501 = vunpack.c.h.b16 %v497
    %v3502 = vunpack.c.l.b16 %v498
    %v3503 = vunpack.c.h.b16 %v498
    %v3504 = vunpack.c.l.b16 %v499
    %v3505 = vunpack.c.h.b16 %v499
    %v3506 = vunpack.c.l.b16 %v500
    %v3507 = vunpack.c.h.b16 %v500
    %v3508 = vunpack.c.l.b16 %v501
    %v3509 = vunpack.c.h.b16 %v501
    %v3510 = vunpack.c.l.b16 %v502
    %v3511 = vunpack.c.h.b16 %v502
    %v3512 = vunpack.c.l.b16 %v503
    %v3513 = vunpack.c.l.b16 %v504
    %v3514 = vunpack.c.h.b16 %v504
    %v3515 = vunpack.c.l.b16 %v505
    %v3516 = vunpack.c.h.b16 %v505
    %v3517 = vunpack.c.l.b16 %v506
    %v3518 = vunpack.c.h.b16 %v506
    %v3519 = vunpack.c.l.b16 %v507
    %v3520 = vunpack.c.h.b16 %v507
    %v3521 = vunpack.c.l.b16 %v508
    %v3522 = vunpack.c.h.b16 %v508
    %v3523 = vunpack.c.l.b16 %v509
    %v3524 = vunpack.c.h.b16 %v509
    %v3525 = vunpack.c.l.b16 %v510
    %v3526 = vunpack.c.l.b16 %v511
    %v3527 = vunpack.c.h.b16 %v511
    %v3528 = vunpack.c.l.b16 %v512
    %v3529 = vunpack.c.h.b16 %v512
    %v3530 = vunpack.c.l.b16 %v513
    %v3531 = vunpack.c.h.b16 %v513
    %v3532 = vunpack.c.l.b16 %v514
    %v3533 = vunpack.c.h.b16 %v514
    %v3534 = vunpack.c.l.b16 %v515
    %v3535 = vunpack.c.h.b16 %v515
    %v3536 = vunpack.c.l.b16 %v516
    %v3537 = vunpack.c.h.b16 %v516
    %v3538 = vunpack.c.l.b16 %v517
    %v3539 = vunpack.c.l.b16 %v518
    %v3540 = vunpack.c.h.b16 %v518
    %v3541 = vunpack.c.l.b16 %v519
    %v3542 = vunpack.c.h.b16 %v519
    %v3543 = vunpack.c.l.b16 %v520
    %v3544 = vunpack.c.h.b16 %v520
    %v3545 = vunpack.c.l.b16 %v521
    %v3546 = vunpack.c.h.b16 %v521
    %v3547 = vunpack.c.l.b16 %v522
    %v3548 = vunpack.c.h.b16 %v522
    %v3549 = vunpack.c.l.b16 %v523
    %v3550 = vunpack.c.h.b16 %v523
    %v3551 = vunpack.c.l.b16 %v524
    %v3552 = vunpack.c.l.b16 %v525
    %v3553 = vunpack.c.h.b16 %v525
    %v3554 = vunpack.c.l.b16 %v526
    %v3555 = vunpack.c.h.b16 %v526
    %v3556 = vunpack.c.l.b16 %v527
    %v3557 = vunpack.c.h.b16 %v527
    %v3558 = vunpack.c.l.b16 %v528
    %v3559 = vunpack.c.h.b16 %v528
    %v3560 = vunpack.c.l.b16 %v529
    %v3561 = vunpack.c.h.b16 %v529
    %v3562 = vunpack.c.l.b16 %v530
    %v3563 = vunpack.c.h.b16 %v530
    %v3564 = vunpack.c.l.b16 %v531
    %v3565 = vunpack.c.l.b16 %v532
    %v3566 = vunpack.c.h.b16 %v532
    %v3567 = vunpack.c.l.b16 %v533
    %v3568 = vunpack.c.h.b16 %v533
    %v3569 = vunpack.c.l.b16 %v534
    %v3570 = vunpack.c.h.b16 %v534
    %v3571 = vunpack.c.l.b16 %v535
    %v3572 = vunpack.c.h.b16 %v535
    %v3573 = vunpack.c.l.b16 %v536
    %v3574 = vunpack.c.h.b16 %v536
    %v3575 = vunpack.c.l.b16 %v537
    %v3576 = vunpack.c.h.b16 %v537
    %v3577 = vunpack.c.l.b16 %v538
    %v3578 = vunpack.c.l.b16 %v539
    %v3579 = vunpack.c.h.b16 %v539
    %v3580 = vunpack.c.l.b16 %v540
    %v3581 = vunpack.c.h.b16 %v540
    %v3582 = vunpack.c.l.b16 %v541
    %v3583 = vunpack.c.h.b16 %v541
    %v3584 = vunpack.c.l.b16 %v542
    %v3585 = vunpack.c.h.b16 %v542
    %v3586 = vunpack.c.l.b16 %v543
    %v3587 = vunpack.c.h.b16 %v543
    %v3588 = vunpack.c.l.b16 %v544
    %v3589 = vunpack.c.h.b16 %v544
    %v3590 = vunpack.c.l.b16 %v545
    %v3591 = vunpack.c.l.b16 %v546
    %v3592 = vunpack.c.h.b16 %v546
    %v3593 = vunpack.c.l.b16 %v547
    %v3594 = vunpack.c.h.b16 %v547
    %v3595 = vunpack.c.l.b16 %v548
    %v3596 = vunpack.c.h.b16 %v548
    %v3597 = vunpack.c.l.b16 %v549
    %v3598 = vunpack.c.h.b16 %v549
    %v3599 = vunpack.c.l.b16 %v550
    %v3600 = vunpack.c.h.b16 %v550
    %v3601 = vunpack.c.l.b16 %v551
    %v3602 = vunpack.c.h.b16 %v551
    %v3603 = vunpack.c.l.b16 %v552
    %v3604 = vunpack.c.l.b16 %v553
    %v3605 = vunpack.c.h.b16 %v553
    %v3606 = vunpack.c.l.b16 %v554
    %v3607 = vunpack.c.h.b16 %v554
    %v3608 = vunpack.c.l.b16 %v555
    %v3609 = vunpack.c.h.b16 %v555
    %v3610 = vunpack.c.l.b16 %v556
    %v3611 = vunpack.c.h.b16 %v556
    %v3612 = vunpack.c.l.b16 %v557
    %v3613 = vunpack.c.h.b16 %v557
    %v3614 = vunpack.c.l.b16 %v558
    %v3615 = vunpack.c.h.b16 %v558
    %v3616 = vunpack.c.l.b16 %v559
    %v3617 = vunpack.c.l.b16 %v560
    %v3618 = vunpack.c.h.b16 %v560
    %v3619 = vunpack.c.l.b16 %v561
    %v3620 = vunpack.c.h.b16 %v561
    %v3621 = vunpack.c.l.b16 %v562
    %v3622 = vunpack.c.h.b16 %v562
    %v3623 = vunpack.c.l.b16 %v563
    %v3624 = vunpack.c.h.b16 %v563
    %v3625 = vunpack.c.l.b16 %v564
    %v3626 = vunpack.c.h.b16 %v564
    %v3627 = vunpack.c.l.b16 %v565
    %v3628 = vunpack.c.h.b16 %v565
    %v3629 = vunpack.c.l.b16 %v566
    %v3630 = vunpack.c.l.b16 %v567
    %v3631 = vunpack.c.h.b16 %v567
    %v3632 = vunpack.c.l.b16 %v568
    %v3633 = vunpack.c.h.b16 %v568
    %v3634 = vunpack.c.l.b16 %v569
    %v3635 = vunpack.c.h.b16 %v569
    %v3636 = vunpack.c.l.b16 %v570
    %v3637 = vunpack.c.h.b16 %v570
    %v3638 = vunpack.c.l.b16 %v571
    %v3639 = vunpack.c.h.b16 %v571
    %v3640 = vunpack.c.l.b16 %v572
    %v3641 = vunpack.c.h.b16 %v572
    %v3642 = vunpack.c.l.b16 %v573
    %v3643 = vunpack.c.l.b16 %v574
    %v3644 = vunpack.c.h.b16 %v574
    %v3645 = vunpack.c.l.b16 %v575
    %v3646 = vunpack.c.h.b16 %v575
    %v3647 = vunpack.c.l.b16 %v576
    %v3648 = vunpack.c.h.b16 %v576
    %v3649 = vunpack.c.l.b16 %v577
    %v3650 = vunpack.c.h.b16 %v577
    %v3651 = vunpack.c.l.b16 %v578
    %v3652 = vunpack.c.h.b16 %v578
    %v3653 = vunpack.c.l.b16 %v579
    %v3654 = vunpack.c.h.b16 %v579
    %v3655 = vunpack.c.l.b16 %v580
    %v3656 = vunpack.c.l.b16 %v581
    %v3657 = vunpack.c.h.b16 %v581
    %v3658 = vunpack.c.l.b16 %v582
    %v3659 = vunpack.c.h.b16 %v582
    %v3660 = vunpack.c.l.b16 %v583
    %v3661 = vunpack.c.h.b16 %v583
    %v3662 = vunpack.c.l.b16 %v584
    %v3663 = vunpack.c.h.b16 %v584
    %v3664 = vunpack.c.l.b16 %v585
    %v3665 = vunpack.c.h.b16 %v585
    %v3666 = vunpack.c.l.b16 %v586
    %v3667 = vunpack.c.h.b16 %v586
    %v3668 = vunpack.c.l.b16 %v587
    %v3669 = vunpack.c.l.b16 %v588
    %v3670 = vunpack.c.h.b16 %v588
    %v3671 = vunpack.c.l.b16 %v589
    %v3672 = vunpack.c.h.b16 %v589
    %v3673 = vunpack.c.l.b16 %v590
    %v3674 = vunpack.c.h.b16 %v590
    %v3675 = vunpack.c.l.b16 %v591
    %v3676 = vunpack.c.h.b16 %v591
    %v3677 = vunpack.c.l.b16 %v592
    %v3678 = vunpack.c.h.b16 %v592
    %v3679 = vunpack.c.l.b16 %v593
    %v3680 = vunpack.c.h.b16 %v593
    %v3681 = vunpack.c.l.b16 %v594
    %v3682 = vunpack.c.l.b16 %v595
    %v3683 = vunpack.c.h.b16 %v595
    %v3684 = vunpack.c.l.b16 %v596
    %v3685 = vunpack.c.h.b16 %v596
    %v3686 = vunpack.c.l.b16 %v597
    %v3687 = vunpack.c.h.b16 %v597
    %v3688 = vunpack.c.l.b16 %v598
    %v3689 = vunpack.c.h.b16 %v598
    %v3690 = vunpack.c.l.b16 %v599
    %v3691 = vunpack.c.h.b16 %v599
    %v3692 = vunpack.c.l.b16 %v600
    %v3693 = vunpack.c.h.b16 %v600
    %v3694 = vunpack.c.l.b16 %v601
    %v3695 = vunpack.c.l.b16 %v602
    %v3696 = vunpack.c.h.b16 %v602
    %v3697 = vunpack.c.l.b16 %v603
    %v3698 = vunpack.c.h.b16 %v603
    %v3699 = vunpack.c.l.b16 %v604
    %v3700 = vunpack.c.h.b16 %v604
    %v3701 = vunpack.c.l.b16 %v605
    %v3702 = vunpack.c.h.b16 %v605
    %v3703 = vunpack.c.l.b16 %v606
    %v3704 = vunpack.c.h.b16 %v606
    %v3705 = vunpack.c.l.b16 %v607
    %v3706 = vunpack.c.h.b16 %v607
    %v3707 = vunpack.c.l.b16 %v608
    %v3708 = vunpack.c.l.b16 %v609
    %v3709 = vunpack.c.h.b16 %v609
    %v3710 = vunpack.c.l.b16 %v610
    %v3711 = vunpack.c.h.b16 %v610
    %v3712 = vunpack.c.l.b16 %v611
    %v3713 = vunpack.c.h.b16 %v611
    %v3714 = vunpack.c.l.b16 %v612
    %v3715 = vunpack.c.h.b16 %v612
    %v3716 = vunpack.c.l.b16 %v613
    %v3717 = vunpack.c.h.b16 %v613
    %v3718 = vunpack.c.l.b16 %v614
    %v3719 = vunpack.c.h.b16 %v614
    %v3720 = vunpack.c.l.b16 %v615
    %v3721 = vunpack.c.l.b16 %v616
    %v3722 = vunpack.c.h.b16 %v616
    %v3723 = vunpack.c.l.b16 %v617
    %v3724 = vunpack.c.h.b16 %v617
    %v3725 = vunpack.c.l.b16 %v618
    %v3726 = vunpack.c.h.b16 %v618
    %v3727 = vunpack.c.l.b16 %v619
    %v3728 = vunpack.c.h.b16 %v619
    %v3729 = vunpack.c.l.b16 %v620
    %v3730 = vunpack.c.h.b16 %v620
    %v3731 = vunpack.c.l.b16 %v621
    %v3732 = vunpack.c.h.b16 %v621
    %v3733 = vunpack.c.l.b16 %v622
    %v3734 = vunpack.c.l.b16 %v623
    %v3735 = vunpack.c.h.b16 %v623
    %v3736 = vunpack.c.l.b16 %v624
    %v3737 = vunpack.c.h.b16 %v624
    %v3738 = vunpack.c.l.b16 %v625
    %v3739 = vunpack.c.h.b16 %v625
    %v3740 = vunpack.c.l.b16 %v626
    %v3741 = vunpack.c.h.b16 %v626
    %v3742 = vunpack.c.l.b16 %v627
    %v3743 = vunpack.c.h.b16 %v627
    %v3744 = vunpack.c.l.b16 %v628
    %v3745 = vunpack.c.h.b16 %v628
    %v3746 = vunpack.c.l.b16 %v629
    %v3747 = vunpack.c.l.b16 %v630
    %v3748 = vunpack.c.h.b16 %v630
    %v3749 = vunpack.c.l.b16 %v631
    %v3750 = vunpack.c.h.b16 %v631
    %v3751 = vunpack.c.l.b16 %v632
    %v3752 = vunpack.c.h.b16 %v632
    %v3753 = vunpack.c.l.b16 %v633
    %v3754 = vunpack.c.h.b16 %v633
    %v3755 = vunpack.c.l.b16 %v634
    %v3756 = vunpack.c.h.b16 %v634
    %v3757 = vunpack.c.l.b16 %v635
    %v3758 = vunpack.c.h.b16 %v635
    %v3759 = vunpack.c.l.b16 %v636
    %v3760 = vunpack.c.l.b16 %v637
    %v3761 = vunpack.c.h.b16 %v637
    %v3762 = vunpack.c.l.b16 %v638
    %v3763 = vunpack.c.h.b16 %v638
    %v3764 = vunpack.c.l.b16 %v639
    %v3765 = vunpack.c.h.b16 %v639
    %v3766 = vunpack.c.l.b16 %v640
    %v3767 = vunpack.c.h.b16 %v640
    %v3768 = vunpack.c.l.b16 %v641
    %v3769 = vunpack.c.h.b16 %v641
    %v3770 = vunpack.c.l.b16 %v642
    %v3771 = vunpack.c.h.b16 %v642
    %v3772 = vunpack.c.l.b16 %v643
    %v3773 = vunpack.c.l.b16 %v644
    %v3774 = vunpack.c.h.b16 %v644
    %v3775 = vunpack.c.l.b16 %v645
    %v3776 = vunpack.c.h.b16 %v645
    %v3777 = vunpack.c.l.b16 %v646
    %v3778 = vunpack.c.h.b16 %v646
    %v3779 = vunpack.c.l.b16 %v647
    %v3780 = vunpack.c.h.b16 %v647
    %v3781 = vunpack.c.l.b16 %v648
    %v3782 = vunpack.c.h.b16 %v648
    %v3783 = vunpack.c.l.b16 %v649
    %v3784 = vunpack.c.h.b16 %v649
    %v3785 = vunpack.c.l.b16 %v650
    %v3786 = vunpack.c.l.b16 %v651
    %v3787 = vunpack.c.h.b16 %v651
    %v3788 = vunpack.c.l.b16 %v652
    %v3789 = vunpack.c.h.b16 %v652
    %v3790 = vunpack.c.l.b16 %v653
    %v3791 = vunpack.c.h.b16 %v653
    %v3792 = vunpack.c.l.b16 %v654
    %v3793 = vunpack.c.h.b16 %v654
    %v3794 = vunpack.c.l.b16 %v655
    %v3795 = vunpack.c.h.b16 %v655
    %v3796 = vunpack.c.l.b16 %v656
    %v3797 = vunpack.c.h.b16 %v656
    %v3798 = vunpack.c.l.b16 %v657
    %v3799 = vunpack.c.l.b16 %v658
    %v3800 = vunpack.c.h.b16 %v658
    %v3801 = vunpack.c.l.b16 %v659
    %v3802 = vunpack.c.h.b16 %v659
    %v3803 = vunpack.c.l.b16 %v660
    %v3804 = vunpack.c.h.b16 %v660
    %v3805 = vunpack.c.l.b16 %v661
    %v3806 = vunpack.c.h.b16 %v661
    %v3807 = vunpack.c.l.b16 %v662
    %v3808 = vunpack.c.h.b16 %v662
    %v3809 = vunpack.c.l.b16 %v663
    %v3810 = vunpack.c.h.b16 %v663
    %v3811 = vunpack.c.l.b16 %v664
    %v3812 = vunpack.c.l.b16 %v665
    %v3813 = vunpack.c.h.b16 %v665
    %v3814 = vunpack.c.l.b16 %v666
    %v3815 = vunpack.c.h.b16 %v666
    %v3816 = vunpack.c.l.b16 %v667
    %v3817 = vunpack.c.h.b16 %v667
    %v3818 = vunpack.c.l.b16 %v668
    %v3819 = vunpack.c.h.b16 %v668
    %v3820 = vunpack.c.l.b16 %v669
    %v3821 = vunpack.c.h.b16 %v669
    %v3822 = vunpack.c.l.b16 %v670
    %v3823 = vunpack.c.h.b16 %v670
    %v3824 = vunpack.c.l.b16 %v671
    %v3825 = vunpack.c.l.b16 %v672
    %v3826 = vunpack.c.h.b16 %v672
    %v3827 = vunpack.c.l.b16 %v673
    %v3828 = vunpack.c.h.b16 %v673
    %v3829 = vunpack.c.l.b16 %v674
    %v3830 = vunpack.c.h.b16 %v674
    %v3831 = vunpack.c.l.b16 %v675
    %v3832 = vunpack.c.h.b16 %v675
    %v3833 = vunpack.c.l.b16 %v676
    %v3834 = vunpack.c.h.b16 %v676
    %v3835 = vunpack.c.l.b16 %v677
    %v3836 = vunpack.c.h.b16 %v677
    %v3837 = vunpack.c.l.b16 %v678
    %v3838 = vunpack.c.l.b16 %v679
    %v3839 = vunpack.c.h.b16 %v679
    %v3840 = vunpack.c.l.b16 %v680
    %v3841 = vunpack.c.h.b16 %v680
    %v3842 = vunpack.c.l.b16 %v681
    %v3843 = vunpack.c.h.b16 %v681
    %v3844 = vunpack.c.l.b16 %v682
    %v3845 = vunpack.c.h.b16 %v682
    %v3846 = vunpack.c.l.b16 %v683
    %v3847 = vunpack.c.h.b16 %v683
    %v3848 = vunpack.c.l.b16 %v684
    %v3849 = vunpack.c.h.b16 %v684
    %v3850 = vunpack.c.l.b16 %v685
    %v3851 = vunpack.c.l.b16 %v686
    %v3852 = vunpack.c.h.b16 %v686
    %v3853 = vunpack.c.l.b16 %v687
    %v3854 = vunpack.c.h.b16 %v687
    %v3855 = vunpack.c.l.b16 %v688
    %v3856 = vunpack.c.h.b16 %v688
    %v3857 = vunpack.c.l.b16 %v689
    %v3858 = vunpack.c.h.b16 %v689
    %v3859 = vunpack.c.l.b16 %v690
    %v3860 = vunpack.c.h.b16 %v690
    %v3861 = vunpack.c.l.b16 %v691
    %v3862 = vunpack.c.h.b16 %v691
    %v3863 = vunpack.c.l.b16 %v692
    %v3864 = vunpack.c.l.b16 %v693
    %v3865 = vunpack.c.h.b16 %v693
    %v3866 = vunpack.c.l.b16 %v694
    %v3867 = vunpack.c.h.b16 %v694
    %v3868 = vunpack.c.l.b16 %v695
    %v3869 = vunpack.c.h.b16 %v695
    %v3870 = vunpack.c.l.b16 %v696
    %v3871 = vunpack.c.h.b16 %v696
    %v3872 = vunpack.c.l.b16 %v697
    %v3873 = vunpack.c.h.b16 %v697
    %v3874 = vunpack.c.l.b16 %v698
    %v3875 = vunpack.c.h.b16 %v698
    %v3876 = vunpack.c.l.b16 %v699
    %v3877 = vunpack.c.l.b16 %v700
    %v3878 = vunpack.c.h.b16 %v700
    %v3879 = vunpack.c.l.b16 %v701
    %v3880 = vunpack.c.h.b16 %v701
    %v3881 = vunpack.c.l.b16 %v702
    %v3882 = vunpack.c.h.b16 %v702
    %v3883 = vunpack.c.l.b16 %v703
    %v3884 = vunpack.c.h.b16 %v703
    %v3885 = vunpack.c.l.b16 %v704
    %v3886 = vunpack.c.h.b16 %v704
    %v3887 = vunpack.c.l.b16 %v705
    %v3888 = vunpack.c.h.b16 %v705
    %v3889 = vunpack.c.l.b16 %v706
    %v3890 = vunpack.c.l.b16 %v707
    %v3891 = vunpack.c.h.b16 %v707
    %v3892 = vunpack.c.l.b16 %v708
    %v3893 = vunpack.c.h.b16 %v708
    %v3894 = vunpack.c.l.b16 %v709
    %v3895 = vunpack.c.h.b16 %v709
    %v3896 = vunpack.c.l.b16 %v710
    %v3897 = vunpack.c.h.b16 %v710
    %v3898 = vunpack.c.l.b16 %v711
    %v3899 = vunpack.c.h.b16 %v711
    %v3900 = vunpack.c.l.b16 %v712
    %v3901 = vunpack.c.h.b16 %v712
    %v3902 = vunpack.c.l.b16 %v713
    %v3903 = vunpack.c.l.b16 %v714
    %v3904 = vunpack.c.h.b16 %v714
    %v3905 = vunpack.c.l.b16 %v715
    %v3906 = vunpack.c.h.b16 %v715
    %v3907 = vunpack.c.l.b16 %v716
    %v3908 = vunpack.c.h.b16 %v716
    %v3909 = vunpack.c.l.b16 %v717
    %v3910 = vunpack.c.h.b16 %v717
    %v3911 = vunpack.c.l.b16 %v718
    %v3912 = vunpack.c.h.b16 %v718
    %v3913 = vunpack.c.l.b16 %v719
    %v3914 = vunpack.c.h.b16 %v719
    %v3915 = vunpack.c.l.b16 %v720
    %v3916 = vunpack.c.l.b16 %v721
    %v3917 = vunpack.c.h.b16 %v721
    %v3918 = vunpack.c.l.b16 %v722
    %v3919 = vunpack.c.h.b16 %v722
    %v3920 = vunpack.c.l.b16 %v723
    %v3921 = vunpack.c.h.b16 %v723
    %v3922 = vunpack.c.l.b16 %v724
    %v3923 = vunpack.c.h.b16 %v724
    %v3924 = vunpack.c.l.b16 %v725
    %v3925 = vunpack.c.h.b16 %v725
    %v3926 = vunpack.c.l.b16 %v726
    %v3927 = vunpack.c.h.b16 %v726
    %v3928 = vunpack.c.l.b16 %v727
    %v3929 = vunpack.c.l.b16 %v728
    %v3930 = vunpack.c.h.b16 %v728
    %v3931 = vunpack.c.l.b16 %v729
    %v3932 = vunpack.c.h.b16 %v729
    %v3933 = vunpack.c.l.b16 %v730
    %v3934 = vunpack.c.h.b16 %v730
    %v3935 = vunpack.c.l.b16 %v731
    %v3936 = vunpack.c.h.b16 %v731
    %v3937 = vunpack.c.l.b16 %v732
    %v3938 = vunpack.c.h.b16 %v732
    %v3939 = vunpack.c.l.b16 %v733
    %v3940 = vunpack.c.h.b16 %v733
    %v3941 = vunpack.c.l.b16 %v734
    %v3942 = vunpack.c.l.b16 %v735
    %v3943 = vunpack.c.h.b16 %v735
    %v3944 = vunpack.c.l.b16 %v736
    %v3945 = vunpack.c.h.b16 %v736
    %v3946 = vunpack.c.l.b16 %v737
    %v3947 = vunpack.c.h.b16 %v737
    %v3948 = vunpack.c.l.b16 %v738
    %v3949 = vunpack.c.h.b16 %v738
    %v3950 = vunpack.c.l.b16 %v739
    %v3951 = vunpack.c.h.b16 %v739
    %v3952 = vunpack.c.l.b16 %v740
    %v3953 = vunpack.c.h.b16 %v740
    %v3954 = vunpack.c.l.b16 %v741
    %v3955 = vunpack.c.l.b16 %v742
    %v3956 = vunpack.c.h.b16 %v742
    %v3957 = vunpack.c.l.b16 %v743
    %v3958 = vunpack.c.h.b16 %v743
    %v3959 = vunpack.c.l.b16 %v744
    %v3960 = vunpack.c.h.b16 %v744
    %v3961 = vunpack.c.l.b16 %v745
    %v3962 = vunpack.c.h.b16 %v745
    %v3963 = vunpack.c.l.b16 %v746
    %v3964 = vunpack.c.h.b16 %v746
    %v3965 = vunpack.c.l.b16 %v747
    %v3966 = vunpack.c.h.b16 %v747
    %v3967 = vunpack.c.l.b16 %v748
    %v3968 = vunpack.c.l.b16 %v749
    %v3969 = vunpack.c.h.b16 %v749
    %v3970 = vunpack.c.l.b16 %v750
    %v3971 = vunpack.c.h.b16 %v750
    %v3972 = vunpack.c.l.b16 %v751
    %v3973 = vunpack.c.h.b16 %v751
    %v3974 = vunpack.c.l.b16 %v752
    %v3975 = vunpack.c.h.b16 %v752
    %v3976 = vunpack.c.l.b16 %v753
    %v3977 = vunpack.c.h.b16 %v753
    %v3978 = vunpack.c.l.b16 %v754
    %v3979 = vunpack.c.h.b16 %v754
    %v3980 = vunpack.c.l.b16 %v755
    %v3981 = vunpack.c.l.b16 %v756
    %v3982 = vunpack.c.h.b16 %v756
    %v3983 = vunpack.c.l.b16 %v757
    %v3984 = vunpack.c.h.b16 %v757
    %v3985 = vunpack.c.l.b16 %v758
    %v3986 = vunpack.c.h.b16 %v758
    %v3987 = vunpack.c.l.b16 %v759
    %v3988 = vunpack.c.h.b16 %v759
    %v3989 = vunpack.c.l.b16 %v760
    %v3990 = vunpack.c.h.b16 %v760
    %v3991 = vunpack.c.l.b16 %v761
    %v3992 = vunpack.c.h.b16 %v761
    %v3993 = vunpack.c.l.b16 %v762
    %v3994 = vunpack.c.l.b16 %v763
    %v3995 = vunpack.c.h.b16 %v763
    %v3996 = vunpack.c.l.b16 %v764
    %v3997 = vunpack.c.h.b16 %v764
    %v3998 = vunpack.c.l.b16 %v765
    %v3999 = vunpack.c.h.b16 %v765
    %v4000 = vunpack.c.l.b16 %v766
    %v4001 = vunpack.c.h.b16 %v766
    %v4002 = vunpack.c.l.b16 %v767
    %v4003 = vunpack.c.h.b16 %v767
    %v4004 = vunpack.c.l.b16 %v768
    %v4005 = vunpack.c.h.b16 %v768
    %v4006 = vunpack.c.l.b16 %v769
    %v4007 = vunpack.c.l.b16 %v770
    %v4008 = vunpack.c.h.b16 %v770
    %v4009 = vunpack.c.l.b16 %v771
    %v4010 = vunpack.c.h.b16 %v771
    %v4011 = vunpack.c.l.b16 %v772
    %v4012 = vunpack.c.h.b16 %v772
    %v4013 = vunpack.c.l.b16 %v773
    %v4014 = vunpack.c.h.b16 %v773
    %v4015 = vunpack.c.l.b16 %v774
    %v4016 = vunpack.c.h.b16 %v774
    %v4017 = vunpack.c.l.b16 %v775
    %v4018 = vunpack.c.h.b16 %v775
    %v4019 = vunpack.c.l.b16 %v776
    %v4020 = vunpack.c.l.b16 %v777
    %v4021 = vunpack.c.h.b16 %v777
    %v4022 = vunpack.c.l.b16 %v778
    %v4023 = vunpack.c.h.b16 %v778
    %v4024 = vunpack.c.l.b16 %v779
    %v4025 = vunpack.c.h.b16 %v779
    %v4026 = vunpack.c.l.b16 %v780
    %v4027 = vunpack.c.h.b16 %v780
    %v4028 = vunpack.c.l.b16 %v781
    %v4029 = vunpack.c.h.b16 %v781
    %v4030 = vunpack.c.l.b16 %v782
    %v4031 = vunpack.c.h.b16 %v782
    %v4032 = vunpack.c.l.b16 %v783
    %v4033 = vunpack.c.l.b16 %v784
    %v4034 = vunpack.c.h.b16 %v784
    %v4035 = vunpack.c.l.b16 %v785
    %v4036 = vunpack.c.h.b16 %v785
    %v4037 = vunpack.c.l.b16 %v786
    %v4038 = vunpack.c.h.b16 %v786
    %v4039 = vunpack.c.l.b16 %v787
    %v4040 = vunpack.c.h.b16 %v787
    %v4041 = vunpack.c.l.b16 %v788
    %v4042 = vunpack.c.h.b16 %v788
    %v4043 = vunpack.c.l.b16 %v789
    %v4044 = vunpack.c.h.b16 %v789
    %v4045 = vunpack.c.l.b16 %v790
    %v4046 = vunpack.c.l.b16 %v791
    %v4047 = vunpack.c.h.b16 %v791
    %v4048 = vunpack.c.l.b16 %v792
    %v4049 = vunpack.c.h.b16 %v792
    %v4050 = vunpack.c.l.b16 %v793
    %v4051 = vunpack.c.h.b16 %v793
    %v4052 = vunpack.c.l.b16 %v794
    %v4053 = vunpack.c.h.b16 %v794
    %v4054 = vunpack.c.l.b16 %v795
    %v4055 = vunpack.c.h.b16 %v795
    %v4056 = vunpack.c.l.b16 %v796
    %v4057 = vunpack.c.h.b16 %v796
    %v4058 = vunpack.c.l.b16 %v797
    %v4059 = vunpack.c.l.b16 %v798
    %v4060 = vunpack.c.h.b16 %v798
    %v4061 = vunpack.c.l.b16 %v799
    %v4062 = vunpack.c.h.b16 %v799
    %v4063 = vunpack.c.l.b16 %v800
    %v4064 = vunpack.c.h.b16 %v800
    %v4065 = vunpack.c.l.b16 %v801
    %v4066 = vunpack.c.h.b16 %v801
    %v4067 = vunpack.c.l.b16 %v802
    %v4068 = vunpack.c.h.b16 %v802
    %v4069 = vunpack.c.l.b16 %v803
    %v4070 = vunpack.c.h.b16 %v803
    %v4071 = vunpack.c.l.b16 %v804
    %v4072 = vunpack.c.l.b16 %v805
    %v4073 = vunpack.c.h.b16 %v805
    %v4074 = vunpack.c.l.b16 %v806
    %v4075 = vunpack.c.h.b16 %v806
    %v4076 = vunpack.c.l.b16 %v807
    %v4077 = vunpack.c.h.b16 %v807
    %v4078 = vunpack.c.l.b16 %v808
    %v4079 = vunpack.c.h.b16 %v808
    %v4080 = vunpack.c.l.b16 %v809
    %v4081 = vunpack.c.h.b16 %v809
    %v4082 = vunpack.c.l.b16 %v810
    %v4083 = vunpack.c.h.b16 %v810
    %v4084 = vunpack.c.l.b16 %v811
    %v4085 = vunpack.c.l.b16 %v812
    %v4086 = vunpack.c.h.b16 %v812
    %v4087 = vunpack.c.l.b16 %v813
    %v4088 = vunpack.c.h.b16 %v813
    %v4089 = vunpack.c.l.b16 %v814
    %v4090 = vunpack.c.h.b16 %v814
    %v4091 = vunpack.c.l.b16 %v815
    %v4092 = vunpack.c.h.b16 %v815
    %v4093 = vunpack.c.l.b16 %v816
    %v4094 = vunpack.c.h.b16 %v816
    %v4095 = vunpack.c.l.b16 %v817
    %v4096 = vunpack.c.h.b16 %v817
    %v4097 = vunpack.c.l.b16 %v818
    %v4098 = vunpack.c.l.b16 %v819
    %v4099 = vunpack.c.h.b16 %v819
    %v4100 = vunpack.c.l.b16 %v820
    %v4101 = vunpack.c.h.b16 %v820
    %v4102 = vunpack.c.l.b16 %v821
    %v4103 = vunpack.c.h.b16 %v821
    %v4104 = vunpack.c.l.b16 %v822
    %v4105 = vunpack.c.h.b16 %v822
    %v4106 = vunpack.c.l.b16 %v823
    %v4107 = vunpack.c.h.b16 %v823
    %v4108 = vunpack.c.l.b16 %v824
    %v4109 = vunpack.c.h.b16 %v824
    %v4110 = vunpack.c.l.b16 %v825
    %v4111 = vunpack.c.l.b16 %v826
    %v4112 = vunpack.c.h.b16 %v826
    %v4113 = vunpack.c.l.b16 %v827
    %v4114 = vunpack.c.h.b16 %v827
    %v4115 = vunpack.c.l.b16 %v828
    %v4116 = vunpack.c.h.b16 %v828
    %v4117 = vunpack.c.l.b16 %v829
    %v4118 = vunpack.c.h.b16 %v829
    %v4119 = vunpack.c.l.b16 %v830
    %v4120 = vunpack.c.h.b16 %v830
    %v4121 = vunpack.c.l.b16 %v831
    %v4122 = vunpack.c.h.b16 %v831
    %v4123 = vunpack.c.l.b16 %v832
    %v4124 = vunpack.c.l.b16 %v833
    %v4125 = vunpack.c.h.b16 %v833
    %v4126 = vunpack.c.l.b16 %v834
    %v4127 = vunpack.c.h.b16 %v834
    %v4128 = vunpack.c.l.b16 %v835
    %v4129 = vunpack.c.h.b16 %v835
    %v4130 = vunpack.c.l.b16 %v836
    %v4131 = vunpack.c.h.b16 %v836
    %v4132 = vunpack.c.l.b16 %v837
    %v4133 = vunpack.c.h.b16 %v837
    %v4134 = vunpack.c.l.b16 %v838
    %v4135 = vunpack.c.h.b16 %v838
    %v4136 = vunpack.c.l.b16 %v839
    %v4137 = vunpack.c.l.b16 %v840
    %v4138 = vunpack.c.h.b16 %v840
    %v4139 = vunpack.c.l.b16 %v841
    %v4140 = vunpack.c.h.b16 %v841
    %v4141 = vunpack.c.l.b16 %v842
    %v4142 = vunpack.c.h.b16 %v842
    %v4143 = vunpack.c.l.b16 %v843
    %v4144 = vunpack.c.h.b16 %v843
    %v4145 = vunpack.c.l.b16 %v844
    %v4146 = vunpack.c.h.b16 %v844
    %v4147 = vunpack.c.l.b16 %v845
    %v4148 = vunpack.c.h.b16 %v845
    %v4149 = vunpack.c.l.b16 %v846
    %v4150 = vunpack.c.l.b16 %v847
    %v4151 = vunpack.c.h.b16 %v847
    %v4152 = vunpack.c.l.b16 %v848
    %v4153 = vunpack.c.h.b16 %v848
    %v4154 = vunpack.c.l.b16 %v849
    %v4155 = vunpack.c.h.b16 %v849
    %v4156 = vunpack.c.l.b16 %v850
    %v4157 = vunpack.c.h.b16 %v850
    %v4158 = vunpack.c.l.b16 %v851
    %v4159 = vunpack.c.h.b16 %v851
    %v4160 = vunpack.c.l.b16 %v852
    %v4161 = vunpack.c.h.b16 %v852
    %v4162 = vunpack.c.l.b16 %v853
    %v4163 = vunpack.c.l.b16 %v854
    %v4164 = vunpack.c.h.b16 %v854
    %v4165 = vunpack.c.l.b16 %v855
    %v4166 = vunpack.c.h.b16 %v855
    %v4167 = vunpack.c.l.b16 %v856
    %v4168 = vunpack.c.h.b16 %v856
    %v4169 = vunpack.c.l.b16 %v857
    %v4170 = vunpack.c.h.b16 %v857
    %v4171 = vunpack.c.l.b16 %v858
    %v4172 = vunpack.c.h.b16 %v858
    %v4173 = vunpack.c.l.b16 %v859
    %v4174 = vunpack.c.h.b16 %v859
    %v4175 = vunpack.c.l.b16 %v860
    %v4176 = vunpack.c.l.b16 %v861
    %v4177 = vunpack.c.h.b16 %v861
    %v4178 = vunpack.c.l.b16 %v862
    %v4179 = vunpack.c.h.b16 %v862
    %v4180 = vunpack.c.l.b16 %v863
    %v4181 = vunpack.c.h.b16 %v863
    %v4182 = vunpack.c.l.b16 %v864
    %v4183 = vunpack.c.h.b16 %v864
    %v4184 = vunpack.c.l.b16 %v865
    %v4185 = vunpack.c.h.b16 %v865
    %v4186 = vunpack.c.l.b16 %v866
    %v4187 = vunpack.c.h.b16 %v866
    %v4188 = vunpack.c.l.b16 %v867
    %v4189 = vunpack.c.l.b16 %v868
    %v4190 = vunpack.c.h.b16 %v868
    %v4191 = vunpack.c.l.b16 %v869
    %v4192 = vunpack.c.h.b16 %v869
    %v4193 = vunpack.c.l.b16 %v870
    %v4194 = vunpack.c.h.b16 %v870
    %v4195 = vunpack.c.l.b16 %v871
    %v4196 = vunpack.c.h.b16 %v871
    %v4197 = vunpack.c.l.b16 %v872
    %v4198 = vunpack.c.h.b16 %v872
    %v4199 = vunpack.c.l.b16 %v873
    %v4200 = vunpack.c.h.b16 %v873
    %v4201 = vunpack.c.l.b16 %v874
    %v4202 = vunpack.c.l.b16 %v875
    %v4203 = vunpack.c.h.b16 %v875
    %v4204 = vunpack.c.l.b16 %v876
    %v4205 = vunpack.c.h.b16 %v876
    %v4206 = vunpack.c.l.b16 %v877
    %v4207 = vunpack.c.h.b16 %v877
    %v4208 = vunpack.c.l.b16 %v878
    %v4209 = vunpack.c.h.b16 %v878
    %v4210 = vunpack.c.l.b16 %v879
    %v4211 = vunpack.c.h.b16 %v879
    %v4212 = vunpack.c.l.b16 %v880
    %v4213 = vunpack.c.h.b16 %v880
    %v4214 = vunpack.c.l.b16 %v881
    %v4215 = vunpack.c.l.b16 %v882
    %v4216 = vunpack.c.h.b16 %v882
    %v4217 = vunpack.c.l.b16 %v883
    %v4218 = vunpack.c.h.b16 %v883
    %v4219 = vunpack.c.l.b16 %v884
    %v4220 = vunpack.c.h.b16 %v884
    %v4221 = vunpack.c.l.b16 %v885
    %v4222 = vunpack.c.h.b16 %v885
    %v4223 = vunpack.c.l.b16 %v886
    %v4224 = vunpack.c.h.b16 %v886
    %v4225 = vunpack.c.l.b16 %v887
    %v4226 = vunpack.c.h.b16 %v887
    %v4227 = vunpack.c.l.b16 %v888
    %v4228 = vunpack.c.l.b16 %v889
    %v4229 = vunpack.c.h.b16 %v889
    %v4230 = vunpack.c.l.b16 %v890
    %v4231 = vunpack.c.h.b16 %v890
    %v4232 = vunpack.c.l.b16 %v891
    %v4233 = vunpack.c.h.b16 %v891
    %v4234 = vunpack.c.l.b16 %v892
    %v4235 = vunpack.c.h.b16 %v892
    %v4236 = vunpack.c.l.b16 %v893
    %v4237 = vunpack.c.h.b16 %v893
    %v4238 = vunpack.c.l.b16 %v894
    %v4239 = vunpack.c.h.b16 %v894
    %v4240 = vunpack.c.l.b16 %v895
    %v4241 = vunpack.c.l.b16 %v896
    %v4242 = vunpack.c.h.b16 %v896
    %v4243 = vunpack.c.l.b16 %v897
    %v4244 = vunpack.c.h.b16 %v897
    %v4245 = vunpack.c.l.b16 %v898
    %v4246 = vunpack.c.h.b16 %v898
    %v4247 = vunpack.c.l.b16 %v899
    %v4248 = vunpack.c.h.b16 %v899
    %v4249 = vunpack.c.l.b16 %v900
    %v4250 = vunpack.c.h.b16 %v900
    %v4251 = vunpack.c.l.b16 %v901
    %v4252 = vunpack.c.h.b16 %v901
    %v4253 = vunpack.c.l.b16 %v902
    %v4254 = vunpack.c.l.b16 %v903
    %v4255 = vunpack.c.h.b16 %v903
    %v4256 = vunpack.c.l.b16 %v904
    %v4257 = vunpack.c.h.b16 %v904
    %v4258 = vunpack.c.l.b16 %v905
    %v4259 = vunpack.c.h.b16 %v905
    %v4260 = vunpack.c.l.b16 %v906
    %v4261 = vunpack.c.h.b16 %v906
    %v4262 = vunpack.c.l.b16 %v907
    %v4263 = vunpack.c.h.b16 %v907
    %v4264 = vunpack.c.l.b16 %v908
    %v4265 = vunpack.c.h.b16 %v908
    %v4266 = vunpack.c.l.b16 %v909
    %v4267 = vunpack.c.l.b16 %v910
    %v4268 = vunpack.c.h.b16 %v910
    %v4269 = vunpack.c.l.b16 %v911
    %v4270 = vunpack.c.h.b16 %v911
    %v4271 = vunpack.c.l.b16 %v912
    %v4272 = vunpack.c.h.b16 %v912
    %v4273 = vunpack.c.l.b16 %v913
    %v4274 = vunpack.c.h.b16 %v913
    %v4275 = vunpack.c.l.b16 %v914
    %v4276 = vunpack.c.h.b16 %v914
    %v4277 = vunpack.c.l.b16 %v915
    %v4278 = vunpack.c.h.b16 %v915
    %v4279 = vunpack.c.l.b16 %v916
    %v4280 = vunpack.c.l.b16 %v917
    %v4281 = vunpack.c.h.b16 %v917
    %v4282 = vunpack.c.l.b16 %v918
    %v4283 = vunpack.c.h.b16 %v918
    %v4284 = vunpack.c.l.b16 %v919
    %v4285 = vunpack.c.h.b16 %v919
    %v4286 = vunpack.c.l.b16 %v920
    %v4287 = vunpack.c.h.b16 %v920
    %v4288 = vunpack.c.l.b16 %v921
    %v4289 = vunpack.c.h.b16 %v921
    %v4290 = vunpack.c.l.b16 %v922
    %v4291 = vunpack.c.h.b16 %v922
    %v4292 = vunpack.c.l.b16 %v923
    %v4293 = vunpack.c.l.b16 %v924
    %v4294 = vunpack.c.h.b16 %v924
    %v4295 = vunpack.c.l.b16 %v925
    %v4296 = vunpack.c.h.b16 %v925
    %v4297 = vunpack.c.l.b16 %v926
    %v4298 = vunpack.c.h.b16 %v926
    %v4299 = vunpack.c.l.b16 %v927
    %v4300 = vunpack.c.h.b16 %v927
    %v4301 = vunpack.c.l.b16 %v928
    %v4302 = vunpack.c.h.b16 %v928
    %v4303 = vunpack.c.l.b16 %v929
    %v4304 = vunpack.c.h.b16 %v929
    %v4305 = vunpack.c.l.b16 %v930
    %v4306 = vunpack.c.l.b16 %v931
    %v4307 = vunpack.c.h.b16 %v931
    %v4308 = vunpack.c.l.b16 %v932
    %v4309 = vunpack.c.h.b16 %v932
    %v4310 = vunpack.c.l.b16 %v933
    %v4311 = vunpack.c.h.b16 %v933
    %v4312 = vunpack.c.l.b16 %v934
    %v4313 = vunpack.c.h.b16 %v934
    %v4314 = vunpack.c.l.b16 %v935
    %v4315 = vunpack.c.h.b16 %v935
    %v4316 = vunpack.c.l.b16 %v936
    %v4317 = vunpack.c.h.b16 %v936
    %v4318 = vunpack.c.l.b16 %v937
    %v4319 = vunpack.c.l.b16 %v938
    %v4320 = vunpack.c.h.b16 %v938
    %v4321 = vunpack.c.l.b16 %v939
    %v4322 = vunpack.c.h.b16 %v939
    %v4323 = vunpack.c.l.b16 %v940
    %v4324 = vunpack.c.h.b16 %v940
    %v4325 = vunpack.c.l.b16 %v941
    %v4326 = vunpack.c.h.b16 %v941
    %v4327 = vunpack.c.l.b16 %v942
    %v4328 = vunpack.c.h.b16 %v942
    %v4329 = vunpack.c.l.b16 %v943
    %v4330 = vunpack.c.h.b16 %v943
    %v4331 = vunpack.c.l.b16 %v944
    %v4332 = vunpack.c.l.b16 %v945
    %v4333 = vunpack.c.h.b16 %v945
    %v4334 = vunpack.c.l.b16 %v946
    %v4335 = vunpack.c.h.b16 %v946
    %v4336 = vunpack.c.l.b16 %v947
    %v4337 = vunpack.c.h.b16 %v947
    %v4338 = vunpack.c.l.b16 %v948
    %v4339 = vunpack.c.h.b16 %v948
    %v4340 = vunpack.c.l.b16 %v949
    %v4341 = vunpack.c.h.b16 %v949
    %v4342 = vunpack.c.l.b16 %v950
    %v4343 = vunpack.c.h.b16 %v950
    %v4344 = vunpack.c.l.b16 %v951
    %v4345 = vunpack.c.l.b16 %v952
    %v4346 = vunpack.c.h.b16 %v952
    %v4347 = vunpack.c.l.b16 %v953
    %v4348 = vunpack.c.h.b16 %v953
    %v4349 = vunpack.c.l.b16 %v954
    %v4350 = vunpack.c.h.b16 %v954
    %v4351 = vunpack.c.l.b16 %v955
    %v4352 = vunpack.c.h.b16 %v955
    %v4353 = vunpack.c.l.b16 %v956
    %v4354 = vunpack.c.h.b16 %v956
    %v4355 = vunpack.c.l.b16 %v957
    %v4356 = vunpack.c.h.b16 %v957
    %v4357 = vunpack.c.l.b16 %v958
    %v4358 = vunpack.c.l.b16 %v959
    %v4359 = vunpack.c.h.b16 %v959
    %v4360 = vunpack.c.l.b16 %v960
    %v4361 = vunpack.c.h.b16 %v960
    %v4362 = vunpack.c.l.b16 %v961
    %v4363 = vunpack.c.h.b16 %v961
    %v4364 = vunpack.c.l.b16 %v962
    %v4365 = vunpack.c.h.b16 %v962
    %v4366 = vunpack.c.l.b16 %v963
    %v4367 = vunpack.c.h.b16 %v963
    %v4368 = vunpack.c.l.b16 %v964
    %v4369 = vunpack.c.h.b16 %v964
    %v4370 = vunpack.c.l.b16 %v965
    %v4371 = vunpack.c.l.b16 %v966
    %v4372 = vunpack.c.h.b16 %v966
    %v4373 = vunpack.c.l.b16 %v967
    %v4374 = vunpack.c.h.b16 %v967
    %v4375 = vunpack.c.l.b16 %v968
    %v4376 = vunpack.c.h.b16 %v968
    %v4377 = vunpack.c.l.b16 %v969
    %v4378 = vunpack.c.h.b16 %v969
    %v4379 = vunpack.c.l.b16 %v970
    %v4380 = vunpack.c.h.b16 %v970
    %v4381 = vunpack.c.l.b16 %v971
    %v4382 = vunpack.c.h.b16 %v971
    %v4383 = vunpack.c.l.b16 %v972
    %v4384 = vunpack.c.l.b16 %v973
    %v4385 = vunpack.c.h.b16 %v973
    %v4386 = vunpack.c.l.b16 %v974
    %v4387 = vunpack.c.h.b16 %v974
    %v4388 = vunpack.c.l.b16 %v975
    %v4389 = vunpack.c.h.b16 %v975
    %v4390 = vunpack.c.l.b16 %v976
    %v4391 = vunpack.c.h.b16 %v976
    %v4392 = vunpack.c.l.b16 %v977
    %v4393 = vunpack.c.h.b16 %v977
    %v4394 = vunpack.c.l.b16 %v978
    %v4395 = vunpack.c.h.b16 %v978
    %v4396 = vunpack.c.l.b16 %v979
    %v4397 = vunpack.c.l.b16 %v980
    %v4398 = vunpack.c.h.b16 %v980
    %v4399 = vunpack.c.l.b16 %v981
    %v4400 = vunpack.c.h.b16 %v981
    %v4401 = vunpack.c.l.b16 %v982
    %v4402 = vunpack.c.h.b16 %v982
    %v4403 = vunpack.c.l.b16 %v983
    %v4404 = vunpack.c.h.b16 %v983
    %v4405 = vunpack.c.l.b16 %v984
    %v4406 = vunpack.c.h.b16 %v984
    %v4407 = vunpack.c.l.b16 %v985
    %v4408 = vunpack.c.h.b16 %v985
    %v4409 = vunpack.c.l.b16 %v986
    %v4410 = vunpack.c.l.b16 %v987
    %v4411 = vunpack.c.h.b16 %v987
    %v4412 = vunpack.c.l.b16 %v988
    %v4413 = vunpack.c.h.b16 %v988
    %v4414 = vunpack.c.l.b16 %v989
    %v4415 = vunpack.c.h.b16 %v989
    %v4416 = vunpack.c.l.b16 %v990
    %v4417 = vunpack.c.h.b16 %v990
    %v4418 = vunpack.c.l.b16 %v991
    %v4419 = vunpack.c.h.b16 %v991
    %v4420 = vunpack.c.l.b16 %v992
    %v4421 = vunpack.c.h.b16 %v992
    %v4422 = vunpack.c.l.b16 %v993
    %v4423 = vunpack.c.l.b16 %v994
    %v4424 = vunpack.c.h.b16 %v994
    %v4425 = vunpack.c.l.b16 %v995
    %v4426 = vunpack.c.h.b16 %v995
    %v4427 = vunpack.c.l.b16 %v996
    %v4428 = vunpack.c.h.b16 %v996
    %v4429 = vunpack.c.l.b16 %v997
    %v4430 = vunpack.c.h.b16 %v997
    %v4431 = vunpack.c.l.b16 %v998
    %v4432 = vunpack.c.h.b16 %v998
    %v4433 = vunpack.c.l.b16 %v999
    %v4434 = vunpack.c.h.b16 %v999
    %v4435 = vunpack.c.l.b16 %v1000
    %v4436 = vunpack.c.l.b16 %v1001
    %v4437 = vunpack.c.h.b16 %v1001
    %v4438 = vunpack.c.l.b16 %v1002
    %v4439 = vunpack.c.h.b16 %v1002
    %v4440 = vunpack.c.l.b16 %v1003
    %v4441 = vunpack.c.h.b16 %v1003
    %v4442 = vunpack.c.l.b16 %v1004
    %v4443 = vunpack.c.h.b16 %v1004
    %v4444 = vunpack.c.l.b16 %v1005
    %v4445 = vunpack.c.h.b16 %v1005
    %v4446 = vunpack.c.l.b16 %v1006
    %v4447 = vunpack.c.h.b16 %v1006
    %v4448 = vunpack.c.l.b16 %v1007
    %v4449 = vunpack.c.l.b16 %v1008
    %v4450 = vunpack.c.h.b16 %v1008
    %v4451 = vunpack.c.l.b16 %v1009
    %v4452 = vunpack.c.h.b16 %v1009
    %v4453 = vunpack.c.l.b16 %v1010
    %v4454 = vunpack.c.h.b16 %v1010
    %v4455 = vunpack.c.l.b16 %v1011
    %v4456 = vunpack.c.h.b16 %v1011
    %v4457 = vunpack.c.l.b16 %v1012
    %v4458 = vunpack.c.h.b16 %v1012
    %v4459 = vunpack.c.l.b16 %v1013
    %v4460 = vunpack.c.h.b16 %v1013
    %v4461 = vunpack.c.l.b16 %v1014
    %v4462 = vunpack.c.l.b16 %v1015
    %v4463 = vunpack.c.h.b16 %v1015
    %v4464 = vunpack.c.l.b16 %v1016
    %v4465 = vunpack.c.h.b16 %v1016
    %v4466 = vunpack.c.l.b16 %v1017
    %v4467 = vunpack.c.h.b16 %v1017
    %v4468 = vunpack.c.l.b16 %v1018
    %v4469 = vunpack.c.h.b16 %v1018
    %v4470 = vunpack.c.l.b16 %v1019
    %v4471 = vunpack.c.h.b16 %v1019
    %v4472 = vunpack.c.l.b16 %v1020
    %v4473 = vunpack.c.h.b16 %v1020
    %v4474 = vunpack.c.l.b16 %v1021
    %v4475 = vunpack.c.l.b16 %v1022
    %v4476 = vunpack.c.h.b16 %v1022
    %v4477 = vunpack.c.l.b16 %v1023
    %v4478 = vunpack.c.h.b16 %v1023
    %v4479 = vunpack.c.l.b16 %v1024
    %v4480 = vunpack.c.h.b16 %v1024
    %v4481 = vunpack.c.l.b16 %v1025
    %v4482 = vunpack.c.h.b16 %v1025
    %v4483 = vunpack.c.l.b16 %v1026
    %v4484 = vunpack.c.h.b16 %v1026
    %v4485 = vunpack.c.l.b16 %v1027
    %v4486 = vunpack.c.h.b16 %v1027
    %v4487 = vunpack.c.l.b16 %v1028
    %v4488 = vunpack.c.l.b16 %v1029
    %v4489 = vunpack.c.h.b16 %v1029
    %v4490 = vunpack.c.l.b16 %v1030
    %v4491 = vunpack.c.h.b16 %v1030
    %v4492 = vunpack.c.l.b16 %v1031
    %v4493 = vunpack.c.h.b16 %v1031
    %v4494 = vunpack.c.l.b16 %v1032
    %v4495 = vunpack.c.h.b16 %v1032
    %v4496 = vunpack.c.l.b16 %v1033
    %v4497 = vunpack.c.h.b16 %v1033
    %v4498 = vunpack.c.l.b16 %v1034
    %v4499 = vunpack.c.h.b16 %v1034
    %v4500 = vunpack.c.l.b16 %v1035
    %v4501 = vunpack.c.l.b16 %v1036
    %v4502 = vunpack.c.h.b16 %v1036
    %v4503 = vunpack.c.l.b16 %v1037
    %v4504 = vunpack.c.h.b16 %v1037
    %v4505 = vunpack.c.l.b16 %v1038
    %v4506 = vunpack.c.h.b16 %v1038
    %v4507 = vunpack.c.l.b16 %v1039
    %v4508 = vunpack.c.h.b16 %v1039
    %v4509 = vunpack.c.l.b16 %v1040
    %v4510 = vunpack.c.h.b16 %v1040
    %v4511 = vunpack.c.l.b16 %v1041
    %v4512 = vunpack.c.h.b16 %v1041
    %v4513 = vunpack.c.l.b16 %v1042
    %v4514 = vunpack.c.l.b16 %v1043
    %v4515 = vunpack.c.h.b16 %v1043
    %v4516 = vunpack.c.l.b16 %v1044
    %v4517 = vunpack.c.h.b16 %v1044
    %v4518 = vunpack.c.l.b16 %v1045
    %v4519 = vunpack.c.h.b16 %v1045
    %v4520 = vunpack.c.l.b16 %v1046
    %v4521 = vunpack.c.h.b16 %v1046
    %v4522 = vunpack.c.l.b16 %v1047
    %v4523 = vunpack.c.h.b16 %v1047
    %v4524 = vunpack.c.l.b16 %v1048
    %v4525 = vunpack.c.h.b16 %v1048
    %v4526 = vunpack.c.l.b16 %v1049
    %v4527 = vunpack.c.l.b16 %v1050
    %v4528 = vunpack.c.h.b16 %v1050
    %v4529 = vunpack.c.l.b16 %v1051
    %v4530 = vunpack.c.h.b16 %v1051
    %v4531 = vunpack.c.l.b16 %v1052
    %v4532 = vunpack.c.h.b16 %v1052
    %v4533 = vunpack.c.l.b16 %v1053
    %v4534 = vunpack.c.h.b16 %v1053
    %v4535 = vunpack.c.l.b16 %v1054
    %v4536 = vunpack.c.h.b16 %v1054
    %v4537 = vunpack.c.l.b16 %v1055
    %v4538 = vunpack.c.h.b16 %v1055
    %v4539 = vunpack.c.l.b16 %v1056
    %v4540 = vunpack.c.l.b16 %v1057
    %v4541 = vunpack.c.h.b16 %v1057
    %v4542 = vunpack.c.l.b16 %v1058
    %v4543 = vunpack.c.h.b16 %v1058
    %v4544 = vunpack.c.l.b16 %v1059
    %v4545 = vunpack.c.h.b16 %v1059
    %v4546 = vunpack.c.l.b16 %v1060
    %v4547 = vunpack.c.h.b16 %v1060
    %v4548 = vunpack.c.l.b16 %v1061
    %v4549 = vunpack.c.h.b16 %v1061
    %v4550 = vunpack.c.l.b16 %v1062
    %v4551 = vunpack.c.h.b16 %v1062
    %v4552 = vunpack.c.l.b16 %v1063
    %v4553 = vunpack.c.l.b16 %v1064
    %v4554 = vunpack.c.h.b16 %v1064
    %v4555 = vunpack.c.l.b16 %v1065
    %v4556 = vunpack.c.h.b16 %v1065
    %v4557 = vunpack.c.l.b16 %v1066
    %v4558 = vunpack.c.h.b16 %v1066
    %v4559 = vunpack.c.l.b16 %v1067
    %v4560 = vunpack.c.h.b16 %v1067
    %v4561 = vunpack.c.l.b16 %v1068
    %v4562 = vunpack.c.h.b16 %v1068
    %v4563 = vunpack.c.l.b16 %v1069
    %v4564 = vunpack.c.h.b16 %v1069
    %v4565 = vunpack.c.l.b16 %v1070
    %v4566 = vunpack.c.l.b16 %v1071
    %v4567 = vunpack.c.h.b16 %v1071
    %v4568 = vunpack.c.l.b16 %v1072
    %v4569 = vunpack.c.h.b16 %v1072
    %v4570 = vunpack.c.l.b16 %v1073
    %v4571 = vunpack.c.h.b16 %v1073
    %v4572 = vunpack.c.l.b16 %v1074
    %v4573 = vunpack.c.h.b16 %v1074
    %v4574 = vunpack.c.l.b16 %v1075
    %v4575 = vunpack.c.h.b16 %v1075
    %v4576 = vunpack.c.l.b16 %v1076
    %v4577 = vunpack.c.h.b16 %v1076
    %v4578 = vunpack.c.l.b16 %v1077
    %v4579 = vunpack.c.l.b16 %v1078
    %v4580 = vunpack.c.h.b16 %v1078
    %v4581 = vunpack.c.l.b16 %v1079
    %v4582 = vunpack.c.h.b16 %v1079
    %v4583 = vunpack.c.l.b16 %v1080
    %v4584 = vunpack.c.h.b16 %v1080
    %v4585 = vunpack.c.l.b16 %v1081
    %v4586 = vunpack.c.h.b16 %v1081
    %v4587 = vunpack.c.l.b16 %v1082
    %v4588 = vunpack.c.h.b16 %v1082
    %v4589 = vunpack.c.l.b16 %v1083
    %v4590 = vunpack.c.h.b16 %v1083
    %v4591 = vunpack.c.l.b16 %v1084
    %v4592 = vunpack.c.l.b16 %v1085
    %v4593 = vunpack.c.h.b16 %v1085
    %v4594 = vunpack.c.l.b16 %v1086
    %v4595 = vunpack.c.h.b16 %v1086
    %v4596 = vunpack.c.l.b16 %v1087
    %v4597 = vunpack.c.h.b16 %v1087
    %v4598 = vunpack.c.l.b16 %v1088
    %v4599 = vunpack.c.h.b16 %v1088
    %v4600 = vunpack.c.l.b16 %v1089
    %v4601 = vunpack.c.h.b16 %v1089
    %v4602 = vunpack.c.l.b16 %v1090
    %v4603 = vunpack.c.h.b16 %v1090
    %v4604 = vunpack.c.l.b16 %v1091
    %v4605 = vunpack.c.l.b16 %v1092
    %v4606 = vunpack.c.h.b16 %v1092
    %v4607 = vunpack.c.l.b16 %v1093
    %v4608 = vunpack.c.h.b16 %v1093
    %v4609 = vunpack.c.l.b16 %v1094
    %v4610 = vunpack.c.h.b16 %v1094
    %v4611 = vunpack.c.l.b16 %v1095
    %v4612 = vunpack.c.h.b16 %v1095
    %v4613 = vunpack.c.l.b16 %v1096
    %v4614 = vunpack.c.h.b16 %v1096
    %v4615 = vunpack.c.l.b16 %v1097
    %v4616 = vunpack.c.h.b16 %v1097
    %v4617 = vunpack.c.l.b16 %v1098
    %v4618 = vunpack.c.l.b16 %v1099
    %v4619 = vunpack.c.h.b16 %v1099
    %v4620 = vunpack.c.l.b16 %v1100
    %v4621 = vunpack.c.h.b16 %v1100
    %v4622 = vunpack.c.l.b16 %v1101
    %v4623 = vunpack.c.h.b16 %v1101
    %v4624 = vunpack.c.l.b16 %v1102
    %v4625 = vunpack.c.h.b16 %v1102
    %v4626 = vunpack.c.l.b16 %v1103
    %v4627 = vunpack.c.h.b16 %v1103
    %v4628 = vunpack.c.l.b16 %v1104
    %v4629 = vunpack.c.h.b16 %v1104
    %v4630 = vunpack.c.l.b16 %v1105
    %v4631 = vunpack.c.l.b16 %v1106
    %v4632 = vunpack.c.h.b16 %v1106
    %v4633 = vunpack.c.l.b16 %v1107
    %v4634 = vunpack.c.h.b16 %v1107
    %v4635 = vunpack.c.l.b16 %v1108
    %v4636 = vunpack.c.h.b16 %v1108
    %v4637 = vunpack.c.l.b16 %v1109
    %v4638 = vunpack.c.h.b16 %v1109
    %v4639 = vunpack.c.l.b16 %v1110
    %v4640 = vunpack.c.h.b16 %v1110
    %v4641 = vunpack.c.l.b16 %v1111
    %v4642 = vunpack.c.h.b16 %v1111
    %v4643 = vunpack.c.l.b16 %v1112
    %v4644 = vunpack.c.l.b16 %v1113
    %v4645 = vunpack.c.h.b16 %v1113
    %v4646 = vunpack.c.l.b16 %v1114
    %v4647 = vunpack.c.h.b16 %v1114
    %v4648 = vunpack.c.l.b16 %v1115
    %v4649 = vunpack.c.h.b16 %v1115
    %v4650 = vunpack.c.l.b16 %v1116
    %v4651 = vunpack.c.h.b16 %v1116
    %v4652 = vunpack.c.l.b16 %v1117
    %v4653 = vunpack.c.h.b16 %v1117
    %v4654 = vunpack.c.l.b16 %v1118
    %v4655 = vunpack.c.h.b16 %v1118
    %v4656 = vunpack.c.l.b16 %v1119
    %v4657 = vunpack.c.l.b16 %v1120
    %v4658 = vunpack.c.h.b16 %v1120
    %v4659 = vunpack.c.l.b16 %v1121
    %v4660 = vunpack.c.h.b16 %v1121
    %v4661 = vunpack.c.l.b16 %v1122
    %v4662 = vunpack.c.h.b16 %v1122
    %v4663 = vunpack.c.l.b16 %v1123
    %v4664 = vunpack.c.h.b16 %v1123
    %v4665 = vunpack.c.l.b16 %v1124
    %v4666 = vunpack.c.h.b16 %v1124
    %v4667 = vunpack.c.l.b16 %v1125
    %v4668 = vunpack.c.h.b16 %v1125
    %v4669 = vunpack.c.l.b16 %v1126
    %v4670 = vunpack.c.l.b16 %v1127
    %v4671 = vunpack.c.h.b16 %v1127
    %v4672 = vunpack.c.l.b16 %v1128
    %v4673 = vunpack.c.h.b16 %v1128
    %v4674 = vunpack.c.l.b16 %v1129
    %v4675 = vunpack.c.h.b16 %v1129
    %v4676 = vunpack.c.l.b16 %v1130
    %v4677 = vunpack.c.h.b16 %v1130
    %v4678 = vunpack.c.l.b16 %v1131
    %v4679 = vunpack.c.h.b16 %v1131
    %v4680 = vunpack.c.l.b16 %v1132
    %v4681 = vunpack.c.h.b16 %v1132
    %v4682 = vunpack.c.l.b16 %v1133
    %v4683 = vunpack.c.l.b16 %v1134
    %v4684 = vunpack.c.h.b16 %v1134
    %v4685 = vunpack.c.l.b16 %v1135
    %v4686 = vunpack.c.h.b16 %v1135
    %v4687 = vunpack.c.l.b16 %v1136
    %v4688 = vunpack.c.h.b16 %v1136
    %v4689 = vunpack.c.l.b16 %v1137
    %v4690 = vunpack.c.h.b16 %v1137
    %v4691 = vunpack.c.l.b16 %v1138
    %v4692 = vunpack.c.h.b16 %v1138
    %v4693 = vunpack.c.l.b16 %v1139
    %v4694 = vunpack.c.h.b16 %v1139
    %v4695 = vunpack.c.l.b16 %v1140
    %v4696 = vunpack.c.l.b16 %v1141
    %v4697 = vunpack.c.h.b16 %v1141
    %v4698 = vunpack.c.l.b16 %v1142
    %v4699 = vunpack.c.h.b16 %v1142
    %v4700 = vunpack.c.l.b16 %v1143
    %v4701 = vunpack.c.h.b16 %v1143
    %v4702 = vunpack.c.l.b16 %v1144
    %v4703 = vunpack.c.h.b16 %v1144
    %v4704 = vunpack.c.l.b16 %v1145
    %v4705 = vunpack.c.h.b16 %v1145
    %v4706 = vunpack.c.l.b16 %v1146
    %v4707 = vunpack.c.h.b16 %v1146
    %v4708 = vunpack.c.l.b16 %v1147
    %v4709 = vunpack.c.l.b16 %v1148
    %v4710 = vunpack.c.h.b16 %v1148
    %v4711 = vunpack.c.l.b16 %v1149
    %v4712 = vunpack.c.h.b16 %v1149
    %v4713 = vunpack.c.l.b16 %v1150
    %v4714 = vunpack.c.h.b16 %v1150
    %v4715 = vunpack.c.l.b16 %v1151
    %v4716 = vunpack.c.h.b16 %v1151
    %v4717 = vunpack.c.l.b16 %v1152
    %v4718 = vunpack.c.h.b16 %v1152
    %v4719 = vunpack.c.l.b16 %v1153
    %v4720 = vunpack.c.h.b16 %v1153
    %v4721 = vunpack.c.l.b16 %v1154
    %v4722 = vunpack.c.l.b16 %v1155
    %v4723 = vunpack.c.h.b16 %v1155
    %v4724 = vunpack.c.l.b16 %v1156
    %v4725 = vunpack.c.h.b16 %v1156
    %v4726 = vunpack.c.l.b16 %v1157
    %v4727 = vunpack.c.h.b16 %v1157
    %v4728 = vunpack.c.l.b16 %v1158
    %v4729 = vunpack.c.h.b16 %v1158
    %v4730 = vunpack.c.l.b16 %v1159
    %v4731 = vunpack.c.h.b16 %v1159
    %v4732 = vunpack.c.l.b16 %v1160
    %v4733 = vunpack.c.h.b16 %v1160
    %v4734 = vunpack.c.l.b16 %v1161
    %v4735 = vunpack.c.l.b16 %v1162
    %v4736 = vunpack.c.h.b16 %v1162
    %v4737 = vunpack.c.l.b16 %v1163
    %v4738 = vunpack.c.h.b16 %v1163
    %v4739 = vunpack.c.l.b16 %v1164
    %v4740 = vunpack.c.h.b16 %v1164
    %v4741 = vunpack.c.l.b16 %v1165
    %v4742 = vunpack.c.h.b16 %v1165
    %v4743 = vunpack.c.l.b16 %v1166
    %v4744 = vunpack.c.h.b16 %v1166
    %v4745 = vunpack.c.l.b16 %v1167
    %v4746 = vunpack.c.h.b16 %v1167
    %v4747 = vunpack.c.l.b16 %v1168
    %v4748 = vunpack.c.l.b16 %v1169
    %v4749 = vunpack.c.h.b16 %v1169
    %v4750 = vunpack.c.l.b16 %v1170
    %v4751 = vunpack.c.h.b16 %v1170
    %v4752 = vunpack.c.l.b16 %v1171
    %v4753 = vunpack.c.h.b16 %v1171
    %v4754 = vunpack.c.l.b16 %v1172
    %v4755 = vunpack.c.h.b16 %v1172
    %v4756 = vunpack.c.l.b16 %v1173
    %v4757 = vunpack.c.h.b16 %v1173
    %v4758 = vunpack.c.l.b16 %v1174
    %v4759 = vunpack.c.h.b16 %v1174
    %v4760 = vunpack.c.l.b16 %v1175
    %v4761 = vunpack.c.l.b16 %v1176
    %v4762 = vunpack.c.h.b16 %v1176
    %v4763 = vunpack.c.l.b16 %v1177
    %v4764 = vunpack.c.h.b16 %v1177
    %v4765 = vunpack.c.l.b16 %v1178
    %v4766 = vunpack.c.h.b16 %v1178
    %v4767 = vunpack.c.l.b16 %v1179
    %v4768 = vunpack.c.h.b16 %v1179
    %v4769 = vunpack.c.l.b16 %v1180
    %v4770 = vunpack.c.h.b16 %v1180
    %v4771 = vunpack.c.l.b16 %v1181
    %v4772 = vunpack.c.h.b16 %v1181
    %v4773 = vunpack.c.l.b16 %v1182
    %v4774 = vunpack.c.l.b16 %v1183
    %v4775 = vunpack.c.h.b16 %v1183
    %v4776 = vunpack.c.l.b16 %v1184
    %v4777 = vunpack.c.h.b16 %v1184
    %v4778 = vunpack.c.l.b16 %v1185
    %v4779 = vunpack.c.h.b16 %v1185
    %v4780 = vunpack.c.l.b16 %v1186
    %v4781 = vunpack.c.h.b16 %v1186
    %v4782 = vunpack.c.l.b16 %v1187
    %v4783 = vunpack.c.h.b16 %v1187
    %v4784 = vunpack.c.l.b16 %v1188
    %v4785 = vunpack.c.h.b16 %v1188
    %v4786 = vunpack.c.l.b16 %v1189
    %v4787 = vunpack.c.l.b16 %v1190
    %v4788 = vunpack.c.h.b16 %v1190
    %v4789 = vunpack.c.l.b16 %v1191
    %v4790 = vunpack.c.h.b16 %v1191
    %v4791 = vunpack.c.l.b16 %v1192
    %v4792 = vunpack.c.h.b16 %v1192
    %v4793 = vunpack.c.l.b16 %v1193
    %v4794 = vunpack.c.h.b16 %v1193
    %v4795 = vunpack.c.l.b16 %v1194
    %v4796 = vunpack.c.h.b16 %v1194
    %v4797 = vunpack.c.l.b16 %v1195
    %v4798 = vunpack.c.h.b16 %v1195
    %v4799 = vunpack.c.l.b16 %v1196
    %v4800 = vunpack.c.l.b16 %v1197
    %v4801 = vunpack.c.h.b16 %v1197
    %v4802 = vunpack.c.l.b16 %v1198
    %v4803 = vunpack.c.h.b16 %v1198
    %v4804 = vunpack.c.l.b16 %v1199
    %v4805 = vunpack.c.h.b16 %v1199
    %v4806 = vunpack.c.l.b16 %v1200
    %v4807 = vunpack.c.h.b16 %v1200
    %v4808 = vunpack.c.l.b16 %v1201
    %v4809 = vunpack.c.h.b16 %v1201
    %v4810 = vunpack.c.l.b16 %v1202
    %v4811 = vunpack.c.h.b16 %v1202
    %v4812 = vunpack.c.l.b16 %v1203
    %v4813 = vunpack.c.l.b16 %v1204
    %v4814 = vunpack.c.h.b16 %v1204
    %v4815 = vunpack.c.l.b16 %v1205
    %v4816 = vunpack.c.h.b16 %v1205
    %v4817 = vunpack.c.l.b16 %v1206
    %v4818 = vunpack.c.h.b16 %v1206
    %v4819 = vunpack.c.l.b16 %v1207
    %v4820 = vunpack.c.h.b16 %v1207
    %v4821 = vunpack.c.l.b16 %v1208
    %v4822 = vunpack.c.h.b16 %v1208
    %v4823 = vunpack.c.l.b16 %v1209
    %v4824 = vunpack.c.h.b16 %v1209
    %v4825 = vunpack.c.l.b16 %v1210
    %v4826 = vunpack.c.l.b16 %v1211
    %v4827 = vunpack.c.h.b16 %v1211
    %v4828 = vunpack.c.l.b16 %v1212
    %v4829 = vunpack.c.h.b16 %v1212
    %v4830 = vunpack.c.l.b16 %v1213
    %v4831 = vunpack.c.h.b16 %v1213
    %v4832 = vunpack.c.l.b16 %v1214
    %v4833 = vunpack.c.h.b16 %v1214
    %v4834 = vunpack.c.l.b16 %v1215
    %v4835 = vunpack.c.h.b16 %v1215
    %v4836 = vunpack.c.l.b16 %v1216
    %v4837 = vunpack.c.h.b16 %v1216
    %v4838 = vunpack.c.l.b16 %v1217
    %v4839 = vunpack.c.l.b16 %v1218
    %v4840 = vunpack.c.h.b16 %v1218
    %v4841 = vunpack.c.l.b16 %v1219
    %v4842 = vunpack.c.h.b16 %v1219
    %v4843 = vunpack.c.l.b16 %v1220
    %v4844 = vunpack.c.h.b16 %v1220
    %v4845 = vunpack.c.l.b16 %v1221
    %v4846 = vunpack.c.h.b16 %v1221
    %v4847 = vunpack.c.l.b16 %v1222
    %v4848 = vunpack.c.h.b16 %v1222
    %v4849 = vunpack.c.l.b16 %v1223
    %v4850 = vunpack.c.h.b16 %v1223
    %v4851 = vunpack.c.l.b16 %v1224
    %v4852 = vunpack.c.l.b16 %v1225
    %v4853 = vunpack.c.h.b16 %v1225
    %v4854 = vunpack.c.l.b16 %v1226
    %v4855 = vunpack.c.h.b16 %v1226
    %v4856 = vunpack.c.l.b16 %v1227
    %v4857 = vunpack.c.h.b16 %v1227
    %v4858 = vunpack.c.l.b16 %v1228
    %v4859 = vunpack.c.h.b16 %v1228
    %v4860 = vunpack.c.l.b16 %v1229
    %v4861 = vunpack.c.h.b16 %v1229
    %v4862 = vunpack.c.l.b16 %v1230
    %v4863 = vunpack.c.h.b16 %v1230
    %v4864 = vunpack.c.l.b16 %v1231
    %v4865 = vunpack.c.l.b16 %v1232
    %v4866 = vunpack.c.h.b16 %v1232
    %v4867 = vunpack.c.l.b16 %v1233
    %v4868 = vunpack.c.h.b16 %v1233
    %v4869 = vunpack.c.l.b16 %v1234
    %v4870 = vunpack.c.h.b16 %v1234
    %v4871 = vunpack.c.l.b16 %v1235
    %v4872 = vunpack.c.h.b16 %v1235
    %v4873 = vunpack.c.l.b16 %v1236
    %v4874 = vunpack.c.h.b16 %v1236
    %v4875 = vunpack.c.l.b16 %v1237
    %v4876 = vunpack.c.h.b16 %v1237
    %v4877 = vunpack.c.l.b16 %v1238
    %v4878 = vunpack.c.l.b16 %v1239
    %v4879 = vunpack.c.h.b16 %v1239
    %v4880 = vunpack.c.l.b16 %v1240
    %v4881 = vunpack.c.h.b16 %v1240
    %v4882 = vunpack.c.l.b16 %v1241
    %v4883 = vunpack.c.h.b16 %v1241
    %v4884 = vunpack.c.l.b16 %v1242
    %v4885 = vunpack.c.h.b16 %v1242
    %v4886 = vunpack.c.l.b16 %v1243
    %v4887 = vunpack.c.h.b16 %v1243
    %v4888 = vunpack.c.l.b16 %v1244
    %v4889 = vunpack.c.h.b16 %v1244
    %v4890 = vunpack.c.l.b16 %v1245
    %v4891 = vunpack.c.l.b16 %v1246
    %v4892 = vunpack.c.h.b16 %v1246
    %v4893 = vunpack.c.l.b16 %v1247
    %v4894 = vunpack.c.h.b16 %v1247
    %v4895 = vunpack.c.l.b16 %v1248
    %v4896 = vunpack.c.h.b16 %v1248
    %v4897 = vunpack.c.l.b16 %v1249
    %v4898 = vunpack.c.h.b16 %v1249
    %v4899 = vunpack.c.l.b16 %v1250
    %v4900 = vunpack.c.h.b16 %v1250
    %v4901 = vunpack.c.l.b16 %v1251
    %v4902 = vunpack.c.h.b16 %v1251
    %v4903 = vunpack.c.l.b16 %v1252
    %v4904 = vunpack.c.l.b16 %v1253
    %v4905 = vunpack.c.h.b16 %v1253
    %v4906 = vunpack.c.l.b16 %v1254
    %v4907 = vunpack.c.h.b16 %v1254
    %v4908 = vunpack.c.l.b16 %v1255
    %v4909 = vunpack.c.h.b16 %v1255
    %v4910 = vunpack.c.l.b16 %v1256
    %v4911 = vunpack.c.h.b16 %v1256
    %v4912 = vunpack.c.l.b16 %v1257
    %v4913 = vunpack.c.h.b16 %v1257
    %v4914 = vunpack.c.l.b16 %v1258
    %v4915 = vunpack.c.h.b16 %v1258
    %v4916 = vunpack.c.l.b16 %v1259
    %v4917 = vunpack.c.l.b16 %v1260
    %v4918 = vunpack.c.h.b16 %v1260
    %v4919 = vunpack.c.l.b16 %v1261
    %v4920 = vunpack.c.h.b16 %v1261
    %v4921 = vunpack.c.l.b16 %v1262
    %v4922 = vunpack.c.h.b16 %v1262
    %v4923 = vunpack.c.l.b16 %v1263
    %v4924 = vunpack.c.h.b16 %v1263
    %v4925 = vunpack.c.l.b16 %v1264
    %v4926 = vunpack.c.h.b16 %v1264
    %v4927 = vunpack.c.l.b16 %v1265
    %v4928 = vunpack.c.h.b16 %v1265
    %v4929 = vunpack.c.l.b16 %v1266
    %v4930 = vunpack.c.l.b16 %v1267
    %v4931 = vunpack.c.h.b16 %v1267
    %v4932 = vunpack.c.l.b16 %v1268
    %v4933 = vunpack.c.h.b16 %v1268
    %v4934 = vunpack.c.l.b16 %v1269
    %v4935 = vunpack.c.h.b16 %v1269
    %v4936 = vunpack.c.l.b16 %v1270
    %v4937 = vunpack.c.h.b16 %v1270
    %v4938 = vunpack.c.l.b16 %v1271
    %v4939 = vunpack.c.h.b16 %v1271
    %v4940 = vunpack.c.l.b16 %v1272
    %v4941 = vunpack.c.h.b16 %v1272
    %v4942 = vunpack.c.l.b16 %v1273
    %v4943 = vunpack.c.l.b16 %v1274
    %v4944 = vunpack.c.h.b16 %v1274
    %v4945 = vunpack.c.l.b16 %v1275
    %v4946 = vunpack.c.h.b16 %v1275
    %v4947 = vunpack.c.l.b16 %v1276
    %v4948 = vunpack.c.h.b16 %v1276
    %v4949 = vunpack.c.l.b16 %v1277
    %v4950 = vunpack.c.h.b16 %v1277
    %v4951 = vunpack.c.l.b16 %v1278
    %v4952 = vunpack.c.h.b16 %v1278
    %v4953 = vunpack.c.l.b16 %v1279
    %v4954 = vunpack.c.h.b16 %v1279
    %v4955 = vunpack.c.l.b16 %v1280
    %v4956 = vunpack.c.l.b16 %v1281
    %v4957 = vunpack.c.h.b16 %v1281
    %v4958 = vunpack.c.l.b16 %v1282
    %v4959 = vunpack.c.h.b16 %v1282
    %v4960 = vunpack.c.l.b16 %v1283
    %v4961 = vunpack.c.h.b16 %v1283
    %v4962 = vunpack.c.l.b16 %v1284
    %v4963 = vunpack.c.h.b16 %v1284
    %v4964 = vunpack.c.l.b16 %v1285
    %v4965 = vunpack.c.h.b16 %v1285
    %v4966 = vunpack.c.l.b16 %v1286
    %v4967 = vunpack.c.h.b16 %v1286
    %v4968 = vunpack.c.l.b16 %v1287
    %v4969 = vunpack.c.l.b16 %v1288
    %v4970 = vunpack.c.h.b16 %v1288
    %v4971 = vunpack.c.l.b16 %v1289
    %v4972 = vunpack.c.h.b16 %v1289
    %v4973 = vunpack.c.l.b16 %v1290
    %v4974 = vunpack.c.h.b16 %v1290
    %v4975 = vunpack.c.l.b16 %v1291
    %v4976 = vunpack.c.h.b16 %v1291
    %v4977 = vunpack.c.l.b16 %v1292
    %v4978 = vunpack.c.h.b16 %v1292
    %v4979 = vunpack.c.l.b16 %v1293
    %v4980 = vunpack.c.h.b16 %v1293
    %v4981 = vunpack.c.l.b16 %v1294
    %v4982 = vunpack.c.l.b16 %v1295
    %v4983 = vunpack.c.h.b16 %v1295
    %v4984 = vunpack.c.l.b16 %v1296
    %v4985 = vunpack.c.h.b16 %v1296
    %v4986 = vunpack.c.l.b16 %v1297
    %v4987 = vunpack.c.h.b16 %v1297
    %v4988 = vunpack.c.l.b16 %v1298
    %v4989 = vunpack.c.h.b16 %v1298
    %v4990 = vunpack.c.l.b16 %v1299
    %v4991 = vunpack.c.h.b16 %v1299
    %v4992 = vunpack.c.l.b16 %v1300
    %v4993 = vunpack.c.h.b16 %v1300
    %v4994 = vunpack.c.l.b16 %v1301
    %v4995 = vunpack.c.l.b16 %v1302
    %v4996 = vunpack.c.h.b16 %v1302
    %v4997 = vunpack.c.l.b16 %v1303
    %v4998 = vunpack.c.h.b16 %v1303
    %v4999 = vunpack.c.l.b16 %v1304
    %v5000 = vunpack.c.h.b16 %v1304
    %v5001 = vunpack.c.l.b16 %v1305
    %v5002 = vunpack.c.h.b16 %v1305
    %v5003 = vunpack.c.l.b16 %v1306
    %v5004 = vunpack.c.h.b16 %v1306
    %v5005 = vunpack.c.l.b16 %v1307
    %v5006 = vunpack.c.h.b16 %v1307
    %v5007 = vunpack.c.l.b16 %v1308
    %v5008 = vunpack.c.l.b16 %v1309
    %v5009 = vunpack.c.h.b16 %v1309
    %v5010 = vunpack.c.l.b16 %v1310
    %v5011 = vunpack.c.h.b16 %v1310
    %v5012 = vunpack.c.l.b16 %v1311
    %v5013 = vunpack.c.h.b16 %v1311
    %v5014 = vunpack.c.l.b16 %v1312
    %v5015 = vunpack.c.h.b16 %v1312
    %v5016 = vunpack.c.l.b16 %v1313
    %v5017 = vunpack.c.h.b16 %v1313
    %v5018 = vunpack.c.l.b16 %v1314
    %v5019 = vunpack.c.h.b16 %v1314
    %v5020 = vunpack.c.l.b16 %v1315
    %v5021 = vunpack.c.l.b16 %v1316
    %v5022 = vunpack.c.h.b16 %v1316
    %v5023 = vunpack.c.l.b16 %v1317
    %v5024 = vunpack.c.h.b16 %v1317
    %v5025 = vunpack.c.l.b16 %v1318
    %v5026 = vunpack.c.h.b16 %v1318
    %v5027 = vunpack.c.l.b16 %v1319
    %v5028 = vunpack.c.h.b16 %v1319
    %v5029 = vunpack.c.l.b16 %v1320
    %v5030 = vunpack.c.h.b16 %v1320
    %v5031 = vunpack.c.l.b16 %v1321
    %v5032 = vunpack.c.h.b16 %v1321
    %v5033 = vunpack.c.l.b16 %v1322
    %v5034 = vunpack.c.l.b16 %v1323
    %v5035 = vunpack.c.h.b16 %v1323
    %v5036 = vunpack.c.l.b16 %v1324
    %v5037 = vunpack.c.h.b16 %v1324
    %v5038 = vunpack.c.l.b16 %v1325
    %v5039 = vunpack.c.h.b16 %v1325
    %v5040 = vunpack.c.l.b16 %v1326
    %v5041 = vunpack.c.h.b16 %v1326
    %v5042 = vunpack.c.l.b16 %v1327
    %v5043 = vunpack.c.h.b16 %v1327
    %v5044 = vunpack.c.l.b16 %v1328
    %v5045 = vunpack.c.h.b16 %v1328
    %v5046 = vunpack.c.l.b16 %v1329
    %v5047 = vunpack.c.l.b16 %v1330
    %v5048 = vunpack.c.h.b16 %v1330
    %v5049 = vunpack.c.l.b16 %v1331
    %v5050 = vunpack.c.h.b16 %v1331
    %v5051 = vunpack.c.l.b16 %v1332
    %v5052 = vunpack.c.h.b16 %v1332
    %v5053 = vunpack.c.l.b16 %v1333
    %v5054 = vunpack.c.h.b16 %v1333
    %v5055 = vunpack.c.l.b16 %v1334
    %v5056 = vunpack.c.h.b16 %v1334
    %v5057 = vunpack.c.l.b16 %v1335
    %v5058 = vunpack.c.h.b16 %v1335
    %v5059 = vunpack.c.l.b16 %v1336
    %v5060 = vunpack.c.l.b16 %v1337
    %v5061 = vunpack.c.h.b16 %v1337
    %v5062 = vunpack.c.l.b16 %v1338
    %v5063 = vunpack.c.h.b16 %v1338
    %v5064 = vunpack.c.l.b16 %v1339
    %v5065 = vunpack.c.h.b16 %v1339
    %v5066 = vunpack.c.l.b16 %v1340
    %v5067 = vunpack.c.h.b16 %v1340
    %v5068 = vunpack.c.l.b16 %v1341
    %v5069 = vunpack.c.h.b16 %v1341
    %v5070 = vunpack.c.l.b16 %v1342
    %v5071 = vunpack.c.h.b16 %v1342
    %v5072 = vunpack.c.l.b16 %v1343
    %v5073 = vunpack.c.l.b16 %v1344
    %v5074 = vunpack.c.h.b16 %v1344
    %v5075 = vunpack.c.l.b16 %v1345
    %v5076 = vunpack.c.h.b16 %v1345
    %v5077 = vunpack.c.l.b16 %v1346
    %v5078 = vunpack.c.h.b16 %v1346
    %v5079 = vunpack.c.l.b16 %v1347
    %v5080 = vunpack.c.h.b16 %v1347
    %v5081 = vunpack.c.l.b16 %v1348
    %v5082 = vunpack.c.h.b16 %v1348
    %v5083 = vunpack.c.l.b16 %v1349
    %v5084 = vunpack.c.h.b16 %v1349
    %v5085 = vunpack.c.l.b16 %v1350
    %v5086 = vunpack.c.l.b16 %v1351
    %v5087 = vunpack.c.h.b16 %v1351
    %v5088 = vunpack.c.l.b16 %v1352
    %v5089 = vunpack.c.h.b16 %v1352
    %v5090 = vunpack.c.l.b16 %v1353
    %v5091 = vunpack.c.h.b16 %v1353
    %v5092 = vunpack.c.l.b16 %v1354
    %v5093 = vunpack.c.h.b16 %v1354
    %v5094 = vunpack.c.l.b16 %v1355
    %v5095 = vunpack.c.h.b16 %v1355
    %v5096 = vunpack.c.l.b16 %v1356
    %v5097 = vunpack.c.h.b16 %v1356
    %v5098 = vunpack.c.l.b16 %v1357
    %v5099 = vunpack.c.l.b16 %v1358
    %v5100 = vunpack.c.h.b16 %v1358
    %v5101 = vunpack.c.l.b16 %v1359
    %v5102 = vunpack.c.h.b16 %v1359
    %v5103 = vunpack.c.l.b16 %v1360
    %v5104 = vunpack.c.h.b16 %v1360
    %v5105 = vunpack.c.l.b16 %v1361
    %v5106 = vunpack.c.h.b16 %v1361
    %v5107 = vunpack.c.l.b16 %v1362
    %v5108 = vunpack.c.h.b16 %v1362
    %v5109 = vunpack.c.l.b16 %v1363
    %v5110 = vunpack.c.h.b16 %v1363
    %v5111 = vunpack.c.l.b16 %v1364
    %v5112 = vunpack.c.l.b16 %v1365
    %v5113 = vunpack.c.h.b16 %v1365
    %v5114 = vunpack.c.l.b16 %v1366
    %v5115 = vunpack.c.h.b16 %v1366
    %v5116 = vunpack.c.l.b16 %v1367
    %v5117 = vunpack.c.h.b16 %v1367
    %v5118 = vunpack.c.l.b16 %v1368
    %v5119 = vunpack.c.h.b16 %v1368
    %v5120 = vunpack.c.l.b16 %v1369
    %v5121 = vunpack.c.h.b16 %v1369
    %v5122 = vunpack.c.l.b16 %v1370
    %v5123 = vunpack.c.h.b16 %v1370
    %v5124 = vunpack.c.l.b16 %v1371
    %v5125 = vunpack.c.l.b16 %v1372
    %v5126 = vunpack.c.h.b16 %v1372
    %v5127 = vunpack.c.l.b16 %v1373
    %v5128 = vunpack.c.h.b16 %v1373
    %v5129 = vunpack.c.l.b16 %v1374
    %v5130 = vunpack.c.h.b16 %v1374
    %v5131 = vunpack.c.l.b16 %v1375
    %v5132 = vunpack.c.h.b16 %v1375
    %v5133 = vunpack.c.l.b16 %v1376
    %v5134 = vunpack.c.h.b16 %v1376
    %v5135 = vunpack.c.l.b16 %v1377
    %v5136 = vunpack.c.h.b16 %v1377
    %v5137 = vunpack.c.l.b16 %v1378
    %v5138 = vunpack.c.l.b16 %v1379
    %v5139 = vunpack.c.h.b16 %v1379
    %v5140 = vunpack.c.l.b16 %v1380
    %v5141 = vunpack.c.h.b16 %v1380
    %v5142 = vunpack.c.l.b16 %v1381
    %v5143 = vunpack.c.h.b16 %v1381
    %v5144 = vunpack.c.l.b16 %v1382
    %v5145 = vunpack.c.h.b16 %v1382
    %v5146 = vunpack.c.l.b16 %v1383
    %v5147 = vunpack.c.h.b16 %v1383
    %v5148 = vunpack.c.l.b16 %v1384
    %v5149 = vunpack.c.h.b16 %v1384
    %v5150 = vunpack.c.l.b16 %v1385
    %v5151 = vunpack.c.l.b16 %v1386
    %v5152 = vunpack.c.h.b16 %v1386
    %v5153 = vunpack.c.l.b16 %v1387
    %v5154 = vunpack.c.h.b16 %v1387
    %v5155 = vunpack.c.l.b16 %v1388
    %v5156 = vunpack.c.h.b16 %v1388
    %v5157 = vunpack.c.l.b16 %v1389
    %v5158 = vunpack.c.h.b16 %v1389
    %v5159 = vunpack.c.l.b16 %v1390
    %v5160 = vunpack.c.h.b16 %v1390
    %v5161 = vunpack.c.l.b16 %v1391
    %v5162 = vunpack.c.h.b16 %v1391
    %v5163 = vunpack.c.l.b16 %v1392
    %v5164 = vunpack.c.l.b16 %v1393
    %v5165 = vunpack.c.h.b16 %v1393
    %v5166 = vunpack.c.l.b16 %v1394
    %v5167 = vunpack.c.h.b16 %v1394
    %v5168 = vunpack.c.l.b16 %v1395
    %v5169 = vunpack.c.h.b16 %v1395
    %v5170 = vunpack.c.l.b16 %v1396
    %v5171 = vunpack.c.h.b16 %v1396
    %v5172 = vunpack.c.l.b16 %v1397
    %v5173 = vunpack.c.h.b16 %v1397
    %v5174 = vunpack.c.l.b16 %v1398
    %v5175 = vunpack.c.h.b16 %v1398
    %v5176 = vunpack.c.l.b16 %v1399
    %v5177 = vunpack.c.l.b16 %v1400
    %v5178 = vunpack.c.h.b16 %v1400
    %v5179 = vunpack.c.l.b16 %v1401
    %v5180 = vunpack.c.h.b16 %v1401
    %v5181 = vunpack.c.l.b16 %v1402
    %v5182 = vunpack.c.h.b16 %v1402
    %v5183 = vunpack.c.l.b16 %v1403
    %v5184 = vunpack.c.h.b16 %v1403
    %v5185 = vunpack.c.l.b16 %v1404
    %v5186 = vunpack.c.h.b16 %v1404
    %v5187 = vunpack.c.l.b16 %v1405
    %v5188 = vunpack.c.h.b16 %v1405
    %v5189 = vunpack.c.l.b16 %v1406
    %v5190 = vunpack.c.l.b16 %v1407
    %v5191 = vunpack.c.h.b16 %v1407
    %v5192 = vunpack.c.l.b16 %v1408
    %v5193 = vunpack.c.h.b16 %v1408
    %v5194 = vunpack.c.l.b16 %v1409
    %v5195 = vunpack.c.h.b16 %v1409
    %v5196 = vunpack.c.l.b16 %v1410
    %v5197 = vunpack.c.h.b16 %v1410
    %v5198 = vunpack.c.l.b16 %v1411
    %v5199 = vunpack.c.h.b16 %v1411
    %v5200 = vunpack.c.l.b16 %v1412
    %v5201 = vunpack.c.h.b16 %v1412
    %v5202 = vunpack.c.l.b16 %v1413
    %v5203 = vpack.c.b16 %v2798, %v2785
    %v5204 = vpack.c.b16 %v2799, %v2786
    %v5205 = vpack.c.b16 %v2800, %v2787
    %v5206 = vpack.c.b16 %v2801, %v2788
    %v5207 = vpack.c.b16 %v2802, %v2789
    %v5208 = vpack.c.b16 %v2803, %v2790
    %v5209 = vpack.c.b16 %v2804, %v2791
    %v5210 = vpack.c.b16 %v2805, %v2792
    %v5211 = vpack.c.b16 %v2806, %v2793
    %v5212 = vpack.c.b16 %v2807, %v2794
    %v5213 = vpack.c.b16 %v2808, %v2795
    %v5214 = vpack.c.b16 %v2809, %v2796
    %v5215 = vpack.c.b16 %v2810, %v2797
    %v5216 = vpack.c.b16 %v2824, %v2811
    %v5217 = vpack.c.b16 %v2825, %v2812
    %v5218 = vpack.c.b16 %v2826, %v2813
    %v5219 = vpack.c.b16 %v2827, %v2814
    %v5220 = vpack.c.b16 %v2828, %v2815
    %v5221 = vpack.c.b16 %v2829, %v2816
    %v5222 = vpack.c.b16 %v2830, %v2817
    %v5223 = vpack.c.b16 %v2831, %v2818
    %v5224 = vpack.c.b16 %v2832, %v2819
    %v5225 = vpack.c.b16 %v2833, %v2820
    %v5226 = vpack.c.b16 %v2834, %v2821
    %v5227 = vpack.c.b16 %v2835, %v2822
    %v5228 = vpack.c.b16 %v2836, %v2823
    %v5229 = vpack.c.b16 %v2850, %v2837
    %v5230 = vpack.c.b16 %v2851, %v2838
    %v5231 = vpack.c.b16 %v2852, %v2839
    %v5232 = vpack.c.b16 %v2853, %v2840
    %v5233 = vpack.c.b16 %v2854, %v2841
    %v5234 = vpack.c.b16 %v2855, %v2842
    %v5235 = vpack.c.b16 %v2856, %v2843
    %v5236 = vpack.c.b16 %v2857, %v2844
    %v5237 = vpack.c.b16 %v2858, %v2845
    %v5238 = vpack.c.b16 %v2859, %v2846
    %v5239 = vpack.c.b16 %v2860, %v2847
    %v5240 = vpack.c.b16 %v2861, %v2848
    %v5241 = vpack.c.b16 %v2862, %v2849
    %v5242 = vpack.c.b16 %v2876, %v2863
    %v5243 = vpack.c.b16 %v2877, %v2864
    %v5244 = vpack.c.b16 %v2878, %v2865
    %v5245 = vpack.c.b16 %v2879, %v2866
    %v5246 = vpack.c.b16 %v2880, %v2867
    %v5247 = vpack.c.b16 %v2881, %v2868
    %v5248 = vpack.c.b16 %v2882, %v2869
    %v5249 = vpack.c.b16 %v2883, %v2870
    %v5250 = vpack.c.b16 %v2884, %v2871
    %v5251 = vpack.c.b16 %v2885, %v2872
    %v5252 = vpack.c.b16 %v2886, %v2873
    %v5253 = vpack.c.b16 %v2887, %v2874
    %v5254 = vpack.c.b16 %v2888, %v2875
    %v5255 = vpack.c.b16 %v2902, %v2889
    %v5256 = vpack.c.b16 %v2903, %v2890
    %v5257 = vpack.c.b16 %v2904, %v2891
    %v5258 = vpack.c.b16 %v2905, %v2892
    %v5259 = vpack.c.b16 %v2906, %v2893
    %v5260 = vpack.c.b16 %v2907, %v2894
    %v5261 = vpack.c.b16 %v2908, %v2895
    %v5262 = vpack.c.b16 %v2909, %v2896
    %v5263 = vpack.c.b16 %v2910, %v2897
    %v5264 = vpack.c.b16 %v2911, %v2898
    %v5265 = vpack.c.b16 %v2912, %v2899
    %v5266 = vpack.c.b16 %v2913, %v2900
    %v5267 = vpack.c.b16 %v2914, %v2901
    %v5268 = vpack.c.b16 %v2928, %v2915
    %v5269 = vpack.c.b16 %v2929, %v2916
    %v5270 = vpack.c.b16 %v2930, %v2917
    %v5271 = vpack.c.b16 %v2931, %v2918
    %v5272 = vpack.c.b16 %v2932, %v2919
    %v5273 = vpack.c.b16 %v2933, %v2920
    %v5274 = vpack.c.b16 %v2934, %v2921
    %v5275 = vpack.c.b16 %v2935, %v2922
    %v5276 = vpack.c.b16 %v2936, %v2923
    %v5277 = vpack.c.b16 %v2937, %v2924
    %v5278 = vpack.c.b16 %v2938, %v2925
    %v5279 = vpack.c.b16 %v2939, %v2926
    %v5280 = vpack.c.b16 %v2940, %v2927
    %v5281 = vpack.c.b16 %v2954, %v2941
    %v5282 = vpack.c.b16 %v2955, %v2942
    %v5283 = vpack.c.b16 %v2956, %v2943
    %v5284 = vpack.c.b16 %v2957, %v2944
    %v5285 = vpack.c.b16 %v2958, %v2945
    %v5286 = vpack.c.b16 %v2959, %v2946
    %v5287 = vpack.c.b16 %v2960, %v2947
    %v5288 = vpack.c.b16 %v2961, %v2948
    %v5289 = vpack.c.b16 %v2962, %v2949
    %v5290 = vpack.c.b16 %v2963, %v2950
    %v5291 = vpack.c.b16 %v2964, %v2951
    %v5292 = vpack.c.b16 %v2965, %v2952
    %v5293 = vpack.c.b16 %v2966, %v2953
    %v5294 = vpack.c.b16 %v2980, %v2967
    %v5295 = vpack.c.b16 %v2981, %v2968
    %v5296 = vpack.c.b16 %v2982, %v2969
    %v5297 = vpack.c.b16 %v2983, %v2970
    %v5298 = vpack.c.b16 %v2984, %v2971
    %v5299 = vpack.c.b16 %v2985, %v2972
    %v5300 = vpack.c.b16 %v2986, %v2973
    %v5301 = vpack.c.b16 %v2987, %v2974
    %v5302 = vpack.c.b16 %v2988, %v2975
    %v5303 = vpack.c.b16 %v2989, %v2976
    %v5304 = vpack.c.b16 %v2990, %v2977
    %v5305 = vpack.c.b16 %v2991, %v2978
    %v5306 = vpack.c.b16 %v2992, %v2979
    %v5307 = vpack.c.b16 %v3006, %v2993
    %v5308 = vpack.c.b16 %v3007, %v2994
    %v5309 = vpack.c.b16 %v3008, %v2995
    %v5310 = vpack.c.b16 %v3009, %v2996
    %v5311 = vpack.c.b16 %v3010, %v2997
    %v5312 = vpack.c.b16 %v3011, %v2998
    %v5313 = vpack.c.b16 %v3012, %v2999
    %v5314 = vpack.c.b16 %v3013, %v3000
    %v5315 = vpack.c.b16 %v3014, %v3001
    %v5316 = vpack.c.b16 %v3015, %v3002
    %v5317 = vpack.c.b16 %v3016, %v3003
    %v5318 = vpack.c.b16 %v3017, %v3004
    %v5319 = vpack.c.b16 %v3018, %v3005
    %v5320 = vpack.c.b16 %v3032, %v3019
    %v5321 = vpack.c.b16 %v3033, %v3020
    %v5322 = vpack.c.b16 %v3034, %v3021
    %v5323 = vpack.c.b16 %v3035, %v3022
    %v5324 = vpack.c.b16 %v3036, %v3023
    %v5325 = vpack.c.b16 %v3037, %v3024
    %v5326 = vpack.c.b16 %v3038, %v3025
    %v5327 = vpack.c.b16 %v3039, %v3026
    %v5328 = vpack.c.b16 %v3040, %v3027
    %v5329 = vpack.c.b16 %v3041, %v3028
    %v5330 = vpack.c.b16 %v3042, %v3029
    %v5331 = vpack.c.b16 %v3043, %v3030
    %v5332 = vpack.c.b16 %v3044, %v3031
    %v5333 = vpack.c.b16 %v3058, %v3045
    %v5334 = vpack.c.b16 %v3059, %v3046
    %v5335 = vpack.c.b16 %v3060, %v3047
    %v5336 = vpack.c.b16 %v3061, %v3048
    %v5337 = vpack.c.b16 %v3062, %v3049
    %v5338 = vpack.c.b16 %v3063, %v3050
    %v5339 = vpack.c.b16 %v3064, %v3051
    %v5340 = vpack.c.b16 %v3065, %v3052
    %v5341 = vpack.c.b16 %v3066, %v3053
    %v5342 = vpack.c.b16 %v3067, %v3054
    %v5343 = vpack.c.b16 %v3068, %v3055
    %v5344 = vpack.c.b16 %v3069, %v3056
    %v5345 = vpack.c.b16 %v3070, %v3057
    %v5346 = vpack.c.b16 %v3084, %v3071
    %v5347 = vpack.c.b16 %v3085, %v3072
    %v5348 = vpack.c.b16 %v3086, %v3073
    %v5349 = vpack.c.b16 %v3087, %v3074
    %v5350 = vpack.c.b16 %v3088, %v3075
    %v5351 = vpack.c.b16 %v3089, %v3076
    %v5352 = vpack.c.b16 %v3090, %v3077
    %v5353 = vpack.c.b16 %v3091, %v3078
    %v5354 = vpack.c.b16 %v3092, %v3079
    %v5355 = vpack.c.b16 %v3093, %v3080
    %v5356 = vpack.c.b16 %v3094, %v3081
    %v5357 = vpack.c.b16 %v3095, %v3082
    %v5358 = vpack.c.b16 %v3096, %v3083
    %v5359 = vpack.c.b16 %v3110, %v3097
    %v5360 = vpack.c.b16 %v3111, %v3098
    %v5361 = vpack.c.b16 %v3112, %v3099
    %v5362 = vpack.c.b16 %v3113, %v3100
    %v5363 = vpack.c.b16 %v3114, %v3101
    %v5364 = vpack.c.b16 %v3115, %v3102
    %v5365 = vpack.c.b16 %v3116, %v3103
    %v5366 = vpack.c.b16 %v3117, %v3104
    %v5367 = vpack.c.b16 %v3118, %v3105
    %v5368 = vpack.c.b16 %v3119, %v3106
    %v5369 = vpack.c.b16 %v3120, %v3107
    %v5370 = vpack.c.b16 %v3121, %v3108
    %v5371 = vpack.c.b16 %v3122, %v3109
    %v5372 = vpack.c.b16 %v3136, %v3123
    %v5373 = vpack.c.b16 %v3137, %v3124
    %v5374 = vpack.c.b16 %v3138, %v3125
    %v5375 = vpack.c.b16 %v3139, %v3126
    %v5376 = vpack.c.b16 %v3140, %v3127
    %v5377 = vpack.c.b16 %v3141, %v3128
    %v5378 = vpack.c.b16 %v3142, %v3129
    %v5379 = vpack.c.b16 %v3143, %v3130
    %v5380 = vpack.c.b16 %v3144, %v3131
    %v5381 = vpack.c.b16 %v3145, %v3132
    %v5382 = vpack.c.b16 %v3146, %v3133
    %v5383 = vpack.c.b16 %v3147, %v3134
    %v5384 = vpack.c.b16 %v3148, %v3135
    %v5385 = vpack.c.b16 %v3162, %v3149
    %v5386 = vpack.c.b16 %v3163, %v3150
    %v5387 = vpack.c.b16 %v3164, %v3151
    %v5388 = vpack.c.b16 %v3165, %v3152
    %v5389 = vpack.c.b16 %v3166, %v3153
    %v5390 = vpack.c.b16 %v3167, %v3154
    %v5391 = vpack.c.b16 %v3168, %v3155
    %v5392 = vpack.c.b16 %v3169, %v3156
    %v5393 = vpack.c.b16 %v3170, %v3157
    %v5394 = vpack.c.b16 %v3171, %v3158
    %v5395 = vpack.c.b16 %v3172, %v3159
    %v5396 = vpack.c.b16 %v3173, %v3160
    %v5397 = vpack.c.b16 %v3174, %v3161
    %v5398 = vpack.c.b16 %v3188, %v3175
    %v5399 = vpack.c.b16 %v3189, %v3176
    %v5400 = vpack.c.b16 %v3190, %v3177
    %v5401 = vpack.c.b16 %v3191, %v3178
    %v5402 = vpack.c.b16 %v3192, %v3179
    %v5403 = vpack.c.b16 %v3193, %v3180
    %v5404 = vpack.c.b16 %v3194, %v3181
    %v5405 = vpack.c.b16 %v3195, %v3182
    %v5406 = vpack.c.b16 %v3196, %v3183
    %v5407 = vpack.c.b16 %v3197, %v3184
    %v5408 = vpack.c.b16 %v3198, %v3185
    %v5409 = vpack.c.b16 %v3199, %v3186
    %v5410 = vpack.c.b16 %v3200, %v3187
    %v5411 = vpack.c.b16 %v3214, %v3201
    %v5412 = vpack.c.b16 %v3215, %v3202
    %v5413 = vpack.c.b16 %v3216, %v3203
    %v5414 = vpack.c.b16 %v3217, %v3204
    %v5415 = vpack.c.b16 %v3218, %v3205
    %v5416 = vpack.c.b16 %v3219, %v3206
    %v5417 = vpack.c.b16 %v3220, %v3207
    %v5418 = vpack.c.b16 %v3221, %v3208
    %v5419 = vpack.c.b16 %v3222, %v3209
    %v5420 = vpack.c.b16 %v3223, %v3210
    %v5421 = vpack.c.b16 %v3224, %v3211
    %v5422 = vpack.c.b16 %v3225, %v3212
    %v5423 = vpack.c.b16 %v3226, %v3213
    %v5424 = vpack.c.b16 %v3240, %v3227
    %v5425 = vpack.c.b16 %v3241, %v3228
    %v5426 = vpack.c.b16 %v3242, %v3229
    %v5427 = vpack.c.b16 %v3243, %v3230
    %v5428 = vpack.c.b16 %v3244, %v3231
    %v5429 = vpack.c.b16 %v3245, %v3232
    %v5430 = vpack.c.b16 %v3246, %v3233
    %v5431 = vpack.c.b16 %v3247, %v3234
    %v5432 = vpack.c.b16 %v3248, %v3235
    %v5433 = vpack.c.b16 %v3249, %v3236
    %v5434 = vpack.c.b16 %v3250, %v3237
    %v5435 = vpack.c.b16 %v3251, %v3238
    %v5436 = vpack.c.b16 %v3252, %v3239
    %v5437 = vpack.c.b16 %v3266, %v3253
    %v5438 = vpack.c.b16 %v3267, %v3254
    %v5439 = vpack.c.b16 %v3268, %v3255
    %v5440 = vpack.c.b16 %v3269, %v3256
    %v5441 = vpack.c.b16 %v3270, %v3257
    %v5442 = vpack.c.b16 %v3271, %v3258
    %v5443 = vpack.c.b16 %v3272, %v3259
    %v5444 = vpack.c.b16 %v3273, %v3260
    %v5445 = vpack.c.b16 %v3274, %v3261
    %v5446 = vpack.c.b16 %v3275, %v3262
    %v5447 = vpack.c.b16 %v3276, %v3263
    %v5448 = vpack.c.b16 %v3277, %v3264
    %v5449 = vpack.c.b16 %v3278, %v3265
    %v5450 = vpack.c.b16 %v3292, %v3279
    %v5451 = vpack.c.b16 %v3293, %v3280
    %v5452 = vpack.c.b16 %v3294, %v3281
    %v5453 = vpack.c.b16 %v3295, %v3282
    %v5454 = vpack.c.b16 %v3296, %v3283
    %v5455 = vpack.c.b16 %v3297, %v3284
    %v5456 = vpack.c.b16 %v3298, %v3285
    %v5457 = vpack.c.b16 %v3299, %v3286
    %v5458 = vpack.c.b16 %v3300, %v3287
    %v5459 = vpack.c.b16 %v3301, %v3288
    %v5460 = vpack.c.b16 %v3302, %v3289
    %v5461 = vpack.c.b16 %v3303, %v3290
    %v5462 = vpack.c.b16 %v3304, %v3291
    %v5463 = vpack.c.b16 %v3318, %v3305
    %v5464 = vpack.c.b16 %v3319, %v3306
    %v5465 = vpack.c.b16 %v3320, %v3307
    %v5466 = vpack.c.b16 %v3321, %v3308
    %v5467 = vpack.c.b16 %v3322, %v3309
    %v5468 = vpack.c.b16 %v3323, %v3310
    %v5469 = vpack.c.b16 %v3324, %v3311
    %v5470 = vpack.c.b16 %v3325, %v3312
    %v5471 = vpack.c.b16 %v3326, %v3313
    %v5472 = vpack.c.b16 %v3327, %v3314
    %v5473 = vpack.c.b16 %v3328, %v3315
    %v5474 = vpack.c.b16 %v3329, %v3316
    %v5475 = vpack.c.b16 %v3330, %v3317
    %v5476 = vpack.c.b16 %v3344, %v3331
    %v5477 = vpack.c.b16 %v3345, %v3332
    %v5478 = vpack.c.b16 %v3346, %v3333
    %v5479 = vpack.c.b16 %v3347, %v3334
    %v5480 = vpack.c.b16 %v3348, %v3335
    %v5481 = vpack.c.b16 %v3349, %v3336
    %v5482 = vpack.c.b16 %v3350, %v3337
    %v5483 = vpack.c.b16 %v3351, %v3338
    %v5484 = vpack.c.b16 %v3352, %v3339
    %v5485 = vpack.c.b16 %v3353, %v3340
    %v5486 = vpack.c.b16 %v3354, %v3341
    %v5487 = vpack.c.b16 %v3355, %v3342
    %v5488 = vpack.c.b16 %v3356, %v3343
    %v5489 = vpack.c.b16 %v3370, %v3357
    %v5490 = vpack.c.b16 %v3371, %v3358
    %v5491 = vpack.c.b16 %v3372, %v3359
    %v5492 = vpack.c.b16 %v3373, %v3360
    %v5493 = vpack.c.b16 %v3374, %v3361
    %v5494 = vpack.c.b16 %v3375, %v3362
    %v5495 = vpack.c.b16 %v3376, %v3363
    %v5496 = vpack.c.b16 %v3377, %v3364
    %v5497 = vpack.c.b16 %v3378, %v3365
    %v5498 = vpack.c.b16 %v3379, %v3366
    %v5499 = vpack.c.b16 %v3380, %v3367
    %v5500 = vpack.c.b16 %v3381, %v3368
    %v5501 = vpack.c.b16 %v3382, %v3369
    %v5502 = vpack.c.b16 %v3396, %v3383
    %v5503 = vpack.c.b16 %v3397, %v3384
    %v5504 = vpack.c.b16 %v3398, %v3385
    %v5505 = vpack.c.b16 %v3399, %v3386
    %v5506 = vpack.c.b16 %v3400, %v3387
    %v5507 = vpack.c.b16 %v3401, %v3388
    %v5508 = vpack.c.b16 %v3402, %v3389
    %v5509 = vpack.c.b16 %v3403, %v3390
    %v5510 = vpack.c.b16 %v3404, %v3391
    %v5511 = vpack.c.b16 %v3405, %v3392
    %v5512 = vpack.c.b16 %v3406, %v3393
    %v5513 = vpack.c.b16 %v3407, %v3394
    %v5514 = vpack.c.b16 %v3408, %v3395
    %v5515 = vpack.c.b16 %v3422, %v3409
    %v5516 = vpack.c.b16 %v3423, %v3410
    %v5517 = vpack.c.b16 %v3424, %v3411
    %v5518 = vpack.c.b16 %v3425, %v3412
    %v5519 = vpack.c.b16 %v3426, %v3413
    %v5520 = vpack.c.b16 %v3427, %v3414
    %v5521 = vpack.c.b16 %v3428, %v3415
    %v5522 = vpack.c.b16 %v3429, %v3416
    %v5523 = vpack.c.b16 %v3430, %v3417
    %v5524 = vpack.c.b16 %v3431, %v3418
    %v5525 = vpack.c.b16 %v3432, %v3419
    %v5526 = vpack.c.b16 %v3433, %v3420
    %v5527 = vpack.c.b16 %v3434, %v3421
    %v5528 = vpack.c.b16 %v3448, %v3435
    %v5529 = vpack.c.b16 %v3449, %v3436
    %v5530 = vpack.c.b16 %v3450, %v3437
    %v5531 = vpack.c.b16 %v3451, %v3438
    %v5532 = vpack.c.b16 %v3452, %v3439
    %v5533 = vpack.c.b16 %v3453, %v3440
    %v5534 = vpack.c.b16 %v3454, %v3441
    %v5535 = vpack.c.b16 %v3455, %v3442
    %v5536 = vpack.c.b16 %v3456, %v3443
    %v5537 = vpack.c.b16 %v3457, %v3444
    %v5538 = vpack.c.b16 %v3458, %v3445
    %v5539 = vpack.c.b16 %v3459, %v3446
    %v5540 = vpack.c.b16 %v3460, %v3447
    %v5541 = vpack.c.b16 %v3474, %v3461
    %v5542 = vpack.c.b16 %v3475, %v3462
    %v5543 = vpack.c.b16 %v3476, %v3463
    %v5544 = vpack.c.b16 %v3477, %v3464
    %v5545 = vpack.c.b16 %v3478, %v3465
    %v5546 = vpack.c.b16 %v3479, %v3466
    %v5547 = vpack.c.b16 %v3480, %v3467
    %v5548 = vpack.c.b16 %v3481, %v3468
    %v5549 = vpack.c.b16 %v3482, %v3469
    %v5550 = vpack.c.b16 %v3483, %v3470
    %v5551 = vpack.c.b16 %v3484, %v3471
    %v5552 = vpack.c.b16 %v3485, %v3472
    %v5553 = vpack.c.b16 %v3486, %v3473
    %v5554 = vpack.c.b16 %v3500, %v3487
    %v5555 = vpack.c.b16 %v3501, %v3488
    %v5556 = vpack.c.b16 %v3502, %v3489
    %v5557 = vpack.c.b16 %v3503, %v3490
    %v5558 = vpack.c.b16 %v3504, %v3491
    %v5559 = vpack.c.b16 %v3505, %v3492
    %v5560 = vpack.c.b16 %v3506, %v3493
    %v5561 = vpack.c.b16 %v3507, %v3494
    %v5562 = vpack.c.b16 %v3508, %v3495
    %v5563 = vpack.c.b16 %v3509, %v3496
    %v5564 = vpack.c.b16 %v3510, %v3497
    %v5565 = vpack.c.b16 %v3511, %v3498
    %v5566 = vpack.c.b16 %v3512, %v3499
    %v5567 = vpack.c.b16 %v3526, %v3513
    %v5568 = vpack.c.b16 %v3527, %v3514
    %v5569 = vpack.c.b16 %v3528, %v3515
    %v5570 = vpack.c.b16 %v3529, %v3516
    %v5571 = vpack.c.b16 %v3530, %v3517
    %v5572 = vpack.c.b16 %v3531, %v3518
    %v5573 = vpack.c.b16 %v3532, %v3519
    %v5574 = vpack.c.b16 %v3533, %v3520
    %v5575 = vpack.c.b16 %v3534, %v3521
    %v5576 = vpack.c.b16 %v3535, %v3522
    %v5577 = vpack.c.b16 %v3536, %v3523
    %v5578 = vpack.c.b16 %v3537, %v3524
    %v5579 = vpack.c.b16 %v3538, %v3525
    %v5580 = vpack.c.b16 %v3552, %v3539
    %v5581 = vpack.c.b16 %v3553, %v3540
    %v5582 = vpack.c.b16 %v3554, %v3541
    %v5583 = vpack.c.b16 %v3555, %v3542
    %v5584 = vpack.c.b16 %v3556, %v3543
    %v5585 = vpack.c.b16 %v3557, %v3544
    %v5586 = vpack.c.b16 %v3558, %v3545
    %v5587 = vpack.c.b16 %v3559, %v3546
    %v5588 = vpack.c.b16 %v3560, %v3547
    %v5589 = vpack.c.b16 %v3561, %v3548
    %v5590 = vpack.c.b16 %v3562, %v3549
    %v5591 = vpack.c.b16 %v3563, %v3550
    %v5592 = vpack.c.b16 %v3564, %v3551
    %v5593 = vpack.c.b16 %v3578, %v3565
    %v5594 = vpack.c.b16 %v3579, %v3566
    %v5595 = vpack.c.b16 %v3580, %v3567
    %v5596 = vpack.c.b16 %v3581, %v3568
    %v5597 = vpack.c.b16 %v3582, %v3569
    %v5598 = vpack.c.b16 %v3583, %v3570
    %v5599 = vpack.c.b16 %v3584, %v3571
    %v5600 = vpack.c.b16 %v3585, %v3572
    %v5601 = vpack.c.b16 %v3586, %v3573
    %v5602 = vpack.c.b16 %v3587, %v3574
    %v5603 = vpack.c.b16 %v3588, %v3575
    %v5604 = vpack.c.b16 %v3589, %v3576
    %v5605 = vpack.c.b16 %v3590, %v3577
    %v5606 = vpack.c.b16 %v3604, %v3591
    %v5607 = vpack.c.b16 %v3605, %v3592
    %v5608 = vpack.c.b16 %v3606, %v3593
    %v5609 = vpack.c.b16 %v3607, %v3594
    %v5610 = vpack.c.b16 %v3608, %v3595
    %v5611 = vpack.c.b16 %v3609, %v3596
    %v5612 = vpack.c.b16 %v3610, %v3597
    %v5613 = vpack.c.b16 %v3611, %v3598
    %v5614 = vpack.c.b16 %v3612, %v3599
    %v5615 = vpack.c.b16 %v3613, %v3600
    %v5616 = vpack.c.b16 %v3614, %v3601
    %v5617 = vpack.c.b16 %v3615, %v3602
    %v5618 = vpack.c.b16 %v3616, %v3603
    %v5619 = vpack.c.b16 %v3630, %v3617
    %v5620 = vpack.c.b16 %v3631, %v3618
    %v5621 = vpack.c.b16 %v3632, %v3619
    %v5622 = vpack.c.b16 %v3633, %v3620
    %v5623 = vpack.c.b16 %v3634, %v3621
    %v5624 = vpack.c.b16 %v3635, %v3622
    %v5625 = vpack.c.b16 %v3636, %v3623
    %v5626 = vpack.c.b16 %v3637, %v3624
    %v5627 = vpack.c.b16 %v3638, %v3625
    %v5628 = vpack.c.b16 %v3639, %v3626
    %v5629 = vpack.c.b16 %v3640, %v3627
    %v5630 = vpack.c.b16 %v3641, %v3628
    %v5631 = vpack.c.b16 %v3642, %v3629
    %v5632 = vpack.c.b16 %v3656, %v3643
    %v5633 = vpack.c.b16 %v3657, %v3644
    %v5634 = vpack.c.b16 %v3658, %v3645
    %v5635 = vpack.c.b16 %v3659, %v3646
    %v5636 = vpack.c.b16 %v3660, %v3647
    %v5637 = vpack.c.b16 %v3661, %v3648
    %v5638 = vpack.c.b16 %v3662, %v3649
    %v5639 = vpack.c.b16 %v3663, %v3650
    %v5640 = vpack.c.b16 %v3664, %v3651
    %v5641 = vpack.c.b16 %v3665, %v3652
    %v5642 = vpack.c.b16 %v3666, %v3653
    %v5643 = vpack.c.b16 %v3667, %v3654
    %v5644 = vpack.c.b16 %v3668, %v3655
    %v5645 = vpack.c.b16 %v3682, %v3669
    %v5646 = vpack.c.b16 %v3683, %v3670
    %v5647 = vpack.c.b16 %v3684, %v3671
    %v5648 = vpack.c.b16 %v3685, %v3672
    %v5649 = vpack.c.b16 %v3686, %v3673
    %v5650 = vpack.c.b16 %v3687, %v3674
    %v5651 = vpack.c.b16 %v3688, %v3675
    %v5652 = vpack.c.b16 %v3689, %v3676
    %v5653 = vpack.c.b16 %v3690, %v3677
    %v5654 = vpack.c.b16 %v3691, %v3678
    %v5655 = vpack.c.b16 %v3692, %v3679
    %v5656 = vpack.c.b16 %v3693, %v3680
    %v5657 = vpack.c.b16 %v3694, %v3681
    %v5658 = vpack.c.b16 %v3708, %v3695
    %v5659 = vpack.c.b16 %v3709, %v3696
    %v5660 = vpack.c.b16 %v3710, %v3697
    %v5661 = vpack.c.b16 %v3711, %v3698
    %v5662 = vpack.c.b16 %v3712, %v3699
    %v5663 = vpack.c.b16 %v3713, %v3700
    %v5664 = vpack.c.b16 %v3714, %v3701
    %v5665 = vpack.c.b16 %v3715, %v3702
    %v5666 = vpack.c.b16 %v3716, %v3703
    %v5667 = vpack.c.b16 %v3717, %v3704
    %v5668 = vpack.c.b16 %v3718, %v3705
    %v5669 = vpack.c.b16 %v3719, %v3706
    %v5670 = vpack.c.b16 %v3720, %v3707
    %v5671 = vpack.c.b16 %v3734, %v3721
    %v5672 = vpack.c.b16 %v3735, %v3722
    %v5673 = vpack.c.b16 %v3736, %v3723
    %v5674 = vpack.c.b16 %v3737, %v3724
    %v5675 = vpack.c.b16 %v3738, %v3725
    %v5676 = vpack.c.b16 %v3739, %v3726
    %v5677 = vpack.c.b16 %v3740, %v3727
    %v5678 = vpack.c.b16 %v3741, %v3728
    %v5679 = vpack.c.b16 %v3742, %v3729
    %v5680 = vpack.c.b16 %v3743, %v3730
    %v5681 = vpack.c.b16 %v3744, %v3731
    %v5682 = vpack.c.b16 %v3745, %v3732
    %v5683 = vpack.c.b16 %v3746, %v3733
    %v5684 = vpack.c.b16 %v3760, %v3747
    %v5685 = vpack.c.b16 %v3761, %v3748
    %v5686 = vpack.c.b16 %v3762, %v3749
    %v5687 = vpack.c.b16 %v3763, %v3750
    %v5688 = vpack.c.b16 %v3764, %v3751
    %v5689 = vpack.c.b16 %v3765, %v3752
    %v5690 = vpack.c.b16 %v3766, %v3753
    %v5691 = vpack.c.b16 %v3767, %v3754
    %v5692 = vpack.c.b16 %v3768, %v3755
    %v5693 = vpack.c.b16 %v3769, %v3756
    %v5694 = vpack.c.b16 %v3770, %v3757
    %v5695 = vpack.c.b16 %v3771, %v3758
    %v5696 = vpack.c.b16 %v3772, %v3759
    %v5697 = vpack.c.b16 %v3786, %v3773
    %v5698 = vpack.c.b16 %v3787, %v3774
    %v5699 = vpack.c.b16 %v3788, %v3775
    %v5700 = vpack.c.b16 %v3789, %v3776
    %v5701 = vpack.c.b16 %v3790, %v3777
    %v5702 = vpack.c.b16 %v3791, %v3778
    %v5703 = vpack.c.b16 %v3792, %v3779
    %v5704 = vpack.c.b16 %v3793, %v3780
    %v5705 = vpack.c.b16 %v3794, %v3781
    %v5706 = vpack.c.b16 %v3795, %v3782
    %v5707 = vpack.c.b16 %v3796, %v3783
    %v5708 = vpack.c.b16 %v3797, %v3784
    %v5709 = vpack.c.b16 %v3798, %v3785
    %v5710 = vpack.c.b16 %v3812, %v3799
    %v5711 = vpack.c.b16 %v3813, %v3800
    %v5712 = vpack.c.b16 %v3814, %v3801
    %v5713 = vpack.c.b16 %v3815, %v3802
    %v5714 = vpack.c.b16 %v3816, %v3803
    %v5715 = vpack.c.b16 %v3817, %v3804
    %v5716 = vpack.c.b16 %v3818, %v3805
    %v5717 = vpack.c.b16 %v3819, %v3806
    %v5718 = vpack.c.b16 %v3820, %v3807
    %v5719 = vpack.c.b16 %v3821, %v3808
    %v5720 = vpack.c.b16 %v3822, %v3809
    %v5721 = vpack.c.b16 %v3823, %v3810
    %v5722 = vpack.c.b16 %v3824, %v3811
    %v5723 = vpack.c.b16 %v3838, %v3825
    %v5724 = vpack.c.b16 %v3839, %v3826
    %v5725 = vpack.c.b16 %v3840, %v3827
    %v5726 = vpack.c.b16 %v3841, %v3828
    %v5727 = vpack.c.b16 %v3842, %v3829
    %v5728 = vpack.c.b16 %v3843, %v3830
    %v5729 = vpack.c.b16 %v3844, %v3831
    %v5730 = vpack.c.b16 %v3845, %v3832
    %v5731 = vpack.c.b16 %v3846, %v3833
    %v5732 = vpack.c.b16 %v3847, %v3834
    %v5733 = vpack.c.b16 %v3848, %v3835
    %v5734 = vpack.c.b16 %v3849, %v3836
    %v5735 = vpack.c.b16 %v3850, %v3837
    %v5736 = vpack.c.b16 %v3864, %v3851
    %v5737 = vpack.c.b16 %v3865, %v3852
    %v5738 = vpack.c.b16 %v3866, %v3853
    %v5739 = vpack.c.b16 %v3867, %v3854
    %v5740 = vpack.c.b16 %v3868, %v3855
    %v5741 = vpack.c.b16 %v3869, %v3856
    %v5742 = vpack.c.b16 %v3870, %v3857
    %v5743 = vpack.c.b16 %v3871, %v3858
    %v5744 = vpack.c.b16 %v3872, %v3859
    %v5745 = vpack.c.b16 %v3873, %v3860
    %v5746 = vpack.c.b16 %v3874, %v3861
    %v5747 = vpack.c.b16 %v3875, %v3862
    %v5748 = vpack.c.b16 %v3876, %v3863
    %v5749 = vpack.c.b16 %v3890, %v3877
    %v5750 = vpack.c.b16 %v3891, %v3878
    %v5751 = vpack.c.b16 %v3892, %v3879
    %v5752 = vpack.c.b16 %v3893, %v3880
    %v5753 = vpack.c.b16 %v3894, %v3881
    %v5754 = vpack.c.b16 %v3895, %v3882
    %v5755 = vpack.c.b16 %v3896, %v3883
    %v5756 = vpack.c.b16 %v3897, %v3884
    %v5757 = vpack.c.b16 %v3898, %v3885
    %v5758 = vpack.c.b16 %v3899, %v3886
    %v5759 = vpack.c.b16 %v3900, %v3887
    %v5760 = vpack.c.b16 %v3901, %v3888
    %v5761 = vpack.c.b16 %v3902, %v3889
    %v5762 = vpack.c.b16 %v3916, %v3903
    %v5763 = vpack.c.b16 %v3917, %v3904
    %v5764 = vpack.c.b16 %v3918, %v3905
    %v5765 = vpack.c.b16 %v3919, %v3906
    %v5766 = vpack.c.b16 %v3920, %v3907
    %v5767 = vpack.c.b16 %v3921, %v3908
    %v5768 = vpack.c.b16 %v3922, %v3909
    %v5769 = vpack.c.b16 %v3923, %v3910
    %v5770 = vpack.c.b16 %v3924, %v3911
    %v5771 = vpack.c.b16 %v3925, %v3912
    %v5772 = vpack.c.b16 %v3926, %v3913
    %v5773 = vpack.c.b16 %v3927, %v3914
    %v5774 = vpack.c.b16 %v3928, %v3915
    %v5775 = vpack.c.b16 %v3942, %v3929
    %v5776 = vpack.c.b16 %v3943, %v3930
    %v5777 = vpack.c.b16 %v3944, %v3931
    %v5778 = vpack.c.b16 %v3945, %v3932
    %v5779 = vpack.c.b16 %v3946, %v3933
    %v5780 = vpack.c.b16 %v3947, %v3934
    %v5781 = vpack.c.b16 %v3948, %v3935
    %v5782 = vpack.c.b16 %v3949, %v3936
    %v5783 = vpack.c.b16 %v3950, %v3937
    %v5784 = vpack.c.b16 %v3951, %v3938
    %v5785 = vpack.c.b16 %v3952, %v3939
    %v5786 = vpack.c.b16 %v3953, %v3940
    %v5787 = vpack.c.b16 %v3954, %v3941
    %v5788 = vpack.c.b16 %v3968, %v3955
    %v5789 = vpack.c.b16 %v3969, %v3956
    %v5790 = vpack.c.b16 %v3970, %v3957
    %v5791 = vpack.c.b16 %v3971, %v3958
    %v5792 = vpack.c.b16 %v3972, %v3959
    %v5793 = vpack.c.b16 %v3973, %v3960
    %v5794 = vpack.c.b16 %v3974, %v3961
    %v5795 = vpack.c.b16 %v3975, %v3962
    %v5796 = vpack.c.b16 %v3976, %v3963
    %v5797 = vpack.c.b16 %v3977, %v3964
    %v5798 = vpack.c.b16 %v3978, %v3965
    %v5799 = vpack.c.b16 %v3979, %v3966
    %v5800 = vpack.c.b16 %v3980, %v3967
    %v5801 = vpack.c.b16 %v3994, %v3981
    %v5802 = vpack.c.b16 %v3995, %v3982
    %v5803 = vpack.c.b16 %v3996, %v3983
    %v5804 = vpack.c.b16 %v3997, %v3984
    %v5805 = vpack.c.b16 %v3998, %v3985
    %v5806 = vpack.c.b16 %v3999, %v3986
    %v5807 = vpack.c.b16 %v4000, %v3987
    %v5808 = vpack.c.b16 %v4001, %v3988
    %v5809 = vpack.c.b16 %v4002, %v3989
    %v5810 = vpack.c.b16 %v4003, %v3990
    %v5811 = vpack.c.b16 %v4004, %v3991
    %v5812 = vpack.c.b16 %v4005, %v3992
    %v5813 = vpack.c.b16 %v4006, %v3993
    %v5814 = vpack.c.b16 %v4020, %v4007
    %v5815 = vpack.c.b16 %v4021, %v4008
    %v5816 = vpack.c.b16 %v4022, %v4009
    %v5817 = vpack.c.b16 %v4023, %v4010
    %v5818 = vpack.c.b16 %v4024, %v4011
    %v5819 = vpack.c.b16 %v4025, %v4012
    %v5820 = vpack.c.b16 %v4026, %v4013
    %v5821 = vpack.c.b16 %v4027, %v4014
    %v5822 = vpack.c.b16 %v4028, %v4015
    %v5823 = vpack.c.b16 %v4029, %v4016
    %v5824 = vpack.c.b16 %v4030, %v4017
    %v5825 = vpack.c.b16 %v4031, %v4018
    %v5826 = vpack.c.b16 %v4032, %v4019
    %v5827 = vpack.c.b16 %v4046, %v4033
    %v5828 = vpack.c.b16 %v4047, %v4034
    %v5829 = vpack.c.b16 %v4048, %v4035
    %v5830 = vpack.c.b16 %v4049, %v4036
    %v5831 = vpack.c.b16 %v4050, %v4037
    %v5832 = vpack.c.b16 %v4051, %v4038
    %v5833 = vpack.c.b16 %v4052, %v4039
    %v5834 = vpack.c.b16 %v4053, %v4040
    %v5835 = vpack.c.b16 %v4054, %v4041
    %v5836 = vpack.c.b16 %v4055, %v4042
    %v5837 = vpack.c.b16 %v4056, %v4043
    %v5838 = vpack.c.b16 %v4057, %v4044
    %v5839 = vpack.c.b16 %v4058, %v4045
    %v5840 = vpack.c.b16 %v4072, %v4059
    %v5841 = vpack.c.b16 %v4073, %v4060
    %v5842 = vpack.c.b16 %v4074, %v4061
    %v5843 = vpack.c.b16 %v4075, %v4062
    %v5844 = vpack.c.b16 %v4076, %v4063
    %v5845 = vpack.c.b16 %v4077, %v4064
    %v5846 = vpack.c.b16 %v4078, %v4065
    %v5847 = vpack.c.b16 %v4079, %v4066
    %v5848 = vpack.c.b16 %v4080, %v4067
    %v5849 = vpack.c.b16 %v4081, %v4068
    %v5850 = vpack.c.b16 %v4082, %v4069
    %v5851 = vpack.c.b16 %v4083, %v4070
    %v5852 = vpack.c.b16 %v4084, %v4071
    %v5853 = vpack.c.b16 %v4098, %v4085
    %v5854 = vpack.c.b16 %v4099, %v4086
    %v5855 = vpack.c.b16 %v4100, %v4087
    %v5856 = vpack.c.b16 %v4101, %v4088
    %v5857 = vpack.c.b16 %v4102, %v4089
    %v5858 = vpack.c.b16 %v4103, %v4090
    %v5859 = vpack.c.b16 %v4104, %v4091
    %v5860 = vpack.c.b16 %v4105, %v4092
    %v5861 = vpack.c.b16 %v4106, %v4093
    %v5862 = vpack.c.b16 %v4107, %v4094
    %v5863 = vpack.c.b16 %v4108, %v4095
    %v5864 = vpack.c.b16 %v4109, %v4096
    %v5865 = vpack.c.b16 %v4110, %v4097
    %v5866 = vpack.c.b16 %v4124, %v4111
    %v5867 = vpack.c.b16 %v4125, %v4112
    %v5868 = vpack.c.b16 %v4126, %v4113
    %v5869 = vpack.c.b16 %v4127, %v4114
    %v5870 = vpack.c.b16 %v4128, %v4115
    %v5871 = vpack.c.b16 %v4129, %v4116
    %v5872 = vpack.c.b16 %v4130, %v4117
    %v5873 = vpack.c.b16 %v4131, %v4118
    %v5874 = vpack.c.b16 %v4132, %v4119
    %v5875 = vpack.c.b16 %v4133, %v4120
    %v5876 = vpack.c.b16 %v4134, %v4121
    %v5877 = vpack.c.b16 %v4135, %v4122
    %v5878 = vpack.c.b16 %v4136, %v4123
    %v5879 = vpack.c.b16 %v4150, %v4137
    %v5880 = vpack.c.b16 %v4151, %v4138
    %v5881 = vpack.c.b16 %v4152, %v4139
    %v5882 = vpack.c.b16 %v4153, %v4140
    %v5883 = vpack.c.b16 %v4154, %v4141
    %v5884 = vpack.c.b16 %v4155, %v4142
    %v5885 = vpack.c.b16 %v4156, %v4143
    %v5886 = vpack.c.b16 %v4157, %v4144
    %v5887 = vpack.c.b16 %v4158, %v4145
    %v5888 = vpack.c.b16 %v4159, %v4146
    %v5889 = vpack.c.b16 %v4160, %v4147
    %v5890 = vpack.c.b16 %v4161, %v4148
    %v5891 = vpack.c.b16 %v4162, %v4149
    %v5892 = vpack.c.b16 %v4176, %v4163
    %v5893 = vpack.c.b16 %v4177, %v4164
    %v5894 = vpack.c.b16 %v4178, %v4165
    %v5895 = vpack.c.b16 %v4179, %v4166
    %v5896 = vpack.c.b16 %v4180, %v4167
    %v5897 = vpack.c.b16 %v4181, %v4168
    %v5898 = vpack.c.b16 %v4182, %v4169
    %v5899 = vpack.c.b16 %v4183, %v4170
    %v5900 = vpack.c.b16 %v4184, %v4171
    %v5901 = vpack.c.b16 %v4185, %v4172
    %v5902 = vpack.c.b16 %v4186, %v4173
    %v5903 = vpack.c.b16 %v4187, %v4174
    %v5904 = vpack.c.b16 %v4188, %v4175
    %v5905 = vpack.c.b16 %v4202, %v4189
    %v5906 = vpack.c.b16 %v4203, %v4190
    %v5907 = vpack.c.b16 %v4204, %v4191
    %v5908 = vpack.c.b16 %v4205, %v4192
    %v5909 = vpack.c.b16 %v4206, %v4193
    %v5910 = vpack.c.b16 %v4207, %v4194
    %v5911 = vpack.c.b16 %v4208, %v4195
    %v5912 = vpack.c.b16 %v4209, %v4196
    %v5913 = vpack.c.b16 %v4210, %v4197
    %v5914 = vpack.c.b16 %v4211, %v4198
    %v5915 = vpack.c.b16 %v4212, %v4199
    %v5916 = vpack.c.b16 %v4213, %v4200
    %v5917 = vpack.c.b16 %v4214, %v4201
    %v5918 = vpack.c.b16 %v4228, %v4215
    %v5919 = vpack.c.b16 %v4229, %v4216
    %v5920 = vpack.c.b16 %v4230, %v4217
    %v5921 = vpack.c.b16 %v4231, %v4218
    %v5922 = vpack.c.b16 %v4232, %v4219
    %v5923 = vpack.c.b16 %v4233, %v4220
    %v5924 = vpack.c.b16 %v4234, %v4221
    %v5925 = vpack.c.b16 %v4235, %v4222
    %v5926 = vpack.c.b16 %v4236, %v4223
    %v5927 = vpack.c.b16 %v4237, %v4224
    %v5928 = vpack.c.b16 %v4238, %v4225
    %v5929 = vpack.c.b16 %v4239, %v4226
    %v5930 = vpack.c.b16 %v4240, %v4227
    %v5931 = vpack.c.b16 %v4254, %v4241
    %v5932 = vpack.c.b16 %v4255, %v4242
    %v5933 = vpack.c.b16 %v4256, %v4243
    %v5934 = vpack.c.b16 %v4257, %v4244
    %v5935 = vpack.c.b16 %v4258, %v4245
    %v5936 = vpack.c.b16 %v4259, %v4246
    %v5937 = vpack.c.b16 %v4260, %v4247
    %v5938 = vpack.c.b16 %v4261, %v4248
    %v5939 = vpack.c.b16 %v4262, %v4249
    %v5940 = vpack.c.b16 %v4263, %v4250
    %v5941 = vpack.c.b16 %v4264, %v4251
    %v5942 = vpack.c.b16 %v4265, %v4252
    %v5943 = vpack.c.b16 %v4266, %v4253
    %v5944 = vpack.c.b16 %v4280, %v4267
    %v5945 = vpack.c.b16 %v4281, %v4268
    %v5946 = vpack.c.b16 %v4282, %v4269
    %v5947 = vpack.c.b16 %v4283, %v4270
    %v5948 = vpack.c.b16 %v4284, %v4271
    %v5949 = vpack.c.b16 %v4285, %v4272
    %v5950 = vpack.c.b16 %v4286, %v4273
    %v5951 = vpack.c.b16 %v4287, %v4274
    %v5952 = vpack.c.b16 %v4288, %v4275
    %v5953 = vpack.c.b16 %v4289, %v4276
    %v5954 = vpack.c.b16 %v4290, %v4277
    %v5955 = vpack.c.b16 %v4291, %v4278
    %v5956 = vpack.c.b16 %v4292, %v4279
    %v5957 = vpack.c.b16 %v4306, %v4293
    %v5958 = vpack.c.b16 %v4307, %v4294
    %v5959 = vpack.c.b16 %v4308, %v4295
    %v5960 = vpack.c.b16 %v4309, %v4296
    %v5961 = vpack.c.b16 %v4310, %v4297
    %v5962 = vpack.c.b16 %v4311, %v4298
    %v5963 = vpack.c.b16 %v4312, %v4299
    %v5964 = vpack.c.b16 %v4313, %v4300
    %v5965 = vpack.c.b16 %v4314, %v4301
    %v5966 = vpack.c.b16 %v4315, %v4302
    %v5967 = vpack.c.b16 %v4316, %v4303
    %v5968 = vpack.c.b16 %v4317, %v4304
    %v5969 = vpack.c.b16 %v4318, %v4305
    %v5970 = vpack.c.b16 %v4332, %v4319
    %v5971 = vpack.c.b16 %v4333, %v4320
    %v5972 = vpack.c.b16 %v4334, %v4321
    %v5973 = vpack.c.b16 %v4335, %v4322
    %v5974 = vpack.c.b16 %v4336, %v4323
    %v5975 = vpack.c.b16 %v4337, %v4324
    %v5976 = vpack.c.b16 %v4338, %v4325
    %v5977 = vpack.c.b16 %v4339, %v4326
    %v5978 = vpack.c.b16 %v4340, %v4327
    %v5979 = vpack.c.b16 %v4341, %v4328
    %v5980 = vpack.c.b16 %v4342, %v4329
    %v5981 = vpack.c.b16 %v4343, %v4330
    %v5982 = vpack.c.b16 %v4344, %v4331
    %v5983 = vpack.c.b16 %v4358, %v4345
    %v5984 = vpack.c.b16 %v4359, %v4346
    %v5985 = vpack.c.b16 %v4360, %v4347
    %v5986 = vpack.c.b16 %v4361, %v4348
    %v5987 = vpack.c.b16 %v4362, %v4349
    %v5988 = vpack.c.b16 %v4363, %v4350
    %v5989 = vpack.c.b16 %v4364, %v4351
    %v5990 = vpack.c.b16 %v4365, %v4352
    %v5991 = vpack.c.b16 %v4366, %v4353
    %v5992 = vpack.c.b16 %v4367, %v4354
    %v5993 = vpack.c.b16 %v4368, %v4355
    %v5994 = vpack.c.b16 %v4369, %v4356
    %v5995 = vpack.c.b16 %v4370, %v4357
    %v5996 = vpack.c.b16 %v4384, %v4371
    %v5997 = vpack.c.b16 %v4385, %v4372
    %v5998 = vpack.c.b16 %v4386, %v4373
    %v5999 = vpack.c.b16 %v4387, %v4374
    %v6000 = vpack.c.b16 %v4388, %v4375
    %v6001 = vpack.c.b16 %v4389, %v4376
    %v6002 = vpack.c.b16 %v4390, %v4377
    %v6003 = vpack.c.b16 %v4391, %v4378
    %v6004 = vpack.c.b16 %v4392, %v4379
    %v6005 = vpack.c.b16 %v4393, %v4380
    %v6006 = vpack.c.b16 %v4394, %v4381
    %v6007 = vpack.c.b16 %v4395, %v4382
    %v6008 = vpack.c.b16 %v4396, %v4383
    %v6009 = vpack.c.b16 %v4410, %v4397
    %v6010 = vpack.c.b16 %v4411, %v4398
    %v6011 = vpack.c.b16 %v4412, %v4399
    %v6012 = vpack.c.b16 %v4413, %v4400
    %v6013 = vpack.c.b16 %v4414, %v4401
    %v6014 = vpack.c.b16 %v4415, %v4402
    %v6015 = vpack.c.b16 %v4416, %v4403
    %v6016 = vpack.c.b16 %v4417, %v4404
    %v6017 = vpack.c.b16 %v4418, %v4405
    %v6018 = vpack.c.b16 %v4419, %v4406
    %v6019 = vpack.c.b16 %v4420, %v4407
    %v6020 = vpack.c.b16 %v4421, %v4408
    %v6021 = vpack.c.b16 %v4422, %v4409
    %v6022 = vpack.c.b16 %v4436, %v4423
    %v6023 = vpack.c.b16 %v4437, %v4424
    %v6024 = vpack.c.b16 %v4438, %v4425
    %v6025 = vpack.c.b16 %v4439, %v4426
    %v6026 = vpack.c.b16 %v4440, %v4427
    %v6027 = vpack.c.b16 %v4441, %v4428
    %v6028 = vpack.c.b16 %v4442, %v4429
    %v6029 = vpack.c.b16 %v4443, %v4430
    %v6030 = vpack.c.b16 %v4444, %v4431
    %v6031 = vpack.c.b16 %v4445, %v4432
    %v6032 = vpack.c.b16 %v4446, %v4433
    %v6033 = vpack.c.b16 %v4447, %v4434
    %v6034 = vpack.c.b16 %v4448, %v4435
    %v6035 = vpack.c.b16 %v4462, %v4449
    %v6036 = vpack.c.b16 %v4463, %v4450
    %v6037 = vpack.c.b16 %v4464, %v4451
    %v6038 = vpack.c.b16 %v4465, %v4452
    %v6039 = vpack.c.b16 %v4466, %v4453
    %v6040 = vpack.c.b16 %v4467, %v4454
    %v6041 = vpack.c.b16 %v4468, %v4455
    %v6042 = vpack.c.b16 %v4469, %v4456
    %v6043 = vpack.c.b16 %v4470, %v4457
    %v6044 = vpack.c.b16 %v4471, %v4458
    %v6045 = vpack.c.b16 %v4472, %v4459
    %v6046 = vpack.c.b16 %v4473, %v4460
    %v6047 = vpack.c.b16 %v4474, %v4461
    %v6048 = vpack.c.b16 %v4488, %v4475
    %v6049 = vpack.c.b16 %v4489, %v4476
    %v6050 = vpack.c.b16 %v4490, %v4477
    %v6051 = vpack.c.b16 %v4491, %v4478
    %v6052 = vpack.c.b16 %v4492, %v4479
    %v6053 = vpack.c.b16 %v4493, %v4480
    %v6054 = vpack.c.b16 %v4494, %v4481
    %v6055 = vpack.c.b16 %v4495, %v4482
    %v6056 = vpack.c.b16 %v4496, %v4483
    %v6057 = vpack.c.b16 %v4497, %v4484
    %v6058 = vpack.c.b16 %v4498, %v4485
    %v6059 = vpack.c.b16 %v4499, %v4486
    %v6060 = vpack.c.b16 %v4500, %v4487
    %v6061 = vpack.c.b16 %v4514, %v4501
    %v6062 = vpack.c.b16 %v4515, %v4502
    %v6063 = vpack.c.b16 %v4516, %v4503
    %v6064 = vpack.c.b16 %v4517, %v4504
    %v6065 = vpack.c.b16 %v4518, %v4505
    %v6066 = vpack.c.b16 %v4519, %v4506
    %v6067 = vpack.c.b16 %v4520, %v4507
    %v6068 = vpack.c.b16 %v4521, %v4508
    %v6069 = vpack.c.b16 %v4522, %v4509
    %v6070 = vpack.c.b16 %v4523, %v4510
    %v6071 = vpack.c.b16 %v4524, %v4511
    %v6072 = vpack.c.b16 %v4525, %v4512
    %v6073 = vpack.c.b16 %v4526, %v4513
    %v6074 = vpack.c.b16 %v4540, %v4527
    %v6075 = vpack.c.b16 %v4541, %v4528
    %v6076 = vpack.c.b16 %v4542, %v4529
    %v6077 = vpack.c.b16 %v4543, %v4530
    %v6078 = vpack.c.b16 %v4544, %v4531
    %v6079 = vpack.c.b16 %v4545, %v4532
    %v6080 = vpack.c.b16 %v4546, %v4533
    %v6081 = vpack.c.b16 %v4547, %v4534
    %v6082 = vpack.c.b16 %v4548, %v4535
    %v6083 = vpack.c.b16 %v4549, %v4536
    %v6084 = vpack.c.b16 %v4550, %v4537
    %v6085 = vpack.c.b16 %v4551, %v4538
    %v6086 = vpack.c.b16 %v4552, %v4539
    %v6087 = vpack.c.b16 %v4566, %v4553
    %v6088 = vpack.c.b16 %v4567, %v4554
    %v6089 = vpack.c.b16 %v4568, %v4555
    %v6090 = vpack.c.b16 %v4569, %v4556
    %v6091 = vpack.c.b16 %v4570, %v4557
    %v6092 = vpack.c.b16 %v4571, %v4558
    %v6093 = vpack.c.b16 %v4572, %v4559
    %v6094 = vpack.c.b16 %v4573, %v4560
    %v6095 = vpack.c.b16 %v4574, %v4561
    %v6096 = vpack.c.b16 %v4575, %v4562
    %v6097 = vpack.c.b16 %v4576, %v4563
    %v6098 = vpack.c.b16 %v4577, %v4564
    %v6099 = vpack.c.b16 %v4578, %v4565
    %v6100 = vpack.c.b16 %v4592, %v4579
    %v6101 = vpack.c.b16 %v4593, %v4580
    %v6102 = vpack.c.b16 %v4594, %v4581
    %v6103 = vpack.c.b16 %v4595, %v4582
    %v6104 = vpack.c.b16 %v4596, %v4583
    %v6105 = vpack.c.b16 %v4597, %v4584
    %v6106 = vpack.c.b16 %v4598, %v4585
    %v6107 = vpack.c.b16 %v4599, %v4586
    %v6108 = vpack.c.b16 %v4600, %v4587
    %v6109 = vpack.c.b16 %v4601, %v4588
    %v6110 = vpack.c.b16 %v4602, %v4589
    %v6111 = vpack.c.b16 %v4603, %v4590
    %v6112 = vpack.c.b16 %v4604, %v4591
    %v6113 = vpack.c.b16 %v4618, %v4605
    %v6114 = vpack.c.b16 %v4619, %v4606
    %v6115 = vpack.c.b16 %v4620, %v4607
    %v6116 = vpack.c.b16 %v4621, %v4608
    %v6117 = vpack.c.b16 %v4622, %v4609
    %v6118 = vpack.c.b16 %v4623, %v4610
    %v6119 = vpack.c.b16 %v4624, %v4611
    %v6120 = vpack.c.b16 %v4625, %v4612
    %v6121 = vpack.c.b16 %v4626, %v4613
    %v6122 = vpack.c.b16 %v4627, %v4614
    %v6123 = vpack.c.b16 %v4628, %v4615
    %v6124 = vpack.c.b16 %v4629, %v4616
    %v6125 = vpack.c.b16 %v4630, %v4617
    %v6126 = vpack.c.b16 %v4644, %v4631
    %v6127 = vpack.c.b16 %v4645, %v4632
    %v6128 = vpack.c.b16 %v4646, %v4633
    %v6129 = vpack.c.b16 %v4647, %v4634
    %v6130 = vpack.c.b16 %v4648, %v4635
    %v6131 = vpack.c.b16 %v4649, %v4636
    %v6132 = vpack.c.b16 %v4650, %v4637
    %v6133 = vpack.c.b16 %v4651, %v4638
    %v6134 = vpack.c.b16 %v4652, %v4639
    %v6135 = vpack.c.b16 %v4653, %v4640
    %v6136 = vpack.c.b16 %v4654, %v4641
    %v6137 = vpack.c.b16 %v4655, %v4642
    %v6138 = vpack.c.b16 %v4656, %v4643
    %v6139 = vpack.c.b16 %v4670, %v4657
    %v6140 = vpack.c.b16 %v4671, %v4658
    %v6141 = vpack.c.b16 %v4672, %v4659
    %v6142 = vpack.c.b16 %v4673, %v4660
    %v6143 = vpack.c.b16 %v4674, %v4661
    %v6144 = vpack.c.b16 %v4675, %v4662
    %v6145 = vpack.c.b16 %v4676, %v4663
    %v6146 = vpack.c.b16 %v4677, %v4664
    %v6147 = vpack.c.b16 %v4678, %v4665
    %v6148 = vpack.c.b16 %v4679, %v4666
    %v6149 = vpack.c.b16 %v4680, %v4667
    %v6150 = vpack.c.b16 %v4681, %v4668
    %v6151 = vpack.c.b16 %v4682, %v4669
    %v6152 = vpack.c.b16 %v4696, %v4683
    %v6153 = vpack.c.b16 %v4697, %v4684
    %v6154 = vpack.c.b16 %v4698, %v4685
    %v6155 = vpack.c.b16 %v4699, %v4686
    %v6156 = vpack.c.b16 %v4700, %v4687
    %v6157 = vpack.c.b16 %v4701, %v4688
    %v6158 = vpack.c.b16 %v4702, %v4689
    %v6159 = vpack.c.b16 %v4703, %v4690
    %v6160 = vpack.c.b16 %v4704, %v4691
    %v6161 = vpack.c.b16 %v4705, %v4692
    %v6162 = vpack.c.b16 %v4706, %v4693
    %v6163 = vpack.c.b16 %v4707, %v4694
    %v6164 = vpack.c.b16 %v4708, %v4695
    %v6165 = vpack.c.b16 %v4722, %v4709
    %v6166 = vpack.c.b16 %v4723, %v4710
    %v6167 = vpack.c.b16 %v4724, %v4711
    %v6168 = vpack.c.b16 %v4725, %v4712
    %v6169 = vpack.c.b16 %v4726, %v4713
    %v6170 = vpack.c.b16 %v4727, %v4714
    %v6171 = vpack.c.b16 %v4728, %v4715
    %v6172 = vpack.c.b16 %v4729, %v4716
    %v6173 = vpack.c.b16 %v4730, %v4717
    %v6174 = vpack.c.b16 %v4731, %v4718
    %v6175 = vpack.c.b16 %v4732, %v4719
    %v6176 = vpack.c.b16 %v4733, %v4720
    %v6177 = vpack.c.b16 %v4734, %v4721
    %v6178 = vpack.c.b16 %v4748, %v4735
    %v6179 = vpack.c.b16 %v4749, %v4736
    %v6180 = vpack.c.b16 %v4750, %v4737
    %v6181 = vpack.c.b16 %v4751, %v4738
    %v6182 = vpack.c.b16 %v4752, %v4739
    %v6183 = vpack.c.b16 %v4753, %v4740
    %v6184 = vpack.c.b16 %v4754, %v4741
    %v6185 = vpack.c.b16 %v4755, %v4742
    %v6186 = vpack.c.b16 %v4756, %v4743
    %v6187 = vpack.c.b16 %v4757, %v4744
    %v6188 = vpack.c.b16 %v4758, %v4745
    %v6189 = vpack.c.b16 %v4759, %v4746
    %v6190 = vpack.c.b16 %v4760, %v4747
    %v6191 = vpack.c.b16 %v4774, %v4761
    %v6192 = vpack.c.b16 %v4775, %v4762
    %v6193 = vpack.c.b16 %v4776, %v4763
    %v6194 = vpack.c.b16 %v4777, %v4764
    %v6195 = vpack.c.b16 %v4778, %v4765
    %v6196 = vpack.c.b16 %v4779, %v4766
    %v6197 = vpack.c.b16 %v4780, %v4767
    %v6198 = vpack.c.b16 %v4781, %v4768
    %v6199 = vpack.c.b16 %v4782, %v4769
    %v6200 = vpack.c.b16 %v4783, %v4770
    %v6201 = vpack.c.b16 %v4784, %v4771
    %v6202 = vpack.c.b16 %v4785, %v4772
    %v6203 = vpack.c.b16 %v4786, %v4773
    %v6204 = vpack.c.b16 %v4800, %v4787
    %v6205 = vpack.c.b16 %v4801, %v4788
    %v6206 = vpack.c.b16 %v4802, %v4789
    %v6207 = vpack.c.b16 %v4803, %v4790
    %v6208 = vpack.c.b16 %v4804, %v4791
    %v6209 = vpack.c.b16 %v4805, %v4792
    %v6210 = vpack.c.b16 %v4806, %v4793
    %v6211 = vpack.c.b16 %v4807, %v4794
    %v6212 = vpack.c.b16 %v4808, %v4795
    %v6213 = vpack.c.b16 %v4809, %v4796
    %v6214 = vpack.c.b16 %v4810, %v4797
    %v6215 = vpack.c.b16 %v4811, %v4798
    %v6216 = vpack.c.b16 %v4812, %v4799
    %v6217 = vpack.c.b16 %v4826, %v4813
    %v6218 = vpack.c.b16 %v4827, %v4814
    %v6219 = vpack.c.b16 %v4828, %v4815
    %v6220 = vpack.c.b16 %v4829, %v4816
    %v6221 = vpack.c.b16 %v4830, %v4817
    %v6222 = vpack.c.b16 %v4831, %v4818
    %v6223 = vpack.c.b16 %v4832, %v4819
    %v6224 = vpack.c.b16 %v4833, %v4820
    %v6225 = vpack.c.b16 %v4834, %v4821
    %v6226 = vpack.c.b16 %v4835, %v4822
    %v6227 = vpack.c.b16 %v4836, %v4823
    %v6228 = vpack.c.b16 %v4837, %v4824
    %v6229 = vpack.c.b16 %v4838, %v4825
    %v6230 = vpack.c.b16 %v4852, %v4839
    %v6231 = vpack.c.b16 %v4853, %v4840
    %v6232 = vpack.c.b16 %v4854, %v4841
    %v6233 = vpack.c.b16 %v4855, %v4842
    %v6234 = vpack.c.b16 %v4856, %v4843
    %v6235 = vpack.c.b16 %v4857, %v4844
    %v6236 = vpack.c.b16 %v4858, %v4845
    %v6237 = vpack.c.b16 %v4859, %v4846
    %v6238 = vpack.c.b16 %v4860, %v4847
    %v6239 = vpack.c.b16 %v4861, %v4848
    %v6240 = vpack.c.b16 %v4862, %v4849
    %v6241 = vpack.c.b16 %v4863, %v4850
    %v6242 = vpack.c.b16 %v4864, %v4851
    %v6243 = vpack.c.b16 %v4878, %v4865
    %v6244 = vpack.c.b16 %v4879, %v4866
    %v6245 = vpack.c.b16 %v4880, %v4867
    %v6246 = vpack.c.b16 %v4881, %v4868
    %v6247 = vpack.c.b16 %v4882, %v4869
    %v6248 = vpack.c.b16 %v4883, %v4870
    %v6249 = vpack.c.b16 %v4884, %v4871
    %v6250 = vpack.c.b16 %v4885, %v4872
    %v6251 = vpack.c.b16 %v4886, %v4873
    %v6252 = vpack.c.b16 %v4887, %v4874
    %v6253 = vpack.c.b16 %v4888, %v4875
    %v6254 = vpack.c.b16 %v4889, %v4876
    %v6255 = vpack.c.b16 %v4890, %v4877
    %v6256 = vpack.c.b16 %v4904, %v4891
    %v6257 = vpack.c.b16 %v4905, %v4892
    %v6258 = vpack.c.b16 %v4906, %v4893
    %v6259 = vpack.c.b16 %v4907, %v4894
    %v6260 = vpack.c.b16 %v4908, %v4895
    %v6261 = vpack.c.b16 %v4909, %v4896
    %v6262 = vpack.c.b16 %v4910, %v4897
    %v6263 = vpack.c.b16 %v4911, %v4898
    %v6264 = vpack.c.b16 %v4912, %v4899
    %v6265 = vpack.c.b16 %v4913, %v4900
    %v6266 = vpack.c.b16 %v4914, %v4901
    %v6267 = vpack.c.b16 %v4915, %v4902
    %v6268 = vpack.c.b16 %v4916, %v4903
    %v6269 = vpack.c.b16 %v4930, %v4917
    %v6270 = vpack.c.b16 %v4931, %v4918
    %v6271 = vpack.c.b16 %v4932, %v4919
    %v6272 = vpack.c.b16 %v4933, %v4920
    %v6273 = vpack.c.b16 %v4934, %v4921
    %v6274 = vpack.c.b16 %v4935, %v4922
    %v6275 = vpack.c.b16 %v4936, %v4923
    %v6276 = vpack.c.b16 %v4937, %v4924
    %v6277 = vpack.c.b16 %v4938, %v4925
    %v6278 = vpack.c.b16 %v4939, %v4926
    %v6279 = vpack.c.b16 %v4940, %v4927
    %v6280 = vpack.c.b16 %v4941, %v4928
    %v6281 = vpack.c.b16 %v4942, %v4929
    %v6282 = vpack.c.b16 %v4956, %v4943
    %v6283 = vpack.c.b16 %v4957, %v4944
    %v6284 = vpack.c.b16 %v4958, %v4945
    %v6285 = vpack.c.b16 %v4959, %v4946
    %v6286 = vpack.c.b16 %v4960, %v4947
    %v6287 = vpack.c.b16 %v4961, %v4948
    %v6288 = vpack.c.b16 %v4962, %v4949
    %v6289 = vpack.c.b16 %v4963, %v4950
    %v6290 = vpack.c.b16 %v4964, %v4951
    %v6291 = vpack.c.b16 %v4965, %v4952
    %v6292 = vpack.c.b16 %v4966, %v4953
    %v6293 = vpack.c.b16 %v4967, %v4954
    %v6294 = vpack.c.b16 %v4968, %v4955
    %v6295 = vpack.c.b16 %v4982, %v4969
    %v6296 = vpack.c.b16 %v4983, %v4970
    %v6297 = vpack.c.b16 %v4984, %v4971
    %v6298 = vpack.c.b16 %v4985, %v4972
    %v6299 = vpack.c.b16 %v4986, %v4973
    %v6300 = vpack.c.b16 %v4987, %v4974
    %v6301 = vpack.c.b16 %v4988, %v4975
    %v6302 = vpack.c.b16 %v4989, %v4976
    %v6303 = vpack.c.b16 %v4990, %v4977
    %v6304 = vpack.c.b16 %v4991, %v4978
    %v6305 = vpack.c.b16 %v4992, %v4979
    %v6306 = vpack.c.b16 %v4993, %v4980
    %v6307 = vpack.c.b16 %v4994, %v4981
    %v6308 = vpack.c.b16 %v5008, %v4995
    %v6309 = vpack.c.b16 %v5009, %v4996
    %v6310 = vpack.c.b16 %v5010, %v4997
    %v6311 = vpack.c.b16 %v5011, %v4998
    %v6312 = vpack.c.b16 %v5012, %v4999
    %v6313 = vpack.c.b16 %v5013, %v5000
    %v6314 = vpack.c.b16 %v5014, %v5001
    %v6315 = vpack.c.b16 %v5015, %v5002
    %v6316 = vpack.c.b16 %v5016, %v5003
    %v6317 = vpack.c.b16 %v5017, %v5004
    %v6318 = vpack.c.b16 %v5018, %v5005
    %v6319 = vpack.c.b16 %v5019, %v5006
    %v6320 = vpack.c.b16 %v5020, %v5007
    %v6321 = vpack.c.b16 %v5034, %v5021
    %v6322 = vpack.c.b16 %v5035, %v5022
    %v6323 = vpack.c.b16 %v5036, %v5023
    %v6324 = vpack.c.b16 %v5037, %v5024
    %v6325 = vpack.c.b16 %v5038, %v5025
    %v6326 = vpack.c.b16 %v5039, %v5026
    %v6327 = vpack.c.b16 %v5040, %v5027
    %v6328 = vpack.c.b16 %v5041, %v5028
    %v6329 = vpack.c.b16 %v5042, %v5029
    %v6330 = vpack.c.b16 %v5043, %v5030
    %v6331 = vpack.c.b16 %v5044, %v5031
    %v6332 = vpack.c.b16 %v5045, %v5032
    %v6333 = vpack.c.b16 %v5046, %v5033
    %v6334 = vpack.c.b16 %v5060, %v5047
    %v6335 = vpack.c.b16 %v5061, %v5048
    %v6336 = vpack.c.b16 %v5062, %v5049
    %v6337 = vpack.c.b16 %v5063, %v5050
    %v6338 = vpack.c.b16 %v5064, %v5051
    %v6339 = vpack.c.b16 %v5065, %v5052
    %v6340 = vpack.c.b16 %v5066, %v5053
    %v6341 = vpack.c.b16 %v5067, %v5054
    %v6342 = vpack.c.b16 %v5068, %v5055
    %v6343 = vpack.c.b16 %v5069, %v5056
    %v6344 = vpack.c.b16 %v5070, %v5057
    %v6345 = vpack.c.b16 %v5071, %v5058
    %v6346 = vpack.c.b16 %v5072, %v5059
    %v6347 = vpack.c.b16 %v5086, %v5073
    %v6348 = vpack.c.b16 %v5087, %v5074
    %v6349 = vpack.c.b16 %v5088, %v5075
    %v6350 = vpack.c.b16 %v5089, %v5076
    %v6351 = vpack.c.b16 %v5090, %v5077
    %v6352 = vpack.c.b16 %v5091, %v5078
    %v6353 = vpack.c.b16 %v5092, %v5079
    %v6354 = vpack.c.b16 %v5093, %v5080
    %v6355 = vpack.c.b16 %v5094, %v5081
    %v6356 = vpack.c.b16 %v5095, %v5082
    %v6357 = vpack.c.b16 %v5096, %v5083
    %v6358 = vpack.c.b16 %v5097, %v5084
    %v6359 = vpack.c.b16 %v5098, %v5085
    %v6360 = vpack.c.b16 %v5112, %v5099
    %v6361 = vpack.c.b16 %v5113, %v5100
    %v6362 = vpack.c.b16 %v5114, %v5101
    %v6363 = vpack.c.b16 %v5115, %v5102
    %v6364 = vpack.c.b16 %v5116, %v5103
    %v6365 = vpack.c.b16 %v5117, %v5104
    %v6366 = vpack.c.b16 %v5118, %v5105
    %v6367 = vpack.c.b16 %v5119, %v5106
    %v6368 = vpack.c.b16 %v5120, %v5107
    %v6369 = vpack.c.b16 %v5121, %v5108
    %v6370 = vpack.c.b16 %v5122, %v5109
    %v6371 = vpack.c.b16 %v5123, %v5110
    %v6372 = vpack.c.b16 %v5124, %v5111
    %v6373 = vpack.c.b16 %v5138, %v5125
    %v6374 = vpack.c.b16 %v5139, %v5126
    %v6375 = vpack.c.b16 %v5140, %v5127
    %v6376 = vpack.c.b16 %v5141, %v5128
    %v6377 = vpack.c.b16 %v5142, %v5129
    %v6378 = vpack.c.b16 %v5143, %v5130
    %v6379 = vpack.c.b16 %v5144, %v5131
    %v6380 = vpack.c.b16 %v5145, %v5132
    %v6381 = vpack.c.b16 %v5146, %v5133
    %v6382 = vpack.c.b16 %v5147, %v5134
    %v6383 = vpack.c.b16 %v5148, %v5135
    %v6384 = vpack.c.b16 %v5149, %v5136
    %v6385 = vpack.c.b16 %v5150, %v5137
    %v6386 = vpack.c.b16 %v5164, %v5151
    %v6387 = vpack.c.b16 %v5165, %v5152
    %v6388 = vpack.c.b16 %v5166, %v5153
    %v6389 = vpack.c.b16 %v5167, %v5154
    %v6390 = vpack.c.b16 %v5168, %v5155
    %v6391 = vpack.c.b16 %v5169, %v5156
    %v6392 = vpack.c.b16 %v5170, %v5157
    %v6393 = vpack.c.b16 %v5171, %v5158
    %v6394 = vpack.c.b16 %v5172, %v5159
    %v6395 = vpack.c.b16 %v5173, %v5160
    %v6396 = vpack.c.b16 %v5174, %v5161
    %v6397 = vpack.c.b16 %v5175, %v5162
    %v6398 = vpack.c.b16 %v5176, %v5163
    %v6399 = vpack.c.b16 %v5190, %v5177
    %v6400 = vpack.c.b16 %v5191, %v5178
    %v6401 = vpack.c.b16 %v5192, %v5179
    %v6402 = vpack.c.b16 %v5193, %v5180
    %v6403 = vpack.c.b16 %v5194, %v5181
    %v6404 = vpack.c.b16 %v5195, %v5182
    %v6405 = vpack.c.b16 %v5196, %v5183
    %v6406 = vpack.c.b16 %v5197, %v5184
    %v6407 = vpack.c.b16 %v5198, %v5185
    %v6408 = vpack.c.b16 %v5199, %v5186
    %v6409 = vpack.c.b16 %v5200, %v5187
    %v6410 = vpack.c.b16 %v5201, %v5188
    %v6411 = vpack.c.b16 %v5202, %v5189
    %vm7621 = vcmask 654336
    %v7623 = vsel %vm7621, %v111, 0
    %7625 = vmatprep.subr.bf16.mxu0 %v5295
    %7626 = vmatpush1.bf16.msra.mxu0 %v5294
    %7627 = vmatprep.subr.bf16.mxu0 %v5282
    %7628 = vmatpush1.bf16.msra.mxu0 %v5281
    %7629 = vmatprep.subr.bf16.mxu0 %v5269
    %7630 = vmatpush1.bf16.msra.mxu0 %v5268
    %7631 = vmatprep.subr.bf16.mxu0 %v5256
    %7632 = vmatpush1.bf16.msra.mxu0 %v5255
    %7633 = vmatprep.subr.bf16.mxu0 %v5243
    %7634 = vmatpush1.bf16.msra.mxu0 %v5242
    %7635 = vmatprep.subr.bf16.mxu0 %v5230
    %7636 = vmatpush1.bf16.msra.mxu0 %v5229
    %7637 = vmatprep.subr.bf16.mxu0 %v5217
    %7638 = vmatpush1.bf16.msra.mxu0 %v5216
    %7639 = vmatprep.subr.bf16.mxu0 %v5204
    %7640 = vmatpush1.bf16.msra.mxu0 %v5203
    %7641 = vmatprep.subr.bf16.mxu0 %v5399
    %7642 = vmatpush2.bf16.msra.mxu0 %v5398
    %7643 = vmatprep.subr.bf16.mxu0 %v5386
    %7644 = vmatpush2.bf16.msra.mxu0 %v5385
    %7645 = vmatprep.subr.bf16.mxu0 %v5373
    %7646 = vmatpush2.bf16.msra.mxu0 %v5372
    %7647 = vmatprep.subr.bf16.mxu0 %v5360
    %7648 = vmatpush2.bf16.msra.mxu0 %v5359
    %7649 = vmatprep.subr.bf16.mxu0 %v5347
    %7650 = vmatpush2.bf16.msra.mxu0 %v5346
    %7651 = vmatprep.subr.bf16.mxu0 %v5334
    %7652 = vmatpush2.bf16.msra.mxu0 %v5333
    %7653 = vmatprep.subr.bf16.mxu0 %v5321
    %7654 = vmatpush2.bf16.msra.mxu0 %v5320
    %7655 = vmatprep.subr.bf16.mxu0 %v5308
    %7656 = vmatpush2.bf16.msra.mxu0 %v5307
    %7657 = vmatprep.mubr.bf16.mxu0 %v101
    %7658 = vmatmul.mubr.bf16.gmra.mxu0 %v100
    %v7659 = vpop.f32.mrf.mxu0
    %v7660 = vadd.f32 %v1421, %v7659
    %v7661 = vpop.f32.mrf.mxu0
    %v7662 = vadd.f32 %v1425, %v7661
    %v7663 = vpop.f32.mrf.mxu0
    %v7664 = vadd.f32 %v1421, %v7663
    %v7665 = vpop.f32.mrf.mxu0
    %v7666 = vadd.f32 %v1425, %v7665
    %7667 = vdwg.mxu0
    %7668 = vmatprep.subr.bf16.mxu0 %v5503
    %7669 = vmatpush1.bf16.msra.mxu0 %v5502
    %7670 = vmatprep.subr.bf16.mxu0 %v5490
    %7671 = vmatpush1.bf16.msra.mxu0 %v5489
    %7672 = vmatprep.subr.bf16.mxu0 %v5477
    %7673 = vmatpush1.bf16.msra.mxu0 %v5476
    %7674 = vmatprep.subr.bf16.mxu0 %v5464
    %7675 = vmatpush1.bf16.msra.mxu0 %v5463
    %7676 = vmatprep.subr.bf16.mxu0 %v5451
    %7677 = vmatpush1.bf16.msra.mxu0 %v5450
    %7678 = vmatprep.subr.bf16.mxu0 %v5438
    %7679 = vmatpush1.bf16.msra.mxu0 %v5437
    %7680 = vmatprep.subr.bf16.mxu0 %v5425
    %7681 = vmatpush1.bf16.msra.mxu0 %v5424
    %7682 = vmatprep.subr.bf16.mxu0 %v5412
    %7683 = vmatpush1.bf16.msra.mxu0 %v5411
    %7684 = vmatprep.subr.bf16.mxu0 %v5607
    %7685 = vmatpush2.bf16.msra.mxu0 %v5606
    %7686 = vmatprep.subr.bf16.mxu0 %v5594
    %7687 = vmatpush2.bf16.msra.mxu0 %v5593
    %7688 = vmatprep.subr.bf16.mxu0 %v5581
    %7689 = vmatpush2.bf16.msra.mxu0 %v5580
    %7690 = vmatprep.subr.bf16.mxu0 %v5568
    %7691 = vmatpush2.bf16.msra.mxu0 %v5567
    %7692 = vmatprep.subr.bf16.mxu0 %v5555
    %7693 = vmatpush2.bf16.msra.mxu0 %v5554
    %7694 = vmatprep.subr.bf16.mxu0 %v5542
    %7695 = vmatpush2.bf16.msra.mxu0 %v5541
    %7696 = vmatprep.subr.bf16.mxu0 %v5529
    %7697 = vmatpush2.bf16.msra.mxu0 %v5528
    %7698 = vmatprep.subr.bf16.mxu0 %v5516
    %7699 = vmatpush2.bf16.msra.mxu0 %v5515
    %7700 = vmatprep.mubr.bf16.mxu0 %v103
    %7701 = vmatmul.mubr.bf16.gmra.mxu0 %v102
    %v7702 = vpop.f32.mrf.mxu0
    %v7703 = vadd.f32 %v7660, %v7702
    %v7704 = vpop.f32.mrf.mxu0
    %v7705 = vadd.f32 %v7662, %v7704
    %v7706 = vpop.f32.mrf.mxu0
    %v7707 = vadd.f32 %v7664, %v7706
    %v7708 = vpop.f32.mrf.mxu0
    %v7709 = vadd.f32 %v7666, %v7708
    %7710 = vdwg.mxu0
    %7711 = vmatprep.subr.bf16.mxu0 %v5711
    %7712 = vmatpush1.bf16.msra.mxu0 %v5710
    %7713 = vmatprep.subr.bf16.mxu0 %v5698
    %7714 = vmatpush1.bf16.msra.mxu0 %v5697
    %7715 = vmatprep.subr.bf16.mxu0 %v5685
    %7716 = vmatpush1.bf16.msra.mxu0 %v5684
    %7717 = vmatprep.subr.bf16.mxu0 %v5672
    %7718 = vmatpush1.bf16.msra.mxu0 %v5671
    %7719 = vmatprep.subr.bf16.mxu0 %v5659
    %7720 = vmatpush1.bf16.msra.mxu0 %v5658
    %7721 = vmatprep.subr.bf16.mxu0 %v5646
    %7722 = vmatpush1.bf16.msra.mxu0 %v5645
    %7723 = vmatprep.subr.bf16.mxu0 %v5633
    %7724 = vmatpush1.bf16.msra.mxu0 %v5632
    %7725 = vmatprep.subr.bf16.mxu0 %v5620
    %7726 = vmatpush1.bf16.msra.mxu0 %v5619
    %7727 = vmatprep.subr.bf16.mxu0 %v5815
    %7728 = vmatpush2.bf16.msra.mxu0 %v5814
    %7729 = vmatprep.subr.bf16.mxu0 %v5802
    %7730 = vmatpush2.bf16.msra.mxu0 %v5801
    %7731 = vmatprep.subr.bf16.mxu0 %v5789
    %7732 = vmatpush2.bf16.msra.mxu0 %v5788
    %7733 = vmatprep.subr.bf16.mxu0 %v5776
    %7734 = vmatpush2.bf16.msra.mxu0 %v5775
    %7735 = vmatprep.subr.bf16.mxu0 %v5763
    %7736 = vmatpush2.bf16.msra.mxu0 %v5762
    %7737 = vmatprep.subr.bf16.mxu0 %v5750
    %7738 = vmatpush2.bf16.msra.mxu0 %v5749
    %7739 = vmatprep.subr.bf16.mxu0 %v5737
    %7740 = vmatpush2.bf16.msra.mxu0 %v5736
    %7741 = vmatprep.subr.bf16.mxu0 %v5724
    %7742 = vmatpush2.bf16.msra.mxu0 %v5723
    %7743 = vmatprep.mubr.bf16.mxu0 %v105
    %7744 = vmatmul.mubr.bf16.gmra.mxu0 %v104
    %v7745 = vpop.f32.mrf.mxu0
    %v7746 = vadd.f32 %v7703, %v7745
    %v7747 = vpop.f32.mrf.mxu0
    %v7748 = vadd.f32 %v7705, %v7747
    %v7749 = vpop.f32.mrf.mxu0
    %v7750 = vadd.f32 %v7707, %v7749
    %v7751 = vpop.f32.mrf.mxu0
    %v7752 = vadd.f32 %v7709, %v7751
    %7753 = vdwg.mxu0
    %7754 = vmatprep.subr.bf16.mxu0 %v5919
    %7755 = vmatpush1.bf16.msra.mxu0 %v5918
    %7756 = vmatprep.subr.bf16.mxu0 %v5906
    %7757 = vmatpush1.bf16.msra.mxu0 %v5905
    %7758 = vmatprep.subr.bf16.mxu0 %v5893
    %7759 = vmatpush1.bf16.msra.mxu0 %v5892
    %7760 = vmatprep.subr.bf16.mxu0 %v5880
    %7761 = vmatpush1.bf16.msra.mxu0 %v5879
    %7762 = vmatprep.subr.bf16.mxu0 %v5867
    %7763 = vmatpush1.bf16.msra.mxu0 %v5866
    %7764 = vmatprep.subr.bf16.mxu0 %v5854
    %7765 = vmatpush1.bf16.msra.mxu0 %v5853
    %7766 = vmatprep.subr.bf16.mxu0 %v5841
    %7767 = vmatpush1.bf16.msra.mxu0 %v5840
    %7768 = vmatprep.subr.bf16.mxu0 %v5828
    %7769 = vmatpush1.bf16.msra.mxu0 %v5827
    %7770 = vmatprep.subr.bf16.mxu0 %v6023
    %7771 = vmatpush2.bf16.msra.mxu0 %v6022
    %7772 = vmatprep.subr.bf16.mxu0 %v6010
    %7773 = vmatpush2.bf16.msra.mxu0 %v6009
    %7774 = vmatprep.subr.bf16.mxu0 %v5997
    %7775 = vmatpush2.bf16.msra.mxu0 %v5996
    %7776 = vmatprep.subr.bf16.mxu0 %v5984
    %7777 = vmatpush2.bf16.msra.mxu0 %v5983
    %7778 = vmatprep.subr.bf16.mxu0 %v5971
    %7779 = vmatpush2.bf16.msra.mxu0 %v5970
    %7780 = vmatprep.subr.bf16.mxu0 %v5958
    %7781 = vmatpush2.bf16.msra.mxu0 %v5957
    %7782 = vmatprep.subr.bf16.mxu0 %v5945
    %7783 = vmatpush2.bf16.msra.mxu0 %v5944
    %7784 = vmatprep.subr.bf16.mxu0 %v5932
    %7785 = vmatpush2.bf16.msra.mxu0 %v5931
    %7786 = vmatprep.mubr.bf16.mxu0 %v107
    %7787 = vmatmul.mubr.bf16.gmra.mxu0 %v106
    %v7788 = vpop.f32.mrf.mxu0
    %v7789 = vadd.f32 %v7746, %v7788
    %v7790 = vpop.f32.mrf.mxu0
    %v7791 = vadd.f32 %v7748, %v7790
    %v7792 = vpop.f32.mrf.mxu0
    %v7793 = vadd.f32 %v7750, %v7792
    %v7794 = vpop.f32.mrf.mxu0
    %v7795 = vadd.f32 %v7752, %v7794
    %7796 = vdwg.mxu0
    %7797 = vmatprep.subr.bf16.mxu0 %v6127
    %7798 = vmatpush1.bf16.msra.mxu0 %v6126
    %7799 = vmatprep.subr.bf16.mxu0 %v6114
    %7800 = vmatpush1.bf16.msra.mxu0 %v6113
    %7801 = vmatprep.subr.bf16.mxu0 %v6101
    %7802 = vmatpush1.bf16.msra.mxu0 %v6100
    %7803 = vmatprep.subr.bf16.mxu0 %v6088
    %7804 = vmatpush1.bf16.msra.mxu0 %v6087
    %7805 = vmatprep.subr.bf16.mxu0 %v6075
    %7806 = vmatpush1.bf16.msra.mxu0 %v6074
    %7807 = vmatprep.subr.bf16.mxu0 %v6062
    %7808 = vmatpush1.bf16.msra.mxu0 %v6061
    %7809 = vmatprep.subr.bf16.mxu0 %v6049
    %7810 = vmatpush1.bf16.msra.mxu0 %v6048
    %7811 = vmatprep.subr.bf16.mxu0 %v6036
    %7812 = vmatpush1.bf16.msra.mxu0 %v6035
    %7813 = vmatprep.subr.bf16.mxu0 %v6231
    %7814 = vmatpush2.bf16.msra.mxu0 %v6230
    %7815 = vmatprep.subr.bf16.mxu0 %v6218
    %7816 = vmatpush2.bf16.msra.mxu0 %v6217
    %7817 = vmatprep.subr.bf16.mxu0 %v6205
    %7818 = vmatpush2.bf16.msra.mxu0 %v6204
    %7819 = vmatprep.subr.bf16.mxu0 %v6192
    %7820 = vmatpush2.bf16.msra.mxu0 %v6191
    %7821 = vmatprep.subr.bf16.mxu0 %v6179
    %7822 = vmatpush2.bf16.msra.mxu0 %v6178
    %7823 = vmatprep.subr.bf16.mxu0 %v6166
    %7824 = vmatpush2.bf16.msra.mxu0 %v6165
    %7825 = vmatprep.subr.bf16.mxu0 %v6153
    %7826 = vmatpush2.bf16.msra.mxu0 %v6152
    %7827 = vmatprep.subr.bf16.mxu0 %v6140
    %7828 = vmatpush2.bf16.msra.mxu0 %v6139
    %7829 = vmatprep.mubr.bf16.mxu0 %v109
    %7830 = vmatmul.mubr.bf16.gmra.mxu0 %v108
    %v7831 = vpop.f32.mrf.mxu0
    %v7832 = vadd.f32 %v7789, %v7831
    %v7833 = vpop.f32.mrf.mxu0
    %v7834 = vadd.f32 %v7791, %v7833
    %v7835 = vpop.f32.mrf.mxu0
    %v7836 = vadd.f32 %v7793, %v7835
    %v7837 = vpop.f32.mrf.mxu0
    %v7838 = vadd.f32 %v7795, %v7837
    %7839 = vdwg.mxu0
    %7840 = vmatprep.subr.bf16.mxu0 %v6335
    %7841 = vmatpush1.bf16.msra.mxu0 %v6334
    %7842 = vmatprep.subr.bf16.mxu0 %v6322
    %7843 = vmatpush1.bf16.msra.mxu0 %v6321
    %7844 = vmatprep.subr.bf16.mxu0 %v6309
    %7845 = vmatpush1.bf16.msra.mxu0 %v6308
    %7846 = vmatprep.subr.bf16.mxu0 %v6296
    %7847 = vmatpush1.bf16.msra.mxu0 %v6295
    %7848 = vmatprep.subr.bf16.mxu0 %v6283
    %7849 = vmatpush1.bf16.msra.mxu0 %v6282
    %7850 = vmatprep.subr.bf16.mxu0 %v6270
    %7851 = vmatpush1.bf16.msra.mxu0 %v6269
    %7852 = vmatprep.subr.bf16.mxu0 %v6257
    %7853 = vmatpush1.bf16.msra.mxu0 %v6256
    %7854 = vmatprep.subr.bf16.mxu0 %v6244
    %7855 = vmatpush1.bf16.msra.mxu0 %v6243
    %7856 = vmatprep.subr.bf16.mxu0 0
    %7857 = vmatpush2.bf16.msra.mxu0 0
    %7858 = vmatprep.subr.bf16.mxu0 0
    %7859 = vmatpush2.bf16.msra.mxu0 0
    %7860 = vmatprep.subr.bf16.mxu0 0
    %7861 = vmatpush2.bf16.msra.mxu0 0
    %7862 = vmatprep.subr.bf16.mxu0 %v6400
    %7863 = vmatpush2.bf16.msra.mxu0 %v6399
    %7864 = vmatprep.subr.bf16.mxu0 %v6387
    %7865 = vmatpush2.bf16.msra.mxu0 %v6386
    %7866 = vmatprep.subr.bf16.mxu0 %v6374
    %7867 = vmatpush2.bf16.msra.mxu0 %v6373
    %7868 = vmatprep.subr.bf16.mxu0 %v6361
    %7869 = vmatpush2.bf16.msra.mxu0 %v6360
    %7870 = vmatprep.subr.bf16.mxu0 %v6348
    %7871 = vmatpush2.bf16.msra.mxu0 %v6347
    %7872 = vmatprep.mubr.bf16.mxu0 %v7623
    %7873 = vmatmul.mubr.bf16.gmra.mxu0 %v110
    %v7874 = vpop.f32.mrf.mxu0
    %v7875 = vadd.f32 %v7832, %v7874
    %v7876 = vpop.f32.mrf.mxu0
    %v7877 = vadd.f32 %v7834, %v7876
    %v7878 = vpop.f32.mrf.mxu0
    %v7879 = vadd.f32 %v7836, %v7878
    %v7880 = vpop.f32.mrf.mxu0
    %v7881 = vadd.f32 %v7838, %v7880
    %7882 = vdwg.mxu0
    %7883 = vmatprep.subr.bf16.mxu0 %v5297
    %7884 = vmatpush1.bf16.msra.mxu0 %v5296
    %7885 = vmatprep.subr.bf16.mxu0 %v5284
    %7886 = vmatpush1.bf16.msra.mxu0 %v5283
    %7887 = vmatprep.subr.bf16.mxu0 %v5271
    %7888 = vmatpush1.bf16.msra.mxu0 %v5270
    %7889 = vmatprep.subr.bf16.mxu0 %v5258
    %7890 = vmatpush1.bf16.msra.mxu0 %v5257
    %7891 = vmatprep.subr.bf16.mxu0 %v5245
    %7892 = vmatpush1.bf16.msra.mxu0 %v5244
    %7893 = vmatprep.subr.bf16.mxu0 %v5232
    %7894 = vmatpush1.bf16.msra.mxu0 %v5231
    %7895 = vmatprep.subr.bf16.mxu0 %v5219
    %7896 = vmatpush1.bf16.msra.mxu0 %v5218
    %7897 = vmatprep.subr.bf16.mxu0 %v5206
    %7898 = vmatpush1.bf16.msra.mxu0 %v5205
    %7899 = vmatprep.subr.bf16.mxu0 %v5401
    %7900 = vmatpush2.bf16.msra.mxu0 %v5400
    %7901 = vmatprep.subr.bf16.mxu0 %v5388
    %7902 = vmatpush2.bf16.msra.mxu0 %v5387
    %7903 = vmatprep.subr.bf16.mxu0 %v5375
    %7904 = vmatpush2.bf16.msra.mxu0 %v5374
    %7905 = vmatprep.subr.bf16.mxu0 %v5362
    %7906 = vmatpush2.bf16.msra.mxu0 %v5361
    %7907 = vmatprep.subr.bf16.mxu0 %v5349
    %7908 = vmatpush2.bf16.msra.mxu0 %v5348
    %7909 = vmatprep.subr.bf16.mxu0 %v5336
    %7910 = vmatpush2.bf16.msra.mxu0 %v5335
    %7911 = vmatprep.subr.bf16.mxu0 %v5323
    %7912 = vmatpush2.bf16.msra.mxu0 %v5322
    %7913 = vmatprep.subr.bf16.mxu0 %v5310
    %7914 = vmatpush2.bf16.msra.mxu0 %v5309
    %7915 = vmatprep.mubr.bf16.mxu0 %v101
    %7916 = vmatmul.mubr.bf16.gmra.mxu0 %v100
    %v7917 = vpop.f32.mrf.mxu0
    %v7918 = vadd.f32 %v1429, %v7917
    %v7919 = vpop.f32.mrf.mxu0
    %v7920 = vadd.f32 %v1433, %v7919
    %v7921 = vpop.f32.mrf.mxu0
    %v7922 = vadd.f32 %v1429, %v7921
    %v7923 = vpop.f32.mrf.mxu0
    %v7924 = vadd.f32 %v1433, %v7923
    %7925 = vdwg.mxu0
    %7926 = vmatprep.subr.bf16.mxu0 %v5505
    %7927 = vmatpush1.bf16.msra.mxu0 %v5504
    %7928 = vmatprep.subr.bf16.mxu0 %v5492
    %7929 = vmatpush1.bf16.msra.mxu0 %v5491
    %7930 = vmatprep.subr.bf16.mxu0 %v5479
    %7931 = vmatpush1.bf16.msra.mxu0 %v5478
    %7932 = vmatprep.subr.bf16.mxu0 %v5466
    %7933 = vmatpush1.bf16.msra.mxu0 %v5465
    %7934 = vmatprep.subr.bf16.mxu0 %v5453
    %7935 = vmatpush1.bf16.msra.mxu0 %v5452
    %7936 = vmatprep.subr.bf16.mxu0 %v5440
    %7937 = vmatpush1.bf16.msra.mxu0 %v5439
    %7938 = vmatprep.subr.bf16.mxu0 %v5427
    %7939 = vmatpush1.bf16.msra.mxu0 %v5426
    %7940 = vmatprep.subr.bf16.mxu0 %v5414
    %7941 = vmatpush1.bf16.msra.mxu0 %v5413
    %7942 = vmatprep.subr.bf16.mxu0 %v5609
    %7943 = vmatpush2.bf16.msra.mxu0 %v5608
    %7944 = vmatprep.subr.bf16.mxu0 %v5596
    %7945 = vmatpush2.bf16.msra.mxu0 %v5595
    %7946 = vmatprep.subr.bf16.mxu0 %v5583
    %7947 = vmatpush2.bf16.msra.mxu0 %v5582
    %7948 = vmatprep.subr.bf16.mxu0 %v5570
    %7949 = vmatpush2.bf16.msra.mxu0 %v5569
    %7950 = vmatprep.subr.bf16.mxu0 %v5557
    %7951 = vmatpush2.bf16.msra.mxu0 %v5556
    %7952 = vmatprep.subr.bf16.mxu0 %v5544
    %7953 = vmatpush2.bf16.msra.mxu0 %v5543
    %7954 = vmatprep.subr.bf16.mxu0 %v5531
    %7955 = vmatpush2.bf16.msra.mxu0 %v5530
    %7956 = vmatprep.subr.bf16.mxu0 %v5518
    %7957 = vmatpush2.bf16.msra.mxu0 %v5517
    %7958 = vmatprep.mubr.bf16.mxu0 %v103
    %7959 = vmatmul.mubr.bf16.gmra.mxu0 %v102
    %v7960 = vpop.f32.mrf.mxu0
    %v7961 = vadd.f32 %v7918, %v7960
    %v7962 = vpop.f32.mrf.mxu0
    %v7963 = vadd.f32 %v7920, %v7962
    %v7964 = vpop.f32.mrf.mxu0
    %v7965 = vadd.f32 %v7922, %v7964
    %v7966 = vpop.f32.mrf.mxu0
    %v7967 = vadd.f32 %v7924, %v7966
    %7968 = vdwg.mxu0
    %7969 = vmatprep.subr.bf16.mxu0 %v5713
    %7970 = vmatpush1.bf16.msra.mxu0 %v5712
    %7971 = vmatprep.subr.bf16.mxu0 %v5700
    %7972 = vmatpush1.bf16.msra.mxu0 %v5699
    %7973 = vmatprep.subr.bf16.mxu0 %v5687
    %7974 = vmatpush1.bf16.msra.mxu0 %v5686
    %7975 = vmatprep.subr.bf16.mxu0 %v5674
    %7976 = vmatpush1.bf16.msra.mxu0 %v5673
    %7977 = vmatprep.subr.bf16.mxu0 %v5661
    %7978 = vmatpush1.bf16.msra.mxu0 %v5660
    %7979 = vmatprep.subr.bf16.mxu0 %v5648
    %7980 = vmatpush1.bf16.msra.mxu0 %v5647
    %7981 = vmatprep.subr.bf16.mxu0 %v5635
    %7982 = vmatpush1.bf16.msra.mxu0 %v5634
    %7983 = vmatprep.subr.bf16.mxu0 %v5622
    %7984 = vmatpush1.bf16.msra.mxu0 %v5621
    %7985 = vmatprep.subr.bf16.mxu0 %v5817
    %7986 = vmatpush2.bf16.msra.mxu0 %v5816
    %7987 = vmatprep.subr.bf16.mxu0 %v5804
    %7988 = vmatpush2.bf16.msra.mxu0 %v5803
    %7989 = vmatprep.subr.bf16.mxu0 %v5791
    %7990 = vmatpush2.bf16.msra.mxu0 %v5790
    %7991 = vmatprep.subr.bf16.mxu0 %v5778
    %7992 = vmatpush2.bf16.msra.mxu0 %v5777
    %7993 = vmatprep.subr.bf16.mxu0 %v5765
    %7994 = vmatpush2.bf16.msra.mxu0 %v5764
    %7995 = vmatprep.subr.bf16.mxu0 %v5752
    %7996 = vmatpush2.bf16.msra.mxu0 %v5751
    %7997 = vmatprep.subr.bf16.mxu0 %v5739
    %7998 = vmatpush2.bf16.msra.mxu0 %v5738
    %7999 = vmatprep.subr.bf16.mxu0 %v5726
    %8000 = vmatpush2.bf16.msra.mxu0 %v5725
    %8001 = vmatprep.mubr.bf16.mxu0 %v105
    %8002 = vmatmul.mubr.bf16.gmra.mxu0 %v104
    %v8003 = vpop.f32.mrf.mxu0
    %v8004 = vadd.f32 %v7961, %v8003
    %v8005 = vpop.f32.mrf.mxu0
    %v8006 = vadd.f32 %v7963, %v8005
    %v8007 = vpop.f32.mrf.mxu0
    %v8008 = vadd.f32 %v7965, %v8007
    %v8009 = vpop.f32.mrf.mxu0
    %v8010 = vadd.f32 %v7967, %v8009
    %8011 = vdwg.mxu0
    %8012 = vmatprep.subr.bf16.mxu0 %v5921
    %8013 = vmatpush1.bf16.msra.mxu0 %v5920
    %8014 = vmatprep.subr.bf16.mxu0 %v5908
    %8015 = vmatpush1.bf16.msra.mxu0 %v5907
    %8016 = vmatprep.subr.bf16.mxu0 %v5895
    %8017 = vmatpush1.bf16.msra.mxu0 %v5894
    %8018 = vmatprep.subr.bf16.mxu0 %v5882
    %8019 = vmatpush1.bf16.msra.mxu0 %v5881
    %8020 = vmatprep.subr.bf16.mxu0 %v5869
    %8021 = vmatpush1.bf16.msra.mxu0 %v5868
    %8022 = vmatprep.subr.bf16.mxu0 %v5856
    %8023 = vmatpush1.bf16.msra.mxu0 %v5855
    %8024 = vmatprep.subr.bf16.mxu0 %v5843
    %8025 = vmatpush1.bf16.msra.mxu0 %v5842
    %8026 = vmatprep.subr.bf16.mxu0 %v5830
    %8027 = vmatpush1.bf16.msra.mxu0 %v5829
    %8028 = vmatprep.subr.bf16.mxu0 %v6025
    %8029 = vmatpush2.bf16.msra.mxu0 %v6024
    %8030 = vmatprep.subr.bf16.mxu0 %v6012
    %8031 = vmatpush2.bf16.msra.mxu0 %v6011
    %8032 = vmatprep.subr.bf16.mxu0 %v5999
    %8033 = vmatpush2.bf16.msra.mxu0 %v5998
    %8034 = vmatprep.subr.bf16.mxu0 %v5986
    %8035 = vmatpush2.bf16.msra.mxu0 %v5985
    %8036 = vmatprep.subr.bf16.mxu0 %v5973
    %8037 = vmatpush2.bf16.msra.mxu0 %v5972
    %8038 = vmatprep.subr.bf16.mxu0 %v5960
    %8039 = vmatpush2.bf16.msra.mxu0 %v5959
    %8040 = vmatprep.subr.bf16.mxu0 %v5947
    %8041 = vmatpush2.bf16.msra.mxu0 %v5946
    %8042 = vmatprep.subr.bf16.mxu0 %v5934
    %8043 = vmatpush2.bf16.msra.mxu0 %v5933
    %8044 = vmatprep.mubr.bf16.mxu0 %v107
    %8045 = vmatmul.mubr.bf16.gmra.mxu0 %v106
    %v8046 = vpop.f32.mrf.mxu0
    %v8047 = vadd.f32 %v8004, %v8046
    %v8048 = vpop.f32.mrf.mxu0
    %v8049 = vadd.f32 %v8006, %v8048
    %v8050 = vpop.f32.mrf.mxu0
    %v8051 = vadd.f32 %v8008, %v8050
    %v8052 = vpop.f32.mrf.mxu0
    %v8053 = vadd.f32 %v8010, %v8052
    %8054 = vdwg.mxu0
    %8055 = vmatprep.subr.bf16.mxu0 %v6129
    %8056 = vmatpush1.bf16.msra.mxu0 %v6128
    %8057 = vmatprep.subr.bf16.mxu0 %v6116
    %8058 = vmatpush1.bf16.msra.mxu0 %v6115
    %8059 = vmatprep.subr.bf16.mxu0 %v6103
    %8060 = vmatpush1.bf16.msra.mxu0 %v6102
    %8061 = vmatprep.subr.bf16.mxu0 %v6090
    %8062 = vmatpush1.bf16.msra.mxu0 %v6089
    %8063 = vmatprep.subr.bf16.mxu0 %v6077
    %8064 = vmatpush1.bf16.msra.mxu0 %v6076
    %8065 = vmatprep.subr.bf16.mxu0 %v6064
    %8066 = vmatpush1.bf16.msra.mxu0 %v6063
    %8067 = vmatprep.subr.bf16.mxu0 %v6051
    %8068 = vmatpush1.bf16.msra.mxu0 %v6050
    %8069 = vmatprep.subr.bf16.mxu0 %v6038
    %8070 = vmatpush1.bf16.msra.mxu0 %v6037
    %8071 = vmatprep.subr.bf16.mxu0 %v6233
    %8072 = vmatpush2.bf16.msra.mxu0 %v6232
    %8073 = vmatprep.subr.bf16.mxu0 %v6220
    %8074 = vmatpush2.bf16.msra.mxu0 %v6219
    %8075 = vmatprep.subr.bf16.mxu0 %v6207
    %8076 = vmatpush2.bf16.msra.mxu0 %v6206
    %8077 = vmatprep.subr.bf16.mxu0 %v6194
    %8078 = vmatpush2.bf16.msra.mxu0 %v6193
    %8079 = vmatprep.subr.bf16.mxu0 %v6181
    %8080 = vmatpush2.bf16.msra.mxu0 %v6180
    %8081 = vmatprep.subr.bf16.mxu0 %v6168
    %8082 = vmatpush2.bf16.msra.mxu0 %v6167
    %8083 = vmatprep.subr.bf16.mxu0 %v6155
    %8084 = vmatpush2.bf16.msra.mxu0 %v6154
    %8085 = vmatprep.subr.bf16.mxu0 %v6142
    %8086 = vmatpush2.bf16.msra.mxu0 %v6141
    %8087 = vmatprep.mubr.bf16.mxu0 %v109
    %8088 = vmatmul.mubr.bf16.gmra.mxu0 %v108
    %v8089 = vpop.f32.mrf.mxu0
    %v8090 = vadd.f32 %v8047, %v8089
    %v8091 = vpop.f32.mrf.mxu0
    %v8092 = vadd.f32 %v8049, %v8091
    %v8093 = vpop.f32.mrf.mxu0
    %v8094 = vadd.f32 %v8051, %v8093
    %v8095 = vpop.f32.mrf.mxu0
    %v8096 = vadd.f32 %v8053, %v8095
    %8097 = vdwg.mxu0
    %8098 = vmatprep.subr.bf16.mxu0 %v6337
    %8099 = vmatpush1.bf16.msra.mxu0 %v6336
    %8100 = vmatprep.subr.bf16.mxu0 %v6324
    %8101 = vmatpush1.bf16.msra.mxu0 %v6323
    %8102 = vmatprep.subr.bf16.mxu0 %v6311
    %8103 = vmatpush1.bf16.msra.mxu0 %v6310
    %8104 = vmatprep.subr.bf16.mxu0 %v6298
    %8105 = vmatpush1.bf16.msra.mxu0 %v6297
    %8106 = vmatprep.subr.bf16.mxu0 %v6285
    %8107 = vmatpush1.bf16.msra.mxu0 %v6284
    %8108 = vmatprep.subr.bf16.mxu0 %v6272
    %8109 = vmatpush1.bf16.msra.mxu0 %v6271
    %8110 = vmatprep.subr.bf16.mxu0 %v6259
    %8111 = vmatpush1.bf16.msra.mxu0 %v6258
    %8112 = vmatprep.subr.bf16.mxu0 %v6246
    %8113 = vmatpush1.bf16.msra.mxu0 %v6245
    %8114 = vmatprep.subr.bf16.mxu0 0
    %8115 = vmatpush2.bf16.msra.mxu0 0
    %8116 = vmatprep.subr.bf16.mxu0 0
    %8117 = vmatpush2.bf16.msra.mxu0 0
    %8118 = vmatprep.subr.bf16.mxu0 0
    %8119 = vmatpush2.bf16.msra.mxu0 0
    %8120 = vmatprep.subr.bf16.mxu0 %v6402
    %8121 = vmatpush2.bf16.msra.mxu0 %v6401
    %8122 = vmatprep.subr.bf16.mxu0 %v6389
    %8123 = vmatpush2.bf16.msra.mxu0 %v6388
    %8124 = vmatprep.subr.bf16.mxu0 %v6376
    %8125 = vmatpush2.bf16.msra.mxu0 %v6375
    %8126 = vmatprep.subr.bf16.mxu0 %v6363
    %8127 = vmatpush2.bf16.msra.mxu0 %v6362
    %8128 = vmatprep.subr.bf16.mxu0 %v6350
    %8129 = vmatpush2.bf16.msra.mxu0 %v6349
    %8130 = vmatprep.mubr.bf16.mxu0 %v7623
    %8131 = vmatmul.mubr.bf16.gmra.mxu0 %v110
    %v8132 = vpop.f32.mrf.mxu0
    %v8133 = vadd.f32 %v8090, %v8132
    %v8134 = vpop.f32.mrf.mxu0
    %v8135 = vadd.f32 %v8092, %v8134
    %v8136 = vpop.f32.mrf.mxu0
    %v8137 = vadd.f32 %v8094, %v8136
    %v8138 = vpop.f32.mrf.mxu0
    %v8139 = vadd.f32 %v8096, %v8138
    %8140 = vdwg.mxu0
    %8141 = vmatprep.subr.bf16.mxu0 %v5299
    %8142 = vmatpush1.bf16.msra.mxu0 %v5298
    %8143 = vmatprep.subr.bf16.mxu0 %v5286
    %8144 = vmatpush1.bf16.msra.mxu0 %v5285
    %8145 = vmatprep.subr.bf16.mxu0 %v5273
    %8146 = vmatpush1.bf16.msra.mxu0 %v5272
    %8147 = vmatprep.subr.bf16.mxu0 %v5260
    %8148 = vmatpush1.bf16.msra.mxu0 %v5259
    %8149 = vmatprep.subr.bf16.mxu0 %v5247
    %8150 = vmatpush1.bf16.msra.mxu0 %v5246
    %8151 = vmatprep.subr.bf16.mxu0 %v5234
    %8152 = vmatpush1.bf16.msra.mxu0 %v5233
    %8153 = vmatprep.subr.bf16.mxu0 %v5221
    %8154 = vmatpush1.bf16.msra.mxu0 %v5220
    %8155 = vmatprep.subr.bf16.mxu0 %v5208
    %8156 = vmatpush1.bf16.msra.mxu0 %v5207
    %8157 = vmatprep.subr.bf16.mxu0 %v5403
    %8158 = vmatpush2.bf16.msra.mxu0 %v5402
    %8159 = vmatprep.subr.bf16.mxu0 %v5390
    %8160 = vmatpush2.bf16.msra.mxu0 %v5389
    %8161 = vmatprep.subr.bf16.mxu0 %v5377
    %8162 = vmatpush2.bf16.msra.mxu0 %v5376
    %8163 = vmatprep.subr.bf16.mxu0 %v5364
    %8164 = vmatpush2.bf16.msra.mxu0 %v5363
    %8165 = vmatprep.subr.bf16.mxu0 %v5351
    %8166 = vmatpush2.bf16.msra.mxu0 %v5350
    %8167 = vmatprep.subr.bf16.mxu0 %v5338
    %8168 = vmatpush2.bf16.msra.mxu0 %v5337
    %8169 = vmatprep.subr.bf16.mxu0 %v5325
    %8170 = vmatpush2.bf16.msra.mxu0 %v5324
    %8171 = vmatprep.subr.bf16.mxu0 %v5312
    %8172 = vmatpush2.bf16.msra.mxu0 %v5311
    %8173 = vmatprep.mubr.bf16.mxu0 %v101
    %8174 = vmatmul.mubr.bf16.gmra.mxu0 %v100
    %v8175 = vpop.f32.mrf.mxu0
    %v8176 = vadd.f32 %v1437, %v8175
    %v8177 = vpop.f32.mrf.mxu0
    %v8178 = vadd.f32 %v1441, %v8177
    %v8179 = vpop.f32.mrf.mxu0
    %v8180 = vadd.f32 %v1437, %v8179
    %v8181 = vpop.f32.mrf.mxu0
    %v8182 = vadd.f32 %v1441, %v8181
    %8183 = vdwg.mxu0
    %8184 = vmatprep.subr.bf16.mxu0 %v5507
    %8185 = vmatpush1.bf16.msra.mxu0 %v5506
    %8186 = vmatprep.subr.bf16.mxu0 %v5494
    %8187 = vmatpush1.bf16.msra.mxu0 %v5493
    %8188 = vmatprep.subr.bf16.mxu0 %v5481
    %8189 = vmatpush1.bf16.msra.mxu0 %v5480
    %8190 = vmatprep.subr.bf16.mxu0 %v5468
    %8191 = vmatpush1.bf16.msra.mxu0 %v5467
    %8192 = vmatprep.subr.bf16.mxu0 %v5455
    %8193 = vmatpush1.bf16.msra.mxu0 %v5454
    %8194 = vmatprep.subr.bf16.mxu0 %v5442
    %8195 = vmatpush1.bf16.msra.mxu0 %v5441
    %8196 = vmatprep.subr.bf16.mxu0 %v5429
    %8197 = vmatpush1.bf16.msra.mxu0 %v5428
    %8198 = vmatprep.subr.bf16.mxu0 %v5416
    %8199 = vmatpush1.bf16.msra.mxu0 %v5415
    %8200 = vmatprep.subr.bf16.mxu0 %v5611
    %8201 = vmatpush2.bf16.msra.mxu0 %v5610
    %8202 = vmatprep.subr.bf16.mxu0 %v5598
    %8203 = vmatpush2.bf16.msra.mxu0 %v5597
    %8204 = vmatprep.subr.bf16.mxu0 %v5585
    %8205 = vmatpush2.bf16.msra.mxu0 %v5584
    %8206 = vmatprep.subr.bf16.mxu0 %v5572
    %8207 = vmatpush2.bf16.msra.mxu0 %v5571
    %8208 = vmatprep.subr.bf16.mxu0 %v5559
    %8209 = vmatpush2.bf16.msra.mxu0 %v5558
    %8210 = vmatprep.subr.bf16.mxu0 %v5546
    %8211 = vmatpush2.bf16.msra.mxu0 %v5545
    %8212 = vmatprep.subr.bf16.mxu0 %v5533
    %8213 = vmatpush2.bf16.msra.mxu0 %v5532
    %8214 = vmatprep.subr.bf16.mxu0 %v5520
    %8215 = vmatpush2.bf16.msra.mxu0 %v5519
    %8216 = vmatprep.mubr.bf16.mxu0 %v103
    %8217 = vmatmul.mubr.bf16.gmra.mxu0 %v102
    %v8218 = vpop.f32.mrf.mxu0
    %v8219 = vadd.f32 %v8176, %v8218
    %v8220 = vpop.f32.mrf.mxu0
    %v8221 = vadd.f32 %v8178, %v8220
    %v8222 = vpop.f32.mrf.mxu0
    %v8223 = vadd.f32 %v8180, %v8222
    %v8224 = vpop.f32.mrf.mxu0
    %v8225 = vadd.f32 %v8182, %v8224
    %8226 = vdwg.mxu0
    %8227 = vmatprep.subr.bf16.mxu0 %v5715
    %8228 = vmatpush1.bf16.msra.mxu0 %v5714
    %8229 = vmatprep.subr.bf16.mxu0 %v5702
    %8230 = vmatpush1.bf16.msra.mxu0 %v5701
    %8231 = vmatprep.subr.bf16.mxu0 %v5689
    %8232 = vmatpush1.bf16.msra.mxu0 %v5688
    %8233 = vmatprep.subr.bf16.mxu0 %v5676
    %8234 = vmatpush1.bf16.msra.mxu0 %v5675
    %8235 = vmatprep.subr.bf16.mxu0 %v5663
    %8236 = vmatpush1.bf16.msra.mxu0 %v5662
    %8237 = vmatprep.subr.bf16.mxu0 %v5650
    %8238 = vmatpush1.bf16.msra.mxu0 %v5649
    %8239 = vmatprep.subr.bf16.mxu0 %v5637
    %8240 = vmatpush1.bf16.msra.mxu0 %v5636
    %8241 = vmatprep.subr.bf16.mxu0 %v5624
    %8242 = vmatpush1.bf16.msra.mxu0 %v5623
    %8243 = vmatprep.subr.bf16.mxu0 %v5819
    %8244 = vmatpush2.bf16.msra.mxu0 %v5818
    %8245 = vmatprep.subr.bf16.mxu0 %v5806
    %8246 = vmatpush2.bf16.msra.mxu0 %v5805
    %8247 = vmatprep.subr.bf16.mxu0 %v5793
    %8248 = vmatpush2.bf16.msra.mxu0 %v5792
    %8249 = vmatprep.subr.bf16.mxu0 %v5780
    %8250 = vmatpush2.bf16.msra.mxu0 %v5779
    %8251 = vmatprep.subr.bf16.mxu0 %v5767
    %8252 = vmatpush2.bf16.msra.mxu0 %v5766
    %8253 = vmatprep.subr.bf16.mxu0 %v5754
    %8254 = vmatpush2.bf16.msra.mxu0 %v5753
    %8255 = vmatprep.subr.bf16.mxu0 %v5741
    %8256 = vmatpush2.bf16.msra.mxu0 %v5740
    %8257 = vmatprep.subr.bf16.mxu0 %v5728
    %8258 = vmatpush2.bf16.msra.mxu0 %v5727
    %8259 = vmatprep.mubr.bf16.mxu0 %v105
    %8260 = vmatmul.mubr.bf16.gmra.mxu0 %v104
    %v8261 = vpop.f32.mrf.mxu0
    %v8262 = vadd.f32 %v8219, %v8261
    %v8263 = vpop.f32.mrf.mxu0
    %v8264 = vadd.f32 %v8221, %v8263
    %v8265 = vpop.f32.mrf.mxu0
    %v8266 = vadd.f32 %v8223, %v8265
    %v8267 = vpop.f32.mrf.mxu0
    %v8268 = vadd.f32 %v8225, %v8267
    %8269 = vdwg.mxu0
    %8270 = vmatprep.subr.bf16.mxu0 %v5923
    %8271 = vmatpush1.bf16.msra.mxu0 %v5922
    %8272 = vmatprep.subr.bf16.mxu0 %v5910
    %8273 = vmatpush1.bf16.msra.mxu0 %v5909
    %8274 = vmatprep.subr.bf16.mxu0 %v5897
    %8275 = vmatpush1.bf16.msra.mxu0 %v5896
    %8276 = vmatprep.subr.bf16.mxu0 %v5884
    %8277 = vmatpush1.bf16.msra.mxu0 %v5883
    %8278 = vmatprep.subr.bf16.mxu0 %v5871
    %8279 = vmatpush1.bf16.msra.mxu0 %v5870
    %8280 = vmatprep.subr.bf16.mxu0 %v5858
    %8281 = vmatpush1.bf16.msra.mxu0 %v5857
    %8282 = vmatprep.subr.bf16.mxu0 %v5845
    %8283 = vmatpush1.bf16.msra.mxu0 %v5844
    %8284 = vmatprep.subr.bf16.mxu0 %v5832
    %8285 = vmatpush1.bf16.msra.mxu0 %v5831
    %8286 = vmatprep.subr.bf16.mxu0 %v6027
    %8287 = vmatpush2.bf16.msra.mxu0 %v6026
    %8288 = vmatprep.subr.bf16.mxu0 %v6014
    %8289 = vmatpush2.bf16.msra.mxu0 %v6013
    %8290 = vmatprep.subr.bf16.mxu0 %v6001
    %8291 = vmatpush2.bf16.msra.mxu0 %v6000
    %8292 = vmatprep.subr.bf16.mxu0 %v5988
    %8293 = vmatpush2.bf16.msra.mxu0 %v5987
    %8294 = vmatprep.subr.bf16.mxu0 %v5975
    %8295 = vmatpush2.bf16.msra.mxu0 %v5974
    %8296 = vmatprep.subr.bf16.mxu0 %v5962
    %8297 = vmatpush2.bf16.msra.mxu0 %v5961
    %8298 = vmatprep.subr.bf16.mxu0 %v5949
    %8299 = vmatpush2.bf16.msra.mxu0 %v5948
    %8300 = vmatprep.subr.bf16.mxu0 %v5936
    %8301 = vmatpush2.bf16.msra.mxu0 %v5935
    %8302 = vmatprep.mubr.bf16.mxu0 %v107
    %8303 = vmatmul.mubr.bf16.gmra.mxu0 %v106
    %v8304 = vpop.f32.mrf.mxu0
    %v8305 = vadd.f32 %v8262, %v8304
    %v8306 = vpop.f32.mrf.mxu0
    %v8307 = vadd.f32 %v8264, %v8306
    %v8308 = vpop.f32.mrf.mxu0
    %v8309 = vadd.f32 %v8266, %v8308
    %v8310 = vpop.f32.mrf.mxu0
    %v8311 = vadd.f32 %v8268, %v8310
    %8312 = vdwg.mxu0
    %8313 = vmatprep.subr.bf16.mxu0 %v6131
    %8314 = vmatpush1.bf16.msra.mxu0 %v6130
    %8315 = vmatprep.subr.bf16.mxu0 %v6118
    %8316 = vmatpush1.bf16.msra.mxu0 %v6117
    %8317 = vmatprep.subr.bf16.mxu0 %v6105
    %8318 = vmatpush1.bf16.msra.mxu0 %v6104
    %8319 = vmatprep.subr.bf16.mxu0 %v6092
    %8320 = vmatpush1.bf16.msra.mxu0 %v6091
    %8321 = vmatprep.subr.bf16.mxu0 %v6079
    %8322 = vmatpush1.bf16.msra.mxu0 %v6078
    %8323 = vmatprep.subr.bf16.mxu0 %v6066
    %8324 = vmatpush1.bf16.msra.mxu0 %v6065
    %8325 = vmatprep.subr.bf16.mxu0 %v6053
    %8326 = vmatpush1.bf16.msra.mxu0 %v6052
    %8327 = vmatprep.subr.bf16.mxu0 %v6040
    %8328 = vmatpush1.bf16.msra.mxu0 %v6039
    %8329 = vmatprep.subr.bf16.mxu0 %v6235
    %8330 = vmatpush2.bf16.msra.mxu0 %v6234
    %8331 = vmatprep.subr.bf16.mxu0 %v6222
    %8332 = vmatpush2.bf16.msra.mxu0 %v6221
    %8333 = vmatprep.subr.bf16.mxu0 %v6209
    %8334 = vmatpush2.bf16.msra.mxu0 %v6208
    %8335 = vmatprep.subr.bf16.mxu0 %v6196
    %8336 = vmatpush2.bf16.msra.mxu0 %v6195
    %8337 = vmatprep.subr.bf16.mxu0 %v6183
    %8338 = vmatpush2.bf16.msra.mxu0 %v6182
    %8339 = vmatprep.subr.bf16.mxu0 %v6170
    %8340 = vmatpush2.bf16.msra.mxu0 %v6169
    %8341 = vmatprep.subr.bf16.mxu0 %v6157
    %8342 = vmatpush2.bf16.msra.mxu0 %v6156
    %8343 = vmatprep.subr.bf16.mxu0 %v6144
    %8344 = vmatpush2.bf16.msra.mxu0 %v6143
    %8345 = vmatprep.mubr.bf16.mxu0 %v109
    %8346 = vmatmul.mubr.bf16.gmra.mxu0 %v108
    %v8347 = vpop.f32.mrf.mxu0
    %v8348 = vadd.f32 %v8305, %v8347
    %v8349 = vpop.f32.mrf.mxu0
    %v8350 = vadd.f32 %v8307, %v8349
    %v8351 = vpop.f32.mrf.mxu0
    %v8352 = vadd.f32 %v8309, %v8351
    %v8353 = vpop.f32.mrf.mxu0
    %v8354 = vadd.f32 %v8311, %v8353
    %8355 = vdwg.mxu0
    %8356 = vmatprep.subr.bf16.mxu0 %v6339
    %8357 = vmatpush1.bf16.msra.mxu0 %v6338
    %8358 = vmatprep.subr.bf16.mxu0 %v6326
    %8359 = vmatpush1.bf16.msra.mxu0 %v6325
    %8360 = vmatprep.subr.bf16.mxu0 %v6313
    %8361 = vmatpush1.bf16.msra.mxu0 %v6312
    %8362 = vmatprep.subr.bf16.mxu0 %v6300
    %8363 = vmatpush1.bf16.msra.mxu0 %v6299
    %8364 = vmatprep.subr.bf16.mxu0 %v6287
    %8365 = vmatpush1.bf16.msra.mxu0 %v6286
    %8366 = vmatprep.subr.bf16.mxu0 %v6274
    %8367 = vmatpush1.bf16.msra.mxu0 %v6273
    %8368 = vmatprep.subr.bf16.mxu0 %v6261
    %8369 = vmatpush1.bf16.msra.mxu0 %v6260
    %8370 = vmatprep.subr.bf16.mxu0 %v6248
    %8371 = vmatpush1.bf16.msra.mxu0 %v6247
    %8372 = vmatprep.subr.bf16.mxu0 0
    %8373 = vmatpush2.bf16.msra.mxu0 0
    %8374 = vmatprep.subr.bf16.mxu0 0
    %8375 = vmatpush2.bf16.msra.mxu0 0
    %8376 = vmatprep.subr.bf16.mxu0 0
    %8377 = vmatpush2.bf16.msra.mxu0 0
    %8378 = vmatprep.subr.bf16.mxu0 %v6404
    %8379 = vmatpush2.bf16.msra.mxu0 %v6403
    %8380 = vmatprep.subr.bf16.mxu0 %v6391
    %8381 = vmatpush2.bf16.msra.mxu0 %v6390
    %8382 = vmatprep.subr.bf16.mxu0 %v6378
    %8383 = vmatpush2.bf16.msra.mxu0 %v6377
    %8384 = vmatprep.subr.bf16.mxu0 %v6365
    %8385 = vmatpush2.bf16.msra.mxu0 %v6364
    %8386 = vmatprep.subr.bf16.mxu0 %v6352
    %8387 = vmatpush2.bf16.msra.mxu0 %v6351
    %8388 = vmatprep.mubr.bf16.mxu0 %v7623
    %8389 = vmatmul.mubr.bf16.gmra.mxu0 %v110
    %v8390 = vpop.f32.mrf.mxu0
    %v8391 = vadd.f32 %v8348, %v8390
    %v8392 = vpop.f32.mrf.mxu0
    %v8393 = vadd.f32 %v8350, %v8392
    %v8394 = vpop.f32.mrf.mxu0
    %v8395 = vadd.f32 %v8352, %v8394
    %v8396 = vpop.f32.mrf.mxu0
    %v8397 = vadd.f32 %v8354, %v8396
    %8398 = vdwg.mxu0
    %8399 = vmatprep.subr.bf16.mxu0 %v5301
    %8400 = vmatpush1.bf16.msra.mxu0 %v5300
    %8401 = vmatprep.subr.bf16.mxu0 %v5288
    %8402 = vmatpush1.bf16.msra.mxu0 %v5287
    %8403 = vmatprep.subr.bf16.mxu0 %v5275
    %8404 = vmatpush1.bf16.msra.mxu0 %v5274
    %8405 = vmatprep.subr.bf16.mxu0 %v5262
    %8406 = vmatpush1.bf16.msra.mxu0 %v5261
    %8407 = vmatprep.subr.bf16.mxu0 %v5249
    %8408 = vmatpush1.bf16.msra.mxu0 %v5248
    %8409 = vmatprep.subr.bf16.mxu0 %v5236
    %8410 = vmatpush1.bf16.msra.mxu0 %v5235
    %8411 = vmatprep.subr.bf16.mxu0 %v5223
    %8412 = vmatpush1.bf16.msra.mxu0 %v5222
    %8413 = vmatprep.subr.bf16.mxu0 %v5210
    %8414 = vmatpush1.bf16.msra.mxu0 %v5209
    %8415 = vmatprep.subr.bf16.mxu0 %v5405
    %8416 = vmatpush2.bf16.msra.mxu0 %v5404
    %8417 = vmatprep.subr.bf16.mxu0 %v5392
    %8418 = vmatpush2.bf16.msra.mxu0 %v5391
    %8419 = vmatprep.subr.bf16.mxu0 %v5379
    %8420 = vmatpush2.bf16.msra.mxu0 %v5378
    %8421 = vmatprep.subr.bf16.mxu0 %v5366
    %8422 = vmatpush2.bf16.msra.mxu0 %v5365
    %8423 = vmatprep.subr.bf16.mxu0 %v5353
    %8424 = vmatpush2.bf16.msra.mxu0 %v5352
    %8425 = vmatprep.subr.bf16.mxu0 %v5340
    %8426 = vmatpush2.bf16.msra.mxu0 %v5339
    %8427 = vmatprep.subr.bf16.mxu0 %v5327
    %8428 = vmatpush2.bf16.msra.mxu0 %v5326
    %8429 = vmatprep.subr.bf16.mxu0 %v5314
    %8430 = vmatpush2.bf16.msra.mxu0 %v5313
    %8431 = vmatprep.mubr.bf16.mxu0 %v101
    %8432 = vmatmul.mubr.bf16.gmra.mxu0 %v100
    %v8433 = vpop.f32.mrf.mxu0
    %v8434 = vadd.f32 %v1445, %v8433
    %v8435 = vpop.f32.mrf.mxu0
    %v8436 = vadd.f32 %v1449, %v8435
    %v8437 = vpop.f32.mrf.mxu0
    %v8438 = vadd.f32 %v1445, %v8437
    %v8439 = vpop.f32.mrf.mxu0
    %v8440 = vadd.f32 %v1449, %v8439
    %8441 = vdwg.mxu0
    %8442 = vmatprep.subr.bf16.mxu0 %v5509
    %8443 = vmatpush1.bf16.msra.mxu0 %v5508
    %8444 = vmatprep.subr.bf16.mxu0 %v5496
    %8445 = vmatpush1.bf16.msra.mxu0 %v5495
    %8446 = vmatprep.subr.bf16.mxu0 %v5483
    %8447 = vmatpush1.bf16.msra.mxu0 %v5482
    %8448 = vmatprep.subr.bf16.mxu0 %v5470
    %8449 = vmatpush1.bf16.msra.mxu0 %v5469
    %8450 = vmatprep.subr.bf16.mxu0 %v5457
    %8451 = vmatpush1.bf16.msra.mxu0 %v5456
    %8452 = vmatprep.subr.bf16.mxu0 %v5444
    %8453 = vmatpush1.bf16.msra.mxu0 %v5443
    %8454 = vmatprep.subr.bf16.mxu0 %v5431
    %8455 = vmatpush1.bf16.msra.mxu0 %v5430
    %8456 = vmatprep.subr.bf16.mxu0 %v5418
    %8457 = vmatpush1.bf16.msra.mxu0 %v5417
    %8458 = vmatprep.subr.bf16.mxu0 %v5613
    %8459 = vmatpush2.bf16.msra.mxu0 %v5612
    %8460 = vmatprep.subr.bf16.mxu0 %v5600
    %8461 = vmatpush2.bf16.msra.mxu0 %v5599
    %8462 = vmatprep.subr.bf16.mxu0 %v5587
    %8463 = vmatpush2.bf16.msra.mxu0 %v5586
    %8464 = vmatprep.subr.bf16.mxu0 %v5574
    %8465 = vmatpush2.bf16.msra.mxu0 %v5573
    %8466 = vmatprep.subr.bf16.mxu0 %v5561
    %8467 = vmatpush2.bf16.msra.mxu0 %v5560
    %8468 = vmatprep.subr.bf16.mxu0 %v5548
    %8469 = vmatpush2.bf16.msra.mxu0 %v5547
    %8470 = vmatprep.subr.bf16.mxu0 %v5535
    %8471 = vmatpush2.bf16.msra.mxu0 %v5534
    %8472 = vmatprep.subr.bf16.mxu0 %v5522
    %8473 = vmatpush2.bf16.msra.mxu0 %v5521
    %8474 = vmatprep.mubr.bf16.mxu0 %v103
    %8475 = vmatmul.mubr.bf16.gmra.mxu0 %v102
    %v8476 = vpop.f32.mrf.mxu0
    %v8477 = vadd.f32 %v8434, %v8476
    %v8478 = vpop.f32.mrf.mxu0
    %v8479 = vadd.f32 %v8436, %v8478
    %v8480 = vpop.f32.mrf.mxu0
    %v8481 = vadd.f32 %v8438, %v8480
    %v8482 = vpop.f32.mrf.mxu0
    %v8483 = vadd.f32 %v8440, %v8482
    %8484 = vdwg.mxu0
    %8485 = vmatprep.subr.bf16.mxu0 %v5717
    %8486 = vmatpush1.bf16.msra.mxu0 %v5716
    %8487 = vmatprep.subr.bf16.mxu0 %v5704
    %8488 = vmatpush1.bf16.msra.mxu0 %v5703
    %8489 = vmatprep.subr.bf16.mxu0 %v5691
    %8490 = vmatpush1.bf16.msra.mxu0 %v5690
    %8491 = vmatprep.subr.bf16.mxu0 %v5678
    %8492 = vmatpush1.bf16.msra.mxu0 %v5677
    %8493 = vmatprep.subr.bf16.mxu0 %v5665
    %8494 = vmatpush1.bf16.msra.mxu0 %v5664
    %8495 = vmatprep.subr.bf16.mxu0 %v5652
    %8496 = vmatpush1.bf16.msra.mxu0 %v5651
    %8497 = vmatprep.subr.bf16.mxu0 %v5639
    %8498 = vmatpush1.bf16.msra.mxu0 %v5638
    %8499 = vmatprep.subr.bf16.mxu0 %v5626
    %8500 = vmatpush1.bf16.msra.mxu0 %v5625
    %8501 = vmatprep.subr.bf16.mxu0 %v5821
    %8502 = vmatpush2.bf16.msra.mxu0 %v5820
    %8503 = vmatprep.subr.bf16.mxu0 %v5808
    %8504 = vmatpush2.bf16.msra.mxu0 %v5807
    %8505 = vmatprep.subr.bf16.mxu0 %v5795
    %8506 = vmatpush2.bf16.msra.mxu0 %v5794
    %8507 = vmatprep.subr.bf16.mxu0 %v5782
    %8508 = vmatpush2.bf16.msra.mxu0 %v5781
    %8509 = vmatprep.subr.bf16.mxu0 %v5769
    %8510 = vmatpush2.bf16.msra.mxu0 %v5768
    %8511 = vmatprep.subr.bf16.mxu0 %v5756
    %8512 = vmatpush2.bf16.msra.mxu0 %v5755
    %8513 = vmatprep.subr.bf16.mxu0 %v5743
    %8514 = vmatpush2.bf16.msra.mxu0 %v5742
    %8515 = vmatprep.subr.bf16.mxu0 %v5730
    %8516 = vmatpush2.bf16.msra.mxu0 %v5729
    %8517 = vmatprep.mubr.bf16.mxu0 %v105
    %8518 = vmatmul.mubr.bf16.gmra.mxu0 %v104
    %v8519 = vpop.f32.mrf.mxu0
    %v8520 = vadd.f32 %v8477, %v8519
    %v8521 = vpop.f32.mrf.mxu0
    %v8522 = vadd.f32 %v8479, %v8521
    %v8523 = vpop.f32.mrf.mxu0
    %v8524 = vadd.f32 %v8481, %v8523
    %v8525 = vpop.f32.mrf.mxu0
    %v8526 = vadd.f32 %v8483, %v8525
    %8527 = vdwg.mxu0
    %8528 = vmatprep.subr.bf16.mxu0 %v5925
    %8529 = vmatpush1.bf16.msra.mxu0 %v5924
    %8530 = vmatprep.subr.bf16.mxu0 %v5912
    %8531 = vmatpush1.bf16.msra.mxu0 %v5911
    %8532 = vmatprep.subr.bf16.mxu0 %v5899
    %8533 = vmatpush1.bf16.msra.mxu0 %v5898
    %8534 = vmatprep.subr.bf16.mxu0 %v5886
    %8535 = vmatpush1.bf16.msra.mxu0 %v5885
    %8536 = vmatprep.subr.bf16.mxu0 %v5873
    %8537 = vmatpush1.bf16.msra.mxu0 %v5872
    %8538 = vmatprep.subr.bf16.mxu0 %v5860
    %8539 = vmatpush1.bf16.msra.mxu0 %v5859
    %8540 = vmatprep.subr.bf16.mxu0 %v5847
    %8541 = vmatpush1.bf16.msra.mxu0 %v5846
    %8542 = vmatprep.subr.bf16.mxu0 %v5834
    %8543 = vmatpush1.bf16.msra.mxu0 %v5833
    %8544 = vmatprep.subr.bf16.mxu0 %v6029
    %8545 = vmatpush2.bf16.msra.mxu0 %v6028
    %8546 = vmatprep.subr.bf16.mxu0 %v6016
    %8547 = vmatpush2.bf16.msra.mxu0 %v6015
    %8548 = vmatprep.subr.bf16.mxu0 %v6003
    %8549 = vmatpush2.bf16.msra.mxu0 %v6002
    %8550 = vmatprep.subr.bf16.mxu0 %v5990
    %8551 = vmatpush2.bf16.msra.mxu0 %v5989
    %8552 = vmatprep.subr.bf16.mxu0 %v5977
    %8553 = vmatpush2.bf16.msra.mxu0 %v5976
    %8554 = vmatprep.subr.bf16.mxu0 %v5964
    %8555 = vmatpush2.bf16.msra.mxu0 %v5963
    %8556 = vmatprep.subr.bf16.mxu0 %v5951
    %8557 = vmatpush2.bf16.msra.mxu0 %v5950
    %8558 = vmatprep.subr.bf16.mxu0 %v5938
    %8559 = vmatpush2.bf16.msra.mxu0 %v5937
    %8560 = vmatprep.mubr.bf16.mxu0 %v107
    %8561 = vmatmul.mubr.bf16.gmra.mxu0 %v106
    %v8562 = vpop.f32.mrf.mxu0
    %v8563 = vadd.f32 %v8520, %v8562
    %v8564 = vpop.f32.mrf.mxu0
    %v8565 = vadd.f32 %v8522, %v8564
    %v8566 = vpop.f32.mrf.mxu0
    %v8567 = vadd.f32 %v8524, %v8566
    %v8568 = vpop.f32.mrf.mxu0
    %v8569 = vadd.f32 %v8526, %v8568
    %8570 = vdwg.mxu0
    %8571 = vmatprep.subr.bf16.mxu0 %v6133
    %8572 = vmatpush1.bf16.msra.mxu0 %v6132
    %8573 = vmatprep.subr.bf16.mxu0 %v6120
    %8574 = vmatpush1.bf16.msra.mxu0 %v6119
    %8575 = vmatprep.subr.bf16.mxu0 %v6107
    %8576 = vmatpush1.bf16.msra.mxu0 %v6106
    %8577 = vmatprep.subr.bf16.mxu0 %v6094
    %8578 = vmatpush1.bf16.msra.mxu0 %v6093
    %8579 = vmatprep.subr.bf16.mxu0 %v6081
    %8580 = vmatpush1.bf16.msra.mxu0 %v6080
    %8581 = vmatprep.subr.bf16.mxu0 %v6068
    %8582 = vmatpush1.bf16.msra.mxu0 %v6067
    %8583 = vmatprep.subr.bf16.mxu0 %v6055
    %8584 = vmatpush1.bf16.msra.mxu0 %v6054
    %8585 = vmatprep.subr.bf16.mxu0 %v6042
    %8586 = vmatpush1.bf16.msra.mxu0 %v6041
    %8587 = vmatprep.subr.bf16.mxu0 %v6237
    %8588 = vmatpush2.bf16.msra.mxu0 %v6236
    %8589 = vmatprep.subr.bf16.mxu0 %v6224
    %8590 = vmatpush2.bf16.msra.mxu0 %v6223
    %8591 = vmatprep.subr.bf16.mxu0 %v6211
    %8592 = vmatpush2.bf16.msra.mxu0 %v6210
    %8593 = vmatprep.subr.bf16.mxu0 %v6198
    %8594 = vmatpush2.bf16.msra.mxu0 %v6197
    %8595 = vmatprep.subr.bf16.mxu0 %v6185
    %8596 = vmatpush2.bf16.msra.mxu0 %v6184
    %8597 = vmatprep.subr.bf16.mxu0 %v6172
    %8598 = vmatpush2.bf16.msra.mxu0 %v6171
    %8599 = vmatprep.subr.bf16.mxu0 %v6159
    %8600 = vmatpush2.bf16.msra.mxu0 %v6158
    %8601 = vmatprep.subr.bf16.mxu0 %v6146
    %8602 = vmatpush2.bf16.msra.mxu0 %v6145
    %8603 = vmatprep.mubr.bf16.mxu0 %v109
    %8604 = vmatmul.mubr.bf16.gmra.mxu0 %v108
    %v8605 = vpop.f32.mrf.mxu0
    %v8606 = vadd.f32 %v8563, %v8605
    %v8607 = vpop.f32.mrf.mxu0
    %v8608 = vadd.f32 %v8565, %v8607
    %v8609 = vpop.f32.mrf.mxu0
    %v8610 = vadd.f32 %v8567, %v8609
    %v8611 = vpop.f32.mrf.mxu0
    %v8612 = vadd.f32 %v8569, %v8611
    %8613 = vdwg.mxu0
    %8614 = vmatprep.subr.bf16.mxu0 %v6341
    %8615 = vmatpush1.bf16.msra.mxu0 %v6340
    %8616 = vmatprep.subr.bf16.mxu0 %v6328
    %8617 = vmatpush1.bf16.msra.mxu0 %v6327
    %8618 = vmatprep.subr.bf16.mxu0 %v6315
    %8619 = vmatpush1.bf16.msra.mxu0 %v6314
    %8620 = vmatprep.subr.bf16.mxu0 %v6302
    %8621 = vmatpush1.bf16.msra.mxu0 %v6301
    %8622 = vmatprep.subr.bf16.mxu0 %v6289
    %8623 = vmatpush1.bf16.msra.mxu0 %v6288
    %8624 = vmatprep.subr.bf16.mxu0 %v6276
    %8625 = vmatpush1.bf16.msra.mxu0 %v6275
    %8626 = vmatprep.subr.bf16.mxu0 %v6263
    %8627 = vmatpush1.bf16.msra.mxu0 %v6262
    %8628 = vmatprep.subr.bf16.mxu0 %v6250
    %8629 = vmatpush1.bf16.msra.mxu0 %v6249
    %8630 = vmatprep.subr.bf16.mxu0 0
    %8631 = vmatpush2.bf16.msra.mxu0 0
    %8632 = vmatprep.subr.bf16.mxu0 0
    %8633 = vmatpush2.bf16.msra.mxu0 0
    %8634 = vmatprep.subr.bf16.mxu0 0
    %8635 = vmatpush2.bf16.msra.mxu0 0
    %8636 = vmatprep.subr.bf16.mxu0 %v6406
    %8637 = vmatpush2.bf16.msra.mxu0 %v6405
    %8638 = vmatprep.subr.bf16.mxu0 %v6393
    %8639 = vmatpush2.bf16.msra.mxu0 %v6392
    %8640 = vmatprep.subr.bf16.mxu0 %v6380
    %8641 = vmatpush2.bf16.msra.mxu0 %v6379
    %8642 = vmatprep.subr.bf16.mxu0 %v6367
    %8643 = vmatpush2.bf16.msra.mxu0 %v6366
    %8644 = vmatprep.subr.bf16.mxu0 %v6354
    %8645 = vmatpush2.bf16.msra.mxu0 %v6353
    %8646 = vmatprep.mubr.bf16.mxu0 %v7623
    %8647 = vmatmul.mubr.bf16.gmra.mxu0 %v110
    %v8648 = vpop.f32.mrf.mxu0
    %v8649 = vadd.f32 %v8606, %v8648
    %v8650 = vpop.f32.mrf.mxu0
    %v8651 = vadd.f32 %v8608, %v8650
    %v8652 = vpop.f32.mrf.mxu0
    %v8653 = vadd.f32 %v8610, %v8652
    %v8654 = vpop.f32.mrf.mxu0
    %v8655 = vadd.f32 %v8612, %v8654
    %8656 = vdwg.mxu0
    %8657 = vmatprep.subr.bf16.mxu0 %v5303
    %8658 = vmatpush1.bf16.msra.mxu0 %v5302
    %8659 = vmatprep.subr.bf16.mxu0 %v5290
    %8660 = vmatpush1.bf16.msra.mxu0 %v5289
    %8661 = vmatprep.subr.bf16.mxu0 %v5277
    %8662 = vmatpush1.bf16.msra.mxu0 %v5276
    %8663 = vmatprep.subr.bf16.mxu0 %v5264
    %8664 = vmatpush1.bf16.msra.mxu0 %v5263
    %8665 = vmatprep.subr.bf16.mxu0 %v5251
    %8666 = vmatpush1.bf16.msra.mxu0 %v5250
    %8667 = vmatprep.subr.bf16.mxu0 %v5238
    %8668 = vmatpush1.bf16.msra.mxu0 %v5237
    %8669 = vmatprep.subr.bf16.mxu0 %v5225
    %8670 = vmatpush1.bf16.msra.mxu0 %v5224
    %8671 = vmatprep.subr.bf16.mxu0 %v5212
    %8672 = vmatpush1.bf16.msra.mxu0 %v5211
    %8673 = vmatprep.subr.bf16.mxu0 %v5407
    %8674 = vmatpush2.bf16.msra.mxu0 %v5406
    %8675 = vmatprep.subr.bf16.mxu0 %v5394
    %8676 = vmatpush2.bf16.msra.mxu0 %v5393
    %8677 = vmatprep.subr.bf16.mxu0 %v5381
    %8678 = vmatpush2.bf16.msra.mxu0 %v5380
    %8679 = vmatprep.subr.bf16.mxu0 %v5368
    %8680 = vmatpush2.bf16.msra.mxu0 %v5367
    %8681 = vmatprep.subr.bf16.mxu0 %v5355
    %8682 = vmatpush2.bf16.msra.mxu0 %v5354
    %8683 = vmatprep.subr.bf16.mxu0 %v5342
    %8684 = vmatpush2.bf16.msra.mxu0 %v5341
    %8685 = vmatprep.subr.bf16.mxu0 %v5329
    %8686 = vmatpush2.bf16.msra.mxu0 %v5328
    %8687 = vmatprep.subr.bf16.mxu0 %v5316
    %8688 = vmatpush2.bf16.msra.mxu0 %v5315
    %8689 = vmatprep.mubr.bf16.mxu0 %v101
    %8690 = vmatmul.mubr.bf16.gmra.mxu0 %v100
    %v8691 = vpop.f32.mrf.mxu0
    %v8692 = vadd.f32 %v1453, %v8691
    %v8693 = vpop.f32.mrf.mxu0
    %v8694 = vadd.f32 %v1457, %v8693
    %v8695 = vpop.f32.mrf.mxu0
    %v8696 = vadd.f32 %v1453, %v8695
    %v8697 = vpop.f32.mrf.mxu0
    %v8698 = vadd.f32 %v1457, %v8697
    %8699 = vdwg.mxu0
    %8700 = vmatprep.subr.bf16.mxu0 %v5511
    %8701 = vmatpush1.bf16.msra.mxu0 %v5510
    %8702 = vmatprep.subr.bf16.mxu0 %v5498
    %8703 = vmatpush1.bf16.msra.mxu0 %v5497
    %8704 = vmatprep.subr.bf16.mxu0 %v5485
    %8705 = vmatpush1.bf16.msra.mxu0 %v5484
    %8706 = vmatprep.subr.bf16.mxu0 %v5472
    %8707 = vmatpush1.bf16.msra.mxu0 %v5471
    %8708 = vmatprep.subr.bf16.mxu0 %v5459
    %8709 = vmatpush1.bf16.msra.mxu0 %v5458
    %8710 = vmatprep.subr.bf16.mxu0 %v5446
    %8711 = vmatpush1.bf16.msra.mxu0 %v5445
    %8712 = vmatprep.subr.bf16.mxu0 %v5433
    %8713 = vmatpush1.bf16.msra.mxu0 %v5432
    %8714 = vmatprep.subr.bf16.mxu0 %v5420
    %8715 = vmatpush1.bf16.msra.mxu0 %v5419
    %8716 = vmatprep.subr.bf16.mxu0 %v5615
    %8717 = vmatpush2.bf16.msra.mxu0 %v5614
    %8718 = vmatprep.subr.bf16.mxu0 %v5602
    %8719 = vmatpush2.bf16.msra.mxu0 %v5601
    %8720 = vmatprep.subr.bf16.mxu0 %v5589
    %8721 = vmatpush2.bf16.msra.mxu0 %v5588
    %8722 = vmatprep.subr.bf16.mxu0 %v5576
    %8723 = vmatpush2.bf16.msra.mxu0 %v5575
    %8724 = vmatprep.subr.bf16.mxu0 %v5563
    %8725 = vmatpush2.bf16.msra.mxu0 %v5562
    %8726 = vmatprep.subr.bf16.mxu0 %v5550
    %8727 = vmatpush2.bf16.msra.mxu0 %v5549
    %8728 = vmatprep.subr.bf16.mxu0 %v5537
    %8729 = vmatpush2.bf16.msra.mxu0 %v5536
    %8730 = vmatprep.subr.bf16.mxu0 %v5524
    %8731 = vmatpush2.bf16.msra.mxu0 %v5523
    %8732 = vmatprep.mubr.bf16.mxu0 %v103
    %8733 = vmatmul.mubr.bf16.gmra.mxu0 %v102
    %v8734 = vpop.f32.mrf.mxu0
    %v8735 = vadd.f32 %v8692, %v8734
    %v8736 = vpop.f32.mrf.mxu0
    %v8737 = vadd.f32 %v8694, %v8736
    %v8738 = vpop.f32.mrf.mxu0
    %v8739 = vadd.f32 %v8696, %v8738
    %v8740 = vpop.f32.mrf.mxu0
    %v8741 = vadd.f32 %v8698, %v8740
    %8742 = vdwg.mxu0
    %8743 = vmatprep.subr.bf16.mxu0 %v5719
    %8744 = vmatpush1.bf16.msra.mxu0 %v5718
    %8745 = vmatprep.subr.bf16.mxu0 %v5706
    %8746 = vmatpush1.bf16.msra.mxu0 %v5705
    %8747 = vmatprep.subr.bf16.mxu0 %v5693
    %8748 = vmatpush1.bf16.msra.mxu0 %v5692
    %8749 = vmatprep.subr.bf16.mxu0 %v5680
    %8750 = vmatpush1.bf16.msra.mxu0 %v5679
    %8751 = vmatprep.subr.bf16.mxu0 %v5667
    %8752 = vmatpush1.bf16.msra.mxu0 %v5666
    %8753 = vmatprep.subr.bf16.mxu0 %v5654
    %8754 = vmatpush1.bf16.msra.mxu0 %v5653
    %8755 = vmatprep.subr.bf16.mxu0 %v5641
    %8756 = vmatpush1.bf16.msra.mxu0 %v5640
    %8757 = vmatprep.subr.bf16.mxu0 %v5628
    %8758 = vmatpush1.bf16.msra.mxu0 %v5627
    %8759 = vmatprep.subr.bf16.mxu0 %v5823
    %8760 = vmatpush2.bf16.msra.mxu0 %v5822
    %8761 = vmatprep.subr.bf16.mxu0 %v5810
    %8762 = vmatpush2.bf16.msra.mxu0 %v5809
    %8763 = vmatprep.subr.bf16.mxu0 %v5797
    %8764 = vmatpush2.bf16.msra.mxu0 %v5796
    %8765 = vmatprep.subr.bf16.mxu0 %v5784
    %8766 = vmatpush2.bf16.msra.mxu0 %v5783
    %8767 = vmatprep.subr.bf16.mxu0 %v5771
    %8768 = vmatpush2.bf16.msra.mxu0 %v5770
    %8769 = vmatprep.subr.bf16.mxu0 %v5758
    %8770 = vmatpush2.bf16.msra.mxu0 %v5757
    %8771 = vmatprep.subr.bf16.mxu0 %v5745
    %8772 = vmatpush2.bf16.msra.mxu0 %v5744
    %8773 = vmatprep.subr.bf16.mxu0 %v5732
    %8774 = vmatpush2.bf16.msra.mxu0 %v5731
    %8775 = vmatprep.mubr.bf16.mxu0 %v105
    %8776 = vmatmul.mubr.bf16.gmra.mxu0 %v104
    %v8777 = vpop.f32.mrf.mxu0
    %v8778 = vadd.f32 %v8735, %v8777
    %v8779 = vpop.f32.mrf.mxu0
    %v8780 = vadd.f32 %v8737, %v8779
    %v8781 = vpop.f32.mrf.mxu0
    %v8782 = vadd.f32 %v8739, %v8781
    %v8783 = vpop.f32.mrf.mxu0
    %v8784 = vadd.f32 %v8741, %v8783
    %8785 = vdwg.mxu0
    %8786 = vmatprep.subr.bf16.mxu0 %v5927
    %8787 = vmatpush1.bf16.msra.mxu0 %v5926
    %8788 = vmatprep.subr.bf16.mxu0 %v5914
    %8789 = vmatpush1.bf16.msra.mxu0 %v5913
    %8790 = vmatprep.subr.bf16.mxu0 %v5901
    %8791 = vmatpush1.bf16.msra.mxu0 %v5900
    %8792 = vmatprep.subr.bf16.mxu0 %v5888
    %8793 = vmatpush1.bf16.msra.mxu0 %v5887
    %8794 = vmatprep.subr.bf16.mxu0 %v5875
    %8795 = vmatpush1.bf16.msra.mxu0 %v5874
    %8796 = vmatprep.subr.bf16.mxu0 %v5862
    %8797 = vmatpush1.bf16.msra.mxu0 %v5861
    %8798 = vmatprep.subr.bf16.mxu0 %v5849
    %8799 = vmatpush1.bf16.msra.mxu0 %v5848
    %8800 = vmatprep.subr.bf16.mxu0 %v5836
    %8801 = vmatpush1.bf16.msra.mxu0 %v5835
    %8802 = vmatprep.subr.bf16.mxu0 %v6031
    %8803 = vmatpush2.bf16.msra.mxu0 %v6030
    %8804 = vmatprep.subr.bf16.mxu0 %v6018
    %8805 = vmatpush2.bf16.msra.mxu0 %v6017
    %8806 = vmatprep.subr.bf16.mxu0 %v6005
    %8807 = vmatpush2.bf16.msra.mxu0 %v6004
    %8808 = vmatprep.subr.bf16.mxu0 %v5992
    %8809 = vmatpush2.bf16.msra.mxu0 %v5991
    %8810 = vmatprep.subr.bf16.mxu0 %v5979
    %8811 = vmatpush2.bf16.msra.mxu0 %v5978
    %8812 = vmatprep.subr.bf16.mxu0 %v5966
    %8813 = vmatpush2.bf16.msra.mxu0 %v5965
    %8814 = vmatprep.subr.bf16.mxu0 %v5953
    %8815 = vmatpush2.bf16.msra.mxu0 %v5952
    %8816 = vmatprep.subr.bf16.mxu0 %v5940
    %8817 = vmatpush2.bf16.msra.mxu0 %v5939
    %8818 = vmatprep.mubr.bf16.mxu0 %v107
    %8819 = vmatmul.mubr.bf16.gmra.mxu0 %v106
    %v8820 = vpop.f32.mrf.mxu0
    %v8821 = vadd.f32 %v8778, %v8820
    %v8822 = vpop.f32.mrf.mxu0
    %v8823 = vadd.f32 %v8780, %v8822
    %v8824 = vpop.f32.mrf.mxu0
    %v8825 = vadd.f32 %v8782, %v8824
    %v8826 = vpop.f32.mrf.mxu0
    %v8827 = vadd.f32 %v8784, %v8826
    %8828 = vdwg.mxu0
    %8829 = vmatprep.subr.bf16.mxu0 %v6135
    %8830 = vmatpush1.bf16.msra.mxu0 %v6134
    %8831 = vmatprep.subr.bf16.mxu0 %v6122
    %8832 = vmatpush1.bf16.msra.mxu0 %v6121
    %8833 = vmatprep.subr.bf16.mxu0 %v6109
    %8834 = vmatpush1.bf16.msra.mxu0 %v6108
    %8835 = vmatprep.subr.bf16.mxu0 %v6096
    %8836 = vmatpush1.bf16.msra.mxu0 %v6095
    %8837 = vmatprep.subr.bf16.mxu0 %v6083
    %8838 = vmatpush1.bf16.msra.mxu0 %v6082
    %8839 = vmatprep.subr.bf16.mxu0 %v6070
    %8840 = vmatpush1.bf16.msra.mxu0 %v6069
    %8841 = vmatprep.subr.bf16.mxu0 %v6057
    %8842 = vmatpush1.bf16.msra.mxu0 %v6056
    %8843 = vmatprep.subr.bf16.mxu0 %v6044
    %8844 = vmatpush1.bf16.msra.mxu0 %v6043
    %8845 = vmatprep.subr.bf16.mxu0 %v6239
    %8846 = vmatpush2.bf16.msra.mxu0 %v6238
    %8847 = vmatprep.subr.bf16.mxu0 %v6226
    %8848 = vmatpush2.bf16.msra.mxu0 %v6225
    %8849 = vmatprep.subr.bf16.mxu0 %v6213
    %8850 = vmatpush2.bf16.msra.mxu0 %v6212
    %8851 = vmatprep.subr.bf16.mxu0 %v6200
    %8852 = vmatpush2.bf16.msra.mxu0 %v6199
    %8853 = vmatprep.subr.bf16.mxu0 %v6187
    %8854 = vmatpush2.bf16.msra.mxu0 %v6186
    %8855 = vmatprep.subr.bf16.mxu0 %v6174
    %8856 = vmatpush2.bf16.msra.mxu0 %v6173
    %8857 = vmatprep.subr.bf16.mxu0 %v6161
    %8858 = vmatpush2.bf16.msra.mxu0 %v6160
    %8859 = vmatprep.subr.bf16.mxu0 %v6148
    %8860 = vmatpush2.bf16.msra.mxu0 %v6147
    %8861 = vmatprep.mubr.bf16.mxu0 %v109
    %8862 = vmatmul.mubr.bf16.gmra.mxu0 %v108
    %v8863 = vpop.f32.mrf.mxu0
    %v8864 = vadd.f32 %v8821, %v8863
    %v8865 = vpop.f32.mrf.mxu0
    %v8866 = vadd.f32 %v8823, %v8865
    %v8867 = vpop.f32.mrf.mxu0
    %v8868 = vadd.f32 %v8825, %v8867
    %v8869 = vpop.f32.mrf.mxu0
    %v8870 = vadd.f32 %v8827, %v8869
    %8871 = vdwg.mxu0
    %8872 = vmatprep.subr.bf16.mxu0 %v6343
    %8873 = vmatpush1.bf16.msra.mxu0 %v6342
    %8874 = vmatprep.subr.bf16.mxu0 %v6330
    %8875 = vmatpush1.bf16.msra.mxu0 %v6329
    %8876 = vmatprep.subr.bf16.mxu0 %v6317
    %8877 = vmatpush1.bf16.msra.mxu0 %v6316
    %8878 = vmatprep.subr.bf16.mxu0 %v6304
    %8879 = vmatpush1.bf16.msra.mxu0 %v6303
    %8880 = vmatprep.subr.bf16.mxu0 %v6291
    %8881 = vmatpush1.bf16.msra.mxu0 %v6290
    %8882 = vmatprep.subr.bf16.mxu0 %v6278
    %8883 = vmatpush1.bf16.msra.mxu0 %v6277
    %8884 = vmatprep.subr.bf16.mxu0 %v6265
    %8885 = vmatpush1.bf16.msra.mxu0 %v6264
    %8886 = vmatprep.subr.bf16.mxu0 %v6252
    %8887 = vmatpush1.bf16.msra.mxu0 %v6251
    %8888 = vmatprep.subr.bf16.mxu0 0
    %8889 = vmatpush2.bf16.msra.mxu0 0
    %8890 = vmatprep.subr.bf16.mxu0 0
    %8891 = vmatpush2.bf16.msra.mxu0 0
    %8892 = vmatprep.subr.bf16.mxu0 0
    %8893 = vmatpush2.bf16.msra.mxu0 0
    %8894 = vmatprep.subr.bf16.mxu0 %v6408
    %8895 = vmatpush2.bf16.msra.mxu0 %v6407
    %8896 = vmatprep.subr.bf16.mxu0 %v6395
    %8897 = vmatpush2.bf16.msra.mxu0 %v6394
    %8898 = vmatprep.subr.bf16.mxu0 %v6382
    %8899 = vmatpush2.bf16.msra.mxu0 %v6381
    %8900 = vmatprep.subr.bf16.mxu0 %v6369
    %8901 = vmatpush2.bf16.msra.mxu0 %v6368
    %8902 = vmatprep.subr.bf16.mxu0 %v6356
    %8903 = vmatpush2.bf16.msra.mxu0 %v6355
    %8904 = vmatprep.mubr.bf16.mxu0 %v7623
    %8905 = vmatmul.mubr.bf16.gmra.mxu0 %v110
    %v8906 = vpop.f32.mrf.mxu0
    %v8907 = vadd.f32 %v8864, %v8906
    %v8908 = vpop.f32.mrf.mxu0
    %v8909 = vadd.f32 %v8866, %v8908
    %v8910 = vpop.f32.mrf.mxu0
    %v8911 = vadd.f32 %v8868, %v8910
    %v8912 = vpop.f32.mrf.mxu0
    %v8913 = vadd.f32 %v8870, %v8912
    %8914 = vdwg.mxu0
    %8915 = vmatprep.subr.bf16.mxu0 %v5305
    %8916 = vmatpush1.bf16.msra.mxu0 %v5304
    %8917 = vmatprep.subr.bf16.mxu0 %v5292
    %8918 = vmatpush1.bf16.msra.mxu0 %v5291
    %8919 = vmatprep.subr.bf16.mxu0 %v5279
    %8920 = vmatpush1.bf16.msra.mxu0 %v5278
    %8921 = vmatprep.subr.bf16.mxu0 %v5266
    %8922 = vmatpush1.bf16.msra.mxu0 %v5265
    %8923 = vmatprep.subr.bf16.mxu0 %v5253
    %8924 = vmatpush1.bf16.msra.mxu0 %v5252
    %8925 = vmatprep.subr.bf16.mxu0 %v5240
    %8926 = vmatpush1.bf16.msra.mxu0 %v5239
    %8927 = vmatprep.subr.bf16.mxu0 %v5227
    %8928 = vmatpush1.bf16.msra.mxu0 %v5226
    %8929 = vmatprep.subr.bf16.mxu0 %v5214
    %8930 = vmatpush1.bf16.msra.mxu0 %v5213
    %8931 = vmatprep.subr.bf16.mxu0 %v5409
    %8932 = vmatpush2.bf16.msra.mxu0 %v5408
    %8933 = vmatprep.subr.bf16.mxu0 %v5396
    %8934 = vmatpush2.bf16.msra.mxu0 %v5395
    %8935 = vmatprep.subr.bf16.mxu0 %v5383
    %8936 = vmatpush2.bf16.msra.mxu0 %v5382
    %8937 = vmatprep.subr.bf16.mxu0 %v5370
    %8938 = vmatpush2.bf16.msra.mxu0 %v5369
    %8939 = vmatprep.subr.bf16.mxu0 %v5357
    %8940 = vmatpush2.bf16.msra.mxu0 %v5356
    %8941 = vmatprep.subr.bf16.mxu0 %v5344
    %8942 = vmatpush2.bf16.msra.mxu0 %v5343
    %8943 = vmatprep.subr.bf16.mxu0 %v5331
    %8944 = vmatpush2.bf16.msra.mxu0 %v5330
    %8945 = vmatprep.subr.bf16.mxu0 %v5318
    %8946 = vmatpush2.bf16.msra.mxu0 %v5317
    %8947 = vmatprep.mubr.bf16.mxu0 %v101
    %8948 = vmatmul.mubr.bf16.gmra.mxu0 %v100
    %v8949 = vpop.f32.mrf.mxu0
    %v8950 = vadd.f32 %v1461, %v8949
    %v8951 = vpop.f32.mrf.mxu0
    %v8952 = vadd.f32 %v1465, %v8951
    %v8953 = vpop.f32.mrf.mxu0
    %v8954 = vadd.f32 %v1461, %v8953
    %v8955 = vpop.f32.mrf.mxu0
    %v8956 = vadd.f32 %v1465, %v8955
    %8957 = vdwg.mxu0
    %8958 = vmatprep.subr.bf16.mxu0 %v5513
    %8959 = vmatpush1.bf16.msra.mxu0 %v5512
    %8960 = vmatprep.subr.bf16.mxu0 %v5500
    %8961 = vmatpush1.bf16.msra.mxu0 %v5499
    %8962 = vmatprep.subr.bf16.mxu0 %v5487
    %8963 = vmatpush1.bf16.msra.mxu0 %v5486
    %8964 = vmatprep.subr.bf16.mxu0 %v5474
    %8965 = vmatpush1.bf16.msra.mxu0 %v5473
    %8966 = vmatprep.subr.bf16.mxu0 %v5461
    %8967 = vmatpush1.bf16.msra.mxu0 %v5460
    %8968 = vmatprep.subr.bf16.mxu0 %v5448
    %8969 = vmatpush1.bf16.msra.mxu0 %v5447
    %8970 = vmatprep.subr.bf16.mxu0 %v5435
    %8971 = vmatpush1.bf16.msra.mxu0 %v5434
    %8972 = vmatprep.subr.bf16.mxu0 %v5422
    %8973 = vmatpush1.bf16.msra.mxu0 %v5421
    %8974 = vmatprep.subr.bf16.mxu0 %v5617
    %8975 = vmatpush2.bf16.msra.mxu0 %v5616
    %8976 = vmatprep.subr.bf16.mxu0 %v5604
    %8977 = vmatpush2.bf16.msra.mxu0 %v5603
    %8978 = vmatprep.subr.bf16.mxu0 %v5591
    %8979 = vmatpush2.bf16.msra.mxu0 %v5590
    %8980 = vmatprep.subr.bf16.mxu0 %v5578
    %8981 = vmatpush2.bf16.msra.mxu0 %v5577
    %8982 = vmatprep.subr.bf16.mxu0 %v5565
    %8983 = vmatpush2.bf16.msra.mxu0 %v5564
    %8984 = vmatprep.subr.bf16.mxu0 %v5552
    %8985 = vmatpush2.bf16.msra.mxu0 %v5551
    %8986 = vmatprep.subr.bf16.mxu0 %v5539
    %8987 = vmatpush2.bf16.msra.mxu0 %v5538
    %8988 = vmatprep.subr.bf16.mxu0 %v5526
    %8989 = vmatpush2.bf16.msra.mxu0 %v5525
    %8990 = vmatprep.mubr.bf16.mxu0 %v103
    %8991 = vmatmul.mubr.bf16.gmra.mxu0 %v102
    %v8992 = vpop.f32.mrf.mxu0
    %v8993 = vadd.f32 %v8950, %v8992
    %v8994 = vpop.f32.mrf.mxu0
    %v8995 = vadd.f32 %v8952, %v8994
    %v8996 = vpop.f32.mrf.mxu0
    %v8997 = vadd.f32 %v8954, %v8996
    %v8998 = vpop.f32.mrf.mxu0
    %v8999 = vadd.f32 %v8956, %v8998
    %9000 = vdwg.mxu0
    %9001 = vmatprep.subr.bf16.mxu0 %v5721
    %9002 = vmatpush1.bf16.msra.mxu0 %v5720
    %9003 = vmatprep.subr.bf16.mxu0 %v5708
    %9004 = vmatpush1.bf16.msra.mxu0 %v5707
    %9005 = vmatprep.subr.bf16.mxu0 %v5695
    %9006 = vmatpush1.bf16.msra.mxu0 %v5694
    %9007 = vmatprep.subr.bf16.mxu0 %v5682
    %9008 = vmatpush1.bf16.msra.mxu0 %v5681
    %9009 = vmatprep.subr.bf16.mxu0 %v5669
    %9010 = vmatpush1.bf16.msra.mxu0 %v5668
    %9011 = vmatprep.subr.bf16.mxu0 %v5656
    %9012 = vmatpush1.bf16.msra.mxu0 %v5655
    %9013 = vmatprep.subr.bf16.mxu0 %v5643
    %9014 = vmatpush1.bf16.msra.mxu0 %v5642
    %9015 = vmatprep.subr.bf16.mxu0 %v5630
    %9016 = vmatpush1.bf16.msra.mxu0 %v5629
    %9017 = vmatprep.subr.bf16.mxu0 %v5825
    %9018 = vmatpush2.bf16.msra.mxu0 %v5824
    %9019 = vmatprep.subr.bf16.mxu0 %v5812
    %9020 = vmatpush2.bf16.msra.mxu0 %v5811
    %9021 = vmatprep.subr.bf16.mxu0 %v5799
    %9022 = vmatpush2.bf16.msra.mxu0 %v5798
    %9023 = vmatprep.subr.bf16.mxu0 %v5786
    %9024 = vmatpush2.bf16.msra.mxu0 %v5785
    %9025 = vmatprep.subr.bf16.mxu0 %v5773
    %9026 = vmatpush2.bf16.msra.mxu0 %v5772
    %9027 = vmatprep.subr.bf16.mxu0 %v5760
    %9028 = vmatpush2.bf16.msra.mxu0 %v5759
    %9029 = vmatprep.subr.bf16.mxu0 %v5747
    %9030 = vmatpush2.bf16.msra.mxu0 %v5746
    %9031 = vmatprep.subr.bf16.mxu0 %v5734
    %9032 = vmatpush2.bf16.msra.mxu0 %v5733
    %9033 = vmatprep.mubr.bf16.mxu0 %v105
    %9034 = vmatmul.mubr.bf16.gmra.mxu0 %v104
    %v9035 = vpop.f32.mrf.mxu0
    %v9036 = vadd.f32 %v8993, %v9035
    %v9037 = vpop.f32.mrf.mxu0
    %v9038 = vadd.f32 %v8995, %v9037
    %v9039 = vpop.f32.mrf.mxu0
    %v9040 = vadd.f32 %v8997, %v9039
    %v9041 = vpop.f32.mrf.mxu0
    %v9042 = vadd.f32 %v8999, %v9041
    %9043 = vdwg.mxu0
    %9044 = vmatprep.subr.bf16.mxu0 %v5929
    %9045 = vmatpush1.bf16.msra.mxu0 %v5928
    %9046 = vmatprep.subr.bf16.mxu0 %v5916
    %9047 = vmatpush1.bf16.msra.mxu0 %v5915
    %9048 = vmatprep.subr.bf16.mxu0 %v5903
    %9049 = vmatpush1.bf16.msra.mxu0 %v5902
    %9050 = vmatprep.subr.bf16.mxu0 %v5890
    %9051 = vmatpush1.bf16.msra.mxu0 %v5889
    %9052 = vmatprep.subr.bf16.mxu0 %v5877
    %9053 = vmatpush1.bf16.msra.mxu0 %v5876
    %9054 = vmatprep.subr.bf16.mxu0 %v5864
    %9055 = vmatpush1.bf16.msra.mxu0 %v5863
    %9056 = vmatprep.subr.bf16.mxu0 %v5851
    %9057 = vmatpush1.bf16.msra.mxu0 %v5850
    %9058 = vmatprep.subr.bf16.mxu0 %v5838
    %9059 = vmatpush1.bf16.msra.mxu0 %v5837
    %9060 = vmatprep.subr.bf16.mxu0 %v6033
    %9061 = vmatpush2.bf16.msra.mxu0 %v6032
    %9062 = vmatprep.subr.bf16.mxu0 %v6020
    %9063 = vmatpush2.bf16.msra.mxu0 %v6019
    %9064 = vmatprep.subr.bf16.mxu0 %v6007
    %9065 = vmatpush2.bf16.msra.mxu0 %v6006
    %9066 = vmatprep.subr.bf16.mxu0 %v5994
    %9067 = vmatpush2.bf16.msra.mxu0 %v5993
    %9068 = vmatprep.subr.bf16.mxu0 %v5981
    %9069 = vmatpush2.bf16.msra.mxu0 %v5980
    %9070 = vmatprep.subr.bf16.mxu0 %v5968
    %9071 = vmatpush2.bf16.msra.mxu0 %v5967
    %9072 = vmatprep.subr.bf16.mxu0 %v5955
    %9073 = vmatpush2.bf16.msra.mxu0 %v5954
    %9074 = vmatprep.subr.bf16.mxu0 %v5942
    %9075 = vmatpush2.bf16.msra.mxu0 %v5941
    %9076 = vmatprep.mubr.bf16.mxu0 %v107
    %9077 = vmatmul.mubr.bf16.gmra.mxu0 %v106
    %v9078 = vpop.f32.mrf.mxu0
    %v9079 = vadd.f32 %v9036, %v9078
    %v9080 = vpop.f32.mrf.mxu0
    %v9081 = vadd.f32 %v9038, %v9080
    %v9082 = vpop.f32.mrf.mxu0
    %v9083 = vadd.f32 %v9040, %v9082
    %v9084 = vpop.f32.mrf.mxu0
    %v9085 = vadd.f32 %v9042, %v9084
    %9086 = vdwg.mxu0
    %9087 = vmatprep.subr.bf16.mxu0 %v6137
    %9088 = vmatpush1.bf16.msra.mxu0 %v6136
    %9089 = vmatprep.subr.bf16.mxu0 %v6124
    %9090 = vmatpush1.bf16.msra.mxu0 %v6123
    %9091 = vmatprep.subr.bf16.mxu0 %v6111
    %9092 = vmatpush1.bf16.msra.mxu0 %v6110
    %9093 = vmatprep.subr.bf16.mxu0 %v6098
    %9094 = vmatpush1.bf16.msra.mxu0 %v6097
    %9095 = vmatprep.subr.bf16.mxu0 %v6085
    %9096 = vmatpush1.bf16.msra.mxu0 %v6084
    %9097 = vmatprep.subr.bf16.mxu0 %v6072
    %9098 = vmatpush1.bf16.msra.mxu0 %v6071
    %9099 = vmatprep.subr.bf16.mxu0 %v6059
    %9100 = vmatpush1.bf16.msra.mxu0 %v6058
    %9101 = vmatprep.subr.bf16.mxu0 %v6046
    %9102 = vmatpush1.bf16.msra.mxu0 %v6045
    %9103 = vmatprep.subr.bf16.mxu0 %v6241
    %9104 = vmatpush2.bf16.msra.mxu0 %v6240
    %9105 = vmatprep.subr.bf16.mxu0 %v6228
    %9106 = vmatpush2.bf16.msra.mxu0 %v6227
    %9107 = vmatprep.subr.bf16.mxu0 %v6215
    %9108 = vmatpush2.bf16.msra.mxu0 %v6214
    %9109 = vmatprep.subr.bf16.mxu0 %v6202
    %9110 = vmatpush2.bf16.msra.mxu0 %v6201
    %9111 = vmatprep.subr.bf16.mxu0 %v6189
    %9112 = vmatpush2.bf16.msra.mxu0 %v6188
    %9113 = vmatprep.subr.bf16.mxu0 %v6176
    %9114 = vmatpush2.bf16.msra.mxu0 %v6175
    %9115 = vmatprep.subr.bf16.mxu0 %v6163
    %9116 = vmatpush2.bf16.msra.mxu0 %v6162
    %9117 = vmatprep.subr.bf16.mxu0 %v6150
    %9118 = vmatpush2.bf16.msra.mxu0 %v6149
    %9119 = vmatprep.mubr.bf16.mxu0 %v109
    %9120 = vmatmul.mubr.bf16.gmra.mxu0 %v108
    %v9121 = vpop.f32.mrf.mxu0
    %v9122 = vadd.f32 %v9079, %v9121
    %v9123 = vpop.f32.mrf.mxu0
    %v9124 = vadd.f32 %v9081, %v9123
    %v9125 = vpop.f32.mrf.mxu0
    %v9126 = vadd.f32 %v9083, %v9125
    %v9127 = vpop.f32.mrf.mxu0
    %v9128 = vadd.f32 %v9085, %v9127
    %9129 = vdwg.mxu0
    %9130 = vmatprep.subr.bf16.mxu0 %v6345
    %9131 = vmatpush1.bf16.msra.mxu0 %v6344
    %9132 = vmatprep.subr.bf16.mxu0 %v6332
    %9133 = vmatpush1.bf16.msra.mxu0 %v6331
    %9134 = vmatprep.subr.bf16.mxu0 %v6319
    %9135 = vmatpush1.bf16.msra.mxu0 %v6318
    %9136 = vmatprep.subr.bf16.mxu0 %v6306
    %9137 = vmatpush1.bf16.msra.mxu0 %v6305
    %9138 = vmatprep.subr.bf16.mxu0 %v6293
    %9139 = vmatpush1.bf16.msra.mxu0 %v6292
    %9140 = vmatprep.subr.bf16.mxu0 %v6280
    %9141 = vmatpush1.bf16.msra.mxu0 %v6279
    %9142 = vmatprep.subr.bf16.mxu0 %v6267
    %9143 = vmatpush1.bf16.msra.mxu0 %v6266
    %9144 = vmatprep.subr.bf16.mxu0 %v6254
    %9145 = vmatpush1.bf16.msra.mxu0 %v6253
    %9146 = vmatprep.subr.bf16.mxu0 0
    %9147 = vmatpush2.bf16.msra.mxu0 0
    %9148 = vmatprep.subr.bf16.mxu0 0
    %9149 = vmatpush2.bf16.msra.mxu0 0
    %9150 = vmatprep.subr.bf16.mxu0 0
    %9151 = vmatpush2.bf16.msra.mxu0 0
    %9152 = vmatprep.subr.bf16.mxu0 %v6410
    %9153 = vmatpush2.bf16.msra.mxu0 %v6409
    %9154 = vmatprep.subr.bf16.mxu0 %v6397
    %9155 = vmatpush2.bf16.msra.mxu0 %v6396
    %9156 = vmatprep.subr.bf16.mxu0 %v6384
    %9157 = vmatpush2.bf16.msra.mxu0 %v6383
    %9158 = vmatprep.subr.bf16.mxu0 %v6371
    %9159 = vmatpush2.bf16.msra.mxu0 %v6370
    %9160 = vmatprep.subr.bf16.mxu0 %v6358
    %9161 = vmatpush2.bf16.msra.mxu0 %v6357
    %9162 = vmatprep.mubr.bf16.mxu0 %v7623
    %9163 = vmatmul.mubr.bf16.gmra.mxu0 %v110
    %v9164 = vpop.f32.mrf.mxu0
    %v9165 = vadd.f32 %v9122, %v9164
    %v9166 = vpop.f32.mrf.mxu0
    %v9167 = vadd.f32 %v9124, %v9166
    %v9168 = vpop.f32.mrf.mxu0
    %v9169 = vadd.f32 %v9126, %v9168
    %v9170 = vpop.f32.mrf.mxu0
    %v9171 = vadd.f32 %v9128, %v9170
    %9172 = vdwg.mxu0
    %9173 = vmatprep.subr.bf16.mxu0 0
    %9174 = vmatpush1.bf16.msra.mxu0 %v5306
    %9175 = vmatprep.subr.bf16.mxu0 0
    %9176 = vmatpush1.bf16.msra.mxu0 %v5293
    %9177 = vmatprep.subr.bf16.mxu0 0
    %9178 = vmatpush1.bf16.msra.mxu0 %v5280
    %9179 = vmatprep.subr.bf16.mxu0 0
    %9180 = vmatpush1.bf16.msra.mxu0 %v5267
    %9181 = vmatprep.subr.bf16.mxu0 0
    %9182 = vmatpush1.bf16.msra.mxu0 %v5254
    %9183 = vmatprep.subr.bf16.mxu0 0
    %9184 = vmatpush1.bf16.msra.mxu0 %v5241
    %9185 = vmatprep.subr.bf16.mxu0 0
    %9186 = vmatpush1.bf16.msra.mxu0 %v5228
    %9187 = vmatprep.subr.bf16.mxu0 0
    %9188 = vmatpush1.bf16.msra.mxu0 %v5215
    %9189 = vmatprep.subr.bf16.mxu0 0
    %9190 = vmatpush2.bf16.msra.mxu0 %v5410
    %9191 = vmatprep.subr.bf16.mxu0 0
    %9192 = vmatpush2.bf16.msra.mxu0 %v5397
    %9193 = vmatprep.subr.bf16.mxu0 0
    %9194 = vmatpush2.bf16.msra.mxu0 %v5384
    %9195 = vmatprep.subr.bf16.mxu0 0
    %9196 = vmatpush2.bf16.msra.mxu0 %v5371
    %9197 = vmatprep.subr.bf16.mxu0 0
    %9198 = vmatpush2.bf16.msra.mxu0 %v5358
    %9199 = vmatprep.subr.bf16.mxu0 0
    %9200 = vmatpush2.bf16.msra.mxu0 %v5345
    %9201 = vmatprep.subr.bf16.mxu0 0
    %9202 = vmatpush2.bf16.msra.mxu0 %v5332
    %9203 = vmatprep.subr.bf16.mxu0 0
    %9204 = vmatpush2.bf16.msra.mxu0 %v5319
    %9205 = vmatprep.mubr.bf16.mxu0 %v101
    %9206 = vmatmul.mubr.bf16.gmra.mxu0 %v100
    %v9207 = vpop.f32.mrf.mxu0
    %v9208 = vadd.f32 %v1469, %v9207
    %v9209 = vpop.f32.mrf.mxu0
    %v9210 = vpop.f32.mrf.mxu0
    %v9211 = vadd.f32 %v1469, %v9210
    %v9212 = vpop.f32.mrf.mxu0
    %9213 = vdwg.mxu0
    %9214 = vmatprep.subr.bf16.mxu0 0
    %9215 = vmatpush1.bf16.msra.mxu0 %v5514
    %9216 = vmatprep.subr.bf16.mxu0 0
    %9217 = vmatpush1.bf16.msra.mxu0 %v5501
    %9218 = vmatprep.subr.bf16.mxu0 0
    %9219 = vmatpush1.bf16.msra.mxu0 %v5488
    %9220 = vmatprep.subr.bf16.mxu0 0
    %9221 = vmatpush1.bf16.msra.mxu0 %v5475
    %9222 = vmatprep.subr.bf16.mxu0 0
    %9223 = vmatpush1.bf16.msra.mxu0 %v5462
    %9224 = vmatprep.subr.bf16.mxu0 0
    %9225 = vmatpush1.bf16.msra.mxu0 %v5449
    %9226 = vmatprep.subr.bf16.mxu0 0
    %9227 = vmatpush1.bf16.msra.mxu0 %v5436
    %9228 = vmatprep.subr.bf16.mxu0 0
    %9229 = vmatpush1.bf16.msra.mxu0 %v5423
    %9230 = vmatprep.subr.bf16.mxu0 0
    %9231 = vmatpush2.bf16.msra.mxu0 %v5618
    %9232 = vmatprep.subr.bf16.mxu0 0
    %9233 = vmatpush2.bf16.msra.mxu0 %v5605
    %9234 = vmatprep.subr.bf16.mxu0 0
    %9235 = vmatpush2.bf16.msra.mxu0 %v5592
    %9236 = vmatprep.subr.bf16.mxu0 0
    %9237 = vmatpush2.bf16.msra.mxu0 %v5579
    %9238 = vmatprep.subr.bf16.mxu0 0
    %9239 = vmatpush2.bf16.msra.mxu0 %v5566
    %9240 = vmatprep.subr.bf16.mxu0 0
    %9241 = vmatpush2.bf16.msra.mxu0 %v5553
    %9242 = vmatprep.subr.bf16.mxu0 0
    %9243 = vmatpush2.bf16.msra.mxu0 %v5540
    %9244 = vmatprep.subr.bf16.mxu0 0
    %9245 = vmatpush2.bf16.msra.mxu0 %v5527
    %9246 = vmatprep.mubr.bf16.mxu0 %v103
    %9247 = vmatmul.mubr.bf16.gmra.mxu0 %v102
    %v9248 = vpop.f32.mrf.mxu0
    %v9249 = vadd.f32 %v9208, %v9248
    %v9250 = vpop.f32.mrf.mxu0
    %v9251 = vpop.f32.mrf.mxu0
    %v9252 = vadd.f32 %v9211, %v9251
    %v9253 = vpop.f32.mrf.mxu0
    %9254 = vdwg.mxu0
    %9255 = vmatprep.subr.bf16.mxu0 0
    %9256 = vmatpush1.bf16.msra.mxu0 %v5722
    %9257 = vmatprep.subr.bf16.mxu0 0
    %9258 = vmatpush1.bf16.msra.mxu0 %v5709
    %9259 = vmatprep.subr.bf16.mxu0 0
    %9260 = vmatpush1.bf16.msra.mxu0 %v5696
    %9261 = vmatprep.subr.bf16.mxu0 0
    %9262 = vmatpush1.bf16.msra.mxu0 %v5683
    %9263 = vmatprep.subr.bf16.mxu0 0
    %9264 = vmatpush1.bf16.msra.mxu0 %v5670
    %9265 = vmatprep.subr.bf16.mxu0 0
    %9266 = vmatpush1.bf16.msra.mxu0 %v5657
    %9267 = vmatprep.subr.bf16.mxu0 0
    %9268 = vmatpush1.bf16.msra.mxu0 %v5644
    %9269 = vmatprep.subr.bf16.mxu0 0
    %9270 = vmatpush1.bf16.msra.mxu0 %v5631
    %9271 = vmatprep.subr.bf16.mxu0 0
    %9272 = vmatpush2.bf16.msra.mxu0 %v5826
    %9273 = vmatprep.subr.bf16.mxu0 0
    %9274 = vmatpush2.bf16.msra.mxu0 %v5813
    %9275 = vmatprep.subr.bf16.mxu0 0
    %9276 = vmatpush2.bf16.msra.mxu0 %v5800
    %9277 = vmatprep.subr.bf16.mxu0 0
    %9278 = vmatpush2.bf16.msra.mxu0 %v5787
    %9279 = vmatprep.subr.bf16.mxu0 0
    %9280 = vmatpush2.bf16.msra.mxu0 %v5774
    %9281 = vmatprep.subr.bf16.mxu0 0
    %9282 = vmatpush2.bf16.msra.mxu0 %v5761
    %9283 = vmatprep.subr.bf16.mxu0 0
    %9284 = vmatpush2.bf16.msra.mxu0 %v5748
    %9285 = vmatprep.subr.bf16.mxu0 0
    %9286 = vmatpush2.bf16.msra.mxu0 %v5735
    %9287 = vmatprep.mubr.bf16.mxu0 %v105
    %9288 = vmatmul.mubr.bf16.gmra.mxu0 %v104
    %v9289 = vpop.f32.mrf.mxu0
    %v9290 = vadd.f32 %v9249, %v9289
    %v9291 = vpop.f32.mrf.mxu0
    %v9292 = vpop.f32.mrf.mxu0
    %v9293 = vadd.f32 %v9252, %v9292
    %v9294 = vpop.f32.mrf.mxu0
    %9295 = vdwg.mxu0
    %9296 = vmatprep.subr.bf16.mxu0 0
    %9297 = vmatpush1.bf16.msra.mxu0 %v5930
    %9298 = vmatprep.subr.bf16.mxu0 0
    %9299 = vmatpush1.bf16.msra.mxu0 %v5917
    %9300 = vmatprep.subr.bf16.mxu0 0
    %9301 = vmatpush1.bf16.msra.mxu0 %v5904
    %9302 = vmatprep.subr.bf16.mxu0 0
    %9303 = vmatpush1.bf16.msra.mxu0 %v5891
    %9304 = vmatprep.subr.bf16.mxu0 0
    %9305 = vmatpush1.bf16.msra.mxu0 %v5878
    %9306 = vmatprep.subr.bf16.mxu0 0
    %9307 = vmatpush1.bf16.msra.mxu0 %v5865
    %9308 = vmatprep.subr.bf16.mxu0 0
    %9309 = vmatpush1.bf16.msra.mxu0 %v5852
    %9310 = vmatprep.subr.bf16.mxu0 0
    %9311 = vmatpush1.bf16.msra.mxu0 %v5839
    %9312 = vmatprep.subr.bf16.mxu0 0
    %9313 = vmatpush2.bf16.msra.mxu0 %v6034
    %9314 = vmatprep.subr.bf16.mxu0 0
    %9315 = vmatpush2.bf16.msra.mxu0 %v6021
    %9316 = vmatprep.subr.bf16.mxu0 0
    %9317 = vmatpush2.bf16.msra.mxu0 %v6008
    %9318 = vmatprep.subr.bf16.mxu0 0
    %9319 = vmatpush2.bf16.msra.mxu0 %v5995
    %9320 = vmatprep.subr.bf16.mxu0 0
    %9321 = vmatpush2.bf16.msra.mxu0 %v5982
    %9322 = vmatprep.subr.bf16.mxu0 0
    %9323 = vmatpush2.bf16.msra.mxu0 %v5969
    %9324 = vmatprep.subr.bf16.mxu0 0
    %9325 = vmatpush2.bf16.msra.mxu0 %v5956
    %9326 = vmatprep.subr.bf16.mxu0 0
    %9327 = vmatpush2.bf16.msra.mxu0 %v5943
    %9328 = vmatprep.mubr.bf16.mxu0 %v107
    %9329 = vmatmul.mubr.bf16.gmra.mxu0 %v106
    %v9330 = vpop.f32.mrf.mxu0
    %v9331 = vadd.f32 %v9290, %v9330
    %v9332 = vpop.f32.mrf.mxu0
    %v9333 = vpop.f32.mrf.mxu0
    %v9334 = vadd.f32 %v9293, %v9333
    %v9335 = vpop.f32.mrf.mxu0
    %9336 = vdwg.mxu0
    %9337 = vmatprep.subr.bf16.mxu0 0
    %9338 = vmatpush1.bf16.msra.mxu0 %v6138
    %9339 = vmatprep.subr.bf16.mxu0 0
    %9340 = vmatpush1.bf16.msra.mxu0 %v6125
    %9341 = vmatprep.subr.bf16.mxu0 0
    %9342 = vmatpush1.bf16.msra.mxu0 %v6112
    %9343 = vmatprep.subr.bf16.mxu0 0
    %9344 = vmatpush1.bf16.msra.mxu0 %v6099
    %9345 = vmatprep.subr.bf16.mxu0 0
    %9346 = vmatpush1.bf16.msra.mxu0 %v6086
    %9347 = vmatprep.subr.bf16.mxu0 0
    %9348 = vmatpush1.bf16.msra.mxu0 %v6073
    %9349 = vmatprep.subr.bf16.mxu0 0
    %9350 = vmatpush1.bf16.msra.mxu0 %v6060
    %9351 = vmatprep.subr.bf16.mxu0 0
    %9352 = vmatpush1.bf16.msra.mxu0 %v6047
    %9353 = vmatprep.subr.bf16.mxu0 0
    %9354 = vmatpush2.bf16.msra.mxu0 %v6242
    %9355 = vmatprep.subr.bf16.mxu0 0
    %9356 = vmatpush2.bf16.msra.mxu0 %v6229
    %9357 = vmatprep.subr.bf16.mxu0 0
    %9358 = vmatpush2.bf16.msra.mxu0 %v6216
    %9359 = vmatprep.subr.bf16.mxu0 0
    %9360 = vmatpush2.bf16.msra.mxu0 %v6203
    %9361 = vmatprep.subr.bf16.mxu0 0
    %9362 = vmatpush2.bf16.msra.mxu0 %v6190
    %9363 = vmatprep.subr.bf16.mxu0 0
    %9364 = vmatpush2.bf16.msra.mxu0 %v6177
    %9365 = vmatprep.subr.bf16.mxu0 0
    %9366 = vmatpush2.bf16.msra.mxu0 %v6164
    %9367 = vmatprep.subr.bf16.mxu0 0
    %9368 = vmatpush2.bf16.msra.mxu0 %v6151
    %9369 = vmatprep.mubr.bf16.mxu0 %v109
    %9370 = vmatmul.mubr.bf16.gmra.mxu0 %v108
    %v9371 = vpop.f32.mrf.mxu0
    %v9372 = vadd.f32 %v9331, %v9371
    %v9373 = vpop.f32.mrf.mxu0
    %v9374 = vpop.f32.mrf.mxu0
    %v9375 = vadd.f32 %v9334, %v9374
    %v9376 = vpop.f32.mrf.mxu0
    %9377 = vdwg.mxu0
    %9378 = vmatprep.subr.bf16.mxu0 0
    %9379 = vmatpush1.bf16.msra.mxu0 %v6346
    %9380 = vmatprep.subr.bf16.mxu0 0
    %9381 = vmatpush1.bf16.msra.mxu0 %v6333
    %9382 = vmatprep.subr.bf16.mxu0 0
    %9383 = vmatpush1.bf16.msra.mxu0 %v6320
    %9384 = vmatprep.subr.bf16.mxu0 0
    %9385 = vmatpush1.bf16.msra.mxu0 %v6307
    %9386 = vmatprep.subr.bf16.mxu0 0
    %9387 = vmatpush1.bf16.msra.mxu0 %v6294
    %9388 = vmatprep.subr.bf16.mxu0 0
    %9389 = vmatpush1.bf16.msra.mxu0 %v6281
    %9390 = vmatprep.subr.bf16.mxu0 0
    %9391 = vmatpush1.bf16.msra.mxu0 %v6268
    %9392 = vmatprep.subr.bf16.mxu0 0
    %9393 = vmatpush1.bf16.msra.mxu0 %v6255
    %9394 = vmatprep.subr.bf16.mxu0 0
    %9395 = vmatpush2.bf16.msra.mxu0 0
    %9396 = vmatprep.subr.bf16.mxu0 0
    %9397 = vmatpush2.bf16.msra.mxu0 0
    %9398 = vmatprep.subr.bf16.mxu0 0
    %9399 = vmatpush2.bf16.msra.mxu0 0
    %9400 = vmatprep.subr.bf16.mxu0 0
    %9401 = vmatpush2.bf16.msra.mxu0 %v6411
    %9402 = vmatprep.subr.bf16.mxu0 0
    %9403 = vmatpush2.bf16.msra.mxu0 %v6398
    %9404 = vmatprep.subr.bf16.mxu0 0
    %9405 = vmatpush2.bf16.msra.mxu0 %v6385
    %9406 = vmatprep.subr.bf16.mxu0 0
    %9407 = vmatpush2.bf16.msra.mxu0 %v6372
    %9408 = vmatprep.subr.bf16.mxu0 0
    %9409 = vmatpush2.bf16.msra.mxu0 %v6359
    %9410 = vmatprep.mubr.bf16.mxu0 %v7623
    %9411 = vmatmul.mubr.bf16.gmra.mxu0 %v110
    %v9412 = vpop.f32.mrf.mxu0
    %v9413 = vadd.f32 %v9372, %v9412
    %v9414 = vpop.f32.mrf.mxu0
    %v9415 = vpop.f32.mrf.mxu0
    %v9416 = vadd.f32 %v9375, %v9415
    %v9417 = vpop.f32.mrf.mxu0
    %9418 = vdwg.mxu0
    %v9419 = vmul.f32 %v7875, %v7875
    %v9420 = vmul.f32 %v7877, %v7877
    %v9421 = vmul.f32 %v8133, %v8133
    %v9422 = vmul.f32 %v8135, %v8135
    %v9423 = vmul.f32 %v8391, %v8391
    %v9424 = vmul.f32 %v8393, %v8393
    %v9425 = vmul.f32 %v8649, %v8649
    %v9426 = vmul.f32 %v8651, %v8651
    %v9427 = vmul.f32 %v8907, %v8907
    %v9428 = vmul.f32 %v8909, %v8909
    %v9429 = vmul.f32 %v9165, %v9165
    %v9430 = vmul.f32 %v9167, %v9167
    %v9431 = vmul.f32 %v9413, %v9413
    %v9432 = vmul.f32 %v7879, %v7879
    %v9433 = vmul.f32 %v7881, %v7881
    %v9434 = vmul.f32 %v8137, %v8137
    %v9435 = vmul.f32 %v8139, %v8139
    %v9436 = vmul.f32 %v8395, %v8395
    %v9437 = vmul.f32 %v8397, %v8397
    %v9438 = vmul.f32 %v8653, %v8653
    %v9439 = vmul.f32 %v8655, %v8655
    %v9440 = vmul.f32 %v8911, %v8911
    %v9441 = vmul.f32 %v8913, %v8913
    %v9442 = vmul.f32 %v9169, %v9169
    %v9443 = vmul.f32 %v9171, %v9171
    %v9444 = vmul.f32 %v9416, %v9416
    %v9445 = vpack.c.bf16 %v9432, %v9419
    %v9446 = vpack.c.bf16 %v9433, %v9420
    %v9447 = vpack.c.bf16 %v9434, %v9421
    %v9448 = vpack.c.bf16 %v9435, %v9422
    %v9449 = vpack.c.bf16 %v9436, %v9423
    %v9450 = vpack.c.bf16 %v9437, %v9424
    %v9451 = vpack.c.bf16 %v9438, %v9425
    %v9452 = vpack.c.bf16 %v9439, %v9426
    %v9453 = vpack.c.bf16 %v9440, %v9427
    %v9454 = vpack.c.bf16 %v9441, %v9428
    %v9455 = vpack.c.bf16 %v9442, %v9429
    %v9456 = vpack.c.bf16 %v9443, %v9430
    %v9457 = vpack.c.bf16 %v9444, %v9431
    %v9458 = vld [vmem:[%s3] sm:$0xf]
    %v9459 = vld [vmem:[%s3 + $0x4] sm:$0xf]
    %v9460 = vld [vmem:[%s3 + $0x8] sm:$0xf]
    %v9461 = vld [vmem:[%s3 + $0xc] sm:$0xf]
    %v9462 = vld [vmem:[%s3 + $0x10] sm:$0xf]
    %v9463 = vld [vmem:[%s3 + $0x14] sm:$0xf]
    %v9464 = vld [vmem:[%s3 + $0x18] sm:$0xf]
    %v9465 = vld [vmem:[%s3 + $0x1c] sm:$0xf]
    %v9466 = vld [vmem:[%s3 + $0x20] sm:$0xf]
    %v9467 = vld [vmem:[%s3 + $0x24] sm:$0xf]
    %v9468 = vld [vmem:[%s3 + $0x28] sm:$0xf]
    %v9469 = vld [vmem:[%s3 + $0x2c] sm:$0xf]
    %v9470 = vld [vmem:[%s3 + $0x30] sm:$0xf]
    %v9471 = vld [vmem:[%s3 + $0x34] sm:$0xf]
    %v9472 = vld [vmem:[%s3 + $0x38] sm:$0xf]
    %v9473 = vld [vmem:[%s3 + $0x3c] sm:$0xf]
    %v9474 = vld [vmem:[%s3 + $0x40] sm:$0xf]
    %v9475 = vld [vmem:[%s3 + $0x44] sm:$0xf]
    %v9476 = vld [vmem:[%s3 + $0x48] sm:$0xf]
    %v9477 = vld [vmem:[%s3 + $0x4c] sm:$0xf]
    %v9478 = vld [vmem:[%s3 + $0x50] sm:$0xf]
    %v9479 = vld [vmem:[%s3 + $0x54] sm:$0xf]
    %v9480 = vld [vmem:[%s3 + $0x58] sm:$0xf]
    %v9481 = vld [vmem:[%s3 + $0x5c] sm:$0xf]
    %v9482 = vld [vmem:[%s3 + $0x60] sm:$0xf]
    %v9483 = vld [vmem:[%s3 + $0x64] sm:$0xf]
    %v9484 = vld [vmem:[%s3 + $0x68] sm:$0xf]
    %v9485 = vld [vmem:[%s3 + $0x6c] sm:$0xf]
    %v9486 = vld [vmem:[%s3 + $0x70] sm:$0xf]
    %v9487 = vld [vmem:[%s3 + $0x74] sm:$0xf]
    %v9488 = vld [vmem:[%s3 + $0x78] sm:$0xf]
    %v9489 = vld [vmem:[%s3 + $0x7c] sm:$0xf]
    %v9490 = vld [vmem:[%s3 + $0x80] sm:$0xf]
    %v9491 = vld [vmem:[%s3 + $0x84] sm:$0xf]
    %v9492 = vld [vmem:[%s3 + $0x88] sm:$0xf]
    %v9493 = vld [vmem:[%s3 + $0x8c] sm:$0xf]
    %v9494 = vld [vmem:[%s3 + $0x90] sm:$0xf]
    %v9495 = vld [vmem:[%s3 + $0x94] sm:$0xf]
    %v9496 = vld [vmem:[%s3 + $0x98] sm:$0xf]
    %v9497 = vld [vmem:[%s3 + $0x9c] sm:$0xf]
    %v9498 = vld [vmem:[%s3 + $0xa0] sm:$0xf]
    %v9499 = vld [vmem:[%s3 + $0xa4] sm:$0xf]
    %v9500 = vld [vmem:[%s3 + $0xa8] sm:$0xf]
    %v9501 = vld [vmem:[%s3 + $0xac] sm:$0xf]
    %v9502 = vld [vmem:[%s3 + $0xb0] sm:$0xf]
    %v9503 = vld [vmem:[%s3 + $0xb4] sm:$0xf]
    %v9504 = vld [vmem:[%s3 + $0xb8] sm:$0xf]
    %v9505 = vld [vmem:[%s3 + $0xbc] sm:$0xf]
    %v9506 = vld [vmem:[%s3 + $0xc0] sm:$0xf]
    %v9507 = vld [vmem:[%s3 + $0xc4] sm:$0xf]
    %v9508 = vld [vmem:[%s3 + $0xc8] sm:$0xf]
    %v9509 = vld [vmem:[%s3 + $0xcc] sm:$0xf]
    %v9510 = vld [vmem:[%s3 + $0xd0] sm:$0xf]
    %v9511 = vld [vmem:[%s3 + $0xd4] sm:$0xf]
    %v9512 = vld [vmem:[%s3 + $0xd8] sm:$0xf]
    %v9513 = vld [vmem:[%s3 + $0xdc] sm:$0xf]
    %v9514 = vld [vmem:[%s3 + $0xe0] sm:$0xf]
    %v9515 = vld [vmem:[%s3 + $0xe4] sm:$0xf]
    %v9516 = vld [vmem:[%s3 + $0xe8] sm:$0xf]
    %v9517 = vld [vmem:[%s3 + $0xec] sm:$0xf]
    %v9518 = vld [vmem:[%s3 + $0xf0] sm:$0xf]
    %v9519 = vld [vmem:[%s3 + $0xf4] sm:$0xf]
    %v9520 = vld [vmem:[%s3 + $0xf8] sm:$0xf]
    %v9521 = vld [vmem:[%s3 + $0xfc] sm:$0xf]
    %v9522 = vld [vmem:[%s3 + $0x100] sm:$0xf]
    %v9523 = vld [vmem:[%s3 + $0x104] sm:$0xf]
    %v9524 = vld [vmem:[%s3 + $0x108] sm:$0xf]
    %v9525 = vld [vmem:[%s3 + $0x10c] sm:$0xf]
    %v9526 = vld [vmem:[%s3 + $0x110] sm:$0xf]
    %v9527 = vld [vmem:[%s3 + $0x114] sm:$0xf]
    %v9528 = vld [vmem:[%s3 + $0x118] sm:$0xf]
    %v9529 = vld [vmem:[%s3 + $0x11c] sm:$0xf]
    %v9530 = vld [vmem:[%s3 + $0x120] sm:$0xf]
    %v9531 = vld [vmem:[%s3 + $0x124] sm:$0xf]
    %v9532 = vld [vmem:[%s3 + $0x128] sm:$0xf]
    %v9533 = vld [vmem:[%s3 + $0x12c] sm:$0xf]
    %v9534 = vld [vmem:[%s3 + $0x130] sm:$0xf]
    %v9535 = vld [vmem:[%s3 + $0x134] sm:$0xf]
    %v9536 = vld [vmem:[%s3 + $0x138] sm:$0xf]
    %v9537 = vld [vmem:[%s3 + $0x13c] sm:$0xf]
    %v9538 = vld [vmem:[%s3 + $0x140] sm:$0xf]
    %v9539 = vld [vmem:[%s3 + $0x144] sm:$0xf]
    %v9540 = vld [vmem:[%s3 + $0x148] sm:$0xf]
    %v9541 = vld [vmem:[%s3 + $0x14c] sm:$0xf]
    %v9542 = vld [vmem:[%s3 + $0x150] sm:$0xf]
    %v9543 = vld [vmem:[%s3 + $0x154] sm:$0xf]
    %v9544 = vld [vmem:[%s3 + $0x158] sm:$0xf]
    %v9545 = vld [vmem:[%s3 + $0x15c] sm:$0xf]
    %v9546 = vld [vmem:[%s3 + $0x160] sm:$0xf]
    %v9547 = vld [vmem:[%s3 + $0x164] sm:$0xf]
    %v9548 = vld [vmem:[%s3 + $0x168] sm:$0xf]
    %v9549 = vld [vmem:[%s3 + $0x16c] sm:$0xf]
    %v9550 = vld [vmem:[%s3 + $0x170] sm:$0xf]
    %v9551 = vld [vmem:[%s3 + $0x174] sm:$0xf]
    %v9552 = vld [vmem:[%s3 + $0x178] sm:$0xf]
    %v9553 = vld [vmem:[%s3 + $0x17c] sm:$0xf]
    %v9554 = vld [vmem:[%s3 + $0x180] sm:$0xf]
    %v9555 = vld [vmem:[%s3 + $0x184] sm:$0xf]
    %v9556 = vld [vmem:[%s3 + $0x188] sm:$0xf]
    %v9557 = vld [vmem:[%s3 + $0x18c] sm:$0xf]
    %v9558 = vld [vmem:[%s3 + $0x190] sm:$0xf]
    %v9559 = vld [vmem:[%s3 + $0x194] sm:$0xf]
    %v9560 = vld [vmem:[%s3 + $0x198] sm:$0xf]
    %v9561 = vld [vmem:[%s3 + $0x19c] sm:$0xf]
    %v9562 = vld [vmem:[%s3 + $0x1a0] sm:$0xf]
    %v9563 = vld [vmem:[%s3 + $0x1a4] sm:$0xf]
    %v9564 = vld [vmem:[%s3 + $0x1a8] sm:$0xf]
    %v9565 = vld [vmem:[%s3 + $0x1ac] sm:$0xf]
    %v9566 = vld [vmem:[%s3 + $0x1b0] sm:$0xf]
    %v9567 = vld [vmem:[%s3 + $0x1b4] sm:$0xf]
    %v9568 = vld [vmem:[%s3 + $0x1b8] sm:$0xf]
    %v9569 = vld [vmem:[%s3 + $0x1bc] sm:$0xf]
    %v9570 = vld [vmem:[%s3 + $0x1c0] sm:$0xf]
    %v9571 = vld [vmem:[%s3 + $0x1c4] sm:$0xf]
    %v9572 = vld [vmem:[%s3 + $0x1c8] sm:$0xf]
    %v9573 = vld [vmem:[%s3 + $0x1cc] sm:$0xf]
    %v9574 = vld [vmem:[%s3 + $0x1d0] sm:$0xf]
    %v9575 = vld [vmem:[%s3 + $0x1d4] sm:$0xf]
    %v9576 = vld [vmem:[%s3 + $0x1d8] sm:$0xf]
    %v9577 = vld [vmem:[%s3 + $0x1dc] sm:$0xf]
    %v9578 = vld [vmem:[%s3 + $0x1e0] sm:$0xf]
    %v9579 = vld [vmem:[%s3 + $0x1e4] sm:$0xf]
    %v9580 = vld [vmem:[%s3 + $0x1e8] sm:$0xf]
    %v9581 = vld [vmem:[%s3 + $0x1ec] sm:$0xf]
    %v9582 = vld [vmem:[%s3 + $0x1f0] sm:$0xf]
    %v9583 = vld [vmem:[%s3 + $0x1f4] sm:$0xf]
    %v9584 = vld [vmem:[%s3 + $0x1f8] sm:$0xf]
    %v9585 = vld [vmem:[%s3 + $0x1fc] sm:$0xf]
    %v9586 = vld [vmem:[%s3 + $0x200] sm:$0xf]
    %v9587 = vld [vmem:[%s3 + $0x204] sm:$0xf]
    %v9588 = vld [vmem:[%s3 + $0x208] sm:$0xf]
    %v9589 = vld [vmem:[%s3 + $0x20c] sm:$0xf]
    %v9590 = vld [vmem:[%s3 + $0x210] sm:$0xf]
    %v9591 = vld [vmem:[%s3 + $0x214] sm:$0xf]
    %v9592 = vld [vmem:[%s3 + $0x218] sm:$0xf]
    %v9593 = vld [vmem:[%s3 + $0x21c] sm:$0xf]
    %v9594 = vld [vmem:[%s3 + $0x220] sm:$0xf]
    %v9595 = vld [vmem:[%s3 + $0x224] sm:$0xf]
    %v9596 = vld [vmem:[%s3 + $0x228] sm:$0xf]
    %v9597 = vld [vmem:[%s3 + $0x22c] sm:$0xf]
    %v9598 = vld [vmem:[%s3 + $0x230] sm:$0xf]
    %v9599 = vld [vmem:[%s3 + $0x234] sm:$0xf]
    %v9600 = vld [vmem:[%s3 + $0x238] sm:$0xf]
    %v9601 = vld [vmem:[%s3 + $0x23c] sm:$0xf]
    %v9602 = vld [vmem:[%s3 + $0x240] sm:$0xf]
    %v9603 = vld [vmem:[%s3 + $0x244] sm:$0xf]
    %v9604 = vld [vmem:[%s3 + $0x248] sm:$0xf]
    %v9605 = vld [vmem:[%s3 + $0x24c] sm:$0xf]
    %v9606 = vld [vmem:[%s3 + $0x250] sm:$0xf]
    %v9607 = vld [vmem:[%s3 + $0x254] sm:$0xf]
    %v9608 = vld [vmem:[%s3 + $0x258] sm:$0xf]
    %v9609 = vld [vmem:[%s3 + $0x25c] sm:$0xf]
    %v9610 = vld [vmem:[%s3 + $0x260] sm:$0xf]
    %v9611 = vld [vmem:[%s3 + $0x264] sm:$0xf]
    %v9612 = vld [vmem:[%s3 + $0x268] sm:$0xf]
    %v9613 = vld [vmem:[%s3 + $0x26c] sm:$0xf]
    %v9614 = vld [vmem:[%s3 + $0x270] sm:$0xf]
    %v9615 = vld [vmem:[%s3 + $0x274] sm:$0xf]
    %v9616 = vld [vmem:[%s3 + $0x278] sm:$0xf]
    %v9617 = vld [vmem:[%s3 + $0x27c] sm:$0xf]
    %v9618 = vld [vmem:[%s3 + $0x280] sm:$0xf]
    %v9619 = vld [vmem:[%s3 + $0x284] sm:$0xf]
    %v9620 = vld [vmem:[%s3 + $0x288] sm:$0xf]
    %v9621 = vld [vmem:[%s3 + $0x28c] sm:$0xf]
    %v9622 = vld [vmem:[%s3 + $0x290] sm:$0xf]
    %v9623 = vld [vmem:[%s3 + $0x294] sm:$0xf]
    %v9624 = vld [vmem:[%s3 + $0x298] sm:$0xf]
    %v9625 = vld [vmem:[%s3 + $0x29c] sm:$0xf]
    %v9626 = vld [vmem:[%s3 + $0x2a0] sm:$0xf]
    %v9627 = vld [vmem:[%s3 + $0x2a4] sm:$0xf]
    %v9628 = vld [vmem:[%s3 + $0x2a8] sm:$0xf]
    %v9629 = vld [vmem:[%s3 + $0x2ac] sm:$0xf]
    %v9630 = vld [vmem:[%s3 + $0x2b0] sm:$0xf]
    %v9631 = vld [vmem:[%s3 + $0x2b4] sm:$0xf]
    %v9632 = vld [vmem:[%s3 + $0x2b8] sm:$0xf]
    %v9633 = vld [vmem:[%s3 + $0x2bc] sm:$0xf]
    %v9634 = vld [vmem:[%s3 + $0x2c0] sm:$0xf]
    %v9635 = vld [vmem:[%s3 + $0x2c4] sm:$0xf]
    %v9636 = vld [vmem:[%s3 + $0x2c8] sm:$0xf]
    %v9637 = vld [vmem:[%s3 + $0x2cc] sm:$0xf]
    %v9638 = vld [vmem:[%s3 + $0x2d0] sm:$0xf]
    %v9639 = vld [vmem:[%s3 + $0x2d4] sm:$0xf]
    %v9640 = vld [vmem:[%s3 + $0x2d8] sm:$0xf]
    %v9641 = vld [vmem:[%s3 + $0x2dc] sm:$0xf]
    %v9642 = vld [vmem:[%s3 + $0x2e0] sm:$0xf]
    %v9643 = vld [vmem:[%s3 + $0x2e4] sm:$0xf]
    %v9644 = vld [vmem:[%s3 + $0x2e8] sm:$0xf]
    %v9645 = vld [vmem:[%s3 + $0x2ec] sm:$0xf]
    %v9646 = vld [vmem:[%s3 + $0x2f0] sm:$0xf]
    %v9647 = vld [vmem:[%s3 + $0x2f4] sm:$0xf]
    %v9648 = vld [vmem:[%s3 + $0x2f8] sm:$0xf]
    %v9649 = vld [vmem:[%s3 + $0x2fc] sm:$0xf]
    %v9650 = vld [vmem:[%s3 + $0x300] sm:$0xf]
    %v9651 = vld [vmem:[%s3 + $0x304] sm:$0xf]
    %v9652 = vld [vmem:[%s3 + $0x308] sm:$0xf]
    %v9653 = vld [vmem:[%s3 + $0x30c] sm:$0xf]
    %v9654 = vld [vmem:[%s3 + $0x310] sm:$0xf]
    %v9655 = vld [vmem:[%s3 + $0x314] sm:$0xf]
    %v9656 = vld [vmem:[%s3 + $0x318] sm:$0xf]
    %v9657 = vld [vmem:[%s3 + $0x31c] sm:$0xf]
    %v9658 = vld [vmem:[%s3 + $0x320] sm:$0xf]
    %v9659 = vld [vmem:[%s3 + $0x324] sm:$0xf]
    %v9660 = vld [vmem:[%s3 + $0x328] sm:$0xf]
    %v9661 = vld [vmem:[%s3 + $0x32c] sm:$0xf]
    %v9662 = vld [vmem:[%s3 + $0x330] sm:$0xf]
    %v9663 = vld [vmem:[%s3 + $0x334] sm:$0xf]
    %v9664 = vld [vmem:[%s3 + $0x338] sm:$0x1]
    %v9872 = vunpack.c.l.b16 %v9458
    %v9873 = vunpack.c.l.b16 %v9459
    %v9874 = vunpack.c.l.b16 %v9460
    %v9875 = vunpack.c.l.b16 %v9461
    %v9876 = vunpack.c.l.b16 %v9462
    %v9877 = vunpack.c.l.b16 %v9463
    %v9878 = vunpack.c.l.b16 %v9464
    %v9879 = vunpack.c.l.b16 %v9465
    %v9880 = vunpack.c.l.b16 %v9466
    %v9881 = vunpack.c.l.b16 %v9467
    %v9882 = vunpack.c.l.b16 %v9468
    %v9883 = vunpack.c.l.b16 %v9469
    %v9884 = vunpack.c.l.b16 %v9470
    %v9885 = vunpack.c.l.b16 %v9471
    %v9886 = vunpack.c.l.b16 %v9472
    %v9887 = vunpack.c.l.b16 %v9473
    %v9888 = vunpack.c.l.b16 %v9474
    %v9889 = vunpack.c.l.b16 %v9475
    %v9890 = vunpack.c.l.b16 %v9476
    %v9891 = vunpack.c.l.b16 %v9477
    %v9892 = vunpack.c.l.b16 %v9478
    %v9893 = vunpack.c.l.b16 %v9479
    %v9894 = vunpack.c.l.b16 %v9480
    %v9895 = vunpack.c.l.b16 %v9481
    %v9896 = vunpack.c.l.b16 %v9482
    %v9897 = vunpack.c.l.b16 %v9483
    %v9898 = vunpack.c.l.b16 %v9484
    %v9899 = vunpack.c.l.b16 %v9485
    %v9900 = vunpack.c.l.b16 %v9486
    %v9901 = vunpack.c.l.b16 %v9487
    %v9902 = vunpack.c.l.b16 %v9488
    %v9903 = vunpack.c.l.b16 %v9489
    %v9904 = vunpack.c.l.b16 %v9490
    %v9905 = vunpack.c.l.b16 %v9491
    %v9906 = vunpack.c.l.b16 %v9492
    %v9907 = vunpack.c.l.b16 %v9493
    %v9908 = vunpack.c.l.b16 %v9494
    %v9909 = vunpack.c.l.b16 %v9495
    %v9910 = vunpack.c.l.b16 %v9496
    %v9911 = vunpack.c.l.b16 %v9497
    %v9912 = vunpack.c.l.b16 %v9498
    %v9913 = vunpack.c.l.b16 %v9499
    %v9914 = vunpack.c.l.b16 %v9500
    %v9915 = vunpack.c.l.b16 %v9501
    %v9916 = vunpack.c.l.b16 %v9502
    %v9917 = vunpack.c.l.b16 %v9503
    %v9918 = vunpack.c.l.b16 %v9504
    %v9919 = vunpack.c.l.b16 %v9505
    %v9920 = vunpack.c.l.b16 %v9506
    %v9921 = vunpack.c.l.b16 %v9507
    %v9922 = vunpack.c.l.b16 %v9508
    %v9923 = vunpack.c.l.b16 %v9509
    %v9924 = vunpack.c.l.b16 %v9510
    %v9925 = vunpack.c.l.b16 %v9511
    %v9926 = vunpack.c.l.b16 %v9512
    %v9927 = vunpack.c.l.b16 %v9513
    %v9928 = vunpack.c.l.b16 %v9514
    %v9929 = vunpack.c.l.b16 %v9515
    %v9930 = vunpack.c.l.b16 %v9516
    %v9931 = vunpack.c.l.b16 %v9517
    %v9932 = vunpack.c.l.b16 %v9518
    %v9933 = vunpack.c.l.b16 %v9519
    %v9934 = vunpack.c.l.b16 %v9520
    %v9935 = vunpack.c.l.b16 %v9521
    %v9936 = vunpack.c.l.b16 %v9522
    %v9937 = vunpack.c.l.b16 %v9523
    %v9938 = vunpack.c.l.b16 %v9524
    %v9939 = vunpack.c.l.b16 %v9525
    %v9940 = vunpack.c.l.b16 %v9526
    %v9941 = vunpack.c.l.b16 %v9527
    %v9942 = vunpack.c.l.b16 %v9528
    %v9943 = vunpack.c.l.b16 %v9529
    %v9944 = vunpack.c.l.b16 %v9530
    %v9945 = vunpack.c.l.b16 %v9531
    %v9946 = vunpack.c.l.b16 %v9532
    %v9947 = vunpack.c.l.b16 %v9533
    %v9948 = vunpack.c.l.b16 %v9534
    %v9949 = vunpack.c.l.b16 %v9535
    %v9950 = vunpack.c.l.b16 %v9536
    %v9951 = vunpack.c.l.b16 %v9537
    %v9952 = vunpack.c.l.b16 %v9538
    %v9953 = vunpack.c.l.b16 %v9539
    %v9954 = vunpack.c.l.b16 %v9540
    %v9955 = vunpack.c.l.b16 %v9541
    %v9956 = vunpack.c.l.b16 %v9542
    %v9957 = vunpack.c.l.b16 %v9543
    %v9958 = vunpack.c.l.b16 %v9544
    %v9959 = vunpack.c.l.b16 %v9545
    %v9960 = vunpack.c.l.b16 %v9546
    %v9961 = vunpack.c.l.b16 %v9547
    %v9962 = vunpack.c.l.b16 %v9548
    %v9963 = vunpack.c.l.b16 %v9549
    %v9964 = vunpack.c.l.b16 %v9550
    %v9965 = vunpack.c.l.b16 %v9551
    %v9966 = vunpack.c.l.b16 %v9552
    %v9967 = vunpack.c.l.b16 %v9553
    %v9968 = vunpack.c.l.b16 %v9554
    %v9969 = vunpack.c.l.b16 %v9555
    %v9970 = vunpack.c.l.b16 %v9556
    %v9971 = vunpack.c.l.b16 %v9557
    %v9972 = vunpack.c.l.b16 %v9558
    %v9973 = vunpack.c.l.b16 %v9559
    %v9974 = vunpack.c.l.b16 %v9560
    %v9975 = vunpack.c.l.b16 %v9561
    %v9976 = vunpack.c.l.b16 %v9562
    %v9977 = vunpack.c.l.b16 %v9563
    %v9978 = vunpack.c.l.b16 %v9564
    %v9979 = vunpack.c.l.b16 %v9565
    %v9980 = vunpack.c.l.b16 %v9566
    %v9981 = vunpack.c.l.b16 %v9567
    %v9982 = vunpack.c.l.b16 %v9568
    %v9983 = vunpack.c.l.b16 %v9569
    %v9984 = vunpack.c.l.b16 %v9570
    %v9985 = vunpack.c.l.b16 %v9571
    %v9986 = vunpack.c.l.b16 %v9572
    %v9987 = vunpack.c.l.b16 %v9573
    %v9988 = vunpack.c.l.b16 %v9574
    %v9989 = vunpack.c.l.b16 %v9575
    %v9990 = vunpack.c.l.b16 %v9576
    %v9991 = vunpack.c.l.b16 %v9577
    %v9992 = vunpack.c.l.b16 %v9578
    %v9993 = vunpack.c.l.b16 %v9579
    %v9994 = vunpack.c.l.b16 %v9580
    %v9995 = vunpack.c.l.b16 %v9581
    %v9996 = vunpack.c.l.b16 %v9582
    %v9997 = vunpack.c.l.b16 %v9583
    %v9998 = vunpack.c.l.b16 %v9584
    %v9999 = vunpack.c.l.b16 %v9585
    %v10000 = vunpack.c.l.b16 %v9586
    %v10001 = vunpack.c.l.b16 %v9587
    %v10002 = vunpack.c.l.b16 %v9588
    %v10003 = vunpack.c.l.b16 %v9589
    %v10004 = vunpack.c.l.b16 %v9590
    %v10005 = vunpack.c.l.b16 %v9591
    %v10006 = vunpack.c.l.b16 %v9592
    %v10007 = vunpack.c.l.b16 %v9593
    %v10008 = vunpack.c.l.b16 %v9594
    %v10009 = vunpack.c.l.b16 %v9595
    %v10010 = vunpack.c.l.b16 %v9596
    %v10011 = vunpack.c.l.b16 %v9597
    %v10012 = vunpack.c.l.b16 %v9598
    %v10013 = vunpack.c.l.b16 %v9599
    %v10014 = vunpack.c.l.b16 %v9600
    %v10015 = vunpack.c.l.b16 %v9601
    %v10016 = vunpack.c.l.b16 %v9602
    %v10017 = vunpack.c.l.b16 %v9603
    %v10018 = vunpack.c.l.b16 %v9604
    %v10019 = vunpack.c.l.b16 %v9605
    %v10020 = vunpack.c.l.b16 %v9606
    %v10021 = vunpack.c.l.b16 %v9607
    %v10022 = vunpack.c.l.b16 %v9608
    %v10023 = vunpack.c.l.b16 %v9609
    %v10024 = vunpack.c.l.b16 %v9610
    %v10025 = vunpack.c.l.b16 %v9611
    %v10026 = vunpack.c.l.b16 %v9612
    %v10027 = vunpack.c.l.b16 %v9613
    %v10028 = vunpack.c.l.b16 %v9614
    %v10029 = vunpack.c.l.b16 %v9615
    %v10030 = vunpack.c.l.b16 %v9616
    %v10031 = vunpack.c.l.b16 %v9617
    %v10032 = vunpack.c.l.b16 %v9618
    %v10033 = vunpack.c.l.b16 %v9619
    %v10034 = vunpack.c.l.b16 %v9620
    %v10035 = vunpack.c.l.b16 %v9621
    %v10036 = vunpack.c.l.b16 %v9622
    %v10037 = vunpack.c.l.b16 %v9623
    %v10038 = vunpack.c.l.b16 %v9624
    %v10039 = vunpack.c.l.b16 %v9625
    %v10040 = vunpack.c.l.b16 %v9626
    %v10041 = vunpack.c.l.b16 %v9627
    %v10042 = vunpack.c.l.b16 %v9628
    %v10043 = vunpack.c.l.b16 %v9629
    %v10044 = vunpack.c.l.b16 %v9630
    %v10045 = vunpack.c.l.b16 %v9631
    %v10046 = vunpack.c.l.b16 %v9632
    %v10047 = vunpack.c.l.b16 %v9633
    %v10048 = vunpack.c.l.b16 %v9634
    %v10049 = vunpack.c.l.b16 %v9635
    %v10050 = vunpack.c.l.b16 %v9636
    %v10051 = vunpack.c.l.b16 %v9637
    %v10052 = vunpack.c.l.b16 %v9638
    %v10053 = vunpack.c.l.b16 %v9639
    %v10054 = vunpack.c.l.b16 %v9640
    %v10055 = vunpack.c.l.b16 %v9641
    %v10056 = vunpack.c.l.b16 %v9642
    %v10057 = vunpack.c.l.b16 %v9643
    %v10058 = vunpack.c.l.b16 %v9644
    %v10059 = vunpack.c.l.b16 %v9645
    %v10060 = vunpack.c.l.b16 %v9646
    %v10061 = vunpack.c.l.b16 %v9647
    %v10062 = vunpack.c.l.b16 %v9648
    %v10063 = vunpack.c.l.b16 %v9649
    %v10064 = vunpack.c.l.b16 %v9650
    %v10065 = vunpack.c.l.b16 %v9651
    %v10066 = vunpack.c.l.b16 %v9652
    %v10067 = vunpack.c.l.b16 %v9653
    %v10068 = vunpack.c.l.b16 %v9654
    %v10069 = vunpack.c.l.b16 %v9655
    %v10070 = vunpack.c.l.b16 %v9656
    %v10071 = vunpack.c.l.b16 %v9657
    %v10072 = vunpack.c.l.b16 %v9658
    %v10073 = vunpack.c.l.b16 %v9659
    %v10074 = vunpack.c.l.b16 %v9660
    %v10075 = vunpack.c.l.b16 %v9661
    %v10076 = vunpack.c.l.b16 %v9662
    %v10077 = vunpack.c.l.b16 %v9663
    %v10078 = vunpack.c.l.b16 %v9664
    %v10079 = vpack.c.b16 %v9873, %v9872
    %v10080 = vpack.c.b16 %v9875, %v9874
    %v10081 = vpack.c.b16 %v9877, %v9876
    %v10082 = vpack.c.b16 %v9879, %v9878
    %v10083 = vpack.c.b16 %v9881, %v9880
    %v10084 = vpack.c.b16 %v9883, %v9882
    %v10085 = vpack.c.b16 %v9885, %v9884
    %v10086 = vpack.c.b16 %v9887, %v9886
    %v10087 = vpack.c.b16 %v9889, %v9888
    %v10088 = vpack.c.b16 %v9891, %v9890
    %v10089 = vpack.c.b16 %v9893, %v9892
    %v10090 = vpack.c.b16 %v9895, %v9894
    %v10091 = vpack.c.b16 %v9897, %v9896
    %v10092 = vpack.c.b16 %v9899, %v9898
    %v10093 = vpack.c.b16 %v9901, %v9900
    %v10094 = vpack.c.b16 %v9903, %v9902
    %v10095 = vpack.c.b16 %v9905, %v9904
    %v10096 = vpack.c.b16 %v9907, %v9906
    %v10097 = vpack.c.b16 %v9909, %v9908
    %v10098 = vpack.c.b16 %v9911, %v9910
    %v10099 = vpack.c.b16 %v9913, %v9912
    %v10100 = vpack.c.b16 %v9915, %v9914
    %v10101 = vpack.c.b16 %v9917, %v9916
    %v10102 = vpack.c.b16 %v9919, %v9918
    %v10103 = vpack.c.b16 %v9921, %v9920
    %v10104 = vpack.c.b16 %v9923, %v9922
    %v10105 = vpack.c.b16 %v9925, %v9924
    %v10106 = vpack.c.b16 %v9927, %v9926
    %v10107 = vpack.c.b16 %v9929, %v9928
    %v10108 = vpack.c.b16 %v9931, %v9930
    %v10109 = vpack.c.b16 %v9933, %v9932
    %v10110 = vpack.c.b16 %v9935, %v9934
    %v10111 = vpack.c.b16 %v9937, %v9936
    %v10112 = vpack.c.b16 %v9939, %v9938
    %v10113 = vpack.c.b16 %v9941, %v9940
    %v10114 = vpack.c.b16 %v9943, %v9942
    %v10115 = vpack.c.b16 %v9945, %v9944
    %v10116 = vpack.c.b16 %v9947, %v9946
    %v10117 = vpack.c.b16 %v9949, %v9948
    %v10118 = vpack.c.b16 %v9951, %v9950
    %v10119 = vpack.c.b16 %v9953, %v9952
    %v10120 = vpack.c.b16 %v9955, %v9954
    %v10121 = vpack.c.b16 %v9957, %v9956
    %v10122 = vpack.c.b16 %v9959, %v9958
    %v10123 = vpack.c.b16 %v9961, %v9960
    %v10124 = vpack.c.b16 %v9963, %v9962
    %v10125 = vpack.c.b16 %v9965, %v9964
    %v10126 = vpack.c.b16 %v9967, %v9966
    %v10127 = vpack.c.b16 %v9969, %v9968
    %v10128 = vpack.c.b16 %v9971, %v9970
    %v10129 = vpack.c.b16 %v9973, %v9972
    %v10130 = vpack.c.b16 %v9975, %v9974
    %v10131 = vpack.c.b16 %v9977, %v9976
    %v10132 = vpack.c.b16 %v9979, %v9978
    %v10133 = vpack.c.b16 %v9981, %v9980
    %v10134 = vpack.c.b16 %v9983, %v9982
    %v10135 = vpack.c.b16 %v9985, %v9984
    %v10136 = vpack.c.b16 %v9987, %v9986
    %v10137 = vpack.c.b16 %v9989, %v9988
    %v10138 = vpack.c.b16 %v9991, %v9990
    %v10139 = vpack.c.b16 %v9993, %v9992
    %v10140 = vpack.c.b16 %v9995, %v9994
    %v10141 = vpack.c.b16 %v9997, %v9996
    %v10142 = vpack.c.b16 %v9999, %v9998
    %v10143 = vpack.c.b16 %v10001, %v10000
    %v10144 = vpack.c.b16 %v10003, %v10002
    %v10145 = vpack.c.b16 %v10005, %v10004
    %v10146 = vpack.c.b16 %v10007, %v10006
    %v10147 = vpack.c.b16 %v10009, %v10008
    %v10148 = vpack.c.b16 %v10011, %v10010
    %v10149 = vpack.c.b16 %v10013, %v10012
    %v10150 = vpack.c.b16 %v10015, %v10014
    %v10151 = vpack.c.b16 %v10017, %v10016
    %v10152 = vpack.c.b16 %v10019, %v10018
    %v10153 = vpack.c.b16 %v10021, %v10020
    %v10154 = vpack.c.b16 %v10023, %v10022
    %v10155 = vpack.c.b16 %v10025, %v10024
    %v10156 = vpack.c.b16 %v10027, %v10026
    %v10157 = vpack.c.b16 %v10029, %v10028
    %v10158 = vpack.c.b16 %v10031, %v10030
    %v10159 = vpack.c.b16 %v10033, %v10032
    %v10160 = vpack.c.b16 %v10035, %v10034
    %v10161 = vpack.c.b16 %v10037, %v10036
    %v10162 = vpack.c.b16 %v10039, %v10038
    %v10163 = vpack.c.b16 %v10041, %v10040
    %v10164 = vpack.c.b16 %v10043, %v10042
    %v10165 = vpack.c.b16 %v10045, %v10044
    %v10166 = vpack.c.b16 %v10047, %v10046
    %v10167 = vpack.c.b16 %v10049, %v10048
    %v10168 = vpack.c.b16 %v10051, %v10050
    %v10169 = vpack.c.b16 %v10053, %v10052
    %v10170 = vpack.c.b16 %v10055, %v10054
    %v10171 = vpack.c.b16 %v10057, %v10056
    %v10172 = vpack.c.b16 %v10059, %v10058
    %v10173 = vpack.c.b16 %v10061, %v10060
    %v10174 = vpack.c.b16 %v10063, %v10062
    %v10175 = vpack.c.b16 %v10065, %v10064
    %v10176 = vpack.c.b16 %v10067, %v10066
    %v10177 = vpack.c.b16 %v10069, %v10068
    %v10178 = vpack.c.b16 %v10071, %v10070
    %v10179 = vpack.c.b16 %v10073, %v10072
    %v10180 = vpack.c.b16 %v10075, %v10074
    %v10181 = vpack.c.b16 %v10077, %v10076
    %v10182 = vpack.c.b16 %v10078, %v10078
    %vm10286 = vcmask 932864
    %v10288 = vsel %vm10286, %v9457, 0
    %vm10290 = vcmask 1040384
    %v10292 = vsel %vm10290, %v10182, 0
    %10294 = vmatprep.subr.bf16.mxu0 0
    %10295 = vmatpush1.bf16.msra.mxu0 %v10086
    %10296 = vmatprep.subr.bf16.mxu0 0
    %10297 = vmatpush1.bf16.msra.mxu0 %v10085
    %10298 = vmatprep.subr.bf16.mxu0 0
    %10299 = vmatpush1.bf16.msra.mxu0 %v10084
    %10300 = vmatprep.subr.bf16.mxu0 0
    %10301 = vmatpush1.bf16.msra.mxu0 %v10083
    %10302 = vmatprep.subr.bf16.mxu0 0
    %10303 = vmatpush1.bf16.msra.mxu0 %v10082
    %10304 = vmatprep.subr.bf16.mxu0 0
    %10305 = vmatpush1.bf16.msra.mxu0 %v10081
    %10306 = vmatprep.subr.bf16.mxu0 0
    %10307 = vmatpush1.bf16.msra.mxu0 %v10080
    %10308 = vmatprep.subr.bf16.mxu0 0
    %10309 = vmatpush1.bf16.msra.mxu0 %v10079
    %10310 = vmatprep.subr.bf16.mxu0 0
    %10311 = vmatpush2.bf16.msra.mxu0 %v10094
    %10312 = vmatprep.subr.bf16.mxu0 0
    %10313 = vmatpush2.bf16.msra.mxu0 %v10093
    %10314 = vmatprep.subr.bf16.mxu0 0
    %10315 = vmatpush2.bf16.msra.mxu0 %v10092
    %10316 = vmatprep.subr.bf16.mxu0 0
    %10317 = vmatpush2.bf16.msra.mxu0 %v10091
    %10318 = vmatprep.subr.bf16.mxu0 0
    %10319 = vmatpush2.bf16.msra.mxu0 %v10090
    %10320 = vmatprep.subr.bf16.mxu0 0
    %10321 = vmatpush2.bf16.msra.mxu0 %v10089
    %10322 = vmatprep.subr.bf16.mxu0 0
    %10323 = vmatpush2.bf16.msra.mxu0 %v10088
    %10324 = vmatprep.subr.bf16.mxu0 0
    %10325 = vmatpush2.bf16.msra.mxu0 %v10087
    %10326 = vmatprep.mubr.bf16.mxu0 %v9446
    %10327 = vmatmul.mubr.bf16.gmra.mxu0 %v9445
    %v10328 = vpop.f32.mrf.mxu0
    %v10329 = vadd.f32 0.0, %v10328
    %v10330 = vpop.f32.mrf.mxu0
    %v10331 = vpop.f32.mrf.mxu0
    %v10332 = vadd.f32 0.0, %v10331
    %v10333 = vpop.f32.mrf.mxu0
    %10334 = vdwg.mxu0
    %10335 = vmatprep.subr.bf16.mxu0 0
    %10336 = vmatpush1.bf16.msra.mxu0 %v10102
    %10337 = vmatprep.subr.bf16.mxu0 0
    %10338 = vmatpush1.bf16.msra.mxu0 %v10101
    %10339 = vmatprep.subr.bf16.mxu0 0
    %10340 = vmatpush1.bf16.msra.mxu0 %v10100
    %10341 = vmatprep.subr.bf16.mxu0 0
    %10342 = vmatpush1.bf16.msra.mxu0 %v10099
    %10343 = vmatprep.subr.bf16.mxu0 0
    %10344 = vmatpush1.bf16.msra.mxu0 %v10098
    %10345 = vmatprep.subr.bf16.mxu0 0
    %10346 = vmatpush1.bf16.msra.mxu0 %v10097
    %10347 = vmatprep.subr.bf16.mxu0 0
    %10348 = vmatpush1.bf16.msra.mxu0 %v10096
    %10349 = vmatprep.subr.bf16.mxu0 0
    %10350 = vmatpush1.bf16.msra.mxu0 %v10095
    %10351 = vmatprep.subr.bf16.mxu0 0
    %10352 = vmatpush2.bf16.msra.mxu0 %v10110
    %10353 = vmatprep.subr.bf16.mxu0 0
    %10354 = vmatpush2.bf16.msra.mxu0 %v10109
    %10355 = vmatprep.subr.bf16.mxu0 0
    %10356 = vmatpush2.bf16.msra.mxu0 %v10108
    %10357 = vmatprep.subr.bf16.mxu0 0
    %10358 = vmatpush2.bf16.msra.mxu0 %v10107
    %10359 = vmatprep.subr.bf16.mxu0 0
    %10360 = vmatpush2.bf16.msra.mxu0 %v10106
    %10361 = vmatprep.subr.bf16.mxu0 0
    %10362 = vmatpush2.bf16.msra.mxu0 %v10105
    %10363 = vmatprep.subr.bf16.mxu0 0
    %10364 = vmatpush2.bf16.msra.mxu0 %v10104
    %10365 = vmatprep.subr.bf16.mxu0 0
    %10366 = vmatpush2.bf16.msra.mxu0 %v10103
    %10367 = vmatprep.mubr.bf16.mxu0 %v9448
    %10368 = vmatmul.mubr.bf16.gmra.mxu0 %v9447
    %v10369 = vpop.f32.mrf.mxu0
    %v10370 = vadd.f32 %v10329, %v10369
    %v10371 = vpop.f32.mrf.mxu0
    %v10372 = vpop.f32.mrf.mxu0
    %v10373 = vadd.f32 %v10332, %v10372
    %v10374 = vpop.f32.mrf.mxu0
    %10375 = vdwg.mxu0
    %10376 = vmatprep.subr.bf16.mxu0 0
    %10377 = vmatpush1.bf16.msra.mxu0 %v10118
    %10378 = vmatprep.subr.bf16.mxu0 0
    %10379 = vmatpush1.bf16.msra.mxu0 %v10117
    %10380 = vmatprep.subr.bf16.mxu0 0
    %10381 = vmatpush1.bf16.msra.mxu0 %v10116
    %10382 = vmatprep.subr.bf16.mxu0 0
    %10383 = vmatpush1.bf16.msra.mxu0 %v10115
    %10384 = vmatprep.subr.bf16.mxu0 0
    %10385 = vmatpush1.bf16.msra.mxu0 %v10114
    %10386 = vmatprep.subr.bf16.mxu0 0
    %10387 = vmatpush1.bf16.msra.mxu0 %v10113
    %10388 = vmatprep.subr.bf16.mxu0 0
    %10389 = vmatpush1.bf16.msra.mxu0 %v10112
    %10390 = vmatprep.subr.bf16.mxu0 0
    %10391 = vmatpush1.bf16.msra.mxu0 %v10111
    %10392 = vmatprep.subr.bf16.mxu0 0
    %10393 = vmatpush2.bf16.msra.mxu0 %v10126
    %10394 = vmatprep.subr.bf16.mxu0 0
    %10395 = vmatpush2.bf16.msra.mxu0 %v10125
    %10396 = vmatprep.subr.bf16.mxu0 0
    %10397 = vmatpush2.bf16.msra.mxu0 %v10124
    %10398 = vmatprep.subr.bf16.mxu0 0
    %10399 = vmatpush2.bf16.msra.mxu0 %v10123
    %10400 = vmatprep.subr.bf16.mxu0 0
    %10401 = vmatpush2.bf16.msra.mxu0 %v10122
    %10402 = vmatprep.subr.bf16.mxu0 0
    %10403 = vmatpush2.bf16.msra.mxu0 %v10121
    %10404 = vmatprep.subr.bf16.mxu0 0
    %10405 = vmatpush2.bf16.msra.mxu0 %v10120
    %10406 = vmatprep.subr.bf16.mxu0 0
    %10407 = vmatpush2.bf16.msra.mxu0 %v10119
    %10408 = vmatprep.mubr.bf16.mxu0 %v9450
    %10409 = vmatmul.mubr.bf16.gmra.mxu0 %v9449
    %v10410 = vpop.f32.mrf.mxu0
    %v10411 = vadd.f32 %v10370, %v10410
    %v10412 = vpop.f32.mrf.mxu0
    %v10413 = vpop.f32.mrf.mxu0
    %v10414 = vadd.f32 %v10373, %v10413
    %v10415 = vpop.f32.mrf.mxu0
    %10416 = vdwg.mxu0
    %10417 = vmatprep.subr.bf16.mxu0 0
    %10418 = vmatpush1.bf16.msra.mxu0 %v10134
    %10419 = vmatprep.subr.bf16.mxu0 0
    %10420 = vmatpush1.bf16.msra.mxu0 %v10133
    %10421 = vmatprep.subr.bf16.mxu0 0
    %10422 = vmatpush1.bf16.msra.mxu0 %v10132
    %10423 = vmatprep.subr.bf16.mxu0 0
    %10424 = vmatpush1.bf16.msra.mxu0 %v10131
    %10425 = vmatprep.subr.bf16.mxu0 0
    %10426 = vmatpush1.bf16.msra.mxu0 %v10130
    %10427 = vmatprep.subr.bf16.mxu0 0
    %10428 = vmatpush1.bf16.msra.mxu0 %v10129
    %10429 = vmatprep.subr.bf16.mxu0 0
    %10430 = vmatpush1.bf16.msra.mxu0 %v10128
    %10431 = vmatprep.subr.bf16.mxu0 0
    %10432 = vmatpush1.bf16.msra.mxu0 %v10127
    %10433 = vmatprep.subr.bf16.mxu0 0
    %10434 = vmatpush2.bf16.msra.mxu0 %v10142
    %10435 = vmatprep.subr.bf16.mxu0 0
    %10436 = vmatpush2.bf16.msra.mxu0 %v10141
    %10437 = vmatprep.subr.bf16.mxu0 0
    %10438 = vmatpush2.bf16.msra.mxu0 %v10140
    %10439 = vmatprep.subr.bf16.mxu0 0
    %10440 = vmatpush2.bf16.msra.mxu0 %v10139
    %10441 = vmatprep.subr.bf16.mxu0 0
    %10442 = vmatpush2.bf16.msra.mxu0 %v10138
    %10443 = vmatprep.subr.bf16.mxu0 0
    %10444 = vmatpush2.bf16.msra.mxu0 %v10137
    %10445 = vmatprep.subr.bf16.mxu0 0
    %10446 = vmatpush2.bf16.msra.mxu0 %v10136
    %10447 = vmatprep.subr.bf16.mxu0 0
    %10448 = vmatpush2.bf16.msra.mxu0 %v10135
    %10449 = vmatprep.mubr.bf16.mxu0 %v9452
    %10450 = vmatmul.mubr.bf16.gmra.mxu0 %v9451
    %v10451 = vpop.f32.mrf.mxu0
    %v10452 = vadd.f32 %v10411, %v10451
    %v10453 = vpop.f32.mrf.mxu0
    %v10454 = vpop.f32.mrf.mxu0
    %v10455 = vadd.f32 %v10414, %v10454
    %v10456 = vpop.f32.mrf.mxu0
    %10457 = vdwg.mxu0
    %10458 = vmatprep.subr.bf16.mxu0 0
    %10459 = vmatpush1.bf16.msra.mxu0 %v10150
    %10460 = vmatprep.subr.bf16.mxu0 0
    %10461 = vmatpush1.bf16.msra.mxu0 %v10149
    %10462 = vmatprep.subr.bf16.mxu0 0
    %10463 = vmatpush1.bf16.msra.mxu0 %v10148
    %10464 = vmatprep.subr.bf16.mxu0 0
    %10465 = vmatpush1.bf16.msra.mxu0 %v10147
    %10466 = vmatprep.subr.bf16.mxu0 0
    %10467 = vmatpush1.bf16.msra.mxu0 %v10146
    %10468 = vmatprep.subr.bf16.mxu0 0
    %10469 = vmatpush1.bf16.msra.mxu0 %v10145
    %10470 = vmatprep.subr.bf16.mxu0 0
    %10471 = vmatpush1.bf16.msra.mxu0 %v10144
    %10472 = vmatprep.subr.bf16.mxu0 0
    %10473 = vmatpush1.bf16.msra.mxu0 %v10143
    %10474 = vmatprep.subr.bf16.mxu0 0
    %10475 = vmatpush2.bf16.msra.mxu0 %v10158
    %10476 = vmatprep.subr.bf16.mxu0 0
    %10477 = vmatpush2.bf16.msra.mxu0 %v10157
    %10478 = vmatprep.subr.bf16.mxu0 0
    %10479 = vmatpush2.bf16.msra.mxu0 %v10156
    %10480 = vmatprep.subr.bf16.mxu0 0
    %10481 = vmatpush2.bf16.msra.mxu0 %v10155
    %10482 = vmatprep.subr.bf16.mxu0 0
    %10483 = vmatpush2.bf16.msra.mxu0 %v10154
    %10484 = vmatprep.subr.bf16.mxu0 0
    %10485 = vmatpush2.bf16.msra.mxu0 %v10153
    %10486 = vmatprep.subr.bf16.mxu0 0
    %10487 = vmatpush2.bf16.msra.mxu0 %v10152
    %10488 = vmatprep.subr.bf16.mxu0 0
    %10489 = vmatpush2.bf16.msra.mxu0 %v10151
    %10490 = vmatprep.mubr.bf16.mxu0 %v9454
    %10491 = vmatmul.mubr.bf16.gmra.mxu0 %v9453
    %v10492 = vpop.f32.mrf.mxu0
    %v10493 = vadd.f32 %v10452, %v10492
    %v10494 = vpop.f32.mrf.mxu0
    %v10495 = vpop.f32.mrf.mxu0
    %v10496 = vadd.f32 %v10455, %v10495
    %v10497 = vpop.f32.mrf.mxu0
    %10498 = vdwg.mxu0
    %10499 = vmatprep.subr.bf16.mxu0 0
    %10500 = vmatpush1.bf16.msra.mxu0 %v10166
    %10501 = vmatprep.subr.bf16.mxu0 0
    %10502 = vmatpush1.bf16.msra.mxu0 %v10165
    %10503 = vmatprep.subr.bf16.mxu0 0
    %10504 = vmatpush1.bf16.msra.mxu0 %v10164
    %10505 = vmatprep.subr.bf16.mxu0 0
    %10506 = vmatpush1.bf16.msra.mxu0 %v10163
    %10507 = vmatprep.subr.bf16.mxu0 0
    %10508 = vmatpush1.bf16.msra.mxu0 %v10162
    %10509 = vmatprep.subr.bf16.mxu0 0
    %10510 = vmatpush1.bf16.msra.mxu0 %v10161
    %10511 = vmatprep.subr.bf16.mxu0 0
    %10512 = vmatpush1.bf16.msra.mxu0 %v10160
    %10513 = vmatprep.subr.bf16.mxu0 0
    %10514 = vmatpush1.bf16.msra.mxu0 %v10159
    %10515 = vmatprep.subr.bf16.mxu0 0
    %10516 = vmatpush2.bf16.msra.mxu0 %v10174
    %10517 = vmatprep.subr.bf16.mxu0 0
    %10518 = vmatpush2.bf16.msra.mxu0 %v10173
    %10519 = vmatprep.subr.bf16.mxu0 0
    %10520 = vmatpush2.bf16.msra.mxu0 %v10172
    %10521 = vmatprep.subr.bf16.mxu0 0
    %10522 = vmatpush2.bf16.msra.mxu0 %v10171
    %10523 = vmatprep.subr.bf16.mxu0 0
    %10524 = vmatpush2.bf16.msra.mxu0 %v10170
    %10525 = vmatprep.subr.bf16.mxu0 0
    %10526 = vmatpush2.bf16.msra.mxu0 %v10169
    %10527 = vmatprep.subr.bf16.mxu0 0
    %10528 = vmatpush2.bf16.msra.mxu0 %v10168
    %10529 = vmatprep.subr.bf16.mxu0 0
    %10530 = vmatpush2.bf16.msra.mxu0 %v10167
    %10531 = vmatprep.mubr.bf16.mxu0 %v9456
    %10532 = vmatmul.mubr.bf16.gmra.mxu0 %v9455
    %v10533 = vpop.f32.mrf.mxu0
    %v10534 = vadd.f32 %v10493, %v10533
    %v10535 = vpop.f32.mrf.mxu0
    %v10536 = vpop.f32.mrf.mxu0
    %v10537 = vadd.f32 %v10496, %v10536
    %v10538 = vpop.f32.mrf.mxu0
    %10539 = vdwg.mxu0
    %10540 = vmatprep.subr.bf16.mxu0 0
    %10541 = vmatpush1.bf16.msra.mxu0 %v10292
    %10542 = vmatprep.subr.bf16.mxu0 0
    %10543 = vmatpush1.bf16.msra.mxu0 %v10181
    %10544 = vmatprep.subr.bf16.mxu0 0
    %10545 = vmatpush1.bf16.msra.mxu0 %v10180
    %10546 = vmatprep.subr.bf16.mxu0 0
    %10547 = vmatpush1.bf16.msra.mxu0 %v10179
    %10548 = vmatprep.subr.bf16.mxu0 0
    %10549 = vmatpush1.bf16.msra.mxu0 %v10178
    %10550 = vmatprep.subr.bf16.mxu0 0
    %10551 = vmatpush1.bf16.msra.mxu0 %v10177
    %10552 = vmatprep.subr.bf16.mxu0 0
    %10553 = vmatpush1.bf16.msra.mxu0 %v10176
    %10554 = vmatprep.subr.bf16.mxu0 0
    %10555 = vmatpush1.bf16.msra.mxu0 %v10175
    %10556 = vmatprep.subr.bf16.mxu0 0
    %10557 = vmatpush2.bf16.msra.mxu0 0
    %10558 = vmatprep.subr.bf16.mxu0 0
    %10559 = vmatpush2.bf16.msra.mxu0 0
    %10560 = vmatprep.subr.bf16.mxu0 0
    %10561 = vmatpush2.bf16.msra.mxu0 0
    %10562 = vmatprep.subr.bf16.mxu0 0
    %10563 = vmatpush2.bf16.msra.mxu0 0
    %10564 = vmatprep.subr.bf16.mxu0 0
    %10565 = vmatpush2.bf16.msra.mxu0 0
    %10566 = vmatprep.subr.bf16.mxu0 0
    %10567 = vmatpush2.bf16.msra.mxu0 0
    %10568 = vmatprep.subr.bf16.mxu0 0
    %10569 = vmatpush2.bf16.msra.mxu0 0
    %10570 = vmatprep.subr.bf16.mxu0 0
    %10571 = vmatpush2.bf16.msra.mxu0 0
    %10572 = vmatprep.mubr.bf16.mxu0 0
    %10573 = vmatmul.mubr.bf16.gmra.mxu0 %v10288
    %v10574 = vpop.f32.mrf.mxu0
    %v10575 = vadd.f32 %v10534, %v10574
    %v10576 = vpop.f32.mrf.mxu0
    %v10577 = vpop.f32.mrf.mxu0
    %v10578 = vadd.f32 %v10537, %v10577
    %v10579 = vpop.f32.mrf.mxu0
    %10580 = vdwg.mxu0
    %v10581 = vmul.f32 %v10575, 0.013333334
    %v10582 = vmul.f32 %v10578, 0.013333334
    %v10583 = vmax.f32 %v10581, 1e-06
    %v10584 = vmax.f32 %v10582, 1e-06
    %v10585 = vlog2.pop %v10583
    %v10586 = vmul.f32 %v10585, 0.6931472
    %v10587 = vlog2.pop %v10584
    %v10588 = vmul.f32 %v10587, 0.6931472
    %v10589 = vld [vmem:[%s4] sm:$0xff]
    %v10590 = vld [vmem:[%s4 + $0x8] sm:$0xff]
    %v10591 = vld [vmem:[%s4 + $0x10] sm:$0xff]
    %v10592 = vld [vmem:[%s4 + $0x18] sm:$0xff]
    %v10593 = vld [vmem:[%s4 + $0x20] sm:$0xff]
    %v10594 = vld [vmem:[%s4 + $0x28] sm:$0xff]
    %v10595 = vld [vmem:[%s4 + $0x30] sm:$0xff]
    %v10596 = vld [vmem:[%s4 + $0x38] sm:$0xff]
    %v10597 = vld [vmem:[%s4 + $0x40] sm:$0x3f]
    %v10598 = vld [vmem:[#allocation8] sm:$0x1]
    %v10600 = vlaneseq
    %v10601 = vshrl.u32 %v10600, 7
    %v10602 = vsub.s32 0, %v10601
    %v10603 = vrot.slane %v10598, %v10602
    %vm10605 = vcmask 572416
    %v10607 = vsel %vm10605, %v10586, 0
    %v10610 = vsel %vm10605, %v10588, 0
    %vm10612 = vcmask 1045504
    %v10614 = vsel %vm10612, %v10597, 0
    %10616 = vmatprep.subr.mxu0 0.0
    %10617 = vmatpush1.msra.mxu0 0.0
    %10618 = vmatprep.subr.mxu0 0.0
    %10619 = vmatpush1.msra.mxu0 0.0
    %10620 = vmatprep.subr.mxu0 0.0
    %10621 = vmatpush1.msra.mxu0 0.0
    %10622 = vmatprep.subr.mxu0 0.0
    %10623 = vmatpush1.msra.mxu0 0.0
    %10624 = vmatprep.subr.mxu0 0.0
    %10625 = vmatpush1.msra.mxu0 0.0
    %10626 = vmatprep.subr.mxu0 0.0
    %10627 = vmatpush1.msra.mxu0 0.0
    %10628 = vmatprep.subr.mxu0 0.0
    %10629 = vmatpush1.msra.mxu0 0.0
    %10630 = vmatprep.subr.mxu0 0.0
    %10631 = vmatpush1.msra.mxu0 %v10614
    %10632 = vmatprep.subr.mxu0 0.0
    %10633 = vmatpush1.msra.mxu0 %v10596
    %10634 = vmatprep.subr.mxu0 0.0
    %10635 = vmatpush1.msra.mxu0 %v10595
    %10636 = vmatprep.subr.mxu0 0.0
    %10637 = vmatpush1.msra.mxu0 %v10594
    %10638 = vmatprep.subr.mxu0 0.0
    %10639 = vmatpush1.msra.mxu0 %v10593
    %10640 = vmatprep.subr.mxu0 0.0
    %10641 = vmatpush1.msra.mxu0 %v10592
    %10642 = vmatprep.subr.mxu0 0.0
    %10643 = vmatpush1.msra.mxu0 %v10591
    %10644 = vmatprep.subr.mxu0 0.0
    %10645 = vmatpush1.msra.mxu0 %v10590
    %10646 = vmatprep.subr.mxu0 0.0
    %10647 = vmatpush1.msra.mxu0 %v10589
    %10648 = vmatprep.subr.mxu0 0.0
    %10649 = vmatpush2.msra.mxu0 0.0
    %10650 = vmatprep.subr.mxu0 0.0
    %10651 = vmatpush2.msra.mxu0 0.0
    %10652 = vmatprep.subr.mxu0 0.0
    %10653 = vmatpush2.msra.mxu0 0.0
    %10654 = vmatprep.subr.mxu0 0.0
    %10655 = vmatpush2.msra.mxu0 0.0
    %10656 = vmatprep.subr.mxu0 0.0
    %10657 = vmatpush2.msra.mxu0 0.0
    %10658 = vmatprep.subr.mxu0 0.0
    %10659 = vmatpush2.msra.mxu0 0.0
    %10660 = vmatprep.subr.mxu0 0.0
    %10661 = vmatpush2.msra.mxu0 0.0
    %10662 = vmatprep.subr.mxu0 0.0
    %10663 = vmatpush2.msra.mxu0 0.0
    %10664 = vmatprep.subr.mxu0 0.0
    %10665 = vmatpush2.msra.mxu0 0.0
    %10666 = vmatprep.subr.mxu0 0.0
    %10667 = vmatpush2.msra.mxu0 0.0
    %10668 = vmatprep.subr.mxu0 0.0
    %10669 = vmatpush2.msra.mxu0 0.0
    %10670 = vmatprep.subr.mxu0 0.0
    %10671 = vmatpush2.msra.mxu0 0.0
    %10672 = vmatprep.subr.mxu0 0.0
    %10673 = vmatpush2.msra.mxu0 0.0
    %10674 = vmatprep.subr.mxu0 0.0
    %10675 = vmatpush2.msra.mxu0 0.0
    %10676 = vmatprep.subr.mxu0 0.0
    %10677 = vmatpush2.msra.mxu0 0.0
    %10678 = vmatprep.subr.mxu0 0.0
    %10679 = vmatpush2.msra.mxu0 0.0
    %10680 = vmatprep.mubr.f32.mxu0 0.0
    %10681 = vmatmul.mubr.f32.gmra.mxu0 %v10607
    %v10682 = vpop.f32.mrf.mxu0
    %v10683 = vadd.f32 %v10603, %v10682
    %v10684 = vpop.f32.mrf.mxu0
    %10685 = vmatprep.mubr.f32.mxu0 0.0
    %10686 = vmatmul.mubr.f32.gmra.mxu0 %v10610
    %v10687 = vpop.f32.mrf.mxu0
    %v10688 = vadd.f32 %v10603, %v10687
    %v10689 = vpop.f32.mrf.mxu0
    %10690 = vdwg.mxu0
    %vm10691 = vcmask 31744
    %v10692 = vsel %vm10691, %v10683, -inf
    %10693 = vmax.xlane.f32.xlu0 %v10692
    %v10694 = vpop.xlane.xlu0 %10693
    %v10695 = vsel %vm10691, %v10688, -inf
    %10696 = vmax.xlane.f32.xlu0 %v10695
    %v10697 = vpop.xlane.xlu0 %10696
    %v10698 = vsub.f32 %v10683, %v10694
    %v10699 = vsub.f32 %v10688, %v10697
    %v10700 = vmul.f32 %v10698, 1.442695
    %v10701 = vpow.pop %v10700
    %v10702 = vmul.f32 %v10699, 1.442695
    %v10703 = vpow.pop %v10702
    %v10704 = vsel %vm10691, %v10701, 0.0
    %10705 = vadd.xlane.f32.xlu0 %v10704
    %v10706 = vpop.xlane.xlu0 %10705
    %v10707 = vsel %vm10691, %v10703, 0.0
    %10708 = vadd.xlane.f32.xlu0 %v10707
    %v10709 = vpop.xlane.xlu0 %10708
    %v10710 = vlog2.pop %v10706
    %v10711 = vmul.f32 %v10710, 0.6931472
    %v10712 = vlog2.pop %v10709
    %v10713 = vmul.f32 %v10712, 0.6931472
    %v10714 = vadd.f32 %v10694, %v10711
    %v10715 = vadd.f32 %v10697, %v10713
    %v10716 = vsub.f32 %v10683, %v10714
    %v10717 = vsub.f32 %v10688, %v10715
    %10718 = vxpose.xlu0.b32.start [1/16] %v10716, 128
    %10719 = vxpose.xlu0.b32.cont [2/16] %v10717, 128
    %10720 = vxpose.xlu0.b32.cont [3/16] 0.0, 128
    %10721 = vxpose.xlu0.b32.cont [4/16] 0.0, 128
    %10722 = vxpose.xlu0.b32.cont [5/16] 0.0, 128
    %10723 = vxpose.xlu0.b32.cont [6/16] 0.0, 128
    %10724 = vxpose.xlu0.b32.cont [7/16] 0.0, 128
    %10725 = vxpose.xlu0.b32.cont [8/16] 0.0, 128
    %10726 = vxpose.xlu0.b32.cont [9/16] 0.0, 128
    %10727 = vxpose.xlu0.b32.cont [10/16] 0.0, 128
    %10728 = vxpose.xlu0.b32.cont [11/16] 0.0, 128
    %10729 = vxpose.xlu0.b32.cont [12/16] 0.0, 128
    %10730 = vxpose.xlu0.b32.cont [13/16] 0.0, 128
    %10731 = vxpose.xlu0.b32.cont [14/16] 0.0, 128
    %10732 = vxpose.xlu0.b32.cont [15/16] 0.0, 128
    %10733 = vxpose.xlu0.b32.end [16/16] 0.0, 128
    %v10734 = vpop.trf.xlu0
    %v10735 = vpop.trf.xlu0
    %v10736 = vpop.trf.xlu0
    %v10737 = vpop.trf.xlu0
    %v10738 = vpop.trf.xlu0
    %v10739 = vpop.trf.xlu0
    %v10740 = vpop.trf.xlu0
    %v10741 = vpop.trf.xlu0
    %v10742 = vpop.trf.xlu0
    %v10743 = vpop.trf.xlu0
    %v10744 = vpop.trf.xlu0
    %v10745 = vpop.trf.xlu0
    %v10746 = vpop.trf.xlu0
    %v10747 = vpop.trf.xlu0
    %v10748 = vpop.trf.xlu0
    %v10749 = vpop.trf.xlu0
    %vm10750 = vcmask 125952
    %10751 = vst.msk [vmem:[#allocation10] sm:$0xf] %vm10750, %v10734
    // Predicated region
    $region42: #{tpu_custom_call.1} parent=1 // pred_check
      _
    $region43: #{tpu_custom_call.1} parent=1 // pred_check_branch
      %10753 = sbr.rel (0) target = $region45
    $region44: #{tpu_custom_call.1} parent=1 // pred_region
      %s10755 = ssub.s32 64, 64
      %10756 = vsyncadd [#allocation4], %s10755
      %s10758 = sshll.u32 [#allocation10], 4
      %s10759 = int_to_ptr.vmem [resolvable:$true] %s10758
      %10761 = dma.vmem_to_hbm [thread:$0]  %s10759, 64, %s6, [#allocation4]
    $region45: #{tpu_custom_call.1} parent=1 // pred_fallthru
      _
    // Predicated region
    $region46: #{tpu_custom_call.1} parent=1 // pred_check
      _
    $region47: #{tpu_custom_call.1} parent=1 // pred_check_branch
      %10763 = sbr.rel (0) target = $region49
    $region48: #{tpu_custom_call.1} parent=1 // pred_region
      %10764 = dma.done [#allocation4], 64
    $region49: #{tpu_custom_call.1} parent=1 // pred_fallthru
      _
    %10765 = vsyncpa [#allocation3], 1
    %10766 = vsyncpa [#allocation6], 1
    %10767 = vsyncpa [#allocation9], 1
    %10768 = vsyncpa [#allocation4], 1

</llo_original>
